<compile_context>
chip_gen: v7x
topology: tpu7x:2x2x1
jax: 0.10.0
libtpu: 0.0.40
codegen_flags: <defaults>
</compile_context>

<pallas_src>
import functools

import jax
import jax.numpy as jnp
import numpy as np
from jax.experimental import pallas as pl
from jax.experimental.pallas import tpu as pltpu


# ---------------------------------------------------------------------------
# Pallas kernels
# ---------------------------------------------------------------------------
def _conv_pool_relu_kernel(p_ref, w_ref, b_ref, o_ref, *, n_win):
    """Fused conv (matmul over pre-gathered patches) + bias + maxpool + ReLU.

    p_ref : (n_win, R, K) bf16 — slot i = im2col patch of the i-th conv
            position inside each pooled pixel's pool window (out-of-range
            positions are clamped duplicates of valid ones -> max unchanged).
    w_ref : (K, Cout) bf16 ; b_ref : (1, Cout) f32 ; o_ref : (R, Cout) f32.
    """
    w = w_ref[...]
    best = None
    for i in range(n_win):                      # static unroll: 16 clean 2-D MXU dots
        y = jnp.dot(p_ref[i], w, preferred_element_type=jnp.float32)
        best = y if best is None else jnp.maximum(best, y)
    # max_i(patch_i @ W) + b == max_i(patch_i @ W + b); ReLU follows the pool.
    o_ref[...] = jnp.maximum(best + b_ref[...], 0.0)


def _mlp_softmax_kernel(x_ref, w1_ref, b1_ref, w2_ref, b2_ref, w3_ref, b3_ref,
                        o_ref):
    """ln1+ReLU -> ln2+ReLU -> ln3+ReLU -> softmax, fully VMEM-resident."""
    h = jnp.dot(x_ref[...], w1_ref[...], preferred_element_type=jnp.float32)
    h = jnp.maximum(h + b1_ref[...], 0.0)
    h = jnp.dot(h.astype(jnp.bfloat16), w2_ref[...],
                preferred_element_type=jnp.float32)
    h = jnp.maximum(h + b2_ref[...], 0.0)
    z = jnp.dot(h.astype(jnp.bfloat16), w3_ref[...],
                preferred_element_type=jnp.float32)
    z = jnp.maximum(z + b3_ref[...], 0.0)       # reference module ReLUs the logits
    m = jnp.max(z, axis=-1, keepdims=True)
    e = jnp.exp(z - m)
    o_ref[...] = e / jnp.sum(e, axis=-1, keepdims=True)


# ---------------------------------------------------------------------------
# pallas_call wrappers
# ---------------------------------------------------------------------------
def _pick_row_block(R, max_rows=512):
    """Largest multiple-of-8 divisor of R that is <= max_rows, else R."""
    if R <= max_rows:
        return R
    for rb in range(max_rows - max_rows % 8, 7, -8):
        if R % rb == 0:
            return rb
    return R


def _conv_pool_call(grouped, wm, b2):
    n_win, R, K = grouped.shape
    _, Cout = wm.shape
    rb = _pick_row_block(R)                     # kept <= 512 rows: fits v7x 64MiB VMEM
    kern = functools.partial(_conv_pool_relu_kernel, n_win=n_win)
    return pl.pallas_call(
        kern,
        out_shape=jax.ShapeDtypeStruct((R, Cout), jnp.float32),
        grid=(R // rb,),
        in_specs=[
            pl.BlockSpec((n_win, rb, K), lambda i: (0, i, 0)),
            pl.BlockSpec((K, Cout), lambda i: (0, 0)),
            pl.BlockSpec((1, Cout), lambda i: (0, 0)),
        ],
        out_specs=pl.BlockSpec((rb, Cout), lambda i: (i, 0)),
        compiler_params=pltpu.CompilerParams(
            dimension_semantics=("parallel",)),  # shard pooled rows across TCs (v7x)
    )(grouped, wm, b2)


def mlp_softmax(x, w1, b1, w2, b2, w3, b3):
    B, N = x.shape[0], w3.shape[1]
    specs = [pl.BlockSpec(a.shape, lambda i: (0, 0))
             for a in (x, w1, b1, w2, b2, w3, b3)]
    return pl.pallas_call(
        _mlp_softmax_kernel,
        out_shape=jax.ShapeDtypeStruct((B, N), jnp.float32),
        grid=(1,),
        in_specs=specs,
        out_specs=pl.BlockSpec((B, N), lambda i: (0, 0)),
    )(x, w1, b1, w2, b2, w3, b3)


# ---------------------------------------------------------------------------
# Layout glue (pure, static-index XLA ops outside the kernels)
# ---------------------------------------------------------------------------
def _im2col_nhwc(x, k):
    """x: (B, H, W, C) already conv-padded -> (B, OH, OW, C*k*k).
    Patch column order is (c, dy, dx), matching torch w.reshape(Cout, -1)."""
    B, H, W, C = x.shape
    OH, OW = H - k + 1, W - k + 1
    cols = [x[:, dy:dy + OH, dx:dx + OW, :] for dy in range(k) for dx in range(k)]
    p = jnp.stack(cols, axis=-1)                # (B, OH, OW, C, k*k)
    return p.reshape(B, OH, OW, C * k * k)


def _pool_grouped_patches(patches, pool_k, pool_pad):
    """(B, OH, OW, K) -> (pool_k**2, B*PH*PW, K), grouped by pool window.

    Out-of-range conv positions (pool padding / floor mode) are clamped to a
    valid conv position inside the same window; MaxPool ignores padding and a
    clamped entry duplicates an existing window member, so the max is intact.
    """
    B, OH, OW, K = patches.shape
    PH = (OH + 2 * pool_pad - pool_k) // pool_k + 1
    PW = (OW + 2 * pool_pad - pool_k) // pool_k + 1
    groups = []
    for wy in range(pool_k):
        oy = np.clip(np.arange(PH) * pool_k + wy - pool_pad, 0, OH - 1)
        for wx in range(pool_k):
            ox = np.clip(np.arange(PW) * pool_k + wx - pool_pad, 0, OW - 1)
            g = patches[:, oy][:, :, ox]        # (B, PH, PW, K), static indices
            groups.append(g.reshape(B * PH * PW, K))
    return jnp.stack(groups, axis=0), (B, PH, PW)


def _pad_last_to(x, mult):
    pad = (-x.shape[-1]) % mult
    if pad:
        x = jnp.pad(x, [(0, 0)] * (x.ndim - 1) + [(0, pad)])
    return x


def conv_pool_relu_stage(x_nhwc, w, b, *, conv_pad, pool_k, pool_pad):
    """PyTorch Conv2d(stride 1) + MaxPool2d + ReLU fused into one Pallas call.
    x_nhwc: (B, H, W, Cin) f32 ; w: (Cout, Cin, kh, kw) ; b: (Cout,).
    Returns channels-last activations (B, PH, PW, Cout) f32."""
    Cout, Cin, kh, kw = w.shape
    if conv_pad:
        x_nhwc = jnp.pad(x_nhwc, ((0, 0), (conv_pad, conv_pad),
                                  (conv_pad, conv_pad), (0, 0)))
    # TODO(synk): patch gathering stays host-side (XLA); true in-kernel im2col
    # would need in-kernel reshapes of strided slices — revisit for large B.
    patches = _im2col_nhwc(x_nhwc, kh)                       # (B, OH, OW, K)
    grouped, (B, PH, PW) = _pool_grouped_patches(patches, pool_k, pool_pad)
    grouped = _pad_last_to(grouped, 128).astype(jnp.bfloat16)
    Kp = grouped.shape[-1]
    wm = w.reshape(Cout, Cin * kh * kw).T                    # (K, Cout)
    wm = jnp.pad(wm, ((0, Kp - wm.shape[0]), (0, 0))).astype(jnp.bfloat16)
    out = _conv_pool_call(grouped, wm, b.reshape(1, Cout).astype(jnp.float32))
    return out.reshape(B, PH, PW, Cout)


# ---------------------------------------------------------------------------
# Parameters (deterministic, PyTorch-default-style uniform init)
# ---------------------------------------------------------------------------
def init_params(key):
    def uni(k, shape, fan_in):
        bound = 1.0 / float(fan_in) ** 0.5
        return jax.random.uniform(k, shape, jnp.float32, -bound, bound)

    ks = jax.random.split(key, 10)
    return {
        "conv1_w": uni(ks[0], (64, 3, 4, 4), 3 * 4 * 4),
        "conv1_b": uni(ks[1], (64,), 3 * 4 * 4),
        "conv2_w": uni(ks[2], (64, 64, 4, 4), 64 * 4 * 4),
        "conv2_b": uni(ks[3], (64,), 64 * 4 * 4),
        # Linear weights stored as (in, out), input dim in torch-Flatten order.
        "ln1_w": uni(ks[4], (256, 256), 256),
        "ln1_b": uni(ks[5], (256,), 256),
        "ln2_w": uni(ks[6], (256, 64), 256),
        "ln2_b": uni(ks[7], (64,), 256),
        "ln3_w": uni(ks[8], (64, 10), 64),
        "ln3_b": uni(ks[9], (10,), 64),
    }


# ---------------------------------------------------------------------------
# Full forward pass (mirrors Conv.forward exactly)
# ---------------------------------------------------------------------------
def conv_forward(params, x):
    # NCHW -> NHWC once at the external boundary; channels-last inside.
    x = jnp.transpose(x, (0, 2, 3, 1))
    x = conv_pool_relu_stage(x, params["conv1_w"], params["conv1_b"],
                             conv_pad=2, pool_k=4, pool_pad=0)    # (B, 8, 8, 64)
    x = conv_pool_relu_stage(x, params["conv2_w"], params["conv2_b"],
                             conv_pad=0, pool_k=4, pool_pad=2)    # (B, 2, 2, 64)
    B, PH, PW, C = x.shape
    x = x.reshape(B, PH * PW * C).astype(jnp.bfloat16)            # cols = (py, px, c)
    # Reorder ln1's input rows from torch Flatten order (c, py, px) to ours
    # instead of transposing the activations back to NCHW.
    j = np.arange(PH * PW * C)
    perm = (j % C) * (PH * PW) + j // C
    w1 = params["ln1_w"][perm].astype(jnp.bfloat16)
    return mlp_softmax(
        x,
        w1, params["ln1_b"].reshape(1, -1),
        params["ln2_w"].astype(jnp.bfloat16), params["ln2_b"].reshape(1, -1),
        params["ln3_w"].astype(jnp.bfloat16), params["ln3_b"].reshape(1, -1),
    )


if __name__ == "__main__":
    key = jax.random.PRNGKey(0)
    pkey, xkey = jax.random.split(key)
    params = init_params(pkey)
    x = jax.random.normal(xkey, (2, 3, 32, 32), dtype=jnp.float32)

    out = jax.jit(conv_forward)(params, x)
    out = jax.block_until_ready(out)

    assert out.shape == (2, 10), out.shape
    assert bool(jnp.all(jnp.isfinite(out)))
    assert bool(jnp.allclose(jnp.sum(out, axis=1), 1.0, atol=1e-5))
    print("KERNEL_OK")
</pallas_src>

<mosaic_0001>
module attributes {stable_mosaic.version = 11 : i64} {
  func.func @_conv_pool_relu_kernel(%arg0: i32, %arg1: memref<16x128x128xbf16, #tpu.memory_space<vmem>>, %arg2: memref<128x64xbf16, #tpu.memory_space<vmem>>, %arg3: memref<1x64xf32, #tpu.memory_space<vmem>>, %arg4: memref<128x64xf32, #tpu.memory_space<vmem>>) attributes {dimension_semantics = [#tpu.dimension_semantics<parallel>], iteration_bounds = array<i64: 1>, scalar_prefetch = 0 : i64, scratch_operands = 0 : i64, tpu.core_type = #tpu.core_type<tc>, window_params = [{transform_indices = @transform_0, window_bounds = array<i64: 16, 128, 128>}, {pipeline_mode = #tpu.pipeline_mode<synchronous>, transform_indices = @transform_1, window_bounds = array<i64: 128, 64>}, {pipeline_mode = #tpu.pipeline_mode<synchronous>, transform_indices = @transform_2, window_bounds = array<i64: 1, 64>}, {transform_indices = @transform_3, window_bounds = array<i64: 128, 64>}]} {
    %c0 = arith.constant 0 : index
    %c0_0 = arith.constant 0 : index
    %0 = vector.load %arg2[%c0, %c0_0] : memref<128x64xbf16, #tpu.memory_space<vmem>>, vector<128x64xbf16>
    %c0_1 = arith.constant 0 : index
    %c0_2 = arith.constant 0 : index
    %c0_3 = arith.constant 0 : index
    %1 = vector.load %arg1[%c0_1, %c0_2, %c0_3] : memref<16x128x128xbf16, #tpu.memory_space<vmem>>, vector<1x128x128xbf16>
    %2 = vector.shape_cast %1 : vector<1x128x128xbf16> to vector<128x128xbf16>
    %cst = arith.constant dense<0.000000e+00> : vector<128x64xf32>
    %3 = tpu.matmul %2, %0, %cst {dimension_numbers = #tpu.dot_dimension_numbers<[1], [0], [0], [1], [0, 0, 1, 1], [], []>} : vector<128x128xbf16>, vector<128x64xbf16>, vector<128x64xf32> -> vector<128x64xf32>
    %c1 = arith.constant 1 : index
    %c0_4 = arith.constant 0 : index
    %c0_5 = arith.constant 0 : index
    %4 = vector.load %arg1[%c1, %c0_4, %c0_5] : memref<16x128x128xbf16, #tpu.memory_space<vmem>>, vector<1x128x128xbf16>
    %5 = vector.shape_cast %4 : vector<1x128x128xbf16> to vector<128x128xbf16>
    %cst_6 = arith.constant dense<0.000000e+00> : vector<128x64xf32>
    %6 = tpu.matmul %5, %0, %cst_6 {dimension_numbers = #tpu.dot_dimension_numbers<[1], [0], [0], [1], [0, 0, 1, 1], [], []>} : vector<128x128xbf16>, vector<128x64xbf16>, vector<128x64xf32> -> vector<128x64xf32>
    %7 = arith.maximumf %3, %6 : vector<128x64xf32>
    %c2 = arith.constant 2 : index
    %c0_7 = arith.constant 0 : index
    %c0_8 = arith.constant 0 : index
    %8 = vector.load %arg1[%c2, %c0_7, %c0_8] : memref<16x128x128xbf16, #tpu.memory_space<vmem>>, vector<1x128x128xbf16>
    %9 = vector.shape_cast %8 : vector<1x128x128xbf16> to vector<128x128xbf16>
    %cst_9 = arith.constant dense<0.000000e+00> : vector<128x64xf32>
    %10 = tpu.matmul %9, %0, %cst_9 {dimension_numbers = #tpu.dot_dimension_numbers<[1], [0], [0], [1], [0, 0, 1, 1], [], []>} : vector<128x128xbf16>, vector<128x64xbf16>, vector<128x64xf32> -> vector<128x64xf32>
    %11 = arith.maximumf %7, %10 : vector<128x64xf32>
    %c3 = arith.constant 3 : index
    %c0_10 = arith.constant 0 : index
    %c0_11 = arith.constant 0 : index
    %12 = vector.load %arg1[%c3, %c0_10, %c0_11] : memref<16x128x128xbf16, #tpu.memory_space<vmem>>, vector<1x128x128xbf16>
    %13 = vector.shape_cast %12 : vector<1x128x128xbf16> to vector<128x128xbf16>
    %cst_12 = arith.constant dense<0.000000e+00> : vector<128x64xf32>
    %14 = tpu.matmul %13, %0, %cst_12 {dimension_numbers = #tpu.dot_dimension_numbers<[1], [0], [0], [1], [0, 0, 1, 1], [], []>} : vector<128x128xbf16>, vector<128x64xbf16>, vector<128x64xf32> -> vector<128x64xf32>
    %15 = arith.maximumf %11, %14 : vector<128x64xf32>
    %c4 = arith.constant 4 : index
    %c0_13 = arith.constant 0 : index
    %c0_14 = arith.constant 0 : index
    %16 = vector.load %arg1[%c4, %c0_13, %c0_14] : memref<16x128x128xbf16, #tpu.memory_space<vmem>>, vector<1x128x128xbf16>
    %17 = vector.shape_cast %16 : vector<1x128x128xbf16> to vector<128x128xbf16>
    %cst_15 = arith.constant dense<0.000000e+00> : vector<128x64xf32>
    %18 = tpu.matmul %17, %0, %cst_15 {dimension_numbers = #tpu.dot_dimension_numbers<[1], [0], [0], [1], [0, 0, 1, 1], [], []>} : vector<128x128xbf16>, vector<128x64xbf16>, vector<128x64xf32> -> vector<128x64xf32>
    %19 = arith.maximumf %15, %18 : vector<128x64xf32>
    %c5 = arith.constant 5 : index
    %c0_16 = arith.constant 0 : index
    %c0_17 = arith.constant 0 : index
    %20 = vector.load %arg1[%c5, %c0_16, %c0_17] : memref<16x128x128xbf16, #tpu.memory_space<vmem>>, vector<1x128x128xbf16>
    %21 = vector.shape_cast %20 : vector<1x128x128xbf16> to vector<128x128xbf16>
    %cst_18 = arith.constant dense<0.000000e+00> : vector<128x64xf32>
    %22 = tpu.matmul %21, %0, %cst_18 {dimension_numbers = #tpu.dot_dimension_numbers<[1], [0], [0], [1], [0, 0, 1, 1], [], []>} : vector<128x128xbf16>, vector<128x64xbf16>, vector<128x64xf32> -> vector<128x64xf32>
    %23 = arith.maximumf %19, %22 : vector<128x64xf32>
    %c6 = arith.constant 6 : index
    %c0_19 = arith.constant 0 : index
    %c0_20 = arith.constant 0 : index
    %24 = vector.load %arg1[%c6, %c0_19, %c0_20] : memref<16x128x128xbf16, #tpu.memory_space<vmem>>, vector<1x128x128xbf16>
    %25 = vector.shape_cast %24 : vector<1x128x128xbf16> to vector<128x128xbf16>
    %cst_21 = arith.constant dense<0.000000e+00> : vector<128x64xf32>
    %26 = tpu.matmul %25, %0, %cst_21 {dimension_numbers = #tpu.dot_dimension_numbers<[1], [0], [0], [1], [0, 0, 1, 1], [], []>} : vector<128x128xbf16>, vector<128x64xbf16>, vector<128x64xf32> -> vector<128x64xf32>
    %27 = arith.maximumf %23, %26 : vector<128x64xf32>
    %c7 = arith.constant 7 : index
    %c0_22 = arith.constant 0 : index
    %c0_23 = arith.constant 0 : index
    %28 = vector.load %arg1[%c7, %c0_22, %c0_23] : memref<16x128x128xbf16, #tpu.memory_space<vmem>>, vector<1x128x128xbf16>
    %29 = vector.shape_cast %28 : vector<1x128x128xbf16> to vector<128x128xbf16>
    %cst_24 = arith.constant dense<0.000000e+00> : vector<128x64xf32>
    %30 = tpu.matmul %29, %0, %cst_24 {dimension_numbers = #tpu.dot_dimension_numbers<[1], [0], [0], [1], [0, 0, 1, 1], [], []>} : vector<128x128xbf16>, vector<128x64xbf16>, vector<128x64xf32> -> vector<128x64xf32>
    %31 = arith.maximumf %27, %30 : vector<128x64xf32>
    %c8 = arith.constant 8 : index
    %c0_25 = arith.constant 0 : index
    %c0_26 = arith.constant 0 : index
    %32 = vector.load %arg1[%c8, %c0_25, %c0_26] : memref<16x128x128xbf16, #tpu.memory_space<vmem>>, vector<1x128x128xbf16>
    %33 = vector.shape_cast %32 : vector<1x128x128xbf16> to vector<128x128xbf16>
    %cst_27 = arith.constant dense<0.000000e+00> : vector<128x64xf32>
    %34 = tpu.matmul %33, %0, %cst_27 {dimension_numbers = #tpu.dot_dimension_numbers<[1], [0], [0], [1], [0, 0, 1, 1], [], []>} : vector<128x128xbf16>, vector<128x64xbf16>, vector<128x64xf32> -> vector<128x64xf32>
    %35 = arith.maximumf %31, %34 : vector<128x64xf32>
    %c9 = arith.constant 9 : index
    %c0_28 = arith.constant 0 : index
    %c0_29 = arith.constant 0 : index
    %36 = vector.load %arg1[%c9, %c0_28, %c0_29] : memref<16x128x128xbf16, #tpu.memory_space<vmem>>, vector<1x128x128xbf16>
    %37 = vector.shape_cast %36 : vector<1x128x128xbf16> to vector<128x128xbf16>
    %cst_30 = arith.constant dense<0.000000e+00> : vector<128x64xf32>
    %38 = tpu.matmul %37, %0, %cst_30 {dimension_numbers = #tpu.dot_dimension_numbers<[1], [0], [0], [1], [0, 0, 1, 1], [], []>} : vector<128x128xbf16>, vector<128x64xbf16>, vector<128x64xf32> -> vector<128x64xf32>
    %39 = arith.maximumf %35, %38 : vector<128x64xf32>
    %c10 = arith.constant 10 : index
    %c0_31 = arith.constant 0 : index
    %c0_32 = arith.constant 0 : index
    %40 = vector.load %arg1[%c10, %c0_31, %c0_32] : memref<16x128x128xbf16, #tpu.memory_space<vmem>>, vector<1x128x128xbf16>
    %41 = vector.shape_cast %40 : vector<1x128x128xbf16> to vector<128x128xbf16>
    %cst_33 = arith.constant dense<0.000000e+00> : vector<128x64xf32>
    %42 = tpu.matmul %41, %0, %cst_33 {dimension_numbers = #tpu.dot_dimension_numbers<[1], [0], [0], [1], [0, 0, 1, 1], [], []>} : vector<128x128xbf16>, vector<128x64xbf16>, vector<128x64xf32> -> vector<128x64xf32>
    %43 = arith.maximumf %39, %42 : vector<128x64xf32>
    %c11 = arith.constant 11 : index
    %c0_34 = arith.constant 0 : index
    %c0_35 = arith.constant 0 : index
    %44 = vector.load %arg1[%c11, %c0_34, %c0_35] : memref<16x128x128xbf16, #tpu.memory_space<vmem>>, vector<1x128x128xbf16>
    %45 = vector.shape_cast %44 : vector<1x128x128xbf16> to vector<128x128xbf16>
    %cst_36 = arith.constant dense<0.000000e+00> : vector<128x64xf32>
    %46 = tpu.matmul %45, %0, %cst_36 {dimension_numbers = #tpu.dot_dimension_numbers<[1], [0], [0], [1], [0, 0, 1, 1], [], []>} : vector<128x128xbf16>, vector<128x64xbf16>, vector<128x64xf32> -> vector<128x64xf32>
    %47 = arith.maximumf %43, %46 : vector<128x64xf32>
    %c12 = arith.constant 12 : index
    %c0_37 = arith.constant 0 : index
    %c0_38 = arith.constant 0 : index
    %48 = vector.load %arg1[%c12, %c0_37, %c0_38] : memref<16x128x128xbf16, #tpu.memory_space<vmem>>, vector<1x128x128xbf16>
    %49 = vector.shape_cast %48 : vector<1x128x128xbf16> to vector<128x128xbf16>
    %cst_39 = arith.constant dense<0.000000e+00> : vector<128x64xf32>
    %50 = tpu.matmul %49, %0, %cst_39 {dimension_numbers = #tpu.dot_dimension_numbers<[1], [0], [0], [1], [0, 0, 1, 1], [], []>} : vector<128x128xbf16>, vector<128x64xbf16>, vector<128x64xf32> -> vector<128x64xf32>
    %51 = arith.maximumf %47, %50 : vector<128x64xf32>
    %c13 = arith.constant 13 : index
    %c0_40 = arith.constant 0 : index
    %c0_41 = arith.constant 0 : index
    %52 = vector.load %arg1[%c13, %c0_40, %c0_41] : memref<16x128x128xbf16, #tpu.memory_space<vmem>>, vector<1x128x128xbf16>
    %53 = vector.shape_cast %52 : vector<1x128x128xbf16> to vector<128x128xbf16>
    %cst_42 = arith.constant dense<0.000000e+00> : vector<128x64xf32>
    %54 = tpu.matmul %53, %0, %cst_42 {dimension_numbers = #tpu.dot_dimension_numbers<[1], [0], [0], [1], [0, 0, 1, 1], [], []>} : vector<128x128xbf16>, vector<128x64xbf16>, vector<128x64xf32> -> vector<128x64xf32>
    %55 = arith.maximumf %51, %54 : vector<128x64xf32>
    %c14 = arith.constant 14 : index
    %c0_43 = arith.constant 0 : index
    %c0_44 = arith.constant 0 : index
    %56 = vector.load %arg1[%c14, %c0_43, %c0_44] : memref<16x128x128xbf16, #tpu.memory_space<vmem>>, vector<1x128x128xbf16>
    %57 = vector.shape_cast %56 : vector<1x128x128xbf16> to vector<128x128xbf16>
    %cst_45 = arith.constant dense<0.000000e+00> : vector<128x64xf32>
    %58 = tpu.matmul %57, %0, %cst_45 {dimension_numbers = #tpu.dot_dimension_numbers<[1], [0], [0], [1], [0, 0, 1, 1], [], []>} : vector<128x128xbf16>, vector<128x64xbf16>, vector<128x64xf32> -> vector<128x64xf32>
    %59 = arith.maximumf %55, %58 : vector<128x64xf32>
    %c15 = arith.constant 15 : index
    %c0_46 = arith.constant 0 : index
    %c0_47 = arith.constant 0 : index
    %60 = vector.load %arg1[%c15, %c0_46, %c0_47] : memref<16x128x128xbf16, #tpu.memory_space<vmem>>, vector<1x128x128xbf16>
    %61 = vector.shape_cast %60 : vector<1x128x128xbf16> to vector<128x128xbf16>
    %cst_48 = arith.constant dense<0.000000e+00> : vector<128x64xf32>
    %62 = tpu.matmul %61, %0, %cst_48 {dimension_numbers = #tpu.dot_dimension_numbers<[1], [0], [0], [1], [0, 0, 1, 1], [], []>} : vector<128x128xbf16>, vector<128x64xbf16>, vector<128x64xf32> -> vector<128x64xf32>
    %63 = arith.maximumf %59, %62 : vector<128x64xf32>
    %c0_49 = arith.constant 0 : index
    %c0_50 = arith.constant 0 : index
    %64 = vector.load %arg3[%c0_49, %c0_50] : memref<1x64xf32, #tpu.memory_space<vmem>>, vector<1x64xf32>
    %65 = vector.broadcast %64 : vector<1x64xf32> to vector<128x64xf32>
    %66 = arith.addf %63, %65 : vector<128x64xf32>
    %cst_51 = arith.constant 0.000000e+00 : f32
    %67 = vector.broadcast %cst_51 : f32 to vector<128x64xf32>
    %68 = arith.maximumf %66, %67 : vector<128x64xf32>
    %c0_52 = arith.constant 0 : index
    %c0_53 = arith.constant 0 : index
    %69 = vector.load %arg4[%c0_52, %c0_53] : memref<128x64xf32, #tpu.memory_space<vmem>>, vector<128x64xf32>
    tpu.vector_store %arg4[%c0_52, %c0_53], %68 {strides = array<i32>} : memref<128x64xf32, #tpu.memory_space<vmem>>, vector<128x64xf32>,
    return
  }
  func.func @transform_0(%arg0: i32) -> (i32, i32, i32) {
    %c0_i32 = arith.constant 0 : i32
    %c0_i32_0 = arith.constant 0 : i32
    %c0_i32_1 = arith.constant 0 : i32
    return %c0_i32, %arg0, %c0_i32_0 : i32, i32, i32
  }
  func.func @transform_1(%arg0: i32) -> (i32, i32) {
    %c0_i32 = arith.constant 0 : i32
    %c0_i32_0 = arith.constant 0 : i32
    %c0_i32_1 = arith.constant 0 : i32
    return %c0_i32, %c0_i32_0 : i32, i32
  }
  func.func @transform_2(%arg0: i32) -> (i32, i32) {
    %c0_i32 = arith.constant 0 : i32
    %c0_i32_0 = arith.constant 0 : i32
    %c0_i32_1 = arith.constant 0 : i32
    return %c0_i32, %c0_i32_0 : i32, i32
  }
  func.func @transform_3(%arg0: i32) -> (i32, i32) {
    %c0_i32 = arith.constant 0 : i32
    %c0_i32_0 = arith.constant 0 : i32
    return %arg0, %c0_i32 : i32, i32
  }
}

module attributes {stable_mosaic.version = 11 : i64} {
  func.func @_conv_pool_relu_kernel(%arg0: i32, %arg1: memref<16x8x1024xbf16, #tpu.memory_space<vmem>>, %arg2: memref<1024x64xbf16, #tpu.memory_space<vmem>>, %arg3: memref<1x64xf32, #tpu.memory_space<vmem>>, %arg4: memref<8x64xf32, #tpu.memory_space<vmem>>) attributes {dimension_semantics = [#tpu.dimension_semantics<parallel>], iteration_bounds = array<i64: 1>, scalar_prefetch = 0 : i64, scratch_operands = 0 : i64, tpu.core_type = #tpu.core_type<tc>, window_params = [{transform_indices = @transform_0, window_bounds = array<i64: 16, 8, 1024>}, {pipeline_mode = #tpu.pipeline_mode<synchronous>, transform_indices = @transform_1, window_bounds = array<i64: 1024, 64>}, {pipeline_mode = #tpu.pipeline_mode<synchronous>, transform_indices = @transform_2, window_bounds = array<i64: 1, 64>}, {transform_indices = @transform_3, window_bounds = array<i64: 8, 64>}]} {
    %c0 = arith.constant 0 : index
    %c0_0 = arith.constant 0 : index
    %0 = vector.load %arg2[%c0, %c0_0] : memref<1024x64xbf16, #tpu.memory_space<vmem>>, vector<1024x64xbf16>
    %c0_1 = arith.constant 0 : index
    %c0_2 = arith.constant 0 : index
    %c0_3 = arith.constant 0 : index
    %1 = vector.load %arg1[%c0_1, %c0_2, %c0_3] : memref<16x8x1024xbf16, #tpu.memory_space<vmem>>, vector<1x8x1024xbf16>
    %2 = vector.shape_cast %1 : vector<1x8x1024xbf16> to vector<8x1024xbf16>
    %cst = arith.constant dense<0.000000e+00> : vector<8x64xf32>
    %3 = tpu.matmul %2, %0, %cst {dimension_numbers = #tpu.dot_dimension_numbers<[1], [0], [0], [1], [0, 0, 1, 1], [], []>} : vector<8x1024xbf16>, vector<1024x64xbf16>, vector<8x64xf32> -> vector<8x64xf32>
    %c1 = arith.constant 1 : index
    %c0_4 = arith.constant 0 : index
    %c0_5 = arith.constant 0 : index
    %4 = vector.load %arg1[%c1, %c0_4, %c0_5] : memref<16x8x1024xbf16, #tpu.memory_space<vmem>>, vector<1x8x1024xbf16>
    %5 = vector.shape_cast %4 : vector<1x8x1024xbf16> to vector<8x1024xbf16>
    %cst_6 = arith.constant dense<0.000000e+00> : vector<8x64xf32>
    %6 = tpu.matmul %5, %0, %cst_6 {dimension_numbers = #tpu.dot_dimension_numbers<[1], [0], [0], [1], [0, 0, 1, 1], [], []>} : vector<8x1024xbf16>, vector<1024x64xbf16>, vector<8x64xf32> -> vector<8x64xf32>
    %7 = arith.maximumf %3, %6 : vector<8x64xf32>
    %c2 = arith.constant 2 : index
    %c0_7 = arith.constant 0 : index
    %c0_8 = arith.constant 0 : index
    %8 = vector.load %arg1[%c2, %c0_7, %c0_8] : memref<16x8x1024xbf16, #tpu.memory_space<vmem>>, vector<1x8x1024xbf16>
    %9 = vector.shape_cast %8 : vector<1x8x1024xbf16> to vector<8x1024xbf16>
    %cst_9 = arith.constant dense<0.000000e+00> : vector<8x64xf32>
    %10 = tpu.matmul %9, %0, %cst_9 {dimension_numbers = #tpu.dot_dimension_numbers<[1], [0], [0], [1], [0, 0, 1, 1], [], []>} : vector<8x1024xbf16>, vector<1024x64xbf16>, vector<8x64xf32> -> vector<8x64xf32>
    %11 = arith.maximumf %7, %10 : vector<8x64xf32>
    %c3 = arith.constant 3 : index
    %c0_10 = arith.constant 0 : index
    %c0_11 = arith.constant 0 : index
    %12 = vector.load %arg1[%c3, %c0_10, %c0_11] : memref<16x8x1024xbf16, #tpu.memory_space<vmem>>, vector<1x8x1024xbf16>
    %13 = vector.shape_cast %12 : vector<1x8x1024xbf16> to vector<8x1024xbf16>
    %cst_12 = arith.constant dense<0.000000e+00> : vector<8x64xf32>
    %14 = tpu.matmul %13, %0, %cst_12 {dimension_numbers = #tpu.dot_dimension_numbers<[1], [0], [0], [1], [0, 0, 1, 1], [], []>} : vector<8x1024xbf16>, vector<1024x64xbf16>, vector<8x64xf32> -> vector<8x64xf32>
    %15 = arith.maximumf %11, %14 : vector<8x64xf32>
    %c4 = arith.constant 4 : index
    %c0_13 = arith.constant 0 : index
    %c0_14 = arith.constant 0 : index
    %16 = vector.load %arg1[%c4, %c0_13, %c0_14] : memref<16x8x1024xbf16, #tpu.memory_space<vmem>>, vector<1x8x1024xbf16>
    %17 = vector.shape_cast %16 : vector<1x8x1024xbf16> to vector<8x1024xbf16>
    %cst_15 = arith.constant dense<0.000000e+00> : vector<8x64xf32>
    %18 = tpu.matmul %17, %0, %cst_15 {dimension_numbers = #tpu.dot_dimension_numbers<[1], [0], [0], [1], [0, 0, 1, 1], [], []>} : vector<8x1024xbf16>, vector<1024x64xbf16>, vector<8x64xf32> -> vector<8x64xf32>
    %19 = arith.maximumf %15, %18 : vector<8x64xf32>
    %c5 = arith.constant 5 : index
    %c0_16 = arith.constant 0 : index
    %c0_17 = arith.constant 0 : index
    %20 = vector.load %arg1[%c5, %c0_16, %c0_17] : memref<16x8x1024xbf16, #tpu.memory_space<vmem>>, vector<1x8x1024xbf16>
    %21 = vector.shape_cast %20 : vector<1x8x1024xbf16> to vector<8x1024xbf16>
    %cst_18 = arith.constant dense<0.000000e+00> : vector<8x64xf32>
    %22 = tpu.matmul %21, %0, %cst_18 {dimension_numbers = #tpu.dot_dimension_numbers<[1], [0], [0], [1], [0, 0, 1, 1], [], []>} : vector<8x1024xbf16>, vector<1024x64xbf16>, vector<8x64xf32> -> vector<8x64xf32>
    %23 = arith.maximumf %19, %22 : vector<8x64xf32>
    %c6 = arith.constant 6 : index
    %c0_19 = arith.constant 0 : index
    %c0_20 = arith.constant 0 : index
    %24 = vector.load %arg1[%c6, %c0_19, %c0_20] : memref<16x8x1024xbf16, #tpu.memory_space<vmem>>, vector<1x8x1024xbf16>
    %25 = vector.shape_cast %24 : vector<1x8x1024xbf16> to vector<8x1024xbf16>
    %cst_21 = arith.constant dense<0.000000e+00> : vector<8x64xf32>
    %26 = tpu.matmul %25, %0, %cst_21 {dimension_numbers = #tpu.dot_dimension_numbers<[1], [0], [0], [1], [0, 0, 1, 1], [], []>} : vector<8x1024xbf16>, vector<1024x64xbf16>, vector<8x64xf32> -> vector<8x64xf32>
    %27 = arith.maximumf %23, %26 : vector<8x64xf32>
    %c7 = arith.constant 7 : index
    %c0_22 = arith.constant 0 : index
    %c0_23 = arith.constant 0 : index
    %28 = vector.load %arg1[%c7, %c0_22, %c0_23] : memref<16x8x1024xbf16, #tpu.memory_space<vmem>>, vector<1x8x1024xbf16>
    %29 = vector.shape_cast %28 : vector<1x8x1024xbf16> to vector<8x1024xbf16>
    %cst_24 = arith.constant dense<0.000000e+00> : vector<8x64xf32>
    %30 = tpu.matmul %29, %0, %cst_24 {dimension_numbers = #tpu.dot_dimension_numbers<[1], [0], [0], [1], [0, 0, 1, 1], [], []>} : vector<8x1024xbf16>, vector<1024x64xbf16>, vector<8x64xf32> -> vector<8x64xf32>
    %31 = arith.maximumf %27, %30 : vector<8x64xf32>
    %c8 = arith.constant 8 : index
    %c0_25 = arith.constant 0 : index
    %c0_26 = arith.constant 0 : index
    %32 = vector.load %arg1[%c8, %c0_25, %c0_26] : memref<16x8x1024xbf16, #tpu.memory_space<vmem>>, vector<1x8x1024xbf16>
    %33 = vector.shape_cast %32 : vector<1x8x1024xbf16> to vector<8x1024xbf16>
    %cst_27 = arith.constant dense<0.000000e+00> : vector<8x64xf32>
    %34 = tpu.matmul %33, %0, %cst_27 {dimension_numbers = #tpu.dot_dimension_numbers<[1], [0], [0], [1], [0, 0, 1, 1], [], []>} : vector<8x1024xbf16>, vector<1024x64xbf16>, vector<8x64xf32> -> vector<8x64xf32>
    %35 = arith.maximumf %31, %34 : vector<8x64xf32>
    %c9 = arith.constant 9 : index
    %c0_28 = arith.constant 0 : index
    %c0_29 = arith.constant 0 : index
    %36 = vector.load %arg1[%c9, %c0_28, %c0_29] : memref<16x8x1024xbf16, #tpu.memory_space<vmem>>, vector<1x8x1024xbf16>
    %37 = vector.shape_cast %36 : vector<1x8x1024xbf16> to vector<8x1024xbf16>
    %cst_30 = arith.constant dense<0.000000e+00> : vector<8x64xf32>
    %38 = tpu.matmul %37, %0, %cst_30 {dimension_numbers = #tpu.dot_dimension_numbers<[1], [0], [0], [1], [0, 0, 1, 1], [], []>} : vector<8x1024xbf16>, vector<1024x64xbf16>, vector<8x64xf32> -> vector<8x64xf32>
    %39 = arith.maximumf %35, %38 : vector<8x64xf32>
    %c10 = arith.constant 10 : index
    %c0_31 = arith.constant 0 : index
    %c0_32 = arith.constant 0 : index
    %40 = vector.load %arg1[%c10, %c0_31, %c0_32] : memref<16x8x1024xbf16, #tpu.memory_space<vmem>>, vector<1x8x1024xbf16>
    %41 = vector.shape_cast %40 : vector<1x8x1024xbf16> to vector<8x1024xbf16>
    %cst_33 = arith.constant dense<0.000000e+00> : vector<8x64xf32>
    %42 = tpu.matmul %41, %0, %cst_33 {dimension_numbers = #tpu.dot_dimension_numbers<[1], [0], [0], [1], [0, 0, 1, 1], [], []>} : vector<8x1024xbf16>, vector<1024x64xbf16>, vector<8x64xf32> -> vector<8x64xf32>
    %43 = arith.maximumf %39, %42 : vector<8x64xf32>
    %c11 = arith.constant 11 : index
    %c0_34 = arith.constant 0 : index
    %c0_35 = arith.constant 0 : index
    %44 = vector.load %arg1[%c11, %c0_34, %c0_35] : memref<16x8x1024xbf16, #tpu.memory_space<vmem>>, vector<1x8x1024xbf16>
    %45 = vector.shape_cast %44 : vector<1x8x1024xbf16> to vector<8x1024xbf16>
    %cst_36 = arith.constant dense<0.000000e+00> : vector<8x64xf32>
    %46 = tpu.matmul %45, %0, %cst_36 {dimension_numbers = #tpu.dot_dimension_numbers<[1], [0], [0], [1], [0, 0, 1, 1], [], []>} : vector<8x1024xbf16>, vector<1024x64xbf16>, vector<8x64xf32> -> vector<8x64xf32>
    %47 = arith.maximumf %43, %46 : vector<8x64xf32>
    %c12 = arith.constant 12 : index
    %c0_37 = arith.constant 0 : index
    %c0_38 = arith.constant 0 : index
    %48 = vector.load %arg1[%c12, %c0_37, %c0_38] : memref<16x8x1024xbf16, #tpu.memory_space<vmem>>, vector<1x8x1024xbf16>
    %49 = vector.shape_cast %48 : vector<1x8x1024xbf16> to vector<8x1024xbf16>
    %cst_39 = arith.constant dense<0.000000e+00> : vector<8x64xf32>
    %50 = tpu.matmul %49, %0, %cst_39 {dimension_numbers = #tpu.dot_dimension_numbers<[1], [0], [0], [1], [0, 0, 1, 1], [], []>} : vector<8x1024xbf16>, vector<1024x64xbf16>, vector<8x64xf32> -> vector<8x64xf32>
    %51 = arith.maximumf %47, %50 : vector<8x64xf32>
    %c13 = arith.constant 13 : index
    %c0_40 = arith.constant 0 : index
    %c0_41 = arith.constant 0 : index
    %52 = vector.load %arg1[%c13, %c0_40, %c0_41] : memref<16x8x1024xbf16, #tpu.memory_space<vmem>>, vector<1x8x1024xbf16>
    %53 = vector.shape_cast %52 : vector<1x8x1024xbf16> to vector<8x1024xbf16>
    %cst_42 = arith.constant dense<0.000000e+00> : vector<8x64xf32>
    %54 = tpu.matmul %53, %0, %cst_42 {dimension_numbers = #tpu.dot_dimension_numbers<[1], [0], [0], [1], [0, 0, 1, 1], [], []>} : vector<8x1024xbf16>, vector<1024x64xbf16>, vector<8x64xf32> -> vector<8x64xf32>
    %55 = arith.maximumf %51, %54 : vector<8x64xf32>
    %c14 = arith.constant 14 : index
    %c0_43 = arith.constant 0 : index
    %c0_44 = arith.constant 0 : index
    %56 = vector.load %arg1[%c14, %c0_43, %c0_44] : memref<16x8x1024xbf16, #tpu.memory_space<vmem>>, vector<1x8x1024xbf16>
    %57 = vector.shape_cast %56 : vector<1x8x1024xbf16> to vector<8x1024xbf16>
    %cst_45 = arith.constant dense<0.000000e+00> : vector<8x64xf32>
    %58 = tpu.matmul %57, %0, %cst_45 {dimension_numbers = #tpu.dot_dimension_numbers<[1], [0], [0], [1], [0, 0, 1, 1], [], []>} : vector<8x1024xbf16>, vector<1024x64xbf16>, vector<8x64xf32> -> vector<8x64xf32>
    %59 = arith.maximumf %55, %58 : vector<8x64xf32>
    %c15 = arith.constant 15 : index
    %c0_46 = arith.constant 0 : index
    %c0_47 = arith.constant 0 : index
    %60 = vector.load %arg1[%c15, %c0_46, %c0_47] : memref<16x8x1024xbf16, #tpu.memory_space<vmem>>, vector<1x8x1024xbf16>
    %61 = vector.shape_cast %60 : vector<1x8x1024xbf16> to vector<8x1024xbf16>
    %cst_48 = arith.constant dense<0.000000e+00> : vector<8x64xf32>
    %62 = tpu.matmul %61, %0, %cst_48 {dimension_numbers = #tpu.dot_dimension_numbers<[1], [0], [0], [1], [0, 0, 1, 1], [], []>} : vector<8x1024xbf16>, vector<1024x64xbf16>, vector<8x64xf32> -> vector<8x64xf32>
    %63 = arith.maximumf %59, %62 : vector<8x64xf32>
    %c0_49 = arith.constant 0 : index
    %c0_50 = arith.constant 0 : index
    %64 = vector.load %arg3[%c0_49, %c0_50] : memref<1x64xf32, #tpu.memory_space<vmem>>, vector<1x64xf32>
    %65 = vector.broadcast %64 : vector<1x64xf32> to vector<8x64xf32>
    %66 = arith.addf %63, %65 : vector<8x64xf32>
    %cst_51 = arith.constant 0.000000e+00 : f32
    %67 = vector.broadcast %cst_51 : f32 to vector<8x64xf32>
    %68 = arith.maximumf %66, %67 : vector<8x64xf32>
    %c0_52 = arith.constant 0 : index
    %c0_53 = arith.constant 0 : index
    %69 = vector.load %arg4[%c0_52, %c0_53] : memref<8x64xf32, #tpu.memory_space<vmem>>, vector<8x64xf32>
    tpu.vector_store %arg4[%c0_52, %c0_53], %68 {strides = array<i32>} : memref<8x64xf32, #tpu.memory_space<vmem>>, vector<8x64xf32>,
    return
  }
  func.func @transform_0(%arg0: i32) -> (i32, i32, i32) {
    %c0_i32 = arith.constant 0 : i32
    %c0_i32_0 = arith.constant 0 : i32
    %c0_i32_1 = arith.constant 0 : i32
    return %c0_i32, %arg0, %c0_i32_0 : i32, i32, i32
  }
  func.func @transform_1(%arg0: i32) -> (i32, i32) {
    %c0_i32 = arith.constant 0 : i32
    %c0_i32_0 = arith.constant 0 : i32
    %c0_i32_1 = arith.constant 0 : i32
    return %c0_i32, %c0_i32_0 : i32, i32
  }
  func.func @transform_2(%arg0: i32) -> (i32, i32) {
    %c0_i32 = arith.constant 0 : i32
    %c0_i32_0 = arith.constant 0 : i32
    %c0_i32_1 = arith.constant 0 : i32
    return %c0_i32, %c0_i32_0 : i32, i32
  }
  func.func @transform_3(%arg0: i32) -> (i32, i32) {
    %c0_i32 = arith.constant 0 : i32
    %c0_i32_0 = arith.constant 0 : i32
    return %arg0, %c0_i32 : i32, i32
  }
}

module attributes {stable_mosaic.version = 11 : i64} {
  func.func @_mlp_softmax_kernel(%arg0: i32, %arg1: memref<2x256xbf16, #tpu.memory_space<vmem>>, %arg2: memref<256x256xbf16, #tpu.memory_space<vmem>>, %arg3: memref<1x256xf32, #tpu.memory_space<vmem>>, %arg4: memref<256x64xbf16, #tpu.memory_space<vmem>>, %arg5: memref<1x64xf32, #tpu.memory_space<vmem>>, %arg6: memref<64x10xbf16, #tpu.memory_space<vmem>>, %arg7: memref<1x10xf32, #tpu.memory_space<vmem>>, %arg8: memref<2x10xf32, #tpu.memory_space<vmem>>) attributes {dimension_semantics = [#tpu.dimension_semantics<arbitrary>], iteration_bounds = array<i64: 1>, scalar_prefetch = 0 : i64, scratch_operands = 0 : i64, tpu.core_type = #tpu.core_type<tc>, window_params = [{pipeline_mode = #tpu.pipeline_mode<synchronous>, transform_indices = @transform_0, window_bounds = array<i64: 2, 256>}, {pipeline_mode = #tpu.pipeline_mode<synchronous>, transform_indices = @transform_1, window_bounds = array<i64: 256, 256>}, {pipeline_mode = #tpu.pipeline_mode<synchronous>, transform_indices = @transform_2, window_bounds = array<i64: 1, 256>}, {pipeline_mode = #tpu.pipeline_mode<synchronous>, transform_indices = @transform_3, window_bounds = array<i64: 256, 64>}, {pipeline_mode = #tpu.pipeline_mode<synchronous>, transform_indices = @transform_4, window_bounds = array<i64: 1, 64>}, {pipeline_mode = #tpu.pipeline_mode<synchronous>, transform_indices = @transform_5, window_bounds = array<i64: 64, 10>}, {pipeline_mode = #tpu.pipeline_mode<synchronous>, transform_indices = @transform_6, window_bounds = array<i64: 1, 10>}, {pipeline_mode = #tpu.pipeline_mode<synchronous>, transform_indices = @transform_7, window_bounds = array<i64: 2, 10>}]} {
    %c0 = arith.constant 0 : index
    %c0_0 = arith.constant 0 : index
    %0 = vector.load %arg1[%c0, %c0_0] : memref<2x256xbf16, #tpu.memory_space<vmem>>, vector<2x256xbf16>
    %c0_1 = arith.constant 0 : index
    %c0_2 = arith.constant 0 : index
    %1 = vector.load %arg2[%c0_1, %c0_2] : memref<256x256xbf16, #tpu.memory_space<vmem>>, vector<256x256xbf16>
    %cst = arith.constant dense<0.000000e+00> : vector<2x256xf32>
    %2 = tpu.matmul %0, %1, %cst {dimension_numbers = #tpu.dot_dimension_numbers<[1], [0], [0], [1], [0, 0, 1, 1], [], []>} : vector<2x256xbf16>, vector<256x256xbf16>, vector<2x256xf32> -> vector<2x256xf32>
    %c0_3 = arith.constant 0 : index
    %c0_4 = arith.constant 0 : index
    %3 = vector.load %arg3[%c0_3, %c0_4] : memref<1x256xf32, #tpu.memory_space<vmem>>, vector<1x256xf32>
    %4 = vector.broadcast %3 : vector<1x256xf32> to vector<2x256xf32>
    %5 = arith.addf %2, %4 : vector<2x256xf32>
    %cst_5 = arith.constant 0.000000e+00 : f32
    %6 = vector.broadcast %cst_5 : f32 to vector<2x256xf32>
    %7 = arith.maximumf %5, %6 : vector<2x256xf32>
    %8 = arith.truncf %7 : vector<2x256xf32> to vector<2x256xbf16>
    %c0_6 = arith.constant 0 : index
    %c0_7 = arith.constant 0 : index
    %9 = vector.load %arg4[%c0_6, %c0_7] : memref<256x64xbf16, #tpu.memory_space<vmem>>, vector<256x64xbf16>
    %cst_8 = arith.constant dense<0.000000e+00> : vector<2x64xf32>
    %10 = tpu.matmul %8, %9, %cst_8 {dimension_numbers = #tpu.dot_dimension_numbers<[1], [0], [0], [1], [0, 0, 1, 1], [], []>} : vector<2x256xbf16>, vector<256x64xbf16>, vector<2x64xf32> -> vector<2x64xf32>
    %c0_9 = arith.constant 0 : index
    %c0_10 = arith.constant 0 : index
    %11 = vector.load %arg5[%c0_9, %c0_10] : memref<1x64xf32, #tpu.memory_space<vmem>>, vector<1x64xf32>
    %12 = vector.broadcast %11 : vector<1x64xf32> to vector<2x64xf32>
    %13 = arith.addf %10, %12 : vector<2x64xf32>
    %cst_11 = arith.constant 0.000000e+00 : f32
    %14 = vector.broadcast %cst_11 : f32 to vector<2x64xf32>
    %15 = arith.maximumf %13, %14 : vector<2x64xf32>
    %16 = arith.truncf %15 : vector<2x64xf32> to vector<2x64xbf16>
    %c0_12 = arith.constant 0 : index
    %c0_13 = arith.constant 0 : index
    %17 = vector.load %arg6[%c0_12, %c0_13] : memref<64x10xbf16, #tpu.memory_space<vmem>>, vector<64x10xbf16>
    %cst_14 = arith.constant dense<0.000000e+00> : vector<2x10xf32>
    %18 = tpu.matmul %16, %17, %cst_14 {dimension_numbers = #tpu.dot_dimension_numbers<[1], [0], [0], [1], [0, 0, 1, 1], [], []>} : vector<2x64xbf16>, vector<64x10xbf16>, vector<2x10xf32> -> vector<2x10xf32>
    %c0_15 = arith.constant 0 : index
    %c0_16 = arith.constant 0 : index
    %19 = vector.load %arg7[%c0_15, %c0_16] : memref<1x10xf32, #tpu.memory_space<vmem>>, vector<1x10xf32>
    %20 = vector.broadcast %19 : vector<1x10xf32> to vector<2x10xf32>
    %21 = arith.addf %18, %20 : vector<2x10xf32>
    %cst_17 = arith.constant 0.000000e+00 : f32
    %22 = vector.broadcast %cst_17 : f32 to vector<2x10xf32>
    %23 = arith.maximumf %21, %22 : vector<2x10xf32>
    %cst_18 = arith.constant dense<0xFF800000> : vector<2xf32>
    %24 = vector.multi_reduction <maximumf>, %23, %cst_18 [1] : vector<2x10xf32> to vector<2xf32>
    %25 = vector.shape_cast %24 : vector<2xf32> to vector<2x1xf32>
    %26 = vector.broadcast %25 : vector<2x1xf32> to vector<2x10xf32>
    %27 = arith.subf %23, %26 : vector<2x10xf32>
    %28 = math.exp %27 : vector<2x10xf32>
    %cst_19 = arith.constant dense<0.000000e+00> : vector<2xf32>
    %29 = vector.multi_reduction <add>, %28, %cst_19 [1] : vector<2x10xf32> to vector<2xf32>
    %30 = vector.shape_cast %29 : vector<2xf32> to vector<2x1xf32>
    %31 = vector.broadcast %30 : vector<2x1xf32> to vector<2x10xf32>
    %32 = arith.divf %28, %31 : vector<2x10xf32>
    %c0_20 = arith.constant 0 : index
    %c0_21 = arith.constant 0 : index
    %33 = vector.load %arg8[%c0_20, %c0_21] : memref<2x10xf32, #tpu.memory_space<vmem>>, vector<2x10xf32>
    tpu.vector_store %arg8[%c0_20, %c0_21], %32 {strides = array<i32>} : memref<2x10xf32, #tpu.memory_space<vmem>>, vector<2x10xf32>,
    return
  }
  func.func @transform_0(%arg0: i32) -> (i32, i32) {
    %c0_i32 = arith.constant 0 : i32
    %c0_i32_0 = arith.constant 0 : i32
    %c0_i32_1 = arith.constant 0 : i32
    return %c0_i32, %c0_i32_0 : i32, i32
  }
  func.func @transform_1(%arg0: i32) -> (i32, i32) {
    %c0_i32 = arith.constant 0 : i32
    %c0_i32_0 = arith.constant 0 : i32
    %c0_i32_1 = arith.constant 0 : i32
    return %c0_i32, %c0_i32_0 : i32, i32
  }
  func.func @transform_2(%arg0: i32) -> (i32, i32) {
    %c0_i32 = arith.constant 0 : i32
    %c0_i32_0 = arith.constant 0 : i32
    %c0_i32_1 = arith.constant 0 : i32
    return %c0_i32, %c0_i32_0 : i32, i32
  }
  func.func @transform_3(%arg0: i32) -> (i32, i32) {
    %c0_i32 = arith.constant 0 : i32
    %c0_i32_0 = arith.constant 0 : i32
    %c0_i32_1 = arith.constant 0 : i32
    return %c0_i32, %c0_i32_0 : i32, i32
  }
  func.func @transform_4(%arg0: i32) -> (i32, i32) {
    %c0_i32 = arith.constant 0 : i32
    %c0_i32_0 = arith.constant 0 : i32
    %c0_i32_1 = arith.constant 0 : i32
    return %c0_i32, %c0_i32_0 : i32, i32
  }
  func.func @transform_5(%arg0: i32) -> (i32, i32) {
    %c0_i32 = arith.constant 0 : i32
    %c0_i32_0 = arith.constant 0 : i32
    %c0_i32_1 = arith.constant 0 : i32
    return %c0_i32, %c0_i32_0 : i32, i32
  }
  func.func @transform_6(%arg0: i32) -> (i32, i32) {
    %c0_i32 = arith.constant 0 : i32
    %c0_i32_0 = arith.constant 0 : i32
    %c0_i32_1 = arith.constant 0 : i32
    return %c0_i32, %c0_i32_0 : i32, i32
  }
  func.func @transform_7(%arg0: i32) -> (i32, i32) {
    %c0_i32 = arith.constant 0 : i32
    %c0_i32_0 = arith.constant 0 : i32
    %c0_i32_1 = arith.constant 0 : i32
    return %c0_i32, %c0_i32_0 : i32, i32
  }
}

</mosaic_0001>

<llo_original>
// kernel: conv_forward.3
$region0: #{conv_forward.3}
  #allocation0 [shape = 'u32[]', space=smem, size = 0x4, offset = 0x4, fixed_abs, tag = 'smem constant byte address 0x4 - core index']
  #allocation1 [shape = 'u32[144,128]{1,0:T(1,128)}', space=vmem, size = 0x12000, scoped, tag = 'internal scratch']
  %s0 = inlined_call_operand.vmem [shape: bf16[16,128,128], index: 0, kind: input, shape index: {}]
  %s1 = inlined_call_operand.vmem [shape: bf16[128,64], index: 1, kind: input, shape index: {}]
  %s2 = inlined_call_operand.vmem [shape: f32[1,64], index: 2, kind: input, shape index: {}]
  %s3 = inlined_call_operand.vmem [shape: f32[128,64], index: 3, kind: output, shape index: {}]
  %s4 = sld [smem:[#allocation0]]
  $region22: #{conv_forward.3} parent=0
    _
  %s6 = ssub.s32 1, %s4
  %s7 = scalar_select 0, %s6, %s4
  // Predicated region
  $region2: #{conv_forward.3} parent=0 // pred_check
    _
  $region3: #{conv_forward.3} parent=0 // pred_check_branch
    %9 = sbr.rel (0) target = $region5
  $region4: #{conv_forward.3} parent=0 // pred_region
    _
  $region5: #{conv_forward.3} parent=0 // pred_fallthru
    _
  // Predicated region
  $region6: #{conv_forward.3} parent=0 // pred_check
    _
  $region7: #{conv_forward.3} parent=0 // pred_check_branch
    %11 = sbr.rel (0) target = $region9
  $region8: #{conv_forward.3} parent=0 // pred_region
    _
  $region9: #{conv_forward.3} parent=0 // pred_fallthru
    _
  // Predicated region
  $region10: #{conv_forward.3} parent=0 // pred_check
    _
  $region11: #{conv_forward.3} parent=0 // pred_check_branch
    %13 = sbr.rel (0) target = $region13
  $region12: #{conv_forward.3} parent=0 // pred_region
    _
  $region13: #{conv_forward.3} parent=0 // pred_fallthru
    _
  %v15 = vld [vmem:[%s1] sm:$0xf]
  %v16 = vld [vmem:[%s1 + $0x4] sm:$0xf]
  %v17 = vld [vmem:[%s1 + $0x8] sm:$0xf]
  %v18 = vld [vmem:[%s1 + $0xc] sm:$0xf]
  %v19 = vld [vmem:[%s1 + $0x10] sm:$0xf]
  %v20 = vld [vmem:[%s1 + $0x14] sm:$0xf]
  %v21 = vld [vmem:[%s1 + $0x18] sm:$0xf]
  %v22 = vld [vmem:[%s1 + $0x1c] sm:$0xf]
  %v23 = vld [vmem:[%s1 + $0x20] sm:$0xf]
  %v24 = vld [vmem:[%s1 + $0x24] sm:$0xf]
  %v25 = vld [vmem:[%s1 + $0x28] sm:$0xf]
  %v26 = vld [vmem:[%s1 + $0x2c] sm:$0xf]
  %v27 = vld [vmem:[%s1 + $0x30] sm:$0xf]
  %v28 = vld [vmem:[%s1 + $0x34] sm:$0xf]
  %v29 = vld [vmem:[%s1 + $0x38] sm:$0xf]
  %v30 = vld [vmem:[%s1 + $0x3c] sm:$0xf]
  %v31 = vld [vmem:[%s0] sm:$0xf]
  %v32 = vld [vmem:[%s0 + $0x4] sm:$0xf]
  %v33 = vld [vmem:[%s0 + $0x8] sm:$0xf]
  %v34 = vld [vmem:[%s0 + $0xc] sm:$0xf]
  %v35 = vld [vmem:[%s0 + $0x10] sm:$0xf]
  %v36 = vld [vmem:[%s0 + $0x14] sm:$0xf]
  %v37 = vld [vmem:[%s0 + $0x18] sm:$0xf]
  %v38 = vld [vmem:[%s0 + $0x1c] sm:$0xf]
  %v39 = vld [vmem:[%s0 + $0x20] sm:$0xf]
  %v40 = vld [vmem:[%s0 + $0x24] sm:$0xf]
  %v41 = vld [vmem:[%s0 + $0x28] sm:$0xf]
  %v42 = vld [vmem:[%s0 + $0x2c] sm:$0xf]
  %v43 = vld [vmem:[%s0 + $0x30] sm:$0xf]
  %v44 = vld [vmem:[%s0 + $0x34] sm:$0xf]
  %v45 = vld [vmem:[%s0 + $0x38] sm:$0xf]
  %v46 = vld [vmem:[%s0 + $0x3c] sm:$0xf]
  %v63 = vunpack.c.l.b16 %v31
  %v64 = vunpack.c.l.b16 %v32
  %v65 = vunpack.c.l.b16 %v33
  %v66 = vunpack.c.l.b16 %v34
  %v67 = vunpack.c.l.b16 %v35
  %v68 = vunpack.c.l.b16 %v36
  %v69 = vunpack.c.l.b16 %v37
  %v70 = vunpack.c.l.b16 %v38
  %v71 = vunpack.c.l.b16 %v39
  %v72 = vunpack.c.l.b16 %v40
  %v73 = vunpack.c.l.b16 %v41
  %v74 = vunpack.c.l.b16 %v42
  %v75 = vunpack.c.l.b16 %v43
  %v76 = vunpack.c.l.b16 %v44
  %v77 = vunpack.c.l.b16 %v45
  %v78 = vunpack.c.l.b16 %v46
  %v79 = vpack.c.b16 %v64, %v63
  %v80 = vpack.c.b16 %v66, %v65
  %v81 = vpack.c.b16 %v68, %v67
  %v82 = vpack.c.b16 %v70, %v69
  %v83 = vpack.c.b16 %v72, %v71
  %v84 = vpack.c.b16 %v74, %v73
  %v85 = vpack.c.b16 %v76, %v75
  %v86 = vpack.c.b16 %v78, %v77
  %v111 = vunpack.c.l.b16 %v15
  %v112 = vunpack.c.l.b16 %v16
  %v113 = vunpack.c.l.b16 %v17
  %v114 = vunpack.c.l.b16 %v18
  %v115 = vunpack.c.l.b16 %v19
  %v116 = vunpack.c.l.b16 %v20
  %v117 = vunpack.c.l.b16 %v21
  %v118 = vunpack.c.l.b16 %v22
  %v119 = vunpack.c.l.b16 %v23
  %v120 = vunpack.c.l.b16 %v24
  %v121 = vunpack.c.l.b16 %v25
  %v122 = vunpack.c.l.b16 %v26
  %v123 = vunpack.c.l.b16 %v27
  %v124 = vunpack.c.l.b16 %v28
  %v125 = vunpack.c.l.b16 %v29
  %v126 = vunpack.c.l.b16 %v30
  %v127 = vpack.c.b16 %v112, %v111
  %v128 = vpack.c.b16 %v114, %v113
  %v129 = vpack.c.b16 %v116, %v115
  %v130 = vpack.c.b16 %v118, %v117
  %v131 = vpack.c.b16 %v120, %v119
  %v132 = vpack.c.b16 %v122, %v121
  %v133 = vpack.c.b16 %v124, %v123
  %v134 = vpack.c.b16 %v126, %v125
  %143 = vmatprep.subr.bf16.mxu0 0
  %144 = vmatpush1.bf16.msra.mxu0 %v127
  %145 = vmatprep.subr.bf16.mxu0 0
  %146 = vmatpush1.bf16.msra.mxu0 %v128
  %147 = vmatprep.subr.bf16.mxu0 0
  %148 = vmatpush1.bf16.msra.mxu0 %v129
  %149 = vmatprep.subr.bf16.mxu0 0
  %150 = vmatpush1.bf16.msra.mxu0 %v130
  %151 = vmatprep.subr.bf16.mxu0 0
  %152 = vmatpush1.bf16.msra.mxu0 %v131
  %153 = vmatprep.subr.bf16.mxu0 0
  %154 = vmatpush1.bf16.msra.mxu0 %v132
  %155 = vmatprep.subr.bf16.mxu0 0
  %156 = vmatpush1.bf16.msra.mxu0 %v133
  %157 = vmatprep.subr.bf16.mxu0 0
  %158 = vmatpush1.bf16.msra.mxu0 %v134
  %159 = vmatprep.subr.bf16.mxu0 0
  %160 = vmatpush1.bf16.msra.mxu0 0
  %161 = vmatprep.subr.bf16.mxu0 0
  %162 = vmatpush1.bf16.msra.mxu0 0
  %163 = vmatprep.subr.bf16.mxu0 0
  %164 = vmatpush1.bf16.msra.mxu0 0
  %165 = vmatprep.subr.bf16.mxu0 0
  %166 = vmatpush1.bf16.msra.mxu0 0
  %167 = vmatprep.subr.bf16.mxu0 0
  %168 = vmatpush1.bf16.msra.mxu0 0
  %169 = vmatprep.subr.bf16.mxu0 0
  %170 = vmatpush1.bf16.msra.mxu0 0
  %171 = vmatprep.subr.bf16.mxu0 0
  %172 = vmatpush1.bf16.msra.mxu0 0
  %173 = vmatprep.subr.bf16.mxu0 0
  %174 = vmatpush1.bf16.msra.mxu0 0
  %175 = vmatprep.mubr.bf16.mxu0 0
  %176 = vmatmul.mubr.bf16.gmra.mrb[0].mxu0 %v79
  %v177 = vpop.f32.mrb[0].mxu0
  %v178 = vadd.f32 0.0, %v177
  %v179 = vpop.f32.mrb[0].mxu0
  %v180 = vpop.f32.mrb[0].mxu0
  %v181 = vadd.f32 0.0, %v180
  %v182 = vpop.f32.mrb[0].mxu0
  %183 = vmatprep.mubr.bf16.mxu0 0
  %184 = vmatmul.mubr.bf16.gmra.mrb[0].mxu0 %v80
  %v185 = vpop.f32.mrb[0].mxu0
  %v186 = vadd.f32 0.0, %v185
  %v187 = vpop.f32.mrb[0].mxu0
  %v188 = vpop.f32.mrb[0].mxu0
  %v189 = vadd.f32 0.0, %v188
  %v190 = vpop.f32.mrb[0].mxu0
  %191 = vmatprep.mubr.bf16.mxu0 0
  %192 = vmatmul.mubr.bf16.gmra.mrb[0].mxu0 %v81
  %v193 = vpop.f32.mrb[0].mxu0
  %v194 = vadd.f32 0.0, %v193
  %v195 = vpop.f32.mrb[0].mxu0
  %v196 = vpop.f32.mrb[0].mxu0
  %v197 = vadd.f32 0.0, %v196
  %v198 = vpop.f32.mrb[0].mxu0
  %199 = vmatprep.mubr.bf16.mxu0 0
  %200 = vmatmul.mubr.bf16.gmra.mrb[0].mxu0 %v82
  %v201 = vpop.f32.mrb[0].mxu0
  %v202 = vadd.f32 0.0, %v201
  %v203 = vpop.f32.mrb[0].mxu0
  %v204 = vpop.f32.mrb[0].mxu0
  %v205 = vadd.f32 0.0, %v204
  %v206 = vpop.f32.mrb[0].mxu0
  %207 = vmatprep.mubr.bf16.mxu0 0
  %208 = vmatmul.mubr.bf16.gmra.mrb[0].mxu0 %v83
  %v209 = vpop.f32.mrb[0].mxu0
  %v210 = vadd.f32 0.0, %v209
  %v211 = vpop.f32.mrb[0].mxu0
  %v212 = vpop.f32.mrb[0].mxu0
  %v213 = vadd.f32 0.0, %v212
  %v214 = vpop.f32.mrb[0].mxu0
  %215 = vmatprep.mubr.bf16.mxu0 0
  %216 = vmatmul.mubr.bf16.gmra.mrb[0].mxu0 %v84
  %v217 = vpop.f32.mrb[0].mxu0
  %v218 = vadd.f32 0.0, %v217
  %v219 = vpop.f32.mrb[0].mxu0
  %v220 = vpop.f32.mrb[0].mxu0
  %v221 = vadd.f32 0.0, %v220
  %v222 = vpop.f32.mrb[0].mxu0
  %223 = vmatprep.mubr.bf16.mxu0 0
  %224 = vmatmul.mubr.bf16.gmra.mrb[0].mxu0 %v85
  %v225 = vpop.f32.mrb[0].mxu0
  %v226 = vadd.f32 0.0, %v225
  %v227 = vpop.f32.mrb[0].mxu0
  %v228 = vpop.f32.mrb[0].mxu0
  %v229 = vadd.f32 0.0, %v228
  %v230 = vpop.f32.mrb[0].mxu0
  %231 = vmatprep.mubr.bf16.mxu0 0
  %232 = vmatmul.mubr.bf16.gmra.mrb[0].mxu0 %v86
  %v233 = vpop.f32.mrb[0].mxu0
  %v234 = vadd.f32 0.0, %v233
  %v235 = vpop.f32.mrb[0].mxu0
  %v236 = vpop.f32.mrb[0].mxu0
  %v237 = vadd.f32 0.0, %v236
  %v238 = vpop.f32.mrb[0].mxu0
  %239 = vdwg.mxu0
  %s240 = scalar_lea.vmem %s0, 64
  %v241 = vld [vmem:[%s240] sm:$0xf]
  %v242 = vld [vmem:[%s240 + $0x4] sm:$0xf]
  %v243 = vld [vmem:[%s240 + $0x8] sm:$0xf]
  %v244 = vld [vmem:[%s240 + $0xc] sm:$0xf]
  %v245 = vld [vmem:[%s240 + $0x10] sm:$0xf]
  %v246 = vld [vmem:[%s240 + $0x14] sm:$0xf]
  %v247 = vld [vmem:[%s240 + $0x18] sm:$0xf]
  %v248 = vld [vmem:[%s240 + $0x1c] sm:$0xf]
  %v249 = vld [vmem:[%s240 + $0x20] sm:$0xf]
  %v250 = vld [vmem:[%s240 + $0x24] sm:$0xf]
  %v251 = vld [vmem:[%s240 + $0x28] sm:$0xf]
  %v252 = vld [vmem:[%s240 + $0x2c] sm:$0xf]
  %v253 = vld [vmem:[%s240 + $0x30] sm:$0xf]
  %v254 = vld [vmem:[%s240 + $0x34] sm:$0xf]
  %v255 = vld [vmem:[%s240 + $0x38] sm:$0xf]
  %v256 = vld [vmem:[%s240 + $0x3c] sm:$0xf]
  %v273 = vunpack.c.l.b16 %v241
  %v274 = vunpack.c.l.b16 %v242
  %v275 = vunpack.c.l.b16 %v243
  %v276 = vunpack.c.l.b16 %v244
  %v277 = vunpack.c.l.b16 %v245
  %v278 = vunpack.c.l.b16 %v246
  %v279 = vunpack.c.l.b16 %v247
  %v280 = vunpack.c.l.b16 %v248
  %v281 = vunpack.c.l.b16 %v249
  %v282 = vunpack.c.l.b16 %v250
  %v283 = vunpack.c.l.b16 %v251
  %v284 = vunpack.c.l.b16 %v252
  %v285 = vunpack.c.l.b16 %v253
  %v286 = vunpack.c.l.b16 %v254
  %v287 = vunpack.c.l.b16 %v255
  %v288 = vunpack.c.l.b16 %v256
  %v289 = vpack.c.b16 %v274, %v273
  %v290 = vpack.c.b16 %v276, %v275
  %v291 = vpack.c.b16 %v278, %v277
  %v292 = vpack.c.b16 %v280, %v279
  %v293 = vpack.c.b16 %v282, %v281
  %v294 = vpack.c.b16 %v284, %v283
  %v295 = vpack.c.b16 %v286, %v285
  %v296 = vpack.c.b16 %v288, %v287
  %305 = vmatprep.subr.bf16.mxu0 0
  %306 = vmatpush1.bf16.msra.mxu0 %v127
  %307 = vmatprep.subr.bf16.mxu0 0
  %308 = vmatpush1.bf16.msra.mxu0 %v128
  %309 = vmatprep.subr.bf16.mxu0 0
  %310 = vmatpush1.bf16.msra.mxu0 %v129
  %311 = vmatprep.subr.bf16.mxu0 0
  %312 = vmatpush1.bf16.msra.mxu0 %v130
  %313 = vmatprep.subr.bf16.mxu0 0
  %314 = vmatpush1.bf16.msra.mxu0 %v131
  %315 = vmatprep.subr.bf16.mxu0 0
  %316 = vmatpush1.bf16.msra.mxu0 %v132
  %317 = vmatprep.subr.bf16.mxu0 0
  %318 = vmatpush1.bf16.msra.mxu0 %v133
  %319 = vmatprep.subr.bf16.mxu0 0
  %320 = vmatpush1.bf16.msra.mxu0 %v134
  %321 = vmatprep.subr.bf16.mxu0 0
  %322 = vmatpush1.bf16.msra.mxu0 0
  %323 = vmatprep.subr.bf16.mxu0 0
  %324 = vmatpush1.bf16.msra.mxu0 0
  %325 = vmatprep.subr.bf16.mxu0 0
  %326 = vmatpush1.bf16.msra.mxu0 0
  %327 = vmatprep.subr.bf16.mxu0 0
  %328 = vmatpush1.bf16.msra.mxu0 0
  %329 = vmatprep.subr.bf16.mxu0 0
  %330 = vmatpush1.bf16.msra.mxu0 0
  %331 = vmatprep.subr.bf16.mxu0 0
  %332 = vmatpush1.bf16.msra.mxu0 0
  %333 = vmatprep.subr.bf16.mxu0 0
  %334 = vmatpush1.bf16.msra.mxu0 0
  %335 = vmatprep.subr.bf16.mxu0 0
  %336 = vmatpush1.bf16.msra.mxu0 0
  %337 = vmatprep.mubr.bf16.mxu0 0
  %338 = vmatmul.mubr.bf16.gmra.mrb[0].mxu0 %v289
  %v339 = vpop.f32.mrb[0].mxu0
  %v340 = vadd.f32 0.0, %v339
  %v341 = vpop.f32.mrb[0].mxu0
  %v342 = vpop.f32.mrb[0].mxu0
  %v343 = vadd.f32 0.0, %v342
  %v344 = vpop.f32.mrb[0].mxu0
  %345 = vmatprep.mubr.bf16.mxu0 0
  %346 = vmatmul.mubr.bf16.gmra.mrb[0].mxu0 %v290
  %v347 = vpop.f32.mrb[0].mxu0
  %v348 = vadd.f32 0.0, %v347
  %v349 = vpop.f32.mrb[0].mxu0
  %v350 = vpop.f32.mrb[0].mxu0
  %v351 = vadd.f32 0.0, %v350
  %v352 = vpop.f32.mrb[0].mxu0
  %353 = vmatprep.mubr.bf16.mxu0 0
  %354 = vmatmul.mubr.bf16.gmra.mrb[0].mxu0 %v291
  %v355 = vpop.f32.mrb[0].mxu0
  %v356 = vadd.f32 0.0, %v355
  %v357 = vpop.f32.mrb[0].mxu0
  %v358 = vpop.f32.mrb[0].mxu0
  %v359 = vadd.f32 0.0, %v358
  %v360 = vpop.f32.mrb[0].mxu0
  %361 = vmatprep.mubr.bf16.mxu0 0
  %362 = vmatmul.mubr.bf16.gmra.mrb[0].mxu0 %v292
  %v363 = vpop.f32.mrb[0].mxu0
  %v364 = vadd.f32 0.0, %v363
  %v365 = vpop.f32.mrb[0].mxu0
  %v366 = vpop.f32.mrb[0].mxu0
  %v367 = vadd.f32 0.0, %v366
  %v368 = vpop.f32.mrb[0].mxu0
  %369 = vmatprep.mubr.bf16.mxu0 0
  %370 = vmatmul.mubr.bf16.gmra.mrb[0].mxu0 %v293
  %v371 = vpop.f32.mrb[0].mxu0
  %v372 = vadd.f32 0.0, %v371
  %v373 = vpop.f32.mrb[0].mxu0
  %v374 = vpop.f32.mrb[0].mxu0
  %v375 = vadd.f32 0.0, %v374
  %v376 = vpop.f32.mrb[0].mxu0
  %377 = vmatprep.mubr.bf16.mxu0 0
  %378 = vmatmul.mubr.bf16.gmra.mrb[0].mxu0 %v294
  %v379 = vpop.f32.mrb[0].mxu0
  %v380 = vadd.f32 0.0, %v379
  %v381 = vpop.f32.mrb[0].mxu0
  %v382 = vpop.f32.mrb[0].mxu0
  %v383 = vadd.f32 0.0, %v382
  %v384 = vpop.f32.mrb[0].mxu0
  %385 = vmatprep.mubr.bf16.mxu0 0
  %386 = vmatmul.mubr.bf16.gmra.mrb[0].mxu0 %v295
  %v387 = vpop.f32.mrb[0].mxu0
  %v388 = vadd.f32 0.0, %v387
  %v389 = vpop.f32.mrb[0].mxu0
  %v390 = vpop.f32.mrb[0].mxu0
  %v391 = vadd.f32 0.0, %v390
  %v392 = vpop.f32.mrb[0].mxu0
  %393 = vmatprep.mubr.bf16.mxu0 0
  %394 = vmatmul.mubr.bf16.gmra.mrb[0].mxu0 %v296
  %v395 = vpop.f32.mrb[0].mxu0
  %v396 = vadd.f32 0.0, %v395
  %v397 = vpop.f32.mrb[0].mxu0
  %v398 = vpop.f32.mrb[0].mxu0
  %v399 = vadd.f32 0.0, %v398
  %v400 = vpop.f32.mrb[0].mxu0
  %401 = vdwg.mxu0
  %v402 = vmax.f32 %v178, %v340
  %v403 = vmax.f32 %v181, %v343
  %v404 = vmax.f32 %v186, %v348
  %v405 = vmax.f32 %v189, %v351
  %v406 = vmax.f32 %v194, %v356
  %v407 = vmax.f32 %v197, %v359
  %v408 = vmax.f32 %v202, %v364
  %v409 = vmax.f32 %v205, %v367
  %v410 = vmax.f32 %v210, %v372
  %v411 = vmax.f32 %v213, %v375
  %v412 = vmax.f32 %v218, %v380
  %v413 = vmax.f32 %v221, %v383
  %v414 = vmax.f32 %v226, %v388
  %v415 = vmax.f32 %v229, %v391
  %v416 = vmax.f32 %v234, %v396
  %v417 = vmax.f32 %v237, %v399
  %s418 = scalar_lea.vmem %s0, 128
  %v419 = vld [vmem:[%s418] sm:$0xf]
  %v420 = vld [vmem:[%s418 + $0x4] sm:$0xf]
  %v421 = vld [vmem:[%s418 + $0x8] sm:$0xf]
  %v422 = vld [vmem:[%s418 + $0xc] sm:$0xf]
  %v423 = vld [vmem:[%s418 + $0x10] sm:$0xf]
  %v424 = vld [vmem:[%s418 + $0x14] sm:$0xf]
  %v425 = vld [vmem:[%s418 + $0x18] sm:$0xf]
  %v426 = vld [vmem:[%s418 + $0x1c] sm:$0xf]
  %v427 = vld [vmem:[%s418 + $0x20] sm:$0xf]
  %v428 = vld [vmem:[%s418 + $0x24] sm:$0xf]
  %v429 = vld [vmem:[%s418 + $0x28] sm:$0xf]
  %v430 = vld [vmem:[%s418 + $0x2c] sm:$0xf]
  %v431 = vld [vmem:[%s418 + $0x30] sm:$0xf]
  %v432 = vld [vmem:[%s418 + $0x34] sm:$0xf]
  %v433 = vld [vmem:[%s418 + $0x38] sm:$0xf]
  %v434 = vld [vmem:[%s418 + $0x3c] sm:$0xf]
  %v451 = vunpack.c.l.b16 %v419
  %v452 = vunpack.c.l.b16 %v420
  %v453 = vunpack.c.l.b16 %v421
  %v454 = vunpack.c.l.b16 %v422
  %v455 = vunpack.c.l.b16 %v423
  %v456 = vunpack.c.l.b16 %v424
  %v457 = vunpack.c.l.b16 %v425
  %v458 = vunpack.c.l.b16 %v426
  %v459 = vunpack.c.l.b16 %v427
  %v460 = vunpack.c.l.b16 %v428
  %v461 = vunpack.c.l.b16 %v429
  %v462 = vunpack.c.l.b16 %v430
  %v463 = vunpack.c.l.b16 %v431
  %v464 = vunpack.c.l.b16 %v432
  %v465 = vunpack.c.l.b16 %v433
  %v466 = vunpack.c.l.b16 %v434
  %v467 = vpack.c.b16 %v452, %v451
  %v468 = vpack.c.b16 %v454, %v453
  %v469 = vpack.c.b16 %v456, %v455
  %v470 = vpack.c.b16 %v458, %v457
  %v471 = vpack.c.b16 %v460, %v459
  %v472 = vpack.c.b16 %v462, %v461
  %v473 = vpack.c.b16 %v464, %v463
  %v474 = vpack.c.b16 %v466, %v465
  %483 = vmatprep.subr.bf16.mxu0 0
  %484 = vmatpush1.bf16.msra.mxu0 %v127
  %485 = vmatprep.subr.bf16.mxu0 0
  %486 = vmatpush1.bf16.msra.mxu0 %v128
  %487 = vmatprep.subr.bf16.mxu0 0
  %488 = vmatpush1.bf16.msra.mxu0 %v129
  %489 = vmatprep.subr.bf16.mxu0 0
  %490 = vmatpush1.bf16.msra.mxu0 %v130
  %491 = vmatprep.subr.bf16.mxu0 0
  %492 = vmatpush1.bf16.msra.mxu0 %v131
  %493 = vmatprep.subr.bf16.mxu0 0
  %494 = vmatpush1.bf16.msra.mxu0 %v132
  %495 = vmatprep.subr.bf16.mxu0 0
  %496 = vmatpush1.bf16.msra.mxu0 %v133
  %497 = vmatprep.subr.bf16.mxu0 0
  %498 = vmatpush1.bf16.msra.mxu0 %v134
  %499 = vmatprep.subr.bf16.mxu0 0
  %500 = vmatpush1.bf16.msra.mxu0 0
  %501 = vmatprep.subr.bf16.mxu0 0
  %502 = vmatpush1.bf16.msra.mxu0 0
  %503 = vmatprep.subr.bf16.mxu0 0
  %504 = vmatpush1.bf16.msra.mxu0 0
  %505 = vmatprep.subr.bf16.mxu0 0
  %506 = vmatpush1.bf16.msra.mxu0 0
  %507 = vmatprep.subr.bf16.mxu0 0
  %508 = vmatpush1.bf16.msra.mxu0 0
  %509 = vmatprep.subr.bf16.mxu0 0
  %510 = vmatpush1.bf16.msra.mxu0 0
  %511 = vmatprep.subr.bf16.mxu0 0
  %512 = vmatpush1.bf16.msra.mxu0 0
  %513 = vmatprep.subr.bf16.mxu0 0
  %514 = vmatpush1.bf16.msra.mxu0 0
  %515 = vmatprep.mubr.bf16.mxu0 0
  %516 = vmatmul.mubr.bf16.gmra.mrb[0].mxu0 %v467
  %v517 = vpop.f32.mrb[0].mxu0
  %v518 = vadd.f32 0.0, %v517
  %v519 = vpop.f32.mrb[0].mxu0
  %v520 = vpop.f32.mrb[0].mxu0
  %v521 = vadd.f32 0.0, %v520
  %v522 = vpop.f32.mrb[0].mxu0
  %523 = vmatprep.mubr.bf16.mxu0 0
  %524 = vmatmul.mubr.bf16.gmra.mrb[0].mxu0 %v468
  %v525 = vpop.f32.mrb[0].mxu0
  %v526 = vadd.f32 0.0, %v525
  %v527 = vpop.f32.mrb[0].mxu0
  %v528 = vpop.f32.mrb[0].mxu0
  %v529 = vadd.f32 0.0, %v528
  %v530 = vpop.f32.mrb[0].mxu0
  %531 = vmatprep.mubr.bf16.mxu0 0
  %532 = vmatmul.mubr.bf16.gmra.mrb[0].mxu0 %v469
  %v533 = vpop.f32.mrb[0].mxu0
  %v534 = vadd.f32 0.0, %v533
  %v535 = vpop.f32.mrb[0].mxu0
  %v536 = vpop.f32.mrb[0].mxu0
  %v537 = vadd.f32 0.0, %v536
  %v538 = vpop.f32.mrb[0].mxu0
  %539 = vmatprep.mubr.bf16.mxu0 0
  %540 = vmatmul.mubr.bf16.gmra.mrb[0].mxu0 %v470
  %v541 = vpop.f32.mrb[0].mxu0
  %v542 = vadd.f32 0.0, %v541
  %v543 = vpop.f32.mrb[0].mxu0
  %v544 = vpop.f32.mrb[0].mxu0
  %v545 = vadd.f32 0.0, %v544
  %v546 = vpop.f32.mrb[0].mxu0
  %547 = vmatprep.mubr.bf16.mxu0 0
  %548 = vmatmul.mubr.bf16.gmra.mrb[0].mxu0 %v471
  %v549 = vpop.f32.mrb[0].mxu0
  %v550 = vadd.f32 0.0, %v549
  %v551 = vpop.f32.mrb[0].mxu0
  %v552 = vpop.f32.mrb[0].mxu0
  %v553 = vadd.f32 0.0, %v552
  %v554 = vpop.f32.mrb[0].mxu0
  %555 = vmatprep.mubr.bf16.mxu0 0
  %556 = vmatmul.mubr.bf16.gmra.mrb[0].mxu0 %v472
  %v557 = vpop.f32.mrb[0].mxu0
  %v558 = vadd.f32 0.0, %v557
  %v559 = vpop.f32.mrb[0].mxu0
  %v560 = vpop.f32.mrb[0].mxu0
  %v561 = vadd.f32 0.0, %v560
  %v562 = vpop.f32.mrb[0].mxu0
  %563 = vmatprep.mubr.bf16.mxu0 0
  %564 = vmatmul.mubr.bf16.gmra.mrb[0].mxu0 %v473
  %v565 = vpop.f32.mrb[0].mxu0
  %v566 = vadd.f32 0.0, %v565
  %v567 = vpop.f32.mrb[0].mxu0
  %v568 = vpop.f32.mrb[0].mxu0
  %v569 = vadd.f32 0.0, %v568
  %v570 = vpop.f32.mrb[0].mxu0
  %571 = vmatprep.mubr.bf16.mxu0 0
  %572 = vmatmul.mubr.bf16.gmra.mrb[0].mxu0 %v474
  %v573 = vpop.f32.mrb[0].mxu0
  %v574 = vadd.f32 0.0, %v573
  %v575 = vpop.f32.mrb[0].mxu0
  %v576 = vpop.f32.mrb[0].mxu0
  %v577 = vadd.f32 0.0, %v576
  %v578 = vpop.f32.mrb[0].mxu0
  %579 = vdwg.mxu0
  %v580 = vmax.f32 %v402, %v518
  %v581 = vmax.f32 %v403, %v521
  %v582 = vmax.f32 %v404, %v526
  %v583 = vmax.f32 %v405, %v529
  %v584 = vmax.f32 %v406, %v534
  %v585 = vmax.f32 %v407, %v537
  %v586 = vmax.f32 %v408, %v542
  %v587 = vmax.f32 %v409, %v545
  %v588 = vmax.f32 %v410, %v550
  %v589 = vmax.f32 %v411, %v553
  %v590 = vmax.f32 %v412, %v558
  %v591 = vmax.f32 %v413, %v561
  %v592 = vmax.f32 %v414, %v566
  %v593 = vmax.f32 %v415, %v569
  %v594 = vmax.f32 %v416, %v574
  %v595 = vmax.f32 %v417, %v577
  %s596 = scalar_lea.vmem %s0, 192
  %v597 = vld [vmem:[%s596] sm:$0xf]
  %v598 = vld [vmem:[%s596 + $0x4] sm:$0xf]
  %v599 = vld [vmem:[%s596 + $0x8] sm:$0xf]
  %v600 = vld [vmem:[%s596 + $0xc] sm:$0xf]
  %v601 = vld [vmem:[%s596 + $0x10] sm:$0xf]
  %v602 = vld [vmem:[%s596 + $0x14] sm:$0xf]
  %v603 = vld [vmem:[%s596 + $0x18] sm:$0xf]
  %v604 = vld [vmem:[%s596 + $0x1c] sm:$0xf]
  %v605 = vld [vmem:[%s596 + $0x20] sm:$0xf]
  %v606 = vld [vmem:[%s596 + $0x24] sm:$0xf]
  %v607 = vld [vmem:[%s596 + $0x28] sm:$0xf]
  %v608 = vld [vmem:[%s596 + $0x2c] sm:$0xf]
  %v609 = vld [vmem:[%s596 + $0x30] sm:$0xf]
  %v610 = vld [vmem:[%s596 + $0x34] sm:$0xf]
  %v611 = vld [vmem:[%s596 + $0x38] sm:$0xf]
  %v612 = vld [vmem:[%s596 + $0x3c] sm:$0xf]
  %v629 = vunpack.c.l.b16 %v597
  %v630 = vunpack.c.l.b16 %v598
  %v631 = vunpack.c.l.b16 %v599
  %v632 = vunpack.c.l.b16 %v600
  %v633 = vunpack.c.l.b16 %v601
  %v634 = vunpack.c.l.b16 %v602
  %v635 = vunpack.c.l.b16 %v603
  %v636 = vunpack.c.l.b16 %v604
  %v637 = vunpack.c.l.b16 %v605
  %v638 = vunpack.c.l.b16 %v606
  %v639 = vunpack.c.l.b16 %v607
  %v640 = vunpack.c.l.b16 %v608
  %v641 = vunpack.c.l.b16 %v609
  %v642 = vunpack.c.l.b16 %v610
  %v643 = vunpack.c.l.b16 %v611
  %v644 = vunpack.c.l.b16 %v612
  %v645 = vpack.c.b16 %v630, %v629
  %v646 = vpack.c.b16 %v632, %v631
  %v647 = vpack.c.b16 %v634, %v633
  %v648 = vpack.c.b16 %v636, %v635
  %v649 = vpack.c.b16 %v638, %v637
  %v650 = vpack.c.b16 %v640, %v639
  %v651 = vpack.c.b16 %v642, %v641
  %v652 = vpack.c.b16 %v644, %v643
  %661 = vmatprep.subr.bf16.mxu0 0
  %662 = vmatpush1.bf16.msra.mxu0 %v127
  %663 = vmatprep.subr.bf16.mxu0 0
  %664 = vmatpush1.bf16.msra.mxu0 %v128
  %665 = vmatprep.subr.bf16.mxu0 0
  %666 = vmatpush1.bf16.msra.mxu0 %v129
  %667 = vmatprep.subr.bf16.mxu0 0
  %668 = vmatpush1.bf16.msra.mxu0 %v130
  %669 = vmatprep.subr.bf16.mxu0 0
  %670 = vmatpush1.bf16.msra.mxu0 %v131
  %671 = vmatprep.subr.bf16.mxu0 0
  %672 = vmatpush1.bf16.msra.mxu0 %v132
  %673 = vmatprep.subr.bf16.mxu0 0
  %674 = vmatpush1.bf16.msra.mxu0 %v133
  %675 = vmatprep.subr.bf16.mxu0 0
  %676 = vmatpush1.bf16.msra.mxu0 %v134
  %677 = vmatprep.subr.bf16.mxu0 0
  %678 = vmatpush1.bf16.msra.mxu0 0
  %679 = vmatprep.subr.bf16.mxu0 0
  %680 = vmatpush1.bf16.msra.mxu0 0
  %681 = vmatprep.subr.bf16.mxu0 0
  %682 = vmatpush1.bf16.msra.mxu0 0
  %683 = vmatprep.subr.bf16.mxu0 0
  %684 = vmatpush1.bf16.msra.mxu0 0
  %685 = vmatprep.subr.bf16.mxu0 0
  %686 = vmatpush1.bf16.msra.mxu0 0
  %687 = vmatprep.subr.bf16.mxu0 0
  %688 = vmatpush1.bf16.msra.mxu0 0
  %689 = vmatprep.subr.bf16.mxu0 0
  %690 = vmatpush1.bf16.msra.mxu0 0
  %691 = vmatprep.subr.bf16.mxu0 0
  %692 = vmatpush1.bf16.msra.mxu0 0
  %693 = vmatprep.mubr.bf16.mxu0 0
  %694 = vmatmul.mubr.bf16.gmra.mrb[0].mxu0 %v645
  %v695 = vpop.f32.mrb[0].mxu0
  %v696 = vadd.f32 0.0, %v695
  %v697 = vpop.f32.mrb[0].mxu0
  %v698 = vpop.f32.mrb[0].mxu0
  %v699 = vadd.f32 0.0, %v698
  %v700 = vpop.f32.mrb[0].mxu0
  %701 = vmatprep.mubr.bf16.mxu0 0
  %702 = vmatmul.mubr.bf16.gmra.mrb[0].mxu0 %v646
  %v703 = vpop.f32.mrb[0].mxu0
  %v704 = vadd.f32 0.0, %v703
  %v705 = vpop.f32.mrb[0].mxu0
  %v706 = vpop.f32.mrb[0].mxu0
  %v707 = vadd.f32 0.0, %v706
  %v708 = vpop.f32.mrb[0].mxu0
  %709 = vmatprep.mubr.bf16.mxu0 0
  %710 = vmatmul.mubr.bf16.gmra.mrb[0].mxu0 %v647
  %v711 = vpop.f32.mrb[0].mxu0
  %v712 = vadd.f32 0.0, %v711
  %v713 = vpop.f32.mrb[0].mxu0
  %v714 = vpop.f32.mrb[0].mxu0
  %v715 = vadd.f32 0.0, %v714
  %v716 = vpop.f32.mrb[0].mxu0
  %717 = vmatprep.mubr.bf16.mxu0 0
  %718 = vmatmul.mubr.bf16.gmra.mrb[0].mxu0 %v648
  %v719 = vpop.f32.mrb[0].mxu0
  %v720 = vadd.f32 0.0, %v719
  %v721 = vpop.f32.mrb[0].mxu0
  %v722 = vpop.f32.mrb[0].mxu0
  %v723 = vadd.f32 0.0, %v722
  %v724 = vpop.f32.mrb[0].mxu0
  %725 = vmatprep.mubr.bf16.mxu0 0
  %726 = vmatmul.mubr.bf16.gmra.mrb[0].mxu0 %v649
  %v727 = vpop.f32.mrb[0].mxu0
  %v728 = vadd.f32 0.0, %v727
  %v729 = vpop.f32.mrb[0].mxu0
  %v730 = vpop.f32.mrb[0].mxu0
  %v731 = vadd.f32 0.0, %v730
  %v732 = vpop.f32.mrb[0].mxu0
  %733 = vmatprep.mubr.bf16.mxu0 0
  %734 = vmatmul.mubr.bf16.gmra.mrb[0].mxu0 %v650
  %v735 = vpop.f32.mrb[0].mxu0
  %v736 = vadd.f32 0.0, %v735
  %v737 = vpop.f32.mrb[0].mxu0
  %v738 = vpop.f32.mrb[0].mxu0
  %v739 = vadd.f32 0.0, %v738
  %v740 = vpop.f32.mrb[0].mxu0
  %741 = vmatprep.mubr.bf16.mxu0 0
  %742 = vmatmul.mubr.bf16.gmra.mrb[0].mxu0 %v651
  %v743 = vpop.f32.mrb[0].mxu0
  %v744 = vadd.f32 0.0, %v743
  %v745 = vpop.f32.mrb[0].mxu0
  %v746 = vpop.f32.mrb[0].mxu0
  %v747 = vadd.f32 0.0, %v746
  %v748 = vpop.f32.mrb[0].mxu0
  %749 = vmatprep.mubr.bf16.mxu0 0
  %750 = vmatmul.mubr.bf16.gmra.mrb[0].mxu0 %v652
  %v751 = vpop.f32.mrb[0].mxu0
  %v752 = vadd.f32 0.0, %v751
  %v753 = vpop.f32.mrb[0].mxu0
  %v754 = vpop.f32.mrb[0].mxu0
  %v755 = vadd.f32 0.0, %v754
  %v756 = vpop.f32.mrb[0].mxu0
  %757 = vdwg.mxu0
  %v758 = vmax.f32 %v580, %v696
  %v759 = vmax.f32 %v581, %v699
  %v760 = vmax.f32 %v582, %v704
  %v761 = vmax.f32 %v583, %v707
  %v762 = vmax.f32 %v584, %v712
  %v763 = vmax.f32 %v585, %v715
  %v764 = vmax.f32 %v586, %v720
  %v765 = vmax.f32 %v587, %v723
  %v766 = vmax.f32 %v588, %v728
  %v767 = vmax.f32 %v589, %v731
  %v768 = vmax.f32 %v590, %v736
  %v769 = vmax.f32 %v591, %v739
  %v770 = vmax.f32 %v592, %v744
  %v771 = vmax.f32 %v593, %v747
  %v772 = vmax.f32 %v594, %v752
  %v773 = vmax.f32 %v595, %v755
  %s774 = scalar_lea.vmem %s0, 256
  %v775 = vld [vmem:[%s774] sm:$0xf]
  %v776 = vld [vmem:[%s774 + $0x4] sm:$0xf]
  %v777 = vld [vmem:[%s774 + $0x8] sm:$0xf]
  %v778 = vld [vmem:[%s774 + $0xc] sm:$0xf]
  %v779 = vld [vmem:[%s774 + $0x10] sm:$0xf]
  %v780 = vld [vmem:[%s774 + $0x14] sm:$0xf]
  %v781 = vld [vmem:[%s774 + $0x18] sm:$0xf]
  %v782 = vld [vmem:[%s774 + $0x1c] sm:$0xf]
  %v783 = vld [vmem:[%s774 + $0x20] sm:$0xf]
  %v784 = vld [vmem:[%s774 + $0x24] sm:$0xf]
  %v785 = vld [vmem:[%s774 + $0x28] sm:$0xf]
  %v786 = vld [vmem:[%s774 + $0x2c] sm:$0xf]
  %v787 = vld [vmem:[%s774 + $0x30] sm:$0xf]
  %v788 = vld [vmem:[%s774 + $0x34] sm:$0xf]
  %v789 = vld [vmem:[%s774 + $0x38] sm:$0xf]
  %v790 = vld [vmem:[%s774 + $0x3c] sm:$0xf]
  %v807 = vunpack.c.l.b16 %v775
  %v808 = vunpack.c.l.b16 %v776
  %v809 = vunpack.c.l.b16 %v777
  %v810 = vunpack.c.l.b16 %v778
  %v811 = vunpack.c.l.b16 %v779
  %v812 = vunpack.c.l.b16 %v780
  %v813 = vunpack.c.l.b16 %v781
  %v814 = vunpack.c.l.b16 %v782
  %v815 = vunpack.c.l.b16 %v783
  %v816 = vunpack.c.l.b16 %v784
  %v817 = vunpack.c.l.b16 %v785
  %v818 = vunpack.c.l.b16 %v786
  %v819 = vunpack.c.l.b16 %v787
  %v820 = vunpack.c.l.b16 %v788
  %v821 = vunpack.c.l.b16 %v789
  %v822 = vunpack.c.l.b16 %v790
  %v823 = vpack.c.b16 %v808, %v807
  %v824 = vpack.c.b16 %v810, %v809
  %v825 = vpack.c.b16 %v812, %v811
  %v826 = vpack.c.b16 %v814, %v813
  %v827 = vpack.c.b16 %v816, %v815
  %v828 = vpack.c.b16 %v818, %v817
  %v829 = vpack.c.b16 %v820, %v819
  %v830 = vpack.c.b16 %v822, %v821
  %839 = vmatprep.subr.bf16.mxu0 0
  %840 = vmatpush1.bf16.msra.mxu0 %v127
  %841 = vmatprep.subr.bf16.mxu0 0
  %842 = vmatpush1.bf16.msra.mxu0 %v128
  %843 = vmatprep.subr.bf16.mxu0 0
  %844 = vmatpush1.bf16.msra.mxu0 %v129
  %845 = vmatprep.subr.bf16.mxu0 0
  %846 = vmatpush1.bf16.msra.mxu0 %v130
  %847 = vmatprep.subr.bf16.mxu0 0
  %848 = vmatpush1.bf16.msra.mxu0 %v131
  %849 = vmatprep.subr.bf16.mxu0 0
  %850 = vmatpush1.bf16.msra.mxu0 %v132
  %851 = vmatprep.subr.bf16.mxu0 0
  %852 = vmatpush1.bf16.msra.mxu0 %v133
  %853 = vmatprep.subr.bf16.mxu0 0
  %854 = vmatpush1.bf16.msra.mxu0 %v134
  %855 = vmatprep.subr.bf16.mxu0 0
  %856 = vmatpush1.bf16.msra.mxu0 0
  %857 = vmatprep.subr.bf16.mxu0 0
  %858 = vmatpush1.bf16.msra.mxu0 0
  %859 = vmatprep.subr.bf16.mxu0 0
  %860 = vmatpush1.bf16.msra.mxu0 0
  %861 = vmatprep.subr.bf16.mxu0 0
  %862 = vmatpush1.bf16.msra.mxu0 0
  %863 = vmatprep.subr.bf16.mxu0 0
  %864 = vmatpush1.bf16.msra.mxu0 0
  %865 = vmatprep.subr.bf16.mxu0 0
  %866 = vmatpush1.bf16.msra.mxu0 0
  %867 = vmatprep.subr.bf16.mxu0 0
  %868 = vmatpush1.bf16.msra.mxu0 0
  %869 = vmatprep.subr.bf16.mxu0 0
  %870 = vmatpush1.bf16.msra.mxu0 0
  %871 = vmatprep.mubr.bf16.mxu0 0
  %872 = vmatmul.mubr.bf16.gmra.mrb[0].mxu0 %v823
  %v873 = vpop.f32.mrb[0].mxu0
  %v874 = vadd.f32 0.0, %v873
  %v875 = vpop.f32.mrb[0].mxu0
  %v876 = vpop.f32.mrb[0].mxu0
  %v877 = vadd.f32 0.0, %v876
  %v878 = vpop.f32.mrb[0].mxu0
  %879 = vmatprep.mubr.bf16.mxu0 0
  %880 = vmatmul.mubr.bf16.gmra.mrb[0].mxu0 %v824
  %v881 = vpop.f32.mrb[0].mxu0
  %v882 = vadd.f32 0.0, %v881
  %v883 = vpop.f32.mrb[0].mxu0
  %v884 = vpop.f32.mrb[0].mxu0
  %v885 = vadd.f32 0.0, %v884
  %v886 = vpop.f32.mrb[0].mxu0
  %887 = vmatprep.mubr.bf16.mxu0 0
  %888 = vmatmul.mubr.bf16.gmra.mrb[0].mxu0 %v825
  %v889 = vpop.f32.mrb[0].mxu0
  %v890 = vadd.f32 0.0, %v889
  %v891 = vpop.f32.mrb[0].mxu0
  %v892 = vpop.f32.mrb[0].mxu0
  %v893 = vadd.f32 0.0, %v892
  %v894 = vpop.f32.mrb[0].mxu0
  %895 = vmatprep.mubr.bf16.mxu0 0
  %896 = vmatmul.mubr.bf16.gmra.mrb[0].mxu0 %v826
  %v897 = vpop.f32.mrb[0].mxu0
  %v898 = vadd.f32 0.0, %v897
  %v899 = vpop.f32.mrb[0].mxu0
  %v900 = vpop.f32.mrb[0].mxu0
  %v901 = vadd.f32 0.0, %v900
  %v902 = vpop.f32.mrb[0].mxu0
  %903 = vmatprep.mubr.bf16.mxu0 0
  %904 = vmatmul.mubr.bf16.gmra.mrb[0].mxu0 %v827
  %v905 = vpop.f32.mrb[0].mxu0
  %v906 = vadd.f32 0.0, %v905
  %v907 = vpop.f32.mrb[0].mxu0
  %v908 = vpop.f32.mrb[0].mxu0
  %v909 = vadd.f32 0.0, %v908
  %v910 = vpop.f32.mrb[0].mxu0
  %911 = vmatprep.mubr.bf16.mxu0 0
  %912 = vmatmul.mubr.bf16.gmra.mrb[0].mxu0 %v828
  %v913 = vpop.f32.mrb[0].mxu0
  %v914 = vadd.f32 0.0, %v913
  %v915 = vpop.f32.mrb[0].mxu0
  %v916 = vpop.f32.mrb[0].mxu0
  %v917 = vadd.f32 0.0, %v916
  %v918 = vpop.f32.mrb[0].mxu0
  %919 = vmatprep.mubr.bf16.mxu0 0
  %920 = vmatmul.mubr.bf16.gmra.mrb[0].mxu0 %v829
  %v921 = vpop.f32.mrb[0].mxu0
  %v922 = vadd.f32 0.0, %v921
  %v923 = vpop.f32.mrb[0].mxu0
  %v924 = vpop.f32.mrb[0].mxu0
  %v925 = vadd.f32 0.0, %v924
  %v926 = vpop.f32.mrb[0].mxu0
  %927 = vmatprep.mubr.bf16.mxu0 0
  %928 = vmatmul.mubr.bf16.gmra.mrb[0].mxu0 %v830
  %v929 = vpop.f32.mrb[0].mxu0
  %v930 = vadd.f32 0.0, %v929
  %v931 = vpop.f32.mrb[0].mxu0
  %v932 = vpop.f32.mrb[0].mxu0
  %v933 = vadd.f32 0.0, %v932
  %v934 = vpop.f32.mrb[0].mxu0
  %935 = vdwg.mxu0
  %v936 = vmax.f32 %v758, %v874
  %v937 = vmax.f32 %v759, %v877
  %v938 = vmax.f32 %v760, %v882
  %v939 = vmax.f32 %v761, %v885
  %v940 = vmax.f32 %v762, %v890
  %v941 = vmax.f32 %v763, %v893
  %v942 = vmax.f32 %v764, %v898
  %v943 = vmax.f32 %v765, %v901
  %v944 = vmax.f32 %v766, %v906
  %v945 = vmax.f32 %v767, %v909
  %v946 = vmax.f32 %v768, %v914
  %v947 = vmax.f32 %v769, %v917
  %v948 = vmax.f32 %v770, %v922
  %v949 = vmax.f32 %v771, %v925
  %v950 = vmax.f32 %v772, %v930
  %v951 = vmax.f32 %v773, %v933
  %s952 = scalar_lea.vmem %s0, 320
  %v953 = vld [vmem:[%s952] sm:$0xf]
  %v954 = vld [vmem:[%s952 + $0x4] sm:$0xf]
  %v955 = vld [vmem:[%s952 + $0x8] sm:$0xf]
  %v956 = vld [vmem:[%s952 + $0xc] sm:$0xf]
  %v957 = vld [vmem:[%s952 + $0x10] sm:$0xf]
  %v958 = vld [vmem:[%s952 + $0x14] sm:$0xf]
  %v959 = vld [vmem:[%s952 + $0x18] sm:$0xf]
  %v960 = vld [vmem:[%s952 + $0x1c] sm:$0xf]
  %v961 = vld [vmem:[%s952 + $0x20] sm:$0xf]
  %v962 = vld [vmem:[%s952 + $0x24] sm:$0xf]
  %v963 = vld [vmem:[%s952 + $0x28] sm:$0xf]
  %v964 = vld [vmem:[%s952 + $0x2c] sm:$0xf]
  %v965 = vld [vmem:[%s952 + $0x30] sm:$0xf]
  %v966 = vld [vmem:[%s952 + $0x34] sm:$0xf]
  %v967 = vld [vmem:[%s952 + $0x38] sm:$0xf]
  %v968 = vld [vmem:[%s952 + $0x3c] sm:$0xf]
  %v985 = vunpack.c.l.b16 %v953
  %v986 = vunpack.c.l.b16 %v954
  %v987 = vunpack.c.l.b16 %v955
  %v988 = vunpack.c.l.b16 %v956
  %v989 = vunpack.c.l.b16 %v957
  %v990 = vunpack.c.l.b16 %v958
  %v991 = vunpack.c.l.b16 %v959
  %v992 = vunpack.c.l.b16 %v960
  %v993 = vunpack.c.l.b16 %v961
  %v994 = vunpack.c.l.b16 %v962
  %v995 = vunpack.c.l.b16 %v963
  %v996 = vunpack.c.l.b16 %v964
  %v997 = vunpack.c.l.b16 %v965
  %v998 = vunpack.c.l.b16 %v966
  %v999 = vunpack.c.l.b16 %v967
  %v1000 = vunpack.c.l.b16 %v968
  %v1001 = vpack.c.b16 %v986, %v985
  %v1002 = vpack.c.b16 %v988, %v987
  %v1003 = vpack.c.b16 %v990, %v989
  %v1004 = vpack.c.b16 %v992, %v991
  %v1005 = vpack.c.b16 %v994, %v993
  %v1006 = vpack.c.b16 %v996, %v995
  %v1007 = vpack.c.b16 %v998, %v997
  %v1008 = vpack.c.b16 %v1000, %v999
  %1017 = vmatprep.subr.bf16.mxu0 0
  %1018 = vmatpush1.bf16.msra.mxu0 %v127
  %1019 = vmatprep.subr.bf16.mxu0 0
  %1020 = vmatpush1.bf16.msra.mxu0 %v128
  %1021 = vmatprep.subr.bf16.mxu0 0
  %1022 = vmatpush1.bf16.msra.mxu0 %v129
  %1023 = vmatprep.subr.bf16.mxu0 0
  %1024 = vmatpush1.bf16.msra.mxu0 %v130
  %1025 = vmatprep.subr.bf16.mxu0 0
  %1026 = vmatpush1.bf16.msra.mxu0 %v131
  %1027 = vmatprep.subr.bf16.mxu0 0
  %1028 = vmatpush1.bf16.msra.mxu0 %v132
  %1029 = vmatprep.subr.bf16.mxu0 0
  %1030 = vmatpush1.bf16.msra.mxu0 %v133
  %1031 = vmatprep.subr.bf16.mxu0 0
  %1032 = vmatpush1.bf16.msra.mxu0 %v134
  %1033 = vmatprep.subr.bf16.mxu0 0
  %1034 = vmatpush1.bf16.msra.mxu0 0
  %1035 = vmatprep.subr.bf16.mxu0 0
  %1036 = vmatpush1.bf16.msra.mxu0 0
  %1037 = vmatprep.subr.bf16.mxu0 0
  %1038 = vmatpush1.bf16.msra.mxu0 0
  %1039 = vmatprep.subr.bf16.mxu0 0
  %1040 = vmatpush1.bf16.msra.mxu0 0
  %1041 = vmatprep.subr.bf16.mxu0 0
  %1042 = vmatpush1.bf16.msra.mxu0 0
  %1043 = vmatprep.subr.bf16.mxu0 0
  %1044 = vmatpush1.bf16.msra.mxu0 0
  %1045 = vmatprep.subr.bf16.mxu0 0
  %1046 = vmatpush1.bf16.msra.mxu0 0
  %1047 = vmatprep.subr.bf16.mxu0 0
  %1048 = vmatpush1.bf16.msra.mxu0 0
  %1049 = vmatprep.mubr.bf16.mxu0 0
  %1050 = vmatmul.mubr.bf16.gmra.mrb[0].mxu0 %v1001
  %v1051 = vpop.f32.mrb[0].mxu0
  %v1052 = vadd.f32 0.0, %v1051
  %v1053 = vpop.f32.mrb[0].mxu0
  %v1054 = vpop.f32.mrb[0].mxu0
  %v1055 = vadd.f32 0.0, %v1054
  %v1056 = vpop.f32.mrb[0].mxu0
  %1057 = vmatprep.mubr.bf16.mxu0 0
  %1058 = vmatmul.mubr.bf16.gmra.mrb[0].mxu0 %v1002
  %v1059 = vpop.f32.mrb[0].mxu0
  %v1060 = vadd.f32 0.0, %v1059
  %v1061 = vpop.f32.mrb[0].mxu0
  %v1062 = vpop.f32.mrb[0].mxu0
  %v1063 = vadd.f32 0.0, %v1062
  %v1064 = vpop.f32.mrb[0].mxu0
  %1065 = vmatprep.mubr.bf16.mxu0 0
  %1066 = vmatmul.mubr.bf16.gmra.mrb[0].mxu0 %v1003
  %v1067 = vpop.f32.mrb[0].mxu0
  %v1068 = vadd.f32 0.0, %v1067
  %v1069 = vpop.f32.mrb[0].mxu0
  %v1070 = vpop.f32.mrb[0].mxu0
  %v1071 = vadd.f32 0.0, %v1070
  %v1072 = vpop.f32.mrb[0].mxu0
  %1073 = vmatprep.mubr.bf16.mxu0 0
  %1074 = vmatmul.mubr.bf16.gmra.mrb[0].mxu0 %v1004
  %v1075 = vpop.f32.mrb[0].mxu0
  %v1076 = vadd.f32 0.0, %v1075
  %v1077 = vpop.f32.mrb[0].mxu0
  %v1078 = vpop.f32.mrb[0].mxu0
  %v1079 = vadd.f32 0.0, %v1078
  %v1080 = vpop.f32.mrb[0].mxu0
  %1081 = vmatprep.mubr.bf16.mxu0 0
  %1082 = vmatmul.mubr.bf16.gmra.mrb[0].mxu0 %v1005
  %v1083 = vpop.f32.mrb[0].mxu0
  %v1084 = vadd.f32 0.0, %v1083
  %v1085 = vpop.f32.mrb[0].mxu0
  %v1086 = vpop.f32.mrb[0].mxu0
  %v1087 = vadd.f32 0.0, %v1086
  %v1088 = vpop.f32.mrb[0].mxu0
  %1089 = vmatprep.mubr.bf16.mxu0 0
  %1090 = vmatmul.mubr.bf16.gmra.mrb[0].mxu0 %v1006
  %v1091 = vpop.f32.mrb[0].mxu0
  %v1092 = vadd.f32 0.0, %v1091
  %v1093 = vpop.f32.mrb[0].mxu0
  %v1094 = vpop.f32.mrb[0].mxu0
  %v1095 = vadd.f32 0.0, %v1094
  %v1096 = vpop.f32.mrb[0].mxu0
  %1097 = vmatprep.mubr.bf16.mxu0 0
  %1098 = vmatmul.mubr.bf16.gmra.mrb[0].mxu0 %v1007
  %v1099 = vpop.f32.mrb[0].mxu0
  %v1100 = vadd.f32 0.0, %v1099
  %v1101 = vpop.f32.mrb[0].mxu0
  %v1102 = vpop.f32.mrb[0].mxu0
  %v1103 = vadd.f32 0.0, %v1102
  %v1104 = vpop.f32.mrb[0].mxu0
  %1105 = vmatprep.mubr.bf16.mxu0 0
  %1106 = vmatmul.mubr.bf16.gmra.mrb[0].mxu0 %v1008
  %v1107 = vpop.f32.mrb[0].mxu0
  %v1108 = vadd.f32 0.0, %v1107
  %v1109 = vpop.f32.mrb[0].mxu0
  %v1110 = vpop.f32.mrb[0].mxu0
  %v1111 = vadd.f32 0.0, %v1110
  %v1112 = vpop.f32.mrb[0].mxu0
  %1113 = vdwg.mxu0
  %v1114 = vmax.f32 %v936, %v1052
  %v1115 = vmax.f32 %v937, %v1055
  %v1116 = vmax.f32 %v938, %v1060
  %v1117 = vmax.f32 %v939, %v1063
  %v1118 = vmax.f32 %v940, %v1068
  %v1119 = vmax.f32 %v941, %v1071
  %v1120 = vmax.f32 %v942, %v1076
  %v1121 = vmax.f32 %v943, %v1079
  %v1122 = vmax.f32 %v944, %v1084
  %v1123 = vmax.f32 %v945, %v1087
  %v1124 = vmax.f32 %v946, %v1092
  %v1125 = vmax.f32 %v947, %v1095
  %v1126 = vmax.f32 %v948, %v1100
  %v1127 = vmax.f32 %v949, %v1103
  %v1128 = vmax.f32 %v950, %v1108
  %v1129 = vmax.f32 %v951, %v1111
  %s1130 = scalar_lea.vmem %s0, 384
  %v1131 = vld [vmem:[%s1130] sm:$0xf]
  %v1132 = vld [vmem:[%s1130 + $0x4] sm:$0xf]
  %v1133 = vld [vmem:[%s1130 + $0x8] sm:$0xf]
  %v1134 = vld [vmem:[%s1130 + $0xc] sm:$0xf]
  %v1135 = vld [vmem:[%s1130 + $0x10] sm:$0xf]
  %v1136 = vld [vmem:[%s1130 + $0x14] sm:$0xf]
  %v1137 = vld [vmem:[%s1130 + $0x18] sm:$0xf]
  %v1138 = vld [vmem:[%s1130 + $0x1c] sm:$0xf]
  %v1139 = vld [vmem:[%s1130 + $0x20] sm:$0xf]
  %v1140 = vld [vmem:[%s1130 + $0x24] sm:$0xf]
  %v1141 = vld [vmem:[%s1130 + $0x28] sm:$0xf]
  %v1142 = vld [vmem:[%s1130 + $0x2c] sm:$0xf]
  %v1143 = vld [vmem:[%s1130 + $0x30] sm:$0xf]
  %v1144 = vld [vmem:[%s1130 + $0x34] sm:$0xf]
  %v1145 = vld [vmem:[%s1130 + $0x38] sm:$0xf]
  %v1146 = vld [vmem:[%s1130 + $0x3c] sm:$0xf]
  %v1163 = vunpack.c.l.b16 %v1131
  %v1164 = vunpack.c.l.b16 %v1132
  %v1165 = vunpack.c.l.b16 %v1133
  %v1166 = vunpack.c.l.b16 %v1134
  %v1167 = vunpack.c.l.b16 %v1135
  %v1168 = vunpack.c.l.b16 %v1136
  %v1169 = vunpack.c.l.b16 %v1137
  %v1170 = vunpack.c.l.b16 %v1138
  %v1171 = vunpack.c.l.b16 %v1139
  %v1172 = vunpack.c.l.b16 %v1140
  %v1173 = vunpack.c.l.b16 %v1141
  %v1174 = vunpack.c.l.b16 %v1142
  %v1175 = vunpack.c.l.b16 %v1143
  %v1176 = vunpack.c.l.b16 %v1144
  %v1177 = vunpack.c.l.b16 %v1145
  %v1178 = vunpack.c.l.b16 %v1146
  %v1179 = vpack.c.b16 %v1164, %v1163
  %v1180 = vpack.c.b16 %v1166, %v1165
  %v1181 = vpack.c.b16 %v1168, %v1167
  %v1182 = vpack.c.b16 %v1170, %v1169
  %v1183 = vpack.c.b16 %v1172, %v1171
  %v1184 = vpack.c.b16 %v1174, %v1173
  %v1185 = vpack.c.b16 %v1176, %v1175
  %v1186 = vpack.c.b16 %v1178, %v1177
  %1195 = vmatprep.subr.bf16.mxu0 0
  %1196 = vmatpush1.bf16.msra.mxu0 %v127
  %1197 = vmatprep.subr.bf16.mxu0 0
  %1198 = vmatpush1.bf16.msra.mxu0 %v128
  %1199 = vmatprep.subr.bf16.mxu0 0
  %1200 = vmatpush1.bf16.msra.mxu0 %v129
  %1201 = vmatprep.subr.bf16.mxu0 0
  %1202 = vmatpush1.bf16.msra.mxu0 %v130
  %1203 = vmatprep.subr.bf16.mxu0 0
  %1204 = vmatpush1.bf16.msra.mxu0 %v131
  %1205 = vmatprep.subr.bf16.mxu0 0
  %1206 = vmatpush1.bf16.msra.mxu0 %v132
  %1207 = vmatprep.subr.bf16.mxu0 0
  %1208 = vmatpush1.bf16.msra.mxu0 %v133
  %1209 = vmatprep.subr.bf16.mxu0 0
  %1210 = vmatpush1.bf16.msra.mxu0 %v134
  %1211 = vmatprep.subr.bf16.mxu0 0
  %1212 = vmatpush1.bf16.msra.mxu0 0
  %1213 = vmatprep.subr.bf16.mxu0 0
  %1214 = vmatpush1.bf16.msra.mxu0 0
  %1215 = vmatprep.subr.bf16.mxu0 0
  %1216 = vmatpush1.bf16.msra.mxu0 0
  %1217 = vmatprep.subr.bf16.mxu0 0
  %1218 = vmatpush1.bf16.msra.mxu0 0
  %1219 = vmatprep.subr.bf16.mxu0 0
  %1220 = vmatpush1.bf16.msra.mxu0 0
  %1221 = vmatprep.subr.bf16.mxu0 0
  %1222 = vmatpush1.bf16.msra.mxu0 0
  %1223 = vmatprep.subr.bf16.mxu0 0
  %1224 = vmatpush1.bf16.msra.mxu0 0
  %1225 = vmatprep.subr.bf16.mxu0 0
  %1226 = vmatpush1.bf16.msra.mxu0 0
  %1227 = vmatprep.mubr.bf16.mxu0 0
  %1228 = vmatmul.mubr.bf16.gmra.mrb[0].mxu0 %v1179
  %v1229 = vpop.f32.mrb[0].mxu0
  %v1230 = vadd.f32 0.0, %v1229
  %v1231 = vpop.f32.mrb[0].mxu0
  %v1232 = vpop.f32.mrb[0].mxu0
  %v1233 = vadd.f32 0.0, %v1232
  %v1234 = vpop.f32.mrb[0].mxu0
  %1235 = vmatprep.mubr.bf16.mxu0 0
  %1236 = vmatmul.mubr.bf16.gmra.mrb[0].mxu0 %v1180
  %v1237 = vpop.f32.mrb[0].mxu0
  %v1238 = vadd.f32 0.0, %v1237
  %v1239 = vpop.f32.mrb[0].mxu0
  %v1240 = vpop.f32.mrb[0].mxu0
  %v1241 = vadd.f32 0.0, %v1240
  %v1242 = vpop.f32.mrb[0].mxu0
  %1243 = vmatprep.mubr.bf16.mxu0 0
  %1244 = vmatmul.mubr.bf16.gmra.mrb[0].mxu0 %v1181
  %v1245 = vpop.f32.mrb[0].mxu0
  %v1246 = vadd.f32 0.0, %v1245
  %v1247 = vpop.f32.mrb[0].mxu0
  %v1248 = vpop.f32.mrb[0].mxu0
  %v1249 = vadd.f32 0.0, %v1248
  %v1250 = vpop.f32.mrb[0].mxu0
  %1251 = vmatprep.mubr.bf16.mxu0 0
  %1252 = vmatmul.mubr.bf16.gmra.mrb[0].mxu0 %v1182
  %v1253 = vpop.f32.mrb[0].mxu0
  %v1254 = vadd.f32 0.0, %v1253
  %v1255 = vpop.f32.mrb[0].mxu0
  %v1256 = vpop.f32.mrb[0].mxu0
  %v1257 = vadd.f32 0.0, %v1256
  %v1258 = vpop.f32.mrb[0].mxu0
  %1259 = vmatprep.mubr.bf16.mxu0 0
  %1260 = vmatmul.mubr.bf16.gmra.mrb[0].mxu0 %v1183
  %v1261 = vpop.f32.mrb[0].mxu0
  %v1262 = vadd.f32 0.0, %v1261
  %v1263 = vpop.f32.mrb[0].mxu0
  %v1264 = vpop.f32.mrb[0].mxu0
  %v1265 = vadd.f32 0.0, %v1264
  %v1266 = vpop.f32.mrb[0].mxu0
  %1267 = vmatprep.mubr.bf16.mxu0 0
  %1268 = vmatmul.mubr.bf16.gmra.mrb[0].mxu0 %v1184
  %v1269 = vpop.f32.mrb[0].mxu0
  %v1270 = vadd.f32 0.0, %v1269
  %v1271 = vpop.f32.mrb[0].mxu0
  %v1272 = vpop.f32.mrb[0].mxu0
  %v1273 = vadd.f32 0.0, %v1272
  %v1274 = vpop.f32.mrb[0].mxu0
  %1275 = vmatprep.mubr.bf16.mxu0 0
  %1276 = vmatmul.mubr.bf16.gmra.mrb[0].mxu0 %v1185
  %v1277 = vpop.f32.mrb[0].mxu0
  %v1278 = vadd.f32 0.0, %v1277
  %v1279 = vpop.f32.mrb[0].mxu0
  %v1280 = vpop.f32.mrb[0].mxu0
  %v1281 = vadd.f32 0.0, %v1280
  %v1282 = vpop.f32.mrb[0].mxu0
  %1283 = vmatprep.mubr.bf16.mxu0 0
  %1284 = vmatmul.mubr.bf16.gmra.mrb[0].mxu0 %v1186
  %v1285 = vpop.f32.mrb[0].mxu0
  %v1286 = vadd.f32 0.0, %v1285
  %v1287 = vpop.f32.mrb[0].mxu0
  %v1288 = vpop.f32.mrb[0].mxu0
  %v1289 = vadd.f32 0.0, %v1288
  %v1290 = vpop.f32.mrb[0].mxu0
  %1291 = vdwg.mxu0
  %v1292 = vmax.f32 %v1114, %v1230
  %v1293 = vmax.f32 %v1115, %v1233
  %v1294 = vmax.f32 %v1116, %v1238
  %v1295 = vmax.f32 %v1117, %v1241
  %v1296 = vmax.f32 %v1118, %v1246
  %v1297 = vmax.f32 %v1119, %v1249
  %v1298 = vmax.f32 %v1120, %v1254
  %v1299 = vmax.f32 %v1121, %v1257
  %v1300 = vmax.f32 %v1122, %v1262
  %v1301 = vmax.f32 %v1123, %v1265
  %v1302 = vmax.f32 %v1124, %v1270
  %v1303 = vmax.f32 %v1125, %v1273
  %v1304 = vmax.f32 %v1126, %v1278
  %v1305 = vmax.f32 %v1127, %v1281
  %v1306 = vmax.f32 %v1128, %v1286
  %v1307 = vmax.f32 %v1129, %v1289
  %s1308 = scalar_lea.vmem %s0, 448
  %v1309 = vld [vmem:[%s1308] sm:$0xf]
  %v1310 = vld [vmem:[%s1308 + $0x4] sm:$0xf]
  %v1311 = vld [vmem:[%s1308 + $0x8] sm:$0xf]
  %v1312 = vld [vmem:[%s1308 + $0xc] sm:$0xf]
  %v1313 = vld [vmem:[%s1308 + $0x10] sm:$0xf]
  %v1314 = vld [vmem:[%s1308 + $0x14] sm:$0xf]
  %v1315 = vld [vmem:[%s1308 + $0x18] sm:$0xf]
  %v1316 = vld [vmem:[%s1308 + $0x1c] sm:$0xf]
  %v1317 = vld [vmem:[%s1308 + $0x20] sm:$0xf]
  %v1318 = vld [vmem:[%s1308 + $0x24] sm:$0xf]
  %v1319 = vld [vmem:[%s1308 + $0x28] sm:$0xf]
  %v1320 = vld [vmem:[%s1308 + $0x2c] sm:$0xf]
  %v1321 = vld [vmem:[%s1308 + $0x30] sm:$0xf]
  %v1322 = vld [vmem:[%s1308 + $0x34] sm:$0xf]
  %v1323 = vld [vmem:[%s1308 + $0x38] sm:$0xf]
  %v1324 = vld [vmem:[%s1308 + $0x3c] sm:$0xf]
  %v1341 = vunpack.c.l.b16 %v1309
  %v1342 = vunpack.c.l.b16 %v1310
  %v1343 = vunpack.c.l.b16 %v1311
  %v1344 = vunpack.c.l.b16 %v1312
  %v1345 = vunpack.c.l.b16 %v1313
  %v1346 = vunpack.c.l.b16 %v1314
  %v1347 = vunpack.c.l.b16 %v1315
  %v1348 = vunpack.c.l.b16 %v1316
  %v1349 = vunpack.c.l.b16 %v1317
  %v1350 = vunpack.c.l.b16 %v1318
  %v1351 = vunpack.c.l.b16 %v1319
  %v1352 = vunpack.c.l.b16 %v1320
  %v1353 = vunpack.c.l.b16 %v1321
  %v1354 = vunpack.c.l.b16 %v1322
  %v1355 = vunpack.c.l.b16 %v1323
  %v1356 = vunpack.c.l.b16 %v1324
  %v1357 = vpack.c.b16 %v1342, %v1341
  %v1358 = vpack.c.b16 %v1344, %v1343
  %v1359 = vpack.c.b16 %v1346, %v1345
  %v1360 = vpack.c.b16 %v1348, %v1347
  %v1361 = vpack.c.b16 %v1350, %v1349
  %v1362 = vpack.c.b16 %v1352, %v1351
  %v1363 = vpack.c.b16 %v1354, %v1353
  %v1364 = vpack.c.b16 %v1356, %v1355
  %1373 = vmatprep.subr.bf16.mxu0 0
  %1374 = vmatpush1.bf16.msra.mxu0 %v127
  %1375 = vmatprep.subr.bf16.mxu0 0
  %1376 = vmatpush1.bf16.msra.mxu0 %v128
  %1377 = vmatprep.subr.bf16.mxu0 0
  %1378 = vmatpush1.bf16.msra.mxu0 %v129
  %1379 = vmatprep.subr.bf16.mxu0 0
  %1380 = vmatpush1.bf16.msra.mxu0 %v130
  %1381 = vmatprep.subr.bf16.mxu0 0
  %1382 = vmatpush1.bf16.msra.mxu0 %v131
  %1383 = vmatprep.subr.bf16.mxu0 0
  %1384 = vmatpush1.bf16.msra.mxu0 %v132
  %1385 = vmatprep.subr.bf16.mxu0 0
  %1386 = vmatpush1.bf16.msra.mxu0 %v133
  %1387 = vmatprep.subr.bf16.mxu0 0
  %1388 = vmatpush1.bf16.msra.mxu0 %v134
  %1389 = vmatprep.subr.bf16.mxu0 0
  %1390 = vmatpush1.bf16.msra.mxu0 0
  %1391 = vmatprep.subr.bf16.mxu0 0
  %1392 = vmatpush1.bf16.msra.mxu0 0
  %1393 = vmatprep.subr.bf16.mxu0 0
  %1394 = vmatpush1.bf16.msra.mxu0 0
  %1395 = vmatprep.subr.bf16.mxu0 0
  %1396 = vmatpush1.bf16.msra.mxu0 0
  %1397 = vmatprep.subr.bf16.mxu0 0
  %1398 = vmatpush1.bf16.msra.mxu0 0
  %1399 = vmatprep.subr.bf16.mxu0 0
  %1400 = vmatpush1.bf16.msra.mxu0 0
  %1401 = vmatprep.subr.bf16.mxu0 0
  %1402 = vmatpush1.bf16.msra.mxu0 0
  %1403 = vmatprep.subr.bf16.mxu0 0
  %1404 = vmatpush1.bf16.msra.mxu0 0
  %1405 = vmatprep.mubr.bf16.mxu0 0
  %1406 = vmatmul.mubr.bf16.gmra.mrb[0].mxu0 %v1357
  %v1407 = vpop.f32.mrb[0].mxu0
  %v1408 = vadd.f32 0.0, %v1407
  %v1409 = vpop.f32.mrb[0].mxu0
  %v1410 = vpop.f32.mrb[0].mxu0
  %v1411 = vadd.f32 0.0, %v1410
  %v1412 = vpop.f32.mrb[0].mxu0
  %1413 = vmatprep.mubr.bf16.mxu0 0
  %1414 = vmatmul.mubr.bf16.gmra.mrb[0].mxu0 %v1358
  %v1415 = vpop.f32.mrb[0].mxu0
  %v1416 = vadd.f32 0.0, %v1415
  %v1417 = vpop.f32.mrb[0].mxu0
  %v1418 = vpop.f32.mrb[0].mxu0
  %v1419 = vadd.f32 0.0, %v1418
  %v1420 = vpop.f32.mrb[0].mxu0
  %1421 = vmatprep.mubr.bf16.mxu0 0
  %1422 = vmatmul.mubr.bf16.gmra.mrb[0].mxu0 %v1359
  %v1423 = vpop.f32.mrb[0].mxu0
  %v1424 = vadd.f32 0.0, %v1423
  %v1425 = vpop.f32.mrb[0].mxu0
  %v1426 = vpop.f32.mrb[0].mxu0
  %v1427 = vadd.f32 0.0, %v1426
  %v1428 = vpop.f32.mrb[0].mxu0
  %1429 = vmatprep.mubr.bf16.mxu0 0
  %1430 = vmatmul.mubr.bf16.gmra.mrb[0].mxu0 %v1360
  %v1431 = vpop.f32.mrb[0].mxu0
  %v1432 = vadd.f32 0.0, %v1431
  %v1433 = vpop.f32.mrb[0].mxu0
  %v1434 = vpop.f32.mrb[0].mxu0
  %v1435 = vadd.f32 0.0, %v1434
  %v1436 = vpop.f32.mrb[0].mxu0
  %1437 = vmatprep.mubr.bf16.mxu0 0
  %1438 = vmatmul.mubr.bf16.gmra.mrb[0].mxu0 %v1361
  %v1439 = vpop.f32.mrb[0].mxu0
  %v1440 = vadd.f32 0.0, %v1439
  %v1441 = vpop.f32.mrb[0].mxu0
  %v1442 = vpop.f32.mrb[0].mxu0
  %v1443 = vadd.f32 0.0, %v1442
  %v1444 = vpop.f32.mrb[0].mxu0
  %1445 = vmatprep.mubr.bf16.mxu0 0
  %1446 = vmatmul.mubr.bf16.gmra.mrb[0].mxu0 %v1362
  %v1447 = vpop.f32.mrb[0].mxu0
  %v1448 = vadd.f32 0.0, %v1447
  %v1449 = vpop.f32.mrb[0].mxu0
  %v1450 = vpop.f32.mrb[0].mxu0
  %v1451 = vadd.f32 0.0, %v1450
  %v1452 = vpop.f32.mrb[0].mxu0
  %1453 = vmatprep.mubr.bf16.mxu0 0
  %1454 = vmatmul.mubr.bf16.gmra.mrb[0].mxu0 %v1363
  %v1455 = vpop.f32.mrb[0].mxu0
  %v1456 = vadd.f32 0.0, %v1455
  %v1457 = vpop.f32.mrb[0].mxu0
  %v1458 = vpop.f32.mrb[0].mxu0
  %v1459 = vadd.f32 0.0, %v1458
  %v1460 = vpop.f32.mrb[0].mxu0
  %1461 = vmatprep.mubr.bf16.mxu0 0
  %1462 = vmatmul.mubr.bf16.gmra.mrb[0].mxu0 %v1364
  %v1463 = vpop.f32.mrb[0].mxu0
  %v1464 = vadd.f32 0.0, %v1463
  %v1465 = vpop.f32.mrb[0].mxu0
  %v1466 = vpop.f32.mrb[0].mxu0
  %v1467 = vadd.f32 0.0, %v1466
  %v1468 = vpop.f32.mrb[0].mxu0
  %1469 = vdwg.mxu0
  %v1470 = vmax.f32 %v1292, %v1408
  %v1471 = vmax.f32 %v1293, %v1411
  %v1472 = vmax.f32 %v1294, %v1416
  %v1473 = vmax.f32 %v1295, %v1419
  %v1474 = vmax.f32 %v1296, %v1424
  %v1475 = vmax.f32 %v1297, %v1427
  %v1476 = vmax.f32 %v1298, %v1432
  %v1477 = vmax.f32 %v1299, %v1435
  %v1478 = vmax.f32 %v1300, %v1440
  %v1479 = vmax.f32 %v1301, %v1443
  %v1480 = vmax.f32 %v1302, %v1448
  %v1481 = vmax.f32 %v1303, %v1451
  %v1482 = vmax.f32 %v1304, %v1456
  %v1483 = vmax.f32 %v1305, %v1459
  %v1484 = vmax.f32 %v1306, %v1464
  %v1485 = vmax.f32 %v1307, %v1467
  %s1486 = scalar_lea.vmem %s0, 512
  %v1487 = vld [vmem:[%s1486] sm:$0xf]
  %v1488 = vld [vmem:[%s1486 + $0x4] sm:$0xf]
  %v1489 = vld [vmem:[%s1486 + $0x8] sm:$0xf]
  %v1490 = vld [vmem:[%s1486 + $0xc] sm:$0xf]
  %v1491 = vld [vmem:[%s1486 + $0x10] sm:$0xf]
  %v1492 = vld [vmem:[%s1486 + $0x14] sm:$0xf]
  %v1493 = vld [vmem:[%s1486 + $0x18] sm:$0xf]
  %v1494 = vld [vmem:[%s1486 + $0x1c] sm:$0xf]
  %v1495 = vld [vmem:[%s1486 + $0x20] sm:$0xf]
  %v1496 = vld [vmem:[%s1486 + $0x24] sm:$0xf]
  %v1497 = vld [vmem:[%s1486 + $0x28] sm:$0xf]
  %v1498 = vld [vmem:[%s1486 + $0x2c] sm:$0xf]
  %v1499 = vld [vmem:[%s1486 + $0x30] sm:$0xf]
  %v1500 = vld [vmem:[%s1486 + $0x34] sm:$0xf]
  %v1501 = vld [vmem:[%s1486 + $0x38] sm:$0xf]
  %v1502 = vld [vmem:[%s1486 + $0x3c] sm:$0xf]
  %v1519 = vunpack.c.l.b16 %v1487
  %v1520 = vunpack.c.l.b16 %v1488
  %v1521 = vunpack.c.l.b16 %v1489
  %v1522 = vunpack.c.l.b16 %v1490
  %v1523 = vunpack.c.l.b16 %v1491
  %v1524 = vunpack.c.l.b16 %v1492
  %v1525 = vunpack.c.l.b16 %v1493
  %v1526 = vunpack.c.l.b16 %v1494
  %v1527 = vunpack.c.l.b16 %v1495
  %v1528 = vunpack.c.l.b16 %v1496
  %v1529 = vunpack.c.l.b16 %v1497
  %v1530 = vunpack.c.l.b16 %v1498
  %v1531 = vunpack.c.l.b16 %v1499
  %v1532 = vunpack.c.l.b16 %v1500
  %v1533 = vunpack.c.l.b16 %v1501
  %v1534 = vunpack.c.l.b16 %v1502
  %v1535 = vpack.c.b16 %v1520, %v1519
  %v1536 = vpack.c.b16 %v1522, %v1521
  %v1537 = vpack.c.b16 %v1524, %v1523
  %v1538 = vpack.c.b16 %v1526, %v1525
  %v1539 = vpack.c.b16 %v1528, %v1527
  %v1540 = vpack.c.b16 %v1530, %v1529
  %v1541 = vpack.c.b16 %v1532, %v1531
  %v1542 = vpack.c.b16 %v1534, %v1533
  %1551 = vmatprep.subr.bf16.mxu0 0
  %1552 = vmatpush1.bf16.msra.mxu0 %v127
  %1553 = vmatprep.subr.bf16.mxu0 0
  %1554 = vmatpush1.bf16.msra.mxu0 %v128
  %1555 = vmatprep.subr.bf16.mxu0 0
  %1556 = vmatpush1.bf16.msra.mxu0 %v129
  %1557 = vmatprep.subr.bf16.mxu0 0
  %1558 = vmatpush1.bf16.msra.mxu0 %v130
  %1559 = vmatprep.subr.bf16.mxu0 0
  %1560 = vmatpush1.bf16.msra.mxu0 %v131
  %1561 = vmatprep.subr.bf16.mxu0 0
  %1562 = vmatpush1.bf16.msra.mxu0 %v132
  %1563 = vmatprep.subr.bf16.mxu0 0
  %1564 = vmatpush1.bf16.msra.mxu0 %v133
  %1565 = vmatprep.subr.bf16.mxu0 0
  %1566 = vmatpush1.bf16.msra.mxu0 %v134
  %1567 = vmatprep.subr.bf16.mxu0 0
  %1568 = vmatpush1.bf16.msra.mxu0 0
  %1569 = vmatprep.subr.bf16.mxu0 0
  %1570 = vmatpush1.bf16.msra.mxu0 0
  %1571 = vmatprep.subr.bf16.mxu0 0
  %1572 = vmatpush1.bf16.msra.mxu0 0
  %1573 = vmatprep.subr.bf16.mxu0 0
  %1574 = vmatpush1.bf16.msra.mxu0 0
  %1575 = vmatprep.subr.bf16.mxu0 0
  %1576 = vmatpush1.bf16.msra.mxu0 0
  %1577 = vmatprep.subr.bf16.mxu0 0
  %1578 = vmatpush1.bf16.msra.mxu0 0
  %1579 = vmatprep.subr.bf16.mxu0 0
  %1580 = vmatpush1.bf16.msra.mxu0 0
  %1581 = vmatprep.subr.bf16.mxu0 0
  %1582 = vmatpush1.bf16.msra.mxu0 0
  %1583 = vmatprep.mubr.bf16.mxu0 0
  %1584 = vmatmul.mubr.bf16.gmra.mrb[0].mxu0 %v1535
  %v1585 = vpop.f32.mrb[0].mxu0
  %v1586 = vadd.f32 0.0, %v1585
  %v1587 = vpop.f32.mrb[0].mxu0
  %v1588 = vpop.f32.mrb[0].mxu0
  %v1589 = vadd.f32 0.0, %v1588
  %v1590 = vpop.f32.mrb[0].mxu0
  %1591 = vmatprep.mubr.bf16.mxu0 0
  %1592 = vmatmul.mubr.bf16.gmra.mrb[0].mxu0 %v1536
  %v1593 = vpop.f32.mrb[0].mxu0
  %v1594 = vadd.f32 0.0, %v1593
  %v1595 = vpop.f32.mrb[0].mxu0
  %v1596 = vpop.f32.mrb[0].mxu0
  %v1597 = vadd.f32 0.0, %v1596
  %v1598 = vpop.f32.mrb[0].mxu0
  %1599 = vmatprep.mubr.bf16.mxu0 0
  %1600 = vmatmul.mubr.bf16.gmra.mrb[0].mxu0 %v1537
  %v1601 = vpop.f32.mrb[0].mxu0
  %v1602 = vadd.f32 0.0, %v1601
  %v1603 = vpop.f32.mrb[0].mxu0
  %v1604 = vpop.f32.mrb[0].mxu0
  %v1605 = vadd.f32 0.0, %v1604
  %v1606 = vpop.f32.mrb[0].mxu0
  %1607 = vmatprep.mubr.bf16.mxu0 0
  %1608 = vmatmul.mubr.bf16.gmra.mrb[0].mxu0 %v1538
  %v1609 = vpop.f32.mrb[0].mxu0
  %v1610 = vadd.f32 0.0, %v1609
  %v1611 = vpop.f32.mrb[0].mxu0
  %v1612 = vpop.f32.mrb[0].mxu0
  %v1613 = vadd.f32 0.0, %v1612
  %v1614 = vpop.f32.mrb[0].mxu0
  %1615 = vmatprep.mubr.bf16.mxu0 0
  %1616 = vmatmul.mubr.bf16.gmra.mrb[0].mxu0 %v1539
  %v1617 = vpop.f32.mrb[0].mxu0
  %v1618 = vadd.f32 0.0, %v1617
  %v1619 = vpop.f32.mrb[0].mxu0
  %v1620 = vpop.f32.mrb[0].mxu0
  %v1621 = vadd.f32 0.0, %v1620
  %v1622 = vpop.f32.mrb[0].mxu0
  %1623 = vmatprep.mubr.bf16.mxu0 0
  %1624 = vmatmul.mubr.bf16.gmra.mrb[0].mxu0 %v1540
  %v1625 = vpop.f32.mrb[0].mxu0
  %v1626 = vadd.f32 0.0, %v1625
  %v1627 = vpop.f32.mrb[0].mxu0
  %v1628 = vpop.f32.mrb[0].mxu0
  %v1629 = vadd.f32 0.0, %v1628
  %v1630 = vpop.f32.mrb[0].mxu0
  %1631 = vmatprep.mubr.bf16.mxu0 0
  %1632 = vmatmul.mubr.bf16.gmra.mrb[0].mxu0 %v1541
  %v1633 = vpop.f32.mrb[0].mxu0
  %v1634 = vadd.f32 0.0, %v1633
  %v1635 = vpop.f32.mrb[0].mxu0
  %v1636 = vpop.f32.mrb[0].mxu0
  %v1637 = vadd.f32 0.0, %v1636
  %v1638 = vpop.f32.mrb[0].mxu0
  %1639 = vmatprep.mubr.bf16.mxu0 0
  %1640 = vmatmul.mubr.bf16.gmra.mrb[0].mxu0 %v1542
  %v1641 = vpop.f32.mrb[0].mxu0
  %v1642 = vadd.f32 0.0, %v1641
  %v1643 = vpop.f32.mrb[0].mxu0
  %v1644 = vpop.f32.mrb[0].mxu0
  %v1645 = vadd.f32 0.0, %v1644
  %v1646 = vpop.f32.mrb[0].mxu0
  %1647 = vdwg.mxu0
  %v1648 = vmax.f32 %v1470, %v1586
  %v1649 = vmax.f32 %v1471, %v1589
  %v1650 = vmax.f32 %v1472, %v1594
  %v1651 = vmax.f32 %v1473, %v1597
  %v1652 = vmax.f32 %v1474, %v1602
  %v1653 = vmax.f32 %v1475, %v1605
  %v1654 = vmax.f32 %v1476, %v1610
  %v1655 = vmax.f32 %v1477, %v1613
  %v1656 = vmax.f32 %v1478, %v1618
  %v1657 = vmax.f32 %v1479, %v1621
  %v1658 = vmax.f32 %v1480, %v1626
  %v1659 = vmax.f32 %v1481, %v1629
  %v1660 = vmax.f32 %v1482, %v1634
  %v1661 = vmax.f32 %v1483, %v1637
  %v1662 = vmax.f32 %v1484, %v1642
  %v1663 = vmax.f32 %v1485, %v1645
  %s1664 = scalar_lea.vmem %s0, 576
  %v1665 = vld [vmem:[%s1664] sm:$0xf]
  %v1666 = vld [vmem:[%s1664 + $0x4] sm:$0xf]
  %v1667 = vld [vmem:[%s1664 + $0x8] sm:$0xf]
  %v1668 = vld [vmem:[%s1664 + $0xc] sm:$0xf]
  %v1669 = vld [vmem:[%s1664 + $0x10] sm:$0xf]
  %v1670 = vld [vmem:[%s1664 + $0x14] sm:$0xf]
  %v1671 = vld [vmem:[%s1664 + $0x18] sm:$0xf]
  %v1672 = vld [vmem:[%s1664 + $0x1c] sm:$0xf]
  %v1673 = vld [vmem:[%s1664 + $0x20] sm:$0xf]
  %v1674 = vld [vmem:[%s1664 + $0x24] sm:$0xf]
  %v1675 = vld [vmem:[%s1664 + $0x28] sm:$0xf]
  %v1676 = vld [vmem:[%s1664 + $0x2c] sm:$0xf]
  %v1677 = vld [vmem:[%s1664 + $0x30] sm:$0xf]
  %v1678 = vld [vmem:[%s1664 + $0x34] sm:$0xf]
  %v1679 = vld [vmem:[%s1664 + $0x38] sm:$0xf]
  %v1680 = vld [vmem:[%s1664 + $0x3c] sm:$0xf]
  %v1697 = vunpack.c.l.b16 %v1665
  %v1698 = vunpack.c.l.b16 %v1666
  %v1699 = vunpack.c.l.b16 %v1667
  %v1700 = vunpack.c.l.b16 %v1668
  %v1701 = vunpack.c.l.b16 %v1669
  %v1702 = vunpack.c.l.b16 %v1670
  %v1703 = vunpack.c.l.b16 %v1671
  %v1704 = vunpack.c.l.b16 %v1672
  %v1705 = vunpack.c.l.b16 %v1673
  %v1706 = vunpack.c.l.b16 %v1674
  %v1707 = vunpack.c.l.b16 %v1675
  %v1708 = vunpack.c.l.b16 %v1676
  %v1709 = vunpack.c.l.b16 %v1677
  %v1710 = vunpack.c.l.b16 %v1678
  %v1711 = vunpack.c.l.b16 %v1679
  %v1712 = vunpack.c.l.b16 %v1680
  %v1713 = vpack.c.b16 %v1698, %v1697
  %v1714 = vpack.c.b16 %v1700, %v1699
  %v1715 = vpack.c.b16 %v1702, %v1701
  %v1716 = vpack.c.b16 %v1704, %v1703
  %v1717 = vpack.c.b16 %v1706, %v1705
  %v1718 = vpack.c.b16 %v1708, %v1707
  %v1719 = vpack.c.b16 %v1710, %v1709
  %v1720 = vpack.c.b16 %v1712, %v1711
  %1729 = vmatprep.subr.bf16.mxu0 0
  %1730 = vmatpush1.bf16.msra.mxu0 %v127
  %1731 = vmatprep.subr.bf16.mxu0 0
  %1732 = vmatpush1.bf16.msra.mxu0 %v128
  %1733 = vmatprep.subr.bf16.mxu0 0
  %1734 = vmatpush1.bf16.msra.mxu0 %v129
  %1735 = vmatprep.subr.bf16.mxu0 0
  %1736 = vmatpush1.bf16.msra.mxu0 %v130
  %1737 = vmatprep.subr.bf16.mxu0 0
  %1738 = vmatpush1.bf16.msra.mxu0 %v131
  %1739 = vmatprep.subr.bf16.mxu0 0
  %1740 = vmatpush1.bf16.msra.mxu0 %v132
  %1741 = vmatprep.subr.bf16.mxu0 0
  %1742 = vmatpush1.bf16.msra.mxu0 %v133
  %1743 = vmatprep.subr.bf16.mxu0 0
  %1744 = vmatpush1.bf16.msra.mxu0 %v134
  %1745 = vmatprep.subr.bf16.mxu0 0
  %1746 = vmatpush1.bf16.msra.mxu0 0
  %1747 = vmatprep.subr.bf16.mxu0 0
  %1748 = vmatpush1.bf16.msra.mxu0 0
  %1749 = vmatprep.subr.bf16.mxu0 0
  %1750 = vmatpush1.bf16.msra.mxu0 0
  %1751 = vmatprep.subr.bf16.mxu0 0
  %1752 = vmatpush1.bf16.msra.mxu0 0
  %1753 = vmatprep.subr.bf16.mxu0 0
  %1754 = vmatpush1.bf16.msra.mxu0 0
  %1755 = vmatprep.subr.bf16.mxu0 0
  %1756 = vmatpush1.bf16.msra.mxu0 0
  %1757 = vmatprep.subr.bf16.mxu0 0
  %1758 = vmatpush1.bf16.msra.mxu0 0
  %1759 = vmatprep.subr.bf16.mxu0 0
  %1760 = vmatpush1.bf16.msra.mxu0 0
  %1761 = vmatprep.mubr.bf16.mxu0 0
  %1762 = vmatmul.mubr.bf16.gmra.mrb[0].mxu0 %v1713
  %v1763 = vpop.f32.mrb[0].mxu0
  %v1764 = vadd.f32 0.0, %v1763
  %v1765 = vpop.f32.mrb[0].mxu0
  %v1766 = vpop.f32.mrb[0].mxu0
  %v1767 = vadd.f32 0.0, %v1766
  %v1768 = vpop.f32.mrb[0].mxu0
  %1769 = vmatprep.mubr.bf16.mxu0 0
  %1770 = vmatmul.mubr.bf16.gmra.mrb[0].mxu0 %v1714
  %v1771 = vpop.f32.mrb[0].mxu0
  %v1772 = vadd.f32 0.0, %v1771
  %v1773 = vpop.f32.mrb[0].mxu0
  %v1774 = vpop.f32.mrb[0].mxu0
  %v1775 = vadd.f32 0.0, %v1774
  %v1776 = vpop.f32.mrb[0].mxu0
  %1777 = vmatprep.mubr.bf16.mxu0 0
  %1778 = vmatmul.mubr.bf16.gmra.mrb[0].mxu0 %v1715
  %v1779 = vpop.f32.mrb[0].mxu0
  %v1780 = vadd.f32 0.0, %v1779
  %v1781 = vpop.f32.mrb[0].mxu0
  %v1782 = vpop.f32.mrb[0].mxu0
  %v1783 = vadd.f32 0.0, %v1782
  %v1784 = vpop.f32.mrb[0].mxu0
  %1785 = vmatprep.mubr.bf16.mxu0 0
  %1786 = vmatmul.mubr.bf16.gmra.mrb[0].mxu0 %v1716
  %v1787 = vpop.f32.mrb[0].mxu0
  %v1788 = vadd.f32 0.0, %v1787
  %v1789 = vpop.f32.mrb[0].mxu0
  %v1790 = vpop.f32.mrb[0].mxu0
  %v1791 = vadd.f32 0.0, %v1790
  %v1792 = vpop.f32.mrb[0].mxu0
  %1793 = vmatprep.mubr.bf16.mxu0 0
  %1794 = vmatmul.mubr.bf16.gmra.mrb[0].mxu0 %v1717
  %v1795 = vpop.f32.mrb[0].mxu0
  %v1796 = vadd.f32 0.0, %v1795
  %v1797 = vpop.f32.mrb[0].mxu0
  %v1798 = vpop.f32.mrb[0].mxu0
  %v1799 = vadd.f32 0.0, %v1798
  %v1800 = vpop.f32.mrb[0].mxu0
  %1801 = vmatprep.mubr.bf16.mxu0 0
  %1802 = vmatmul.mubr.bf16.gmra.mrb[0].mxu0 %v1718
  %v1803 = vpop.f32.mrb[0].mxu0
  %v1804 = vadd.f32 0.0, %v1803
  %v1805 = vpop.f32.mrb[0].mxu0
  %v1806 = vpop.f32.mrb[0].mxu0
  %v1807 = vadd.f32 0.0, %v1806
  %v1808 = vpop.f32.mrb[0].mxu0
  %1809 = vmatprep.mubr.bf16.mxu0 0
  %1810 = vmatmul.mubr.bf16.gmra.mrb[0].mxu0 %v1719
  %v1811 = vpop.f32.mrb[0].mxu0
  %v1812 = vadd.f32 0.0, %v1811
  %v1813 = vpop.f32.mrb[0].mxu0
  %v1814 = vpop.f32.mrb[0].mxu0
  %v1815 = vadd.f32 0.0, %v1814
  %v1816 = vpop.f32.mrb[0].mxu0
  %1817 = vmatprep.mubr.bf16.mxu0 0
  %1818 = vmatmul.mubr.bf16.gmra.mrb[0].mxu0 %v1720
  %v1819 = vpop.f32.mrb[0].mxu0
  %v1820 = vadd.f32 0.0, %v1819
  %v1821 = vpop.f32.mrb[0].mxu0
  %v1822 = vpop.f32.mrb[0].mxu0
  %v1823 = vadd.f32 0.0, %v1822
  %v1824 = vpop.f32.mrb[0].mxu0
  %1825 = vdwg.mxu0
  %v1826 = vmax.f32 %v1648, %v1764
  %v1827 = vmax.f32 %v1649, %v1767
  %v1828 = vmax.f32 %v1650, %v1772
  %v1829 = vmax.f32 %v1651, %v1775
  %v1830 = vmax.f32 %v1652, %v1780
  %v1831 = vmax.f32 %v1653, %v1783
  %v1832 = vmax.f32 %v1654, %v1788
  %v1833 = vmax.f32 %v1655, %v1791
  %v1834 = vmax.f32 %v1656, %v1796
  %v1835 = vmax.f32 %v1657, %v1799
  %v1836 = vmax.f32 %v1658, %v1804
  %v1837 = vmax.f32 %v1659, %v1807
  %v1838 = vmax.f32 %v1660, %v1812
  %v1839 = vmax.f32 %v1661, %v1815
  %v1840 = vmax.f32 %v1662, %v1820
  %v1841 = vmax.f32 %v1663, %v1823
  %s1842 = scalar_lea.vmem %s0, 640
  %v1843 = vld [vmem:[%s1842] sm:$0xf]
  %v1844 = vld [vmem:[%s1842 + $0x4] sm:$0xf]
  %v1845 = vld [vmem:[%s1842 + $0x8] sm:$0xf]
  %v1846 = vld [vmem:[%s1842 + $0xc] sm:$0xf]
  %v1847 = vld [vmem:[%s1842 + $0x10] sm:$0xf]
  %v1848 = vld [vmem:[%s1842 + $0x14] sm:$0xf]
  %v1849 = vld [vmem:[%s1842 + $0x18] sm:$0xf]
  %v1850 = vld [vmem:[%s1842 + $0x1c] sm:$0xf]
  %v1851 = vld [vmem:[%s1842 + $0x20] sm:$0xf]
  %v1852 = vld [vmem:[%s1842 + $0x24] sm:$0xf]
  %v1853 = vld [vmem:[%s1842 + $0x28] sm:$0xf]
  %v1854 = vld [vmem:[%s1842 + $0x2c] sm:$0xf]
  %v1855 = vld [vmem:[%s1842 + $0x30] sm:$0xf]
  %v1856 = vld [vmem:[%s1842 + $0x34] sm:$0xf]
  %v1857 = vld [vmem:[%s1842 + $0x38] sm:$0xf]
  %v1858 = vld [vmem:[%s1842 + $0x3c] sm:$0xf]
  %v1875 = vunpack.c.l.b16 %v1843
  %v1876 = vunpack.c.l.b16 %v1844
  %v1877 = vunpack.c.l.b16 %v1845
  %v1878 = vunpack.c.l.b16 %v1846
  %v1879 = vunpack.c.l.b16 %v1847
  %v1880 = vunpack.c.l.b16 %v1848
  %v1881 = vunpack.c.l.b16 %v1849
  %v1882 = vunpack.c.l.b16 %v1850
  %v1883 = vunpack.c.l.b16 %v1851
  %v1884 = vunpack.c.l.b16 %v1852
  %v1885 = vunpack.c.l.b16 %v1853
  %v1886 = vunpack.c.l.b16 %v1854
  %v1887 = vunpack.c.l.b16 %v1855
  %v1888 = vunpack.c.l.b16 %v1856
  %v1889 = vunpack.c.l.b16 %v1857
  %v1890 = vunpack.c.l.b16 %v1858
  %v1891 = vpack.c.b16 %v1876, %v1875
  %v1892 = vpack.c.b16 %v1878, %v1877
  %v1893 = vpack.c.b16 %v1880, %v1879
  %v1894 = vpack.c.b16 %v1882, %v1881
  %v1895 = vpack.c.b16 %v1884, %v1883
  %v1896 = vpack.c.b16 %v1886, %v1885
  %v1897 = vpack.c.b16 %v1888, %v1887
  %v1898 = vpack.c.b16 %v1890, %v1889
  %1907 = vmatprep.subr.bf16.mxu0 0
  %1908 = vmatpush1.bf16.msra.mxu0 %v127
  %1909 = vmatprep.subr.bf16.mxu0 0
  %1910 = vmatpush1.bf16.msra.mxu0 %v128
  %1911 = vmatprep.subr.bf16.mxu0 0
  %1912 = vmatpush1.bf16.msra.mxu0 %v129
  %1913 = vmatprep.subr.bf16.mxu0 0
  %1914 = vmatpush1.bf16.msra.mxu0 %v130
  %1915 = vmatprep.subr.bf16.mxu0 0
  %1916 = vmatpush1.bf16.msra.mxu0 %v131
  %1917 = vmatprep.subr.bf16.mxu0 0
  %1918 = vmatpush1.bf16.msra.mxu0 %v132
  %1919 = vmatprep.subr.bf16.mxu0 0
  %1920 = vmatpush1.bf16.msra.mxu0 %v133
  %1921 = vmatprep.subr.bf16.mxu0 0
  %1922 = vmatpush1.bf16.msra.mxu0 %v134
  %1923 = vmatprep.subr.bf16.mxu0 0
  %1924 = vmatpush1.bf16.msra.mxu0 0
  %1925 = vmatprep.subr.bf16.mxu0 0
  %1926 = vmatpush1.bf16.msra.mxu0 0
  %1927 = vmatprep.subr.bf16.mxu0 0
  %1928 = vmatpush1.bf16.msra.mxu0 0
  %1929 = vmatprep.subr.bf16.mxu0 0
  %1930 = vmatpush1.bf16.msra.mxu0 0
  %1931 = vmatprep.subr.bf16.mxu0 0
  %1932 = vmatpush1.bf16.msra.mxu0 0
  %1933 = vmatprep.subr.bf16.mxu0 0
  %1934 = vmatpush1.bf16.msra.mxu0 0
  %1935 = vmatprep.subr.bf16.mxu0 0
  %1936 = vmatpush1.bf16.msra.mxu0 0
  %1937 = vmatprep.subr.bf16.mxu0 0
  %1938 = vmatpush1.bf16.msra.mxu0 0
  %1939 = vmatprep.mubr.bf16.mxu0 0
  %1940 = vmatmul.mubr.bf16.gmra.mrb[0].mxu0 %v1891
  %v1941 = vpop.f32.mrb[0].mxu0
  %v1942 = vadd.f32 0.0, %v1941
  %v1943 = vpop.f32.mrb[0].mxu0
  %v1944 = vpop.f32.mrb[0].mxu0
  %v1945 = vadd.f32 0.0, %v1944
  %v1946 = vpop.f32.mrb[0].mxu0
  %1947 = vmatprep.mubr.bf16.mxu0 0
  %1948 = vmatmul.mubr.bf16.gmra.mrb[0].mxu0 %v1892
  %v1949 = vpop.f32.mrb[0].mxu0
  %v1950 = vadd.f32 0.0, %v1949
  %v1951 = vpop.f32.mrb[0].mxu0
  %v1952 = vpop.f32.mrb[0].mxu0
  %v1953 = vadd.f32 0.0, %v1952
  %v1954 = vpop.f32.mrb[0].mxu0
  %1955 = vmatprep.mubr.bf16.mxu0 0
  %1956 = vmatmul.mubr.bf16.gmra.mrb[0].mxu0 %v1893
  %v1957 = vpop.f32.mrb[0].mxu0
  %v1958 = vadd.f32 0.0, %v1957
  %v1959 = vpop.f32.mrb[0].mxu0
  %v1960 = vpop.f32.mrb[0].mxu0
  %v1961 = vadd.f32 0.0, %v1960
  %v1962 = vpop.f32.mrb[0].mxu0
  %1963 = vmatprep.mubr.bf16.mxu0 0
  %1964 = vmatmul.mubr.bf16.gmra.mrb[0].mxu0 %v1894
  %v1965 = vpop.f32.mrb[0].mxu0
  %v1966 = vadd.f32 0.0, %v1965
  %v1967 = vpop.f32.mrb[0].mxu0
  %v1968 = vpop.f32.mrb[0].mxu0
  %v1969 = vadd.f32 0.0, %v1968
  %v1970 = vpop.f32.mrb[0].mxu0
  %1971 = vmatprep.mubr.bf16.mxu0 0
  %1972 = vmatmul.mubr.bf16.gmra.mrb[0].mxu0 %v1895
  %v1973 = vpop.f32.mrb[0].mxu0
  %v1974 = vadd.f32 0.0, %v1973
  %v1975 = vpop.f32.mrb[0].mxu0
  %v1976 = vpop.f32.mrb[0].mxu0
  %v1977 = vadd.f32 0.0, %v1976
  %v1978 = vpop.f32.mrb[0].mxu0
  %1979 = vmatprep.mubr.bf16.mxu0 0
  %1980 = vmatmul.mubr.bf16.gmra.mrb[0].mxu0 %v1896
  %v1981 = vpop.f32.mrb[0].mxu0
  %v1982 = vadd.f32 0.0, %v1981
  %v1983 = vpop.f32.mrb[0].mxu0
  %v1984 = vpop.f32.mrb[0].mxu0
  %v1985 = vadd.f32 0.0, %v1984
  %v1986 = vpop.f32.mrb[0].mxu0
  %1987 = vmatprep.mubr.bf16.mxu0 0
  %1988 = vmatmul.mubr.bf16.gmra.mrb[0].mxu0 %v1897
  %v1989 = vpop.f32.mrb[0].mxu0
  %v1990 = vadd.f32 0.0, %v1989
  %v1991 = vpop.f32.mrb[0].mxu0
  %v1992 = vpop.f32.mrb[0].mxu0
  %v1993 = vadd.f32 0.0, %v1992
  %v1994 = vpop.f32.mrb[0].mxu0
  %1995 = vmatprep.mubr.bf16.mxu0 0
  %1996 = vmatmul.mubr.bf16.gmra.mrb[0].mxu0 %v1898
  %v1997 = vpop.f32.mrb[0].mxu0
  %v1998 = vadd.f32 0.0, %v1997
  %v1999 = vpop.f32.mrb[0].mxu0
  %v2000 = vpop.f32.mrb[0].mxu0
  %v2001 = vadd.f32 0.0, %v2000
  %v2002 = vpop.f32.mrb[0].mxu0
  %2003 = vdwg.mxu0
  %v2004 = vmax.f32 %v1826, %v1942
  %v2005 = vmax.f32 %v1827, %v1945
  %v2006 = vmax.f32 %v1828, %v1950
  %v2007 = vmax.f32 %v1829, %v1953
  %v2008 = vmax.f32 %v1830, %v1958
  %v2009 = vmax.f32 %v1831, %v1961
  %v2010 = vmax.f32 %v1832, %v1966
  %v2011 = vmax.f32 %v1833, %v1969
  %v2012 = vmax.f32 %v1834, %v1974
  %v2013 = vmax.f32 %v1835, %v1977
  %v2014 = vmax.f32 %v1836, %v1982
  %v2015 = vmax.f32 %v1837, %v1985
  %v2016 = vmax.f32 %v1838, %v1990
  %v2017 = vmax.f32 %v1839, %v1993
  %v2018 = vmax.f32 %v1840, %v1998
  %v2019 = vmax.f32 %v1841, %v2001
  %s2020 = scalar_lea.vmem %s0, 704
  %v2021 = vld [vmem:[%s2020] sm:$0xf]
  %v2022 = vld [vmem:[%s2020 + $0x4] sm:$0xf]
  %v2023 = vld [vmem:[%s2020 + $0x8] sm:$0xf]
  %v2024 = vld [vmem:[%s2020 + $0xc] sm:$0xf]
  %v2025 = vld [vmem:[%s2020 + $0x10] sm:$0xf]
  %v2026 = vld [vmem:[%s2020 + $0x14] sm:$0xf]
  %v2027 = vld [vmem:[%s2020 + $0x18] sm:$0xf]
  %v2028 = vld [vmem:[%s2020 + $0x1c] sm:$0xf]
  %v2029 = vld [vmem:[%s2020 + $0x20] sm:$0xf]
  %v2030 = vld [vmem:[%s2020 + $0x24] sm:$0xf]
  %v2031 = vld [vmem:[%s2020 + $0x28] sm:$0xf]
  %v2032 = vld [vmem:[%s2020 + $0x2c] sm:$0xf]
  %v2033 = vld [vmem:[%s2020 + $0x30] sm:$0xf]
  %v2034 = vld [vmem:[%s2020 + $0x34] sm:$0xf]
  %v2035 = vld [vmem:[%s2020 + $0x38] sm:$0xf]
  %v2036 = vld [vmem:[%s2020 + $0x3c] sm:$0xf]
  %v2053 = vunpack.c.l.b16 %v2021
  %v2054 = vunpack.c.l.b16 %v2022
  %v2055 = vunpack.c.l.b16 %v2023
  %v2056 = vunpack.c.l.b16 %v2024
  %v2057 = vunpack.c.l.b16 %v2025
  %v2058 = vunpack.c.l.b16 %v2026
  %v2059 = vunpack.c.l.b16 %v2027
  %v2060 = vunpack.c.l.b16 %v2028
  %v2061 = vunpack.c.l.b16 %v2029
  %v2062 = vunpack.c.l.b16 %v2030
  %v2063 = vunpack.c.l.b16 %v2031
  %v2064 = vunpack.c.l.b16 %v2032
  %v2065 = vunpack.c.l.b16 %v2033
  %v2066 = vunpack.c.l.b16 %v2034
  %v2067 = vunpack.c.l.b16 %v2035
  %v2068 = vunpack.c.l.b16 %v2036
  %v2069 = vpack.c.b16 %v2054, %v2053
  %v2070 = vpack.c.b16 %v2056, %v2055
  %v2071 = vpack.c.b16 %v2058, %v2057
  %v2072 = vpack.c.b16 %v2060, %v2059
  %v2073 = vpack.c.b16 %v2062, %v2061
  %v2074 = vpack.c.b16 %v2064, %v2063
  %v2075 = vpack.c.b16 %v2066, %v2065
  %v2076 = vpack.c.b16 %v2068, %v2067
  %2085 = vmatprep.subr.bf16.mxu0 0
  %2086 = vmatpush1.bf16.msra.mxu0 %v127
  %2087 = vmatprep.subr.bf16.mxu0 0
  %2088 = vmatpush1.bf16.msra.mxu0 %v128
  %2089 = vmatprep.subr.bf16.mxu0 0
  %2090 = vmatpush1.bf16.msra.mxu0 %v129
  %2091 = vmatprep.subr.bf16.mxu0 0
  %2092 = vmatpush1.bf16.msra.mxu0 %v130
  %2093 = vmatprep.subr.bf16.mxu0 0
  %2094 = vmatpush1.bf16.msra.mxu0 %v131
  %2095 = vmatprep.subr.bf16.mxu0 0
  %2096 = vmatpush1.bf16.msra.mxu0 %v132
  %2097 = vmatprep.subr.bf16.mxu0 0
  %2098 = vmatpush1.bf16.msra.mxu0 %v133
  %2099 = vmatprep.subr.bf16.mxu0 0
  %2100 = vmatpush1.bf16.msra.mxu0 %v134
  %2101 = vmatprep.subr.bf16.mxu0 0
  %2102 = vmatpush1.bf16.msra.mxu0 0
  %2103 = vmatprep.subr.bf16.mxu0 0
  %2104 = vmatpush1.bf16.msra.mxu0 0
  %2105 = vmatprep.subr.bf16.mxu0 0
  %2106 = vmatpush1.bf16.msra.mxu0 0
  %2107 = vmatprep.subr.bf16.mxu0 0
  %2108 = vmatpush1.bf16.msra.mxu0 0
  %2109 = vmatprep.subr.bf16.mxu0 0
  %2110 = vmatpush1.bf16.msra.mxu0 0
  %2111 = vmatprep.subr.bf16.mxu0 0
  %2112 = vmatpush1.bf16.msra.mxu0 0
  %2113 = vmatprep.subr.bf16.mxu0 0
  %2114 = vmatpush1.bf16.msra.mxu0 0
  %2115 = vmatprep.subr.bf16.mxu0 0
  %2116 = vmatpush1.bf16.msra.mxu0 0
  %2117 = vmatprep.mubr.bf16.mxu0 0
  %2118 = vmatmul.mubr.bf16.gmra.mrb[0].mxu0 %v2069
  %v2119 = vpop.f32.mrb[0].mxu0
  %v2120 = vadd.f32 0.0, %v2119
  %v2121 = vpop.f32.mrb[0].mxu0
  %v2122 = vpop.f32.mrb[0].mxu0
  %v2123 = vadd.f32 0.0, %v2122
  %v2124 = vpop.f32.mrb[0].mxu0
  %2125 = vmatprep.mubr.bf16.mxu0 0
  %2126 = vmatmul.mubr.bf16.gmra.mrb[0].mxu0 %v2070
  %v2127 = vpop.f32.mrb[0].mxu0
  %v2128 = vadd.f32 0.0, %v2127
  %v2129 = vpop.f32.mrb[0].mxu0
  %v2130 = vpop.f32.mrb[0].mxu0
  %v2131 = vadd.f32 0.0, %v2130
  %v2132 = vpop.f32.mrb[0].mxu0
  %2133 = vmatprep.mubr.bf16.mxu0 0
  %2134 = vmatmul.mubr.bf16.gmra.mrb[0].mxu0 %v2071
  %v2135 = vpop.f32.mrb[0].mxu0
  %v2136 = vadd.f32 0.0, %v2135
  %v2137 = vpop.f32.mrb[0].mxu0
  %v2138 = vpop.f32.mrb[0].mxu0
  %v2139 = vadd.f32 0.0, %v2138
  %v2140 = vpop.f32.mrb[0].mxu0
  %2141 = vmatprep.mubr.bf16.mxu0 0
  %2142 = vmatmul.mubr.bf16.gmra.mrb[0].mxu0 %v2072
  %v2143 = vpop.f32.mrb[0].mxu0
  %v2144 = vadd.f32 0.0, %v2143
  %v2145 = vpop.f32.mrb[0].mxu0
  %v2146 = vpop.f32.mrb[0].mxu0
  %v2147 = vadd.f32 0.0, %v2146
  %v2148 = vpop.f32.mrb[0].mxu0
  %2149 = vmatprep.mubr.bf16.mxu0 0
  %2150 = vmatmul.mubr.bf16.gmra.mrb[0].mxu0 %v2073
  %v2151 = vpop.f32.mrb[0].mxu0
  %v2152 = vadd.f32 0.0, %v2151
  %v2153 = vpop.f32.mrb[0].mxu0
  %v2154 = vpop.f32.mrb[0].mxu0
  %v2155 = vadd.f32 0.0, %v2154
  %v2156 = vpop.f32.mrb[0].mxu0
  %2157 = vmatprep.mubr.bf16.mxu0 0
  %2158 = vmatmul.mubr.bf16.gmra.mrb[0].mxu0 %v2074
  %v2159 = vpop.f32.mrb[0].mxu0
  %v2160 = vadd.f32 0.0, %v2159
  %v2161 = vpop.f32.mrb[0].mxu0
  %v2162 = vpop.f32.mrb[0].mxu0
  %v2163 = vadd.f32 0.0, %v2162
  %v2164 = vpop.f32.mrb[0].mxu0
  %2165 = vmatprep.mubr.bf16.mxu0 0
  %2166 = vmatmul.mubr.bf16.gmra.mrb[0].mxu0 %v2075
  %v2167 = vpop.f32.mrb[0].mxu0
  %v2168 = vadd.f32 0.0, %v2167
  %v2169 = vpop.f32.mrb[0].mxu0
  %v2170 = vpop.f32.mrb[0].mxu0
  %v2171 = vadd.f32 0.0, %v2170
  %v2172 = vpop.f32.mrb[0].mxu0
  %2173 = vmatprep.mubr.bf16.mxu0 0
  %2174 = vmatmul.mubr.bf16.gmra.mrb[0].mxu0 %v2076
  %v2175 = vpop.f32.mrb[0].mxu0
  %v2176 = vadd.f32 0.0, %v2175
  %v2177 = vpop.f32.mrb[0].mxu0
  %v2178 = vpop.f32.mrb[0].mxu0
  %v2179 = vadd.f32 0.0, %v2178
  %v2180 = vpop.f32.mrb[0].mxu0
  %2181 = vdwg.mxu0
  %v2182 = vmax.f32 %v2004, %v2120
  %v2183 = vmax.f32 %v2005, %v2123
  %v2184 = vmax.f32 %v2006, %v2128
  %v2185 = vmax.f32 %v2007, %v2131
  %v2186 = vmax.f32 %v2008, %v2136
  %v2187 = vmax.f32 %v2009, %v2139
  %v2188 = vmax.f32 %v2010, %v2144
  %v2189 = vmax.f32 %v2011, %v2147
  %v2190 = vmax.f32 %v2012, %v2152
  %v2191 = vmax.f32 %v2013, %v2155
  %v2192 = vmax.f32 %v2014, %v2160
  %v2193 = vmax.f32 %v2015, %v2163
  %v2194 = vmax.f32 %v2016, %v2168
  %v2195 = vmax.f32 %v2017, %v2171
  %v2196 = vmax.f32 %v2018, %v2176
  %v2197 = vmax.f32 %v2019, %v2179
  %s2198 = scalar_lea.vmem %s0, 768
  %v2199 = vld [vmem:[%s2198] sm:$0xf]
  %v2200 = vld [vmem:[%s2198 + $0x4] sm:$0xf]
  %v2201 = vld [vmem:[%s2198 + $0x8] sm:$0xf]
  %v2202 = vld [vmem:[%s2198 + $0xc] sm:$0xf]
  %v2203 = vld [vmem:[%s2198 + $0x10] sm:$0xf]
  %v2204 = vld [vmem:[%s2198 + $0x14] sm:$0xf]
  %v2205 = vld [vmem:[%s2198 + $0x18] sm:$0xf]
  %v2206 = vld [vmem:[%s2198 + $0x1c] sm:$0xf]
  %v2207 = vld [vmem:[%s2198 + $0x20] sm:$0xf]
  %v2208 = vld [vmem:[%s2198 + $0x24] sm:$0xf]
  %v2209 = vld [vmem:[%s2198 + $0x28] sm:$0xf]
  %v2210 = vld [vmem:[%s2198 + $0x2c] sm:$0xf]
  %v2211 = vld [vmem:[%s2198 + $0x30] sm:$0xf]
  %v2212 = vld [vmem:[%s2198 + $0x34] sm:$0xf]
  %v2213 = vld [vmem:[%s2198 + $0x38] sm:$0xf]
  %v2214 = vld [vmem:[%s2198 + $0x3c] sm:$0xf]
  %v2231 = vunpack.c.l.b16 %v2199
  %v2232 = vunpack.c.l.b16 %v2200
  %v2233 = vunpack.c.l.b16 %v2201
  %v2234 = vunpack.c.l.b16 %v2202
  %v2235 = vunpack.c.l.b16 %v2203
  %v2236 = vunpack.c.l.b16 %v2204
  %v2237 = vunpack.c.l.b16 %v2205
  %v2238 = vunpack.c.l.b16 %v2206
  %v2239 = vunpack.c.l.b16 %v2207
  %v2240 = vunpack.c.l.b16 %v2208
  %v2241 = vunpack.c.l.b16 %v2209
  %v2242 = vunpack.c.l.b16 %v2210
  %v2243 = vunpack.c.l.b16 %v2211
  %v2244 = vunpack.c.l.b16 %v2212
  %v2245 = vunpack.c.l.b16 %v2213
  %v2246 = vunpack.c.l.b16 %v2214
  %v2247 = vpack.c.b16 %v2232, %v2231
  %v2248 = vpack.c.b16 %v2234, %v2233
  %v2249 = vpack.c.b16 %v2236, %v2235
  %v2250 = vpack.c.b16 %v2238, %v2237
  %v2251 = vpack.c.b16 %v2240, %v2239
  %v2252 = vpack.c.b16 %v2242, %v2241
  %v2253 = vpack.c.b16 %v2244, %v2243
  %v2254 = vpack.c.b16 %v2246, %v2245
  %2263 = vmatprep.subr.bf16.mxu0 0
  %2264 = vmatpush1.bf16.msra.mxu0 %v127
  %2265 = vmatprep.subr.bf16.mxu0 0
  %2266 = vmatpush1.bf16.msra.mxu0 %v128
  %2267 = vmatprep.subr.bf16.mxu0 0
  %2268 = vmatpush1.bf16.msra.mxu0 %v129
  %2269 = vmatprep.subr.bf16.mxu0 0
  %2270 = vmatpush1.bf16.msra.mxu0 %v130
  %2271 = vmatprep.subr.bf16.mxu0 0
  %2272 = vmatpush1.bf16.msra.mxu0 %v131
  %2273 = vmatprep.subr.bf16.mxu0 0
  %2274 = vmatpush1.bf16.msra.mxu0 %v132
  %2275 = vmatprep.subr.bf16.mxu0 0
  %2276 = vmatpush1.bf16.msra.mxu0 %v133
  %2277 = vmatprep.subr.bf16.mxu0 0
  %2278 = vmatpush1.bf16.msra.mxu0 %v134
  %2279 = vmatprep.subr.bf16.mxu0 0
  %2280 = vmatpush1.bf16.msra.mxu0 0
  %2281 = vmatprep.subr.bf16.mxu0 0
  %2282 = vmatpush1.bf16.msra.mxu0 0
  %2283 = vmatprep.subr.bf16.mxu0 0
  %2284 = vmatpush1.bf16.msra.mxu0 0
  %2285 = vmatprep.subr.bf16.mxu0 0
  %2286 = vmatpush1.bf16.msra.mxu0 0
  %2287 = vmatprep.subr.bf16.mxu0 0
  %2288 = vmatpush1.bf16.msra.mxu0 0
  %2289 = vmatprep.subr.bf16.mxu0 0
  %2290 = vmatpush1.bf16.msra.mxu0 0
  %2291 = vmatprep.subr.bf16.mxu0 0
  %2292 = vmatpush1.bf16.msra.mxu0 0
  %2293 = vmatprep.subr.bf16.mxu0 0
  %2294 = vmatpush1.bf16.msra.mxu0 0
  %2295 = vmatprep.mubr.bf16.mxu0 0
  %2296 = vmatmul.mubr.bf16.gmra.mrb[0].mxu0 %v2247
  %v2297 = vpop.f32.mrb[0].mxu0
  %v2298 = vadd.f32 0.0, %v2297
  %v2299 = vpop.f32.mrb[0].mxu0
  %v2300 = vpop.f32.mrb[0].mxu0
  %v2301 = vadd.f32 0.0, %v2300
  %v2302 = vpop.f32.mrb[0].mxu0
  %2303 = vmatprep.mubr.bf16.mxu0 0
  %2304 = vmatmul.mubr.bf16.gmra.mrb[0].mxu0 %v2248
  %v2305 = vpop.f32.mrb[0].mxu0
  %v2306 = vadd.f32 0.0, %v2305
  %v2307 = vpop.f32.mrb[0].mxu0
  %v2308 = vpop.f32.mrb[0].mxu0
  %v2309 = vadd.f32 0.0, %v2308
  %v2310 = vpop.f32.mrb[0].mxu0
  %2311 = vmatprep.mubr.bf16.mxu0 0
  %2312 = vmatmul.mubr.bf16.gmra.mrb[0].mxu0 %v2249
  %v2313 = vpop.f32.mrb[0].mxu0
  %v2314 = vadd.f32 0.0, %v2313
  %v2315 = vpop.f32.mrb[0].mxu0
  %v2316 = vpop.f32.mrb[0].mxu0
  %v2317 = vadd.f32 0.0, %v2316
  %v2318 = vpop.f32.mrb[0].mxu0
  %2319 = vmatprep.mubr.bf16.mxu0 0
  %2320 = vmatmul.mubr.bf16.gmra.mrb[0].mxu0 %v2250
  %v2321 = vpop.f32.mrb[0].mxu0
  %v2322 = vadd.f32 0.0, %v2321
  %v2323 = vpop.f32.mrb[0].mxu0
  %v2324 = vpop.f32.mrb[0].mxu0
  %v2325 = vadd.f32 0.0, %v2324
  %v2326 = vpop.f32.mrb[0].mxu0
  %2327 = vmatprep.mubr.bf16.mxu0 0
  %2328 = vmatmul.mubr.bf16.gmra.mrb[0].mxu0 %v2251
  %v2329 = vpop.f32.mrb[0].mxu0
  %v2330 = vadd.f32 0.0, %v2329
  %v2331 = vpop.f32.mrb[0].mxu0
  %v2332 = vpop.f32.mrb[0].mxu0
  %v2333 = vadd.f32 0.0, %v2332
  %v2334 = vpop.f32.mrb[0].mxu0
  %2335 = vmatprep.mubr.bf16.mxu0 0
  %2336 = vmatmul.mubr.bf16.gmra.mrb[0].mxu0 %v2252
  %v2337 = vpop.f32.mrb[0].mxu0
  %v2338 = vadd.f32 0.0, %v2337
  %v2339 = vpop.f32.mrb[0].mxu0
  %v2340 = vpop.f32.mrb[0].mxu0
  %v2341 = vadd.f32 0.0, %v2340
  %v2342 = vpop.f32.mrb[0].mxu0
  %2343 = vmatprep.mubr.bf16.mxu0 0
  %2344 = vmatmul.mubr.bf16.gmra.mrb[0].mxu0 %v2253
  %v2345 = vpop.f32.mrb[0].mxu0
  %v2346 = vadd.f32 0.0, %v2345
  %v2347 = vpop.f32.mrb[0].mxu0
  %v2348 = vpop.f32.mrb[0].mxu0
  %v2349 = vadd.f32 0.0, %v2348
  %v2350 = vpop.f32.mrb[0].mxu0
  %2351 = vmatprep.mubr.bf16.mxu0 0
  %2352 = vmatmul.mubr.bf16.gmra.mrb[0].mxu0 %v2254
  %v2353 = vpop.f32.mrb[0].mxu0
  %v2354 = vadd.f32 0.0, %v2353
  %v2355 = vpop.f32.mrb[0].mxu0
  %v2356 = vpop.f32.mrb[0].mxu0
  %v2357 = vadd.f32 0.0, %v2356
  %v2358 = vpop.f32.mrb[0].mxu0
  %2359 = vdwg.mxu0
  %v2360 = vmax.f32 %v2182, %v2298
  %v2361 = vmax.f32 %v2183, %v2301
  %v2362 = vmax.f32 %v2184, %v2306
  %v2363 = vmax.f32 %v2185, %v2309
  %v2364 = vmax.f32 %v2186, %v2314
  %v2365 = vmax.f32 %v2187, %v2317
  %v2366 = vmax.f32 %v2188, %v2322
  %v2367 = vmax.f32 %v2189, %v2325
  %v2368 = vmax.f32 %v2190, %v2330
  %v2369 = vmax.f32 %v2191, %v2333
  %v2370 = vmax.f32 %v2192, %v2338
  %v2371 = vmax.f32 %v2193, %v2341
  %v2372 = vmax.f32 %v2194, %v2346
  %v2373 = vmax.f32 %v2195, %v2349
  %v2374 = vmax.f32 %v2196, %v2354
  %v2375 = vmax.f32 %v2197, %v2357
  %s2376 = scalar_lea.vmem %s0, 832
  %v2377 = vld [vmem:[%s2376] sm:$0xf]
  %v2378 = vld [vmem:[%s2376 + $0x4] sm:$0xf]
  %v2379 = vld [vmem:[%s2376 + $0x8] sm:$0xf]
  %v2380 = vld [vmem:[%s2376 + $0xc] sm:$0xf]
  %v2381 = vld [vmem:[%s2376 + $0x10] sm:$0xf]
  %v2382 = vld [vmem:[%s2376 + $0x14] sm:$0xf]
  %v2383 = vld [vmem:[%s2376 + $0x18] sm:$0xf]
  %v2384 = vld [vmem:[%s2376 + $0x1c] sm:$0xf]
  %v2385 = vld [vmem:[%s2376 + $0x20] sm:$0xf]
  %v2386 = vld [vmem:[%s2376 + $0x24] sm:$0xf]
  %v2387 = vld [vmem:[%s2376 + $0x28] sm:$0xf]
  %v2388 = vld [vmem:[%s2376 + $0x2c] sm:$0xf]
  %v2389 = vld [vmem:[%s2376 + $0x30] sm:$0xf]
  %v2390 = vld [vmem:[%s2376 + $0x34] sm:$0xf]
  %v2391 = vld [vmem:[%s2376 + $0x38] sm:$0xf]
  %v2392 = vld [vmem:[%s2376 + $0x3c] sm:$0xf]
  %v2409 = vunpack.c.l.b16 %v2377
  %v2410 = vunpack.c.l.b16 %v2378
  %v2411 = vunpack.c.l.b16 %v2379
  %v2412 = vunpack.c.l.b16 %v2380
  %v2413 = vunpack.c.l.b16 %v2381
  %v2414 = vunpack.c.l.b16 %v2382
  %v2415 = vunpack.c.l.b16 %v2383
  %v2416 = vunpack.c.l.b16 %v2384
  %v2417 = vunpack.c.l.b16 %v2385
  %v2418 = vunpack.c.l.b16 %v2386
  %v2419 = vunpack.c.l.b16 %v2387
  %v2420 = vunpack.c.l.b16 %v2388
  %v2421 = vunpack.c.l.b16 %v2389
  %v2422 = vunpack.c.l.b16 %v2390
  %v2423 = vunpack.c.l.b16 %v2391
  %v2424 = vunpack.c.l.b16 %v2392
  %v2425 = vpack.c.b16 %v2410, %v2409
  %v2426 = vpack.c.b16 %v2412, %v2411
  %v2427 = vpack.c.b16 %v2414, %v2413
  %v2428 = vpack.c.b16 %v2416, %v2415
  %v2429 = vpack.c.b16 %v2418, %v2417
  %v2430 = vpack.c.b16 %v2420, %v2419
  %v2431 = vpack.c.b16 %v2422, %v2421
  %v2432 = vpack.c.b16 %v2424, %v2423
  %2441 = vmatprep.subr.bf16.mxu0 0
  %2442 = vmatpush1.bf16.msra.mxu0 %v127
  %2443 = vmatprep.subr.bf16.mxu0 0
  %2444 = vmatpush1.bf16.msra.mxu0 %v128
  %2445 = vmatprep.subr.bf16.mxu0 0
  %2446 = vmatpush1.bf16.msra.mxu0 %v129
  %2447 = vmatprep.subr.bf16.mxu0 0
  %2448 = vmatpush1.bf16.msra.mxu0 %v130
  %2449 = vmatprep.subr.bf16.mxu0 0
  %2450 = vmatpush1.bf16.msra.mxu0 %v131
  %2451 = vmatprep.subr.bf16.mxu0 0
  %2452 = vmatpush1.bf16.msra.mxu0 %v132
  %2453 = vmatprep.subr.bf16.mxu0 0
  %2454 = vmatpush1.bf16.msra.mxu0 %v133
  %2455 = vmatprep.subr.bf16.mxu0 0
  %2456 = vmatpush1.bf16.msra.mxu0 %v134
  %2457 = vmatprep.subr.bf16.mxu0 0
  %2458 = vmatpush1.bf16.msra.mxu0 0
  %2459 = vmatprep.subr.bf16.mxu0 0
  %2460 = vmatpush1.bf16.msra.mxu0 0
  %2461 = vmatprep.subr.bf16.mxu0 0
  %2462 = vmatpush1.bf16.msra.mxu0 0
  %2463 = vmatprep.subr.bf16.mxu0 0
  %2464 = vmatpush1.bf16.msra.mxu0 0
  %2465 = vmatprep.subr.bf16.mxu0 0
  %2466 = vmatpush1.bf16.msra.mxu0 0
  %2467 = vmatprep.subr.bf16.mxu0 0
  %2468 = vmatpush1.bf16.msra.mxu0 0
  %2469 = vmatprep.subr.bf16.mxu0 0
  %2470 = vmatpush1.bf16.msra.mxu0 0
  %2471 = vmatprep.subr.bf16.mxu0 0
  %2472 = vmatpush1.bf16.msra.mxu0 0
  %2473 = vmatprep.mubr.bf16.mxu0 0
  %2474 = vmatmul.mubr.bf16.gmra.mrb[0].mxu0 %v2425
  %v2475 = vpop.f32.mrb[0].mxu0
  %v2476 = vadd.f32 0.0, %v2475
  %v2477 = vpop.f32.mrb[0].mxu0
  %v2478 = vpop.f32.mrb[0].mxu0
  %v2479 = vadd.f32 0.0, %v2478
  %v2480 = vpop.f32.mrb[0].mxu0
  %2481 = vmatprep.mubr.bf16.mxu0 0
  %2482 = vmatmul.mubr.bf16.gmra.mrb[0].mxu0 %v2426
  %v2483 = vpop.f32.mrb[0].mxu0
  %v2484 = vadd.f32 0.0, %v2483
  %v2485 = vpop.f32.mrb[0].mxu0
  %v2486 = vpop.f32.mrb[0].mxu0
  %v2487 = vadd.f32 0.0, %v2486
  %v2488 = vpop.f32.mrb[0].mxu0
  %2489 = vmatprep.mubr.bf16.mxu0 0
  %2490 = vmatmul.mubr.bf16.gmra.mrb[0].mxu0 %v2427
  %v2491 = vpop.f32.mrb[0].mxu0
  %v2492 = vadd.f32 0.0, %v2491
  %v2493 = vpop.f32.mrb[0].mxu0
  %v2494 = vpop.f32.mrb[0].mxu0
  %v2495 = vadd.f32 0.0, %v2494
  %v2496 = vpop.f32.mrb[0].mxu0
  %2497 = vmatprep.mubr.bf16.mxu0 0
  %2498 = vmatmul.mubr.bf16.gmra.mrb[0].mxu0 %v2428
  %v2499 = vpop.f32.mrb[0].mxu0
  %v2500 = vadd.f32 0.0, %v2499
  %v2501 = vpop.f32.mrb[0].mxu0
  %v2502 = vpop.f32.mrb[0].mxu0
  %v2503 = vadd.f32 0.0, %v2502
  %v2504 = vpop.f32.mrb[0].mxu0
  %2505 = vmatprep.mubr.bf16.mxu0 0
  %2506 = vmatmul.mubr.bf16.gmra.mrb[0].mxu0 %v2429
  %v2507 = vpop.f32.mrb[0].mxu0
  %v2508 = vadd.f32 0.0, %v2507
  %v2509 = vpop.f32.mrb[0].mxu0
  %v2510 = vpop.f32.mrb[0].mxu0
  %v2511 = vadd.f32 0.0, %v2510
  %v2512 = vpop.f32.mrb[0].mxu0
  %2513 = vmatprep.mubr.bf16.mxu0 0
  %2514 = vmatmul.mubr.bf16.gmra.mrb[0].mxu0 %v2430
  %v2515 = vpop.f32.mrb[0].mxu0
  %v2516 = vadd.f32 0.0, %v2515
  %v2517 = vpop.f32.mrb[0].mxu0
  %v2518 = vpop.f32.mrb[0].mxu0
  %v2519 = vadd.f32 0.0, %v2518
  %v2520 = vpop.f32.mrb[0].mxu0
  %2521 = vmatprep.mubr.bf16.mxu0 0
  %2522 = vmatmul.mubr.bf16.gmra.mrb[0].mxu0 %v2431
  %v2523 = vpop.f32.mrb[0].mxu0
  %v2524 = vadd.f32 0.0, %v2523
  %v2525 = vpop.f32.mrb[0].mxu0
  %v2526 = vpop.f32.mrb[0].mxu0
  %v2527 = vadd.f32 0.0, %v2526
  %v2528 = vpop.f32.mrb[0].mxu0
  %2529 = vmatprep.mubr.bf16.mxu0 0
  %2530 = vmatmul.mubr.bf16.gmra.mrb[0].mxu0 %v2432
  %v2531 = vpop.f32.mrb[0].mxu0
  %v2532 = vadd.f32 0.0, %v2531
  %v2533 = vpop.f32.mrb[0].mxu0
  %v2534 = vpop.f32.mrb[0].mxu0
  %v2535 = vadd.f32 0.0, %v2534
  %v2536 = vpop.f32.mrb[0].mxu0
  %2537 = vdwg.mxu0
  %v2538 = vmax.f32 %v2360, %v2476
  %v2539 = vmax.f32 %v2361, %v2479
  %v2540 = vmax.f32 %v2362, %v2484
  %v2541 = vmax.f32 %v2363, %v2487
  %v2542 = vmax.f32 %v2364, %v2492
  %v2543 = vmax.f32 %v2365, %v2495
  %v2544 = vmax.f32 %v2366, %v2500
  %v2545 = vmax.f32 %v2367, %v2503
  %v2546 = vmax.f32 %v2368, %v2508
  %v2547 = vmax.f32 %v2369, %v2511
  %v2548 = vmax.f32 %v2370, %v2516
  %v2549 = vmax.f32 %v2371, %v2519
  %v2550 = vmax.f32 %v2372, %v2524
  %v2551 = vmax.f32 %v2373, %v2527
  %v2552 = vmax.f32 %v2374, %v2532
  %v2553 = vmax.f32 %v2375, %v2535
  %s2554 = scalar_lea.vmem %s0, 896
  %v2555 = vld [vmem:[%s2554] sm:$0xf]
  %v2556 = vld [vmem:[%s2554 + $0x4] sm:$0xf]
  %v2557 = vld [vmem:[%s2554 + $0x8] sm:$0xf]
  %v2558 = vld [vmem:[%s2554 + $0xc] sm:$0xf]
  %v2559 = vld [vmem:[%s2554 + $0x10] sm:$0xf]
  %v2560 = vld [vmem:[%s2554 + $0x14] sm:$0xf]
  %v2561 = vld [vmem:[%s2554 + $0x18] sm:$0xf]
  %v2562 = vld [vmem:[%s2554 + $0x1c] sm:$0xf]
  %v2563 = vld [vmem:[%s2554 + $0x20] sm:$0xf]
  %v2564 = vld [vmem:[%s2554 + $0x24] sm:$0xf]
  %v2565 = vld [vmem:[%s2554 + $0x28] sm:$0xf]
  %v2566 = vld [vmem:[%s2554 + $0x2c] sm:$0xf]
  %v2567 = vld [vmem:[%s2554 + $0x30] sm:$0xf]
  %v2568 = vld [vmem:[%s2554 + $0x34] sm:$0xf]
  %v2569 = vld [vmem:[%s2554 + $0x38] sm:$0xf]
  %v2570 = vld [vmem:[%s2554 + $0x3c] sm:$0xf]
  %v2587 = vunpack.c.l.b16 %v2555
  %v2588 = vunpack.c.l.b16 %v2556
  %v2589 = vunpack.c.l.b16 %v2557
  %v2590 = vunpack.c.l.b16 %v2558
  %v2591 = vunpack.c.l.b16 %v2559
  %v2592 = vunpack.c.l.b16 %v2560
  %v2593 = vunpack.c.l.b16 %v2561
  %v2594 = vunpack.c.l.b16 %v2562
  %v2595 = vunpack.c.l.b16 %v2563
  %v2596 = vunpack.c.l.b16 %v2564
  %v2597 = vunpack.c.l.b16 %v2565
  %v2598 = vunpack.c.l.b16 %v2566
  %v2599 = vunpack.c.l.b16 %v2567
  %v2600 = vunpack.c.l.b16 %v2568
  %v2601 = vunpack.c.l.b16 %v2569
  %v2602 = vunpack.c.l.b16 %v2570
  %v2603 = vpack.c.b16 %v2588, %v2587
  %v2604 = vpack.c.b16 %v2590, %v2589
  %v2605 = vpack.c.b16 %v2592, %v2591
  %v2606 = vpack.c.b16 %v2594, %v2593
  %v2607 = vpack.c.b16 %v2596, %v2595
  %v2608 = vpack.c.b16 %v2598, %v2597
  %v2609 = vpack.c.b16 %v2600, %v2599
  %v2610 = vpack.c.b16 %v2602, %v2601
  %2619 = vmatprep.subr.bf16.mxu0 0
  %2620 = vmatpush1.bf16.msra.mxu0 %v127
  %2621 = vmatprep.subr.bf16.mxu0 0
  %2622 = vmatpush1.bf16.msra.mxu0 %v128
  %2623 = vmatprep.subr.bf16.mxu0 0
  %2624 = vmatpush1.bf16.msra.mxu0 %v129
  %2625 = vmatprep.subr.bf16.mxu0 0
  %2626 = vmatpush1.bf16.msra.mxu0 %v130
  %2627 = vmatprep.subr.bf16.mxu0 0
  %2628 = vmatpush1.bf16.msra.mxu0 %v131
  %2629 = vmatprep.subr.bf16.mxu0 0
  %2630 = vmatpush1.bf16.msra.mxu0 %v132
  %2631 = vmatprep.subr.bf16.mxu0 0
  %2632 = vmatpush1.bf16.msra.mxu0 %v133
  %2633 = vmatprep.subr.bf16.mxu0 0
  %2634 = vmatpush1.bf16.msra.mxu0 %v134
  %2635 = vmatprep.subr.bf16.mxu0 0
  %2636 = vmatpush1.bf16.msra.mxu0 0
  %2637 = vmatprep.subr.bf16.mxu0 0
  %2638 = vmatpush1.bf16.msra.mxu0 0
  %2639 = vmatprep.subr.bf16.mxu0 0
  %2640 = vmatpush1.bf16.msra.mxu0 0
  %2641 = vmatprep.subr.bf16.mxu0 0
  %2642 = vmatpush1.bf16.msra.mxu0 0
  %2643 = vmatprep.subr.bf16.mxu0 0
  %2644 = vmatpush1.bf16.msra.mxu0 0
  %2645 = vmatprep.subr.bf16.mxu0 0
  %2646 = vmatpush1.bf16.msra.mxu0 0
  %2647 = vmatprep.subr.bf16.mxu0 0
  %2648 = vmatpush1.bf16.msra.mxu0 0
  %2649 = vmatprep.subr.bf16.mxu0 0
  %2650 = vmatpush1.bf16.msra.mxu0 0
  %2651 = vmatprep.mubr.bf16.mxu0 0
  %2652 = vmatmul.mubr.bf16.gmra.mrb[0].mxu0 %v2603
  %v2653 = vpop.f32.mrb[0].mxu0
  %v2654 = vadd.f32 0.0, %v2653
  %v2655 = vpop.f32.mrb[0].mxu0
  %v2656 = vpop.f32.mrb[0].mxu0
  %v2657 = vadd.f32 0.0, %v2656
  %v2658 = vpop.f32.mrb[0].mxu0
  %2659 = vmatprep.mubr.bf16.mxu0 0
  %2660 = vmatmul.mubr.bf16.gmra.mrb[0].mxu0 %v2604
  %v2661 = vpop.f32.mrb[0].mxu0
  %v2662 = vadd.f32 0.0, %v2661
  %v2663 = vpop.f32.mrb[0].mxu0
  %v2664 = vpop.f32.mrb[0].mxu0
  %v2665 = vadd.f32 0.0, %v2664
  %v2666 = vpop.f32.mrb[0].mxu0
  %2667 = vmatprep.mubr.bf16.mxu0 0
  %2668 = vmatmul.mubr.bf16.gmra.mrb[0].mxu0 %v2605
  %v2669 = vpop.f32.mrb[0].mxu0
  %v2670 = vadd.f32 0.0, %v2669
  %v2671 = vpop.f32.mrb[0].mxu0
  %v2672 = vpop.f32.mrb[0].mxu0
  %v2673 = vadd.f32 0.0, %v2672
  %v2674 = vpop.f32.mrb[0].mxu0
  %2675 = vmatprep.mubr.bf16.mxu0 0
  %2676 = vmatmul.mubr.bf16.gmra.mrb[0].mxu0 %v2606
  %v2677 = vpop.f32.mrb[0].mxu0
  %v2678 = vadd.f32 0.0, %v2677
  %v2679 = vpop.f32.mrb[0].mxu0
  %v2680 = vpop.f32.mrb[0].mxu0
  %v2681 = vadd.f32 0.0, %v2680
  %v2682 = vpop.f32.mrb[0].mxu0
  %2683 = vmatprep.mubr.bf16.mxu0 0
  %2684 = vmatmul.mubr.bf16.gmra.mrb[0].mxu0 %v2607
  %v2685 = vpop.f32.mrb[0].mxu0
  %v2686 = vadd.f32 0.0, %v2685
  %v2687 = vpop.f32.mrb[0].mxu0
  %v2688 = vpop.f32.mrb[0].mxu0
  %v2689 = vadd.f32 0.0, %v2688
  %v2690 = vpop.f32.mrb[0].mxu0
  %2691 = vmatprep.mubr.bf16.mxu0 0
  %2692 = vmatmul.mubr.bf16.gmra.mrb[0].mxu0 %v2608
  %v2693 = vpop.f32.mrb[0].mxu0
  %v2694 = vadd.f32 0.0, %v2693
  %v2695 = vpop.f32.mrb[0].mxu0
  %v2696 = vpop.f32.mrb[0].mxu0
  %v2697 = vadd.f32 0.0, %v2696
  %v2698 = vpop.f32.mrb[0].mxu0
  %2699 = vmatprep.mubr.bf16.mxu0 0
  %2700 = vmatmul.mubr.bf16.gmra.mrb[0].mxu0 %v2609
  %v2701 = vpop.f32.mrb[0].mxu0
  %v2702 = vadd.f32 0.0, %v2701
  %v2703 = vpop.f32.mrb[0].mxu0
  %v2704 = vpop.f32.mrb[0].mxu0
  %v2705 = vadd.f32 0.0, %v2704
  %v2706 = vpop.f32.mrb[0].mxu0
  %2707 = vmatprep.mubr.bf16.mxu0 0
  %2708 = vmatmul.mubr.bf16.gmra.mrb[0].mxu0 %v2610
  %v2709 = vpop.f32.mrb[0].mxu0
  %v2710 = vadd.f32 0.0, %v2709
  %v2711 = vpop.f32.mrb[0].mxu0
  %v2712 = vpop.f32.mrb[0].mxu0
  %v2713 = vadd.f32 0.0, %v2712
  %v2714 = vpop.f32.mrb[0].mxu0
  %2715 = vdwg.mxu0
  %v2716 = vmax.f32 %v2538, %v2654
  %v2717 = vmax.f32 %v2539, %v2657
  %v2718 = vmax.f32 %v2540, %v2662
  %v2719 = vmax.f32 %v2541, %v2665
  %v2720 = vmax.f32 %v2542, %v2670
  %v2721 = vmax.f32 %v2543, %v2673
  %v2722 = vmax.f32 %v2544, %v2678
  %v2723 = vmax.f32 %v2545, %v2681
  %v2724 = vmax.f32 %v2546, %v2686
  %v2725 = vmax.f32 %v2547, %v2689
  %v2726 = vmax.f32 %v2548, %v2694
  %v2727 = vmax.f32 %v2549, %v2697
  %v2728 = vmax.f32 %v2550, %v2702
  %v2729 = vmax.f32 %v2551, %v2705
  %v2730 = vmax.f32 %v2552, %v2710
  %v2731 = vmax.f32 %v2553, %v2713
  %s2732 = scalar_lea.vmem %s0, 960
  %v2733 = vld [vmem:[%s2732] sm:$0xf]
  %v2734 = vld [vmem:[%s2732 + $0x4] sm:$0xf]
  %v2735 = vld [vmem:[%s2732 + $0x8] sm:$0xf]
  %v2736 = vld [vmem:[%s2732 + $0xc] sm:$0xf]
  %v2737 = vld [vmem:[%s2732 + $0x10] sm:$0xf]
  %v2738 = vld [vmem:[%s2732 + $0x14] sm:$0xf]
  %v2739 = vld [vmem:[%s2732 + $0x18] sm:$0xf]
  %v2740 = vld [vmem:[%s2732 + $0x1c] sm:$0xf]
  %v2741 = vld [vmem:[%s2732 + $0x20] sm:$0xf]
  %v2742 = vld [vmem:[%s2732 + $0x24] sm:$0xf]
  %v2743 = vld [vmem:[%s2732 + $0x28] sm:$0xf]
  %v2744 = vld [vmem:[%s2732 + $0x2c] sm:$0xf]
  %v2745 = vld [vmem:[%s2732 + $0x30] sm:$0xf]
  %v2746 = vld [vmem:[%s2732 + $0x34] sm:$0xf]
  %v2747 = vld [vmem:[%s2732 + $0x38] sm:$0xf]
  %v2748 = vld [vmem:[%s2732 + $0x3c] sm:$0xf]
  %v2765 = vunpack.c.l.b16 %v2733
  %v2766 = vunpack.c.l.b16 %v2734
  %v2767 = vunpack.c.l.b16 %v2735
  %v2768 = vunpack.c.l.b16 %v2736
  %v2769 = vunpack.c.l.b16 %v2737
  %v2770 = vunpack.c.l.b16 %v2738
  %v2771 = vunpack.c.l.b16 %v2739
  %v2772 = vunpack.c.l.b16 %v2740
  %v2773 = vunpack.c.l.b16 %v2741
  %v2774 = vunpack.c.l.b16 %v2742
  %v2775 = vunpack.c.l.b16 %v2743
  %v2776 = vunpack.c.l.b16 %v2744
  %v2777 = vunpack.c.l.b16 %v2745
  %v2778 = vunpack.c.l.b16 %v2746
  %v2779 = vunpack.c.l.b16 %v2747
  %v2780 = vunpack.c.l.b16 %v2748
  %v2781 = vpack.c.b16 %v2766, %v2765
  %v2782 = vpack.c.b16 %v2768, %v2767
  %v2783 = vpack.c.b16 %v2770, %v2769
  %v2784 = vpack.c.b16 %v2772, %v2771
  %v2785 = vpack.c.b16 %v2774, %v2773
  %v2786 = vpack.c.b16 %v2776, %v2775
  %v2787 = vpack.c.b16 %v2778, %v2777
  %v2788 = vpack.c.b16 %v2780, %v2779
  %2797 = vmatprep.subr.bf16.mxu0 0
  %2798 = vmatpush1.bf16.msra.mxu0 %v127
  %2799 = vmatprep.subr.bf16.mxu0 0
  %2800 = vmatpush1.bf16.msra.mxu0 %v128
  %2801 = vmatprep.subr.bf16.mxu0 0
  %2802 = vmatpush1.bf16.msra.mxu0 %v129
  %2803 = vmatprep.subr.bf16.mxu0 0
  %2804 = vmatpush1.bf16.msra.mxu0 %v130
  %2805 = vmatprep.subr.bf16.mxu0 0
  %2806 = vmatpush1.bf16.msra.mxu0 %v131
  %2807 = vmatprep.subr.bf16.mxu0 0
  %2808 = vmatpush1.bf16.msra.mxu0 %v132
  %2809 = vmatprep.subr.bf16.mxu0 0
  %2810 = vmatpush1.bf16.msra.mxu0 %v133
  %2811 = vmatprep.subr.bf16.mxu0 0
  %2812 = vmatpush1.bf16.msra.mxu0 %v134
  %2813 = vmatprep.subr.bf16.mxu0 0
  %2814 = vmatpush1.bf16.msra.mxu0 0
  %2815 = vmatprep.subr.bf16.mxu0 0
  %2816 = vmatpush1.bf16.msra.mxu0 0
  %2817 = vmatprep.subr.bf16.mxu0 0
  %2818 = vmatpush1.bf16.msra.mxu0 0
  %2819 = vmatprep.subr.bf16.mxu0 0
  %2820 = vmatpush1.bf16.msra.mxu0 0
  %2821 = vmatprep.subr.bf16.mxu0 0
  %2822 = vmatpush1.bf16.msra.mxu0 0
  %2823 = vmatprep.subr.bf16.mxu0 0
  %2824 = vmatpush1.bf16.msra.mxu0 0
  %2825 = vmatprep.subr.bf16.mxu0 0
  %2826 = vmatpush1.bf16.msra.mxu0 0
  %2827 = vmatprep.subr.bf16.mxu0 0
  %2828 = vmatpush1.bf16.msra.mxu0 0
  %2829 = vmatprep.mubr.bf16.mxu0 0
  %2830 = vmatmul.mubr.bf16.gmra.mrb[0].mxu0 %v2781
  %v2831 = vpop.f32.mrb[0].mxu0
  %v2832 = vadd.f32 0.0, %v2831
  %v2833 = vpop.f32.mrb[0].mxu0
  %v2834 = vpop.f32.mrb[0].mxu0
  %v2835 = vadd.f32 0.0, %v2834
  %v2836 = vpop.f32.mrb[0].mxu0
  %2837 = vmatprep.mubr.bf16.mxu0 0
  %2838 = vmatmul.mubr.bf16.gmra.mrb[0].mxu0 %v2782
  %v2839 = vpop.f32.mrb[0].mxu0
  %v2840 = vadd.f32 0.0, %v2839
  %v2841 = vpop.f32.mrb[0].mxu0
  %v2842 = vpop.f32.mrb[0].mxu0
  %v2843 = vadd.f32 0.0, %v2842
  %v2844 = vpop.f32.mrb[0].mxu0
  %2845 = vmatprep.mubr.bf16.mxu0 0
  %2846 = vmatmul.mubr.bf16.gmra.mrb[0].mxu0 %v2783
  %v2847 = vpop.f32.mrb[0].mxu0
  %v2848 = vadd.f32 0.0, %v2847
  %v2849 = vpop.f32.mrb[0].mxu0
  %v2850 = vpop.f32.mrb[0].mxu0
  %v2851 = vadd.f32 0.0, %v2850
  %v2852 = vpop.f32.mrb[0].mxu0
  %2853 = vmatprep.mubr.bf16.mxu0 0
  %2854 = vmatmul.mubr.bf16.gmra.mrb[0].mxu0 %v2784
  %v2855 = vpop.f32.mrb[0].mxu0
  %v2856 = vadd.f32 0.0, %v2855
  %v2857 = vpop.f32.mrb[0].mxu0
  %v2858 = vpop.f32.mrb[0].mxu0
  %v2859 = vadd.f32 0.0, %v2858
  %v2860 = vpop.f32.mrb[0].mxu0
  %2861 = vmatprep.mubr.bf16.mxu0 0
  %2862 = vmatmul.mubr.bf16.gmra.mrb[0].mxu0 %v2785
  %v2863 = vpop.f32.mrb[0].mxu0
  %v2864 = vadd.f32 0.0, %v2863
  %v2865 = vpop.f32.mrb[0].mxu0
  %v2866 = vpop.f32.mrb[0].mxu0
  %v2867 = vadd.f32 0.0, %v2866
  %v2868 = vpop.f32.mrb[0].mxu0
  %2869 = vmatprep.mubr.bf16.mxu0 0
  %2870 = vmatmul.mubr.bf16.gmra.mrb[0].mxu0 %v2786
  %v2871 = vpop.f32.mrb[0].mxu0
  %v2872 = vadd.f32 0.0, %v2871
  %v2873 = vpop.f32.mrb[0].mxu0
  %v2874 = vpop.f32.mrb[0].mxu0
  %v2875 = vadd.f32 0.0, %v2874
  %v2876 = vpop.f32.mrb[0].mxu0
  %2877 = vmatprep.mubr.bf16.mxu0 0
  %2878 = vmatmul.mubr.bf16.gmra.mrb[0].mxu0 %v2787
  %v2879 = vpop.f32.mrb[0].mxu0
  %v2880 = vadd.f32 0.0, %v2879
  %v2881 = vpop.f32.mrb[0].mxu0
  %v2882 = vpop.f32.mrb[0].mxu0
  %v2883 = vadd.f32 0.0, %v2882
  %v2884 = vpop.f32.mrb[0].mxu0
  %2885 = vmatprep.mubr.bf16.mxu0 0
  %2886 = vmatmul.mubr.bf16.gmra.mrb[0].mxu0 %v2788
  %v2887 = vpop.f32.mrb[0].mxu0
  %v2888 = vadd.f32 0.0, %v2887
  %v2889 = vpop.f32.mrb[0].mxu0
  %v2890 = vpop.f32.mrb[0].mxu0
  %v2891 = vadd.f32 0.0, %v2890
  %v2892 = vpop.f32.mrb[0].mxu0
  %2893 = vdwg.mxu0
  %v2894 = vmax.f32 %v2716, %v2832
  %v2895 = vmax.f32 %v2717, %v2835
  %v2896 = vmax.f32 %v2718, %v2840
  %v2897 = vmax.f32 %v2719, %v2843
  %v2898 = vmax.f32 %v2720, %v2848
  %v2899 = vmax.f32 %v2721, %v2851
  %v2900 = vmax.f32 %v2722, %v2856
  %v2901 = vmax.f32 %v2723, %v2859
  %v2902 = vmax.f32 %v2724, %v2864
  %v2903 = vmax.f32 %v2725, %v2867
  %v2904 = vmax.f32 %v2726, %v2872
  %v2905 = vmax.f32 %v2727, %v2875
  %v2906 = vmax.f32 %v2728, %v2880
  %v2907 = vmax.f32 %v2729, %v2883
  %v2908 = vmax.f32 %v2730, %v2888
  %v2909 = vmax.f32 %v2731, %v2891
  %v2910 = vld [vmem:[%s2] sm:$0x1]
  %v2912 = vlaneseq
  %v2913 = vshrl.u32 %v2912, 7
  %v2914 = vsub.s32 0, %v2913
  %v2915 = vrot.slane %v2910, %v2914
  %v2917 = vadd.f32 %v2894, %v2915
  %v2918 = vadd.f32 %v2895, %v2915
  %v2919 = vadd.f32 %v2896, %v2915
  %v2920 = vadd.f32 %v2897, %v2915
  %v2921 = vadd.f32 %v2898, %v2915
  %v2922 = vadd.f32 %v2899, %v2915
  %v2923 = vadd.f32 %v2900, %v2915
  %v2924 = vadd.f32 %v2901, %v2915
  %v2925 = vadd.f32 %v2902, %v2915
  %v2926 = vadd.f32 %v2903, %v2915
  %v2927 = vadd.f32 %v2904, %v2915
  %v2928 = vadd.f32 %v2905, %v2915
  %v2929 = vadd.f32 %v2906, %v2915
  %v2930 = vadd.f32 %v2907, %v2915
  %v2931 = vadd.f32 %v2908, %v2915
  %v2932 = vadd.f32 %v2909, %v2915
  %v2933 = vmax.f32 %v2917, 0.0
  %v2934 = vmax.f32 %v2918, 0.0
  %v2935 = vmax.f32 %v2919, 0.0
  %v2936 = vmax.f32 %v2920, 0.0
  %v2937 = vmax.f32 %v2921, 0.0
  %v2938 = vmax.f32 %v2922, 0.0
  %v2939 = vmax.f32 %v2923, 0.0
  %v2940 = vmax.f32 %v2924, 0.0
  %v2941 = vmax.f32 %v2925, 0.0
  %v2942 = vmax.f32 %v2926, 0.0
  %v2943 = vmax.f32 %v2927, 0.0
  %v2944 = vmax.f32 %v2928, 0.0
  %v2945 = vmax.f32 %v2929, 0.0
  %v2946 = vmax.f32 %v2930, 0.0
  %v2947 = vmax.f32 %v2931, 0.0
  %v2948 = vmax.f32 %v2932, 0.0
  %vm2949 = vcmask 523264
  %2950 = vst.msk [vmem:[%s3] sm:$0xff] %vm2949, %v2933
  %2951 = vst.msk [vmem:[%s3 + $0x8] sm:$0xff] %vm2949, %v2934
  %2952 = vst.msk [vmem:[%s3 + $0x10] sm:$0xff] %vm2949, %v2935
  %2953 = vst.msk [vmem:[%s3 + $0x18] sm:$0xff] %vm2949, %v2936
  %2954 = vst.msk [vmem:[%s3 + $0x20] sm:$0xff] %vm2949, %v2937
  %2955 = vst.msk [vmem:[%s3 + $0x28] sm:$0xff] %vm2949, %v2938
  %2956 = vst.msk [vmem:[%s3 + $0x30] sm:$0xff] %vm2949, %v2939
  %2957 = vst.msk [vmem:[%s3 + $0x38] sm:$0xff] %vm2949, %v2940
  %2958 = vst.msk [vmem:[%s3 + $0x40] sm:$0xff] %vm2949, %v2941
  %2959 = vst.msk [vmem:[%s3 + $0x48] sm:$0xff] %vm2949, %v2942
  %2960 = vst.msk [vmem:[%s3 + $0x50] sm:$0xff] %vm2949, %v2943
  %2961 = vst.msk [vmem:[%s3 + $0x58] sm:$0xff] %vm2949, %v2944
  %2962 = vst.msk [vmem:[%s3 + $0x60] sm:$0xff] %vm2949, %v2945
  %2963 = vst.msk [vmem:[%s3 + $0x68] sm:$0xff] %vm2949, %v2946
  %2964 = vst.msk [vmem:[%s3 + $0x70] sm:$0xff] %vm2949, %v2947
  %2965 = vst.msk [vmem:[%s3 + $0x78] sm:$0xff] %vm2949, %v2948
  // Predicated region
  $region14: #{conv_forward.3} parent=0 // pred_check
    _
  $region15: #{conv_forward.3} parent=0 // pred_check_branch
    %2967 = sbr.rel (0) target = $region17
  $region16: #{conv_forward.3} parent=0 // pred_region
    _
  $region17: #{conv_forward.3} parent=0 // pred_fallthru
    _
  // Predicated region
  $region18: #{conv_forward.3} parent=0 // pred_check
    _
  $region19: #{conv_forward.3} parent=0 // pred_check_branch
    %2969 = sbr.rel (0) target = $region21
  $region20: #{conv_forward.3} parent=0 // pred_region
    _
  $region21: #{conv_forward.3} parent=0 // pred_fallthru
    _

// kernel: conv_forward.4
$region0: #{conv_forward.4}
  #allocation0 [shape = 'u32[]', space=smem, size = 0x4, offset = 0x4, fixed_abs, tag = 'smem constant byte address 0x4 - core index']
  #allocation1 [shape = 'u32[144,128]{1,0:T(1,128)}', space=vmem, size = 0x12000, scoped, tag = 'internal scratch']
  %s0 = inlined_call_operand.vmem [shape: bf16[16,8,1024], index: 0, kind: input, shape index: {}]
  %s1 = inlined_call_operand.vmem [shape: bf16[1024,64], index: 1, kind: input, shape index: {}]
  %s2 = inlined_call_operand.vmem [shape: f32[1,64], index: 2, kind: input, shape index: {}]
  %s3 = inlined_call_operand.vmem [shape: f32[8,64], index: 3, kind: output, shape index: {}]
  %s4 = sld [smem:[#allocation0]]
  $region22: #{conv_forward.4} parent=0
    _
  %s6 = ssub.s32 1, %s4
  %s7 = scalar_select 0, %s6, %s4
  // Predicated region
  $region2: #{conv_forward.4} parent=0 // pred_check
    _
  $region3: #{conv_forward.4} parent=0 // pred_check_branch
    %9 = sbr.rel (0) target = $region5
  $region4: #{conv_forward.4} parent=0 // pred_region
    _
  $region5: #{conv_forward.4} parent=0 // pred_fallthru
    _
  // Predicated region
  $region6: #{conv_forward.4} parent=0 // pred_check
    _
  $region7: #{conv_forward.4} parent=0 // pred_check_branch
    %11 = sbr.rel (0) target = $region9
  $region8: #{conv_forward.4} parent=0 // pred_region
    _
  $region9: #{conv_forward.4} parent=0 // pred_fallthru
    _
  // Predicated region
  $region10: #{conv_forward.4} parent=0 // pred_check
    _
  $region11: #{conv_forward.4} parent=0 // pred_check_branch
    %13 = sbr.rel (0) target = $region13
  $region12: #{conv_forward.4} parent=0 // pred_region
    _
  $region13: #{conv_forward.4} parent=0 // pred_fallthru
    _
  %v15 = vld [vmem:[%s1] sm:$0xf]
  %v16 = vld [vmem:[%s1 + $0x4] sm:$0xf]
  %v17 = vld [vmem:[%s1 + $0x8] sm:$0xf]
  %v18 = vld [vmem:[%s1 + $0xc] sm:$0xf]
  %v19 = vld [vmem:[%s1 + $0x10] sm:$0xf]
  %v20 = vld [vmem:[%s1 + $0x14] sm:$0xf]
  %v21 = vld [vmem:[%s1 + $0x18] sm:$0xf]
  %v22 = vld [vmem:[%s1 + $0x1c] sm:$0xf]
  %v23 = vld [vmem:[%s1 + $0x20] sm:$0xf]
  %v24 = vld [vmem:[%s1 + $0x24] sm:$0xf]
  %v25 = vld [vmem:[%s1 + $0x28] sm:$0xf]
  %v26 = vld [vmem:[%s1 + $0x2c] sm:$0xf]
  %v27 = vld [vmem:[%s1 + $0x30] sm:$0xf]
  %v28 = vld [vmem:[%s1 + $0x34] sm:$0xf]
  %v29 = vld [vmem:[%s1 + $0x38] sm:$0xf]
  %v30 = vld [vmem:[%s1 + $0x3c] sm:$0xf]
  %v31 = vld [vmem:[%s1 + $0x40] sm:$0xf]
  %v32 = vld [vmem:[%s1 + $0x44] sm:$0xf]
  %v33 = vld [vmem:[%s1 + $0x48] sm:$0xf]
  %v34 = vld [vmem:[%s1 + $0x4c] sm:$0xf]
  %v35 = vld [vmem:[%s1 + $0x50] sm:$0xf]
  %v36 = vld [vmem:[%s1 + $0x54] sm:$0xf]
  %v37 = vld [vmem:[%s1 + $0x58] sm:$0xf]
  %v38 = vld [vmem:[%s1 + $0x5c] sm:$0xf]
  %v39 = vld [vmem:[%s1 + $0x60] sm:$0xf]
  %v40 = vld [vmem:[%s1 + $0x64] sm:$0xf]
  %v41 = vld [vmem:[%s1 + $0x68] sm:$0xf]
  %v42 = vld [vmem:[%s1 + $0x6c] sm:$0xf]
  %v43 = vld [vmem:[%s1 + $0x70] sm:$0xf]
  %v44 = vld [vmem:[%s1 + $0x74] sm:$0xf]
  %v45 = vld [vmem:[%s1 + $0x78] sm:$0xf]
  %v46 = vld [vmem:[%s1 + $0x7c] sm:$0xf]
  %v47 = vld [vmem:[%s1 + $0x80] sm:$0xf]
  %v48 = vld [vmem:[%s1 + $0x84] sm:$0xf]
  %v49 = vld [vmem:[%s1 + $0x88] sm:$0xf]
  %v50 = vld [vmem:[%s1 + $0x8c] sm:$0xf]
  %v51 = vld [vmem:[%s1 + $0x90] sm:$0xf]
  %v52 = vld [vmem:[%s1 + $0x94] sm:$0xf]
  %v53 = vld [vmem:[%s1 + $0x98] sm:$0xf]
  %v54 = vld [vmem:[%s1 + $0x9c] sm:$0xf]
  %v55 = vld [vmem:[%s1 + $0xa0] sm:$0xf]
  %v56 = vld [vmem:[%s1 + $0xa4] sm:$0xf]
  %v57 = vld [vmem:[%s1 + $0xa8] sm:$0xf]
  %v58 = vld [vmem:[%s1 + $0xac] sm:$0xf]
  %v59 = vld [vmem:[%s1 + $0xb0] sm:$0xf]
  %v60 = vld [vmem:[%s1 + $0xb4] sm:$0xf]
  %v61 = vld [vmem:[%s1 + $0xb8] sm:$0xf]
  %v62 = vld [vmem:[%s1 + $0xbc] sm:$0xf]
  %v63 = vld [vmem:[%s1 + $0xc0] sm:$0xf]
  %v64 = vld [vmem:[%s1 + $0xc4] sm:$0xf]
  %v65 = vld [vmem:[%s1 + $0xc8] sm:$0xf]
  %v66 = vld [vmem:[%s1 + $0xcc] sm:$0xf]
  %v67 = vld [vmem:[%s1 + $0xd0] sm:$0xf]
  %v68 = vld [vmem:[%s1 + $0xd4] sm:$0xf]
  %v69 = vld [vmem:[%s1 + $0xd8] sm:$0xf]
  %v70 = vld [vmem:[%s1 + $0xdc] sm:$0xf]
  %v71 = vld [vmem:[%s1 + $0xe0] sm:$0xf]
  %v72 = vld [vmem:[%s1 + $0xe4] sm:$0xf]
  %v73 = vld [vmem:[%s1 + $0xe8] sm:$0xf]
  %v74 = vld [vmem:[%s1 + $0xec] sm:$0xf]
  %v75 = vld [vmem:[%s1 + $0xf0] sm:$0xf]
  %v76 = vld [vmem:[%s1 + $0xf4] sm:$0xf]
  %v77 = vld [vmem:[%s1 + $0xf8] sm:$0xf]
  %v78 = vld [vmem:[%s1 + $0xfc] sm:$0xf]
  %v79 = vld [vmem:[%s1 + $0x100] sm:$0xf]
  %v80 = vld [vmem:[%s1 + $0x104] sm:$0xf]
  %v81 = vld [vmem:[%s1 + $0x108] sm:$0xf]
  %v82 = vld [vmem:[%s1 + $0x10c] sm:$0xf]
  %v83 = vld [vmem:[%s1 + $0x110] sm:$0xf]
  %v84 = vld [vmem:[%s1 + $0x114] sm:$0xf]
  %v85 = vld [vmem:[%s1 + $0x118] sm:$0xf]
  %v86 = vld [vmem:[%s1 + $0x11c] sm:$0xf]
  %v87 = vld [vmem:[%s1 + $0x120] sm:$0xf]
  %v88 = vld [vmem:[%s1 + $0x124] sm:$0xf]
  %v89 = vld [vmem:[%s1 + $0x128] sm:$0xf]
  %v90 = vld [vmem:[%s1 + $0x12c] sm:$0xf]
  %v91 = vld [vmem:[%s1 + $0x130] sm:$0xf]
  %v92 = vld [vmem:[%s1 + $0x134] sm:$0xf]
  %v93 = vld [vmem:[%s1 + $0x138] sm:$0xf]
  %v94 = vld [vmem:[%s1 + $0x13c] sm:$0xf]
  %v95 = vld [vmem:[%s1 + $0x140] sm:$0xf]
  %v96 = vld [vmem:[%s1 + $0x144] sm:$0xf]
  %v97 = vld [vmem:[%s1 + $0x148] sm:$0xf]
  %v98 = vld [vmem:[%s1 + $0x14c] sm:$0xf]
  %v99 = vld [vmem:[%s1 + $0x150] sm:$0xf]
  %v100 = vld [vmem:[%s1 + $0x154] sm:$0xf]
  %v101 = vld [vmem:[%s1 + $0x158] sm:$0xf]
  %v102 = vld [vmem:[%s1 + $0x15c] sm:$0xf]
  %v103 = vld [vmem:[%s1 + $0x160] sm:$0xf]
  %v104 = vld [vmem:[%s1 + $0x164] sm:$0xf]
  %v105 = vld [vmem:[%s1 + $0x168] sm:$0xf]
  %v106 = vld [vmem:[%s1 + $0x16c] sm:$0xf]
  %v107 = vld [vmem:[%s1 + $0x170] sm:$0xf]
  %v108 = vld [vmem:[%s1 + $0x174] sm:$0xf]
  %v109 = vld [vmem:[%s1 + $0x178] sm:$0xf]
  %v110 = vld [vmem:[%s1 + $0x17c] sm:$0xf]
  %v111 = vld [vmem:[%s1 + $0x180] sm:$0xf]
  %v112 = vld [vmem:[%s1 + $0x184] sm:$0xf]
  %v113 = vld [vmem:[%s1 + $0x188] sm:$0xf]
  %v114 = vld [vmem:[%s1 + $0x18c] sm:$0xf]
  %v115 = vld [vmem:[%s1 + $0x190] sm:$0xf]
  %v116 = vld [vmem:[%s1 + $0x194] sm:$0xf]
  %v117 = vld [vmem:[%s1 + $0x198] sm:$0xf]
  %v118 = vld [vmem:[%s1 + $0x19c] sm:$0xf]
  %v119 = vld [vmem:[%s1 + $0x1a0] sm:$0xf]
  %v120 = vld [vmem:[%s1 + $0x1a4] sm:$0xf]
  %v121 = vld [vmem:[%s1 + $0x1a8] sm:$0xf]
  %v122 = vld [vmem:[%s1 + $0x1ac] sm:$0xf]
  %v123 = vld [vmem:[%s1 + $0x1b0] sm:$0xf]
  %v124 = vld [vmem:[%s1 + $0x1b4] sm:$0xf]
  %v125 = vld [vmem:[%s1 + $0x1b8] sm:$0xf]
  %v126 = vld [vmem:[%s1 + $0x1bc] sm:$0xf]
  %v127 = vld [vmem:[%s1 + $0x1c0] sm:$0xf]
  %v128 = vld [vmem:[%s1 + $0x1c4] sm:$0xf]
  %v129 = vld [vmem:[%s1 + $0x1c8] sm:$0xf]
  %v130 = vld [vmem:[%s1 + $0x1cc] sm:$0xf]
  %v131 = vld [vmem:[%s1 + $0x1d0] sm:$0xf]
  %v132 = vld [vmem:[%s1 + $0x1d4] sm:$0xf]
  %v133 = vld [vmem:[%s1 + $0x1d8] sm:$0xf]
  %v134 = vld [vmem:[%s1 + $0x1dc] sm:$0xf]
  %v135 = vld [vmem:[%s1 + $0x1e0] sm:$0xf]
  %v136 = vld [vmem:[%s1 + $0x1e4] sm:$0xf]
  %v137 = vld [vmem:[%s1 + $0x1e8] sm:$0xf]
  %v138 = vld [vmem:[%s1 + $0x1ec] sm:$0xf]
  %v139 = vld [vmem:[%s1 + $0x1f0] sm:$0xf]
  %v140 = vld [vmem:[%s1 + $0x1f4] sm:$0xf]
  %v141 = vld [vmem:[%s1 + $0x1f8] sm:$0xf]
  %v142 = vld [vmem:[%s1 + $0x1fc] sm:$0xf]
  %v143 = vld [vmem:[%s0] sm:$0xff]
  %v144 = vld [vmem:[%s0 + $0x8] sm:$0xff]
  %v145 = vld [vmem:[%s0 + $0x10] sm:$0xff]
  %v146 = vld [vmem:[%s0 + $0x18] sm:$0xff]
  %v151 = vunpack.c.l.b16 %v143
  %v152 = vunpack.c.h.b16 %v143
  %v153 = vunpack.c.l.b16 %v144
  %v154 = vunpack.c.h.b16 %v144
  %v155 = vunpack.c.l.b16 %v145
  %v156 = vunpack.c.h.b16 %v145
  %v157 = vunpack.c.l.b16 %v146
  %v158 = vunpack.c.h.b16 %v146
  %v159 = vpack.c.b16 %v151, %v151
  %v160 = vpack.c.b16 %v152, %v152
  %v161 = vpack.c.b16 %v153, %v153
  %v162 = vpack.c.b16 %v154, %v154
  %v163 = vpack.c.b16 %v155, %v155
  %v164 = vpack.c.b16 %v156, %v156
  %v165 = vpack.c.b16 %v157, %v157
  %v166 = vpack.c.b16 %v158, %v158
  %v303 = vunpack.c.l.b16 %v15
  %v304 = vunpack.c.l.b16 %v16
  %v305 = vunpack.c.l.b16 %v17
  %v306 = vunpack.c.l.b16 %v18
  %v307 = vunpack.c.l.b16 %v19
  %v308 = vunpack.c.l.b16 %v20
  %v309 = vunpack.c.l.b16 %v21
  %v310 = vunpack.c.l.b16 %v22
  %v311 = vunpack.c.l.b16 %v23
  %v312 = vunpack.c.l.b16 %v24
  %v313 = vunpack.c.l.b16 %v25
  %v314 = vunpack.c.l.b16 %v26
  %v315 = vunpack.c.l.b16 %v27
  %v316 = vunpack.c.l.b16 %v28
  %v317 = vunpack.c.l.b16 %v29
  %v318 = vunpack.c.l.b16 %v30
  %v319 = vunpack.c.l.b16 %v31
  %v320 = vunpack.c.l.b16 %v32
  %v321 = vunpack.c.l.b16 %v33
  %v322 = vunpack.c.l.b16 %v34
  %v323 = vunpack.c.l.b16 %v35
  %v324 = vunpack.c.l.b16 %v36
  %v325 = vunpack.c.l.b16 %v37
  %v326 = vunpack.c.l.b16 %v38
  %v327 = vunpack.c.l.b16 %v39
  %v328 = vunpack.c.l.b16 %v40
  %v329 = vunpack.c.l.b16 %v41
  %v330 = vunpack.c.l.b16 %v42
  %v331 = vunpack.c.l.b16 %v43
  %v332 = vunpack.c.l.b16 %v44
  %v333 = vunpack.c.l.b16 %v45
  %v334 = vunpack.c.l.b16 %v46
  %v335 = vunpack.c.l.b16 %v47
  %v336 = vunpack.c.l.b16 %v48
  %v337 = vunpack.c.l.b16 %v49
  %v338 = vunpack.c.l.b16 %v50
  %v339 = vunpack.c.l.b16 %v51
  %v340 = vunpack.c.l.b16 %v52
  %v341 = vunpack.c.l.b16 %v53
  %v342 = vunpack.c.l.b16 %v54
  %v343 = vunpack.c.l.b16 %v55
  %v344 = vunpack.c.l.b16 %v56
  %v345 = vunpack.c.l.b16 %v57
  %v346 = vunpack.c.l.b16 %v58
  %v347 = vunpack.c.l.b16 %v59
  %v348 = vunpack.c.l.b16 %v60
  %v349 = vunpack.c.l.b16 %v61
  %v350 = vunpack.c.l.b16 %v62
  %v351 = vunpack.c.l.b16 %v63
  %v352 = vunpack.c.l.b16 %v64
  %v353 = vunpack.c.l.b16 %v65
  %v354 = vunpack.c.l.b16 %v66
  %v355 = vunpack.c.l.b16 %v67
  %v356 = vunpack.c.l.b16 %v68
  %v357 = vunpack.c.l.b16 %v69
  %v358 = vunpack.c.l.b16 %v70
  %v359 = vunpack.c.l.b16 %v71
  %v360 = vunpack.c.l.b16 %v72
  %v361 = vunpack.c.l.b16 %v73
  %v362 = vunpack.c.l.b16 %v74
  %v363 = vunpack.c.l.b16 %v75
  %v364 = vunpack.c.l.b16 %v76
  %v365 = vunpack.c.l.b16 %v77
  %v366 = vunpack.c.l.b16 %v78
  %v367 = vunpack.c.l.b16 %v79
  %v368 = vunpack.c.l.b16 %v80
  %v369 = vunpack.c.l.b16 %v81
  %v370 = vunpack.c.l.b16 %v82
  %v371 = vunpack.c.l.b16 %v83
  %v372 = vunpack.c.l.b16 %v84
  %v373 = vunpack.c.l.b16 %v85
  %v374 = vunpack.c.l.b16 %v86
  %v375 = vunpack.c.l.b16 %v87
  %v376 = vunpack.c.l.b16 %v88
  %v377 = vunpack.c.l.b16 %v89
  %v378 = vunpack.c.l.b16 %v90
  %v379 = vunpack.c.l.b16 %v91
  %v380 = vunpack.c.l.b16 %v92
  %v381 = vunpack.c.l.b16 %v93
  %v382 = vunpack.c.l.b16 %v94
  %v383 = vunpack.c.l.b16 %v95
  %v384 = vunpack.c.l.b16 %v96
  %v385 = vunpack.c.l.b16 %v97
  %v386 = vunpack.c.l.b16 %v98
  %v387 = vunpack.c.l.b16 %v99
  %v388 = vunpack.c.l.b16 %v100
  %v389 = vunpack.c.l.b16 %v101
  %v390 = vunpack.c.l.b16 %v102
  %v391 = vunpack.c.l.b16 %v103
  %v392 = vunpack.c.l.b16 %v104
  %v393 = vunpack.c.l.b16 %v105
  %v394 = vunpack.c.l.b16 %v106
  %v395 = vunpack.c.l.b16 %v107
  %v396 = vunpack.c.l.b16 %v108
  %v397 = vunpack.c.l.b16 %v109
  %v398 = vunpack.c.l.b16 %v110
  %v399 = vunpack.c.l.b16 %v111
  %v400 = vunpack.c.l.b16 %v112
  %v401 = vunpack.c.l.b16 %v113
  %v402 = vunpack.c.l.b16 %v114
  %v403 = vunpack.c.l.b16 %v115
  %v404 = vunpack.c.l.b16 %v116
  %v405 = vunpack.c.l.b16 %v117
  %v406 = vunpack.c.l.b16 %v118
  %v407 = vunpack.c.l.b16 %v119
  %v408 = vunpack.c.l.b16 %v120
  %v409 = vunpack.c.l.b16 %v121
  %v410 = vunpack.c.l.b16 %v122
  %v411 = vunpack.c.l.b16 %v123
  %v412 = vunpack.c.l.b16 %v124
  %v413 = vunpack.c.l.b16 %v125
  %v414 = vunpack.c.l.b16 %v126
  %v415 = vunpack.c.l.b16 %v127
  %v416 = vunpack.c.l.b16 %v128
  %v417 = vunpack.c.l.b16 %v129
  %v418 = vunpack.c.l.b16 %v130
  %v419 = vunpack.c.l.b16 %v131
  %v420 = vunpack.c.l.b16 %v132
  %v421 = vunpack.c.l.b16 %v133
  %v422 = vunpack.c.l.b16 %v134
  %v423 = vunpack.c.l.b16 %v135
  %v424 = vunpack.c.l.b16 %v136
  %v425 = vunpack.c.l.b16 %v137
  %v426 = vunpack.c.l.b16 %v138
  %v427 = vunpack.c.l.b16 %v139
  %v428 = vunpack.c.l.b16 %v140
  %v429 = vunpack.c.l.b16 %v141
  %v430 = vunpack.c.l.b16 %v142
  %v431 = vpack.c.b16 %v304, %v303
  %v432 = vpack.c.b16 %v306, %v305
  %v433 = vpack.c.b16 %v308, %v307
  %v434 = vpack.c.b16 %v310, %v309
  %v435 = vpack.c.b16 %v312, %v311
  %v436 = vpack.c.b16 %v314, %v313
  %v437 = vpack.c.b16 %v316, %v315
  %v438 = vpack.c.b16 %v318, %v317
  %v439 = vpack.c.b16 %v320, %v319
  %v440 = vpack.c.b16 %v322, %v321
  %v441 = vpack.c.b16 %v324, %v323
  %v442 = vpack.c.b16 %v326, %v325
  %v443 = vpack.c.b16 %v328, %v327
  %v444 = vpack.c.b16 %v330, %v329
  %v445 = vpack.c.b16 %v332, %v331
  %v446 = vpack.c.b16 %v334, %v333
  %v447 = vpack.c.b16 %v336, %v335
  %v448 = vpack.c.b16 %v338, %v337
  %v449 = vpack.c.b16 %v340, %v339
  %v450 = vpack.c.b16 %v342, %v341
  %v451 = vpack.c.b16 %v344, %v343
  %v452 = vpack.c.b16 %v346, %v345
  %v453 = vpack.c.b16 %v348, %v347
  %v454 = vpack.c.b16 %v350, %v349
  %v455 = vpack.c.b16 %v352, %v351
  %v456 = vpack.c.b16 %v354, %v353
  %v457 = vpack.c.b16 %v356, %v355
  %v458 = vpack.c.b16 %v358, %v357
  %v459 = vpack.c.b16 %v360, %v359
  %v460 = vpack.c.b16 %v362, %v361
  %v461 = vpack.c.b16 %v364, %v363
  %v462 = vpack.c.b16 %v366, %v365
  %v463 = vpack.c.b16 %v368, %v367
  %v464 = vpack.c.b16 %v370, %v369
  %v465 = vpack.c.b16 %v372, %v371
  %v466 = vpack.c.b16 %v374, %v373
  %v467 = vpack.c.b16 %v376, %v375
  %v468 = vpack.c.b16 %v378, %v377
  %v469 = vpack.c.b16 %v380, %v379
  %v470 = vpack.c.b16 %v382, %v381
  %v471 = vpack.c.b16 %v384, %v383
  %v472 = vpack.c.b16 %v386, %v385
  %v473 = vpack.c.b16 %v388, %v387
  %v474 = vpack.c.b16 %v390, %v389
  %v475 = vpack.c.b16 %v392, %v391
  %v476 = vpack.c.b16 %v394, %v393
  %v477 = vpack.c.b16 %v396, %v395
  %v478 = vpack.c.b16 %v398, %v397
  %v479 = vpack.c.b16 %v400, %v399
  %v480 = vpack.c.b16 %v402, %v401
  %v481 = vpack.c.b16 %v404, %v403
  %v482 = vpack.c.b16 %v406, %v405
  %v483 = vpack.c.b16 %v408, %v407
  %v484 = vpack.c.b16 %v410, %v409
  %v485 = vpack.c.b16 %v412, %v411
  %v486 = vpack.c.b16 %v414, %v413
  %v487 = vpack.c.b16 %v416, %v415
  %v488 = vpack.c.b16 %v418, %v417
  %v489 = vpack.c.b16 %v420, %v419
  %v490 = vpack.c.b16 %v422, %v421
  %v491 = vpack.c.b16 %v424, %v423
  %v492 = vpack.c.b16 %v426, %v425
  %v493 = vpack.c.b16 %v428, %v427
  %v494 = vpack.c.b16 %v430, %v429
  %559 = vmatprep.subr.bf16.mxu0 0
  %560 = vmatpush1.bf16.msra.mxu0 %v431
  %561 = vmatprep.subr.bf16.mxu0 0
  %562 = vmatpush1.bf16.msra.mxu0 %v432
  %563 = vmatprep.subr.bf16.mxu0 0
  %564 = vmatpush1.bf16.msra.mxu0 %v433
  %565 = vmatprep.subr.bf16.mxu0 0
  %566 = vmatpush1.bf16.msra.mxu0 %v434
  %567 = vmatprep.subr.bf16.mxu0 0
  %568 = vmatpush1.bf16.msra.mxu0 %v435
  %569 = vmatprep.subr.bf16.mxu0 0
  %570 = vmatpush1.bf16.msra.mxu0 %v436
  %571 = vmatprep.subr.bf16.mxu0 0
  %572 = vmatpush1.bf16.msra.mxu0 %v437
  %573 = vmatprep.subr.bf16.mxu0 0
  %574 = vmatpush1.bf16.msra.mxu0 %v438
  %575 = vmatprep.subr.bf16.mxu0 0
  %576 = vmatpush1.bf16.msra.mxu0 %v439
  %577 = vmatprep.subr.bf16.mxu0 0
  %578 = vmatpush1.bf16.msra.mxu0 %v440
  %579 = vmatprep.subr.bf16.mxu0 0
  %580 = vmatpush1.bf16.msra.mxu0 %v441
  %581 = vmatprep.subr.bf16.mxu0 0
  %582 = vmatpush1.bf16.msra.mxu0 %v442
  %583 = vmatprep.subr.bf16.mxu0 0
  %584 = vmatpush1.bf16.msra.mxu0 %v443
  %585 = vmatprep.subr.bf16.mxu0 0
  %586 = vmatpush1.bf16.msra.mxu0 %v444
  %587 = vmatprep.subr.bf16.mxu0 0
  %588 = vmatpush1.bf16.msra.mxu0 %v445
  %589 = vmatprep.subr.bf16.mxu0 0
  %590 = vmatpush1.bf16.msra.mxu0 %v446
  %591 = vmatprep.mubr.bf16.mxu0 %v160
  %592 = vmatmul.mubr.bf16.gmra.mrb[0].mxu0 %v159
  %v593 = vpop.f32.mrb[0].mxu0
  %v594 = vadd.f32 0.0, %v593
  %v595 = vpop.f32.mrb[0].mxu0
  %v596 = vpop.f32.mrb[0].mxu0
  %v597 = vpop.f32.mrb[0].mxu0
  %598 = vdwg.mxu0
  %599 = vmatprep.subr.bf16.mxu0 0
  %600 = vmatpush1.bf16.msra.mxu0 %v447
  %601 = vmatprep.subr.bf16.mxu0 0
  %602 = vmatpush1.bf16.msra.mxu0 %v448
  %603 = vmatprep.subr.bf16.mxu0 0
  %604 = vmatpush1.bf16.msra.mxu0 %v449
  %605 = vmatprep.subr.bf16.mxu0 0
  %606 = vmatpush1.bf16.msra.mxu0 %v450
  %607 = vmatprep.subr.bf16.mxu0 0
  %608 = vmatpush1.bf16.msra.mxu0 %v451
  %609 = vmatprep.subr.bf16.mxu0 0
  %610 = vmatpush1.bf16.msra.mxu0 %v452
  %611 = vmatprep.subr.bf16.mxu0 0
  %612 = vmatpush1.bf16.msra.mxu0 %v453
  %613 = vmatprep.subr.bf16.mxu0 0
  %614 = vmatpush1.bf16.msra.mxu0 %v454
  %615 = vmatprep.subr.bf16.mxu0 0
  %616 = vmatpush1.bf16.msra.mxu0 %v455
  %617 = vmatprep.subr.bf16.mxu0 0
  %618 = vmatpush1.bf16.msra.mxu0 %v456
  %619 = vmatprep.subr.bf16.mxu0 0
  %620 = vmatpush1.bf16.msra.mxu0 %v457
  %621 = vmatprep.subr.bf16.mxu0 0
  %622 = vmatpush1.bf16.msra.mxu0 %v458
  %623 = vmatprep.subr.bf16.mxu0 0
  %624 = vmatpush1.bf16.msra.mxu0 %v459
  %625 = vmatprep.subr.bf16.mxu0 0
  %626 = vmatpush1.bf16.msra.mxu0 %v460
  %627 = vmatprep.subr.bf16.mxu0 0
  %628 = vmatpush1.bf16.msra.mxu0 %v461
  %629 = vmatprep.subr.bf16.mxu0 0
  %630 = vmatpush1.bf16.msra.mxu0 %v462
  %631 = vmatprep.mubr.bf16.mxu0 %v162
  %632 = vmatmul.mubr.bf16.gmra.mrb[0].mxu0 %v161
  %v633 = vpop.f32.mrb[0].mxu0
  %v634 = vadd.f32 %v594, %v633
  %v635 = vpop.f32.mrb[0].mxu0
  %v636 = vpop.f32.mrb[0].mxu0
  %v637 = vpop.f32.mrb[0].mxu0
  %638 = vdwg.mxu0
  %639 = vmatprep.subr.bf16.mxu0 0
  %640 = vmatpush1.bf16.msra.mxu0 %v463
  %641 = vmatprep.subr.bf16.mxu0 0
  %642 = vmatpush1.bf16.msra.mxu0 %v464
  %643 = vmatprep.subr.bf16.mxu0 0
  %644 = vmatpush1.bf16.msra.mxu0 %v465
  %645 = vmatprep.subr.bf16.mxu0 0
  %646 = vmatpush1.bf16.msra.mxu0 %v466
  %647 = vmatprep.subr.bf16.mxu0 0
  %648 = vmatpush1.bf16.msra.mxu0 %v467
  %649 = vmatprep.subr.bf16.mxu0 0
  %650 = vmatpush1.bf16.msra.mxu0 %v468
  %651 = vmatprep.subr.bf16.mxu0 0
  %652 = vmatpush1.bf16.msra.mxu0 %v469
  %653 = vmatprep.subr.bf16.mxu0 0
  %654 = vmatpush1.bf16.msra.mxu0 %v470
  %655 = vmatprep.subr.bf16.mxu0 0
  %656 = vmatpush1.bf16.msra.mxu0 %v471
  %657 = vmatprep.subr.bf16.mxu0 0
  %658 = vmatpush1.bf16.msra.mxu0 %v472
  %659 = vmatprep.subr.bf16.mxu0 0
  %660 = vmatpush1.bf16.msra.mxu0 %v473
  %661 = vmatprep.subr.bf16.mxu0 0
  %662 = vmatpush1.bf16.msra.mxu0 %v474
  %663 = vmatprep.subr.bf16.mxu0 0
  %664 = vmatpush1.bf16.msra.mxu0 %v475
  %665 = vmatprep.subr.bf16.mxu0 0
  %666 = vmatpush1.bf16.msra.mxu0 %v476
  %667 = vmatprep.subr.bf16.mxu0 0
  %668 = vmatpush1.bf16.msra.mxu0 %v477
  %669 = vmatprep.subr.bf16.mxu0 0
  %670 = vmatpush1.bf16.msra.mxu0 %v478
  %671 = vmatprep.mubr.bf16.mxu0 %v164
  %672 = vmatmul.mubr.bf16.gmra.mrb[0].mxu0 %v163
  %v673 = vpop.f32.mrb[0].mxu0
  %v674 = vadd.f32 %v634, %v673
  %v675 = vpop.f32.mrb[0].mxu0
  %v676 = vpop.f32.mrb[0].mxu0
  %v677 = vpop.f32.mrb[0].mxu0
  %678 = vdwg.mxu0
  %679 = vmatprep.subr.bf16.mxu0 0
  %680 = vmatpush1.bf16.msra.mxu0 %v479
  %681 = vmatprep.subr.bf16.mxu0 0
  %682 = vmatpush1.bf16.msra.mxu0 %v480
  %683 = vmatprep.subr.bf16.mxu0 0
  %684 = vmatpush1.bf16.msra.mxu0 %v481
  %685 = vmatprep.subr.bf16.mxu0 0
  %686 = vmatpush1.bf16.msra.mxu0 %v482
  %687 = vmatprep.subr.bf16.mxu0 0
  %688 = vmatpush1.bf16.msra.mxu0 %v483
  %689 = vmatprep.subr.bf16.mxu0 0
  %690 = vmatpush1.bf16.msra.mxu0 %v484
  %691 = vmatprep.subr.bf16.mxu0 0
  %692 = vmatpush1.bf16.msra.mxu0 %v485
  %693 = vmatprep.subr.bf16.mxu0 0
  %694 = vmatpush1.bf16.msra.mxu0 %v486
  %695 = vmatprep.subr.bf16.mxu0 0
  %696 = vmatpush1.bf16.msra.mxu0 %v487
  %697 = vmatprep.subr.bf16.mxu0 0
  %698 = vmatpush1.bf16.msra.mxu0 %v488
  %699 = vmatprep.subr.bf16.mxu0 0
  %700 = vmatpush1.bf16.msra.mxu0 %v489
  %701 = vmatprep.subr.bf16.mxu0 0
  %702 = vmatpush1.bf16.msra.mxu0 %v490
  %703 = vmatprep.subr.bf16.mxu0 0
  %704 = vmatpush1.bf16.msra.mxu0 %v491
  %705 = vmatprep.subr.bf16.mxu0 0
  %706 = vmatpush1.bf16.msra.mxu0 %v492
  %707 = vmatprep.subr.bf16.mxu0 0
  %708 = vmatpush1.bf16.msra.mxu0 %v493
  %709 = vmatprep.subr.bf16.mxu0 0
  %710 = vmatpush1.bf16.msra.mxu0 %v494
  %711 = vmatprep.mubr.bf16.mxu0 %v166
  %712 = vmatmul.mubr.bf16.gmra.mrb[0].mxu0 %v165
  %v713 = vpop.f32.mrb[0].mxu0
  %v714 = vadd.f32 %v674, %v713
  %v715 = vpop.f32.mrb[0].mxu0
  %v716 = vpop.f32.mrb[0].mxu0
  %v717 = vpop.f32.mrb[0].mxu0
  %718 = vdwg.mxu0
  %s719 = scalar_lea.vmem %s0, 32
  %v720 = vld [vmem:[%s719] sm:$0xff]
  %v721 = vld [vmem:[%s719 + $0x8] sm:$0xff]
  %v722 = vld [vmem:[%s719 + $0x10] sm:$0xff]
  %v723 = vld [vmem:[%s719 + $0x18] sm:$0xff]
  %v728 = vunpack.c.l.b16 %v720
  %v729 = vunpack.c.h.b16 %v720
  %v730 = vunpack.c.l.b16 %v721
  %v731 = vunpack.c.h.b16 %v721
  %v732 = vunpack.c.l.b16 %v722
  %v733 = vunpack.c.h.b16 %v722
  %v734 = vunpack.c.l.b16 %v723
  %v735 = vunpack.c.h.b16 %v723
  %v736 = vpack.c.b16 %v728, %v728
  %v737 = vpack.c.b16 %v729, %v729
  %v738 = vpack.c.b16 %v730, %v730
  %v739 = vpack.c.b16 %v731, %v731
  %v740 = vpack.c.b16 %v732, %v732
  %v741 = vpack.c.b16 %v733, %v733
  %v742 = vpack.c.b16 %v734, %v734
  %v743 = vpack.c.b16 %v735, %v735
  %752 = vmatprep.subr.bf16.mxu0 0
  %753 = vmatpush1.bf16.msra.mxu0 %v431
  %754 = vmatprep.subr.bf16.mxu0 0
  %755 = vmatpush1.bf16.msra.mxu0 %v432
  %756 = vmatprep.subr.bf16.mxu0 0
  %757 = vmatpush1.bf16.msra.mxu0 %v433
  %758 = vmatprep.subr.bf16.mxu0 0
  %759 = vmatpush1.bf16.msra.mxu0 %v434
  %760 = vmatprep.subr.bf16.mxu0 0
  %761 = vmatpush1.bf16.msra.mxu0 %v435
  %762 = vmatprep.subr.bf16.mxu0 0
  %763 = vmatpush1.bf16.msra.mxu0 %v436
  %764 = vmatprep.subr.bf16.mxu0 0
  %765 = vmatpush1.bf16.msra.mxu0 %v437
  %766 = vmatprep.subr.bf16.mxu0 0
  %767 = vmatpush1.bf16.msra.mxu0 %v438
  %768 = vmatprep.subr.bf16.mxu0 0
  %769 = vmatpush1.bf16.msra.mxu0 %v439
  %770 = vmatprep.subr.bf16.mxu0 0
  %771 = vmatpush1.bf16.msra.mxu0 %v440
  %772 = vmatprep.subr.bf16.mxu0 0
  %773 = vmatpush1.bf16.msra.mxu0 %v441
  %774 = vmatprep.subr.bf16.mxu0 0
  %775 = vmatpush1.bf16.msra.mxu0 %v442
  %776 = vmatprep.subr.bf16.mxu0 0
  %777 = vmatpush1.bf16.msra.mxu0 %v443
  %778 = vmatprep.subr.bf16.mxu0 0
  %779 = vmatpush1.bf16.msra.mxu0 %v444
  %780 = vmatprep.subr.bf16.mxu0 0
  %781 = vmatpush1.bf16.msra.mxu0 %v445
  %782 = vmatprep.subr.bf16.mxu0 0
  %783 = vmatpush1.bf16.msra.mxu0 %v446
  %784 = vmatprep.mubr.bf16.mxu0 %v737
  %785 = vmatmul.mubr.bf16.gmra.mrb[0].mxu0 %v736
  %v786 = vpop.f32.mrb[0].mxu0
  %v787 = vadd.f32 0.0, %v786
  %v788 = vpop.f32.mrb[0].mxu0
  %v789 = vpop.f32.mrb[0].mxu0
  %v790 = vpop.f32.mrb[0].mxu0
  %791 = vdwg.mxu0
  %792 = vmatprep.subr.bf16.mxu0 0
  %793 = vmatpush1.bf16.msra.mxu0 %v447
  %794 = vmatprep.subr.bf16.mxu0 0
  %795 = vmatpush1.bf16.msra.mxu0 %v448
  %796 = vmatprep.subr.bf16.mxu0 0
  %797 = vmatpush1.bf16.msra.mxu0 %v449
  %798 = vmatprep.subr.bf16.mxu0 0
  %799 = vmatpush1.bf16.msra.mxu0 %v450
  %800 = vmatprep.subr.bf16.mxu0 0
  %801 = vmatpush1.bf16.msra.mxu0 %v451
  %802 = vmatprep.subr.bf16.mxu0 0
  %803 = vmatpush1.bf16.msra.mxu0 %v452
  %804 = vmatprep.subr.bf16.mxu0 0
  %805 = vmatpush1.bf16.msra.mxu0 %v453
  %806 = vmatprep.subr.bf16.mxu0 0
  %807 = vmatpush1.bf16.msra.mxu0 %v454
  %808 = vmatprep.subr.bf16.mxu0 0
  %809 = vmatpush1.bf16.msra.mxu0 %v455
  %810 = vmatprep.subr.bf16.mxu0 0
  %811 = vmatpush1.bf16.msra.mxu0 %v456
  %812 = vmatprep.subr.bf16.mxu0 0
  %813 = vmatpush1.bf16.msra.mxu0 %v457
  %814 = vmatprep.subr.bf16.mxu0 0
  %815 = vmatpush1.bf16.msra.mxu0 %v458
  %816 = vmatprep.subr.bf16.mxu0 0
  %817 = vmatpush1.bf16.msra.mxu0 %v459
  %818 = vmatprep.subr.bf16.mxu0 0
  %819 = vmatpush1.bf16.msra.mxu0 %v460
  %820 = vmatprep.subr.bf16.mxu0 0
  %821 = vmatpush1.bf16.msra.mxu0 %v461
  %822 = vmatprep.subr.bf16.mxu0 0
  %823 = vmatpush1.bf16.msra.mxu0 %v462
  %824 = vmatprep.mubr.bf16.mxu0 %v739
  %825 = vmatmul.mubr.bf16.gmra.mrb[0].mxu0 %v738
  %v826 = vpop.f32.mrb[0].mxu0
  %v827 = vadd.f32 %v787, %v826
  %v828 = vpop.f32.mrb[0].mxu0
  %v829 = vpop.f32.mrb[0].mxu0
  %v830 = vpop.f32.mrb[0].mxu0
  %831 = vdwg.mxu0
  %832 = vmatprep.subr.bf16.mxu0 0
  %833 = vmatpush1.bf16.msra.mxu0 %v463
  %834 = vmatprep.subr.bf16.mxu0 0
  %835 = vmatpush1.bf16.msra.mxu0 %v464
  %836 = vmatprep.subr.bf16.mxu0 0
  %837 = vmatpush1.bf16.msra.mxu0 %v465
  %838 = vmatprep.subr.bf16.mxu0 0
  %839 = vmatpush1.bf16.msra.mxu0 %v466
  %840 = vmatprep.subr.bf16.mxu0 0
  %841 = vmatpush1.bf16.msra.mxu0 %v467
  %842 = vmatprep.subr.bf16.mxu0 0
  %843 = vmatpush1.bf16.msra.mxu0 %v468
  %844 = vmatprep.subr.bf16.mxu0 0
  %845 = vmatpush1.bf16.msra.mxu0 %v469
  %846 = vmatprep.subr.bf16.mxu0 0
  %847 = vmatpush1.bf16.msra.mxu0 %v470
  %848 = vmatprep.subr.bf16.mxu0 0
  %849 = vmatpush1.bf16.msra.mxu0 %v471
  %850 = vmatprep.subr.bf16.mxu0 0
  %851 = vmatpush1.bf16.msra.mxu0 %v472
  %852 = vmatprep.subr.bf16.mxu0 0
  %853 = vmatpush1.bf16.msra.mxu0 %v473
  %854 = vmatprep.subr.bf16.mxu0 0
  %855 = vmatpush1.bf16.msra.mxu0 %v474
  %856 = vmatprep.subr.bf16.mxu0 0
  %857 = vmatpush1.bf16.msra.mxu0 %v475
  %858 = vmatprep.subr.bf16.mxu0 0
  %859 = vmatpush1.bf16.msra.mxu0 %v476
  %860 = vmatprep.subr.bf16.mxu0 0
  %861 = vmatpush1.bf16.msra.mxu0 %v477
  %862 = vmatprep.subr.bf16.mxu0 0
  %863 = vmatpush1.bf16.msra.mxu0 %v478
  %864 = vmatprep.mubr.bf16.mxu0 %v741
  %865 = vmatmul.mubr.bf16.gmra.mrb[0].mxu0 %v740
  %v866 = vpop.f32.mrb[0].mxu0
  %v867 = vadd.f32 %v827, %v866
  %v868 = vpop.f32.mrb[0].mxu0
  %v869 = vpop.f32.mrb[0].mxu0
  %v870 = vpop.f32.mrb[0].mxu0
  %871 = vdwg.mxu0
  %872 = vmatprep.subr.bf16.mxu0 0
  %873 = vmatpush1.bf16.msra.mxu0 %v479
  %874 = vmatprep.subr.bf16.mxu0 0
  %875 = vmatpush1.bf16.msra.mxu0 %v480
  %876 = vmatprep.subr.bf16.mxu0 0
  %877 = vmatpush1.bf16.msra.mxu0 %v481
  %878 = vmatprep.subr.bf16.mxu0 0
  %879 = vmatpush1.bf16.msra.mxu0 %v482
  %880 = vmatprep.subr.bf16.mxu0 0
  %881 = vmatpush1.bf16.msra.mxu0 %v483
  %882 = vmatprep.subr.bf16.mxu0 0
  %883 = vmatpush1.bf16.msra.mxu0 %v484
  %884 = vmatprep.subr.bf16.mxu0 0
  %885 = vmatpush1.bf16.msra.mxu0 %v485
  %886 = vmatprep.subr.bf16.mxu0 0
  %887 = vmatpush1.bf16.msra.mxu0 %v486
  %888 = vmatprep.subr.bf16.mxu0 0
  %889 = vmatpush1.bf16.msra.mxu0 %v487
  %890 = vmatprep.subr.bf16.mxu0 0
  %891 = vmatpush1.bf16.msra.mxu0 %v488
  %892 = vmatprep.subr.bf16.mxu0 0
  %893 = vmatpush1.bf16.msra.mxu0 %v489
  %894 = vmatprep.subr.bf16.mxu0 0
  %895 = vmatpush1.bf16.msra.mxu0 %v490
  %896 = vmatprep.subr.bf16.mxu0 0
  %897 = vmatpush1.bf16.msra.mxu0 %v491
  %898 = vmatprep.subr.bf16.mxu0 0
  %899 = vmatpush1.bf16.msra.mxu0 %v492
  %900 = vmatprep.subr.bf16.mxu0 0
  %901 = vmatpush1.bf16.msra.mxu0 %v493
  %902 = vmatprep.subr.bf16.mxu0 0
  %903 = vmatpush1.bf16.msra.mxu0 %v494
  %904 = vmatprep.mubr.bf16.mxu0 %v743
  %905 = vmatmul.mubr.bf16.gmra.mrb[0].mxu0 %v742
  %v906 = vpop.f32.mrb[0].mxu0
  %v907 = vadd.f32 %v867, %v906
  %v908 = vpop.f32.mrb[0].mxu0
  %v909 = vpop.f32.mrb[0].mxu0
  %v910 = vpop.f32.mrb[0].mxu0
  %911 = vdwg.mxu0
  %v912 = vmax.f32 %v714, %v907
  %s913 = scalar_lea.vmem %s0, 64
  %v914 = vld [vmem:[%s913] sm:$0xff]
  %v915 = vld [vmem:[%s913 + $0x8] sm:$0xff]
  %v916 = vld [vmem:[%s913 + $0x10] sm:$0xff]
  %v917 = vld [vmem:[%s913 + $0x18] sm:$0xff]
  %v922 = vunpack.c.l.b16 %v914
  %v923 = vunpack.c.h.b16 %v914
  %v924 = vunpack.c.l.b16 %v915
  %v925 = vunpack.c.h.b16 %v915
  %v926 = vunpack.c.l.b16 %v916
  %v927 = vunpack.c.h.b16 %v916
  %v928 = vunpack.c.l.b16 %v917
  %v929 = vunpack.c.h.b16 %v917
  %v930 = vpack.c.b16 %v922, %v922
  %v931 = vpack.c.b16 %v923, %v923
  %v932 = vpack.c.b16 %v924, %v924
  %v933 = vpack.c.b16 %v925, %v925
  %v934 = vpack.c.b16 %v926, %v926
  %v935 = vpack.c.b16 %v927, %v927
  %v936 = vpack.c.b16 %v928, %v928
  %v937 = vpack.c.b16 %v929, %v929
  %946 = vmatprep.subr.bf16.mxu0 0
  %947 = vmatpush1.bf16.msra.mxu0 %v431
  %948 = vmatprep.subr.bf16.mxu0 0
  %949 = vmatpush1.bf16.msra.mxu0 %v432
  %950 = vmatprep.subr.bf16.mxu0 0
  %951 = vmatpush1.bf16.msra.mxu0 %v433
  %952 = vmatprep.subr.bf16.mxu0 0
  %953 = vmatpush1.bf16.msra.mxu0 %v434
  %954 = vmatprep.subr.bf16.mxu0 0
  %955 = vmatpush1.bf16.msra.mxu0 %v435
  %956 = vmatprep.subr.bf16.mxu0 0
  %957 = vmatpush1.bf16.msra.mxu0 %v436
  %958 = vmatprep.subr.bf16.mxu0 0
  %959 = vmatpush1.bf16.msra.mxu0 %v437
  %960 = vmatprep.subr.bf16.mxu0 0
  %961 = vmatpush1.bf16.msra.mxu0 %v438
  %962 = vmatprep.subr.bf16.mxu0 0
  %963 = vmatpush1.bf16.msra.mxu0 %v439
  %964 = vmatprep.subr.bf16.mxu0 0
  %965 = vmatpush1.bf16.msra.mxu0 %v440
  %966 = vmatprep.subr.bf16.mxu0 0
  %967 = vmatpush1.bf16.msra.mxu0 %v441
  %968 = vmatprep.subr.bf16.mxu0 0
  %969 = vmatpush1.bf16.msra.mxu0 %v442
  %970 = vmatprep.subr.bf16.mxu0 0
  %971 = vmatpush1.bf16.msra.mxu0 %v443
  %972 = vmatprep.subr.bf16.mxu0 0
  %973 = vmatpush1.bf16.msra.mxu0 %v444
  %974 = vmatprep.subr.bf16.mxu0 0
  %975 = vmatpush1.bf16.msra.mxu0 %v445
  %976 = vmatprep.subr.bf16.mxu0 0
  %977 = vmatpush1.bf16.msra.mxu0 %v446
  %978 = vmatprep.mubr.bf16.mxu0 %v931
  %979 = vmatmul.mubr.bf16.gmra.mrb[0].mxu0 %v930
  %v980 = vpop.f32.mrb[0].mxu0
  %v981 = vadd.f32 0.0, %v980
  %v982 = vpop.f32.mrb[0].mxu0
  %v983 = vpop.f32.mrb[0].mxu0
  %v984 = vpop.f32.mrb[0].mxu0
  %985 = vdwg.mxu0
  %986 = vmatprep.subr.bf16.mxu0 0
  %987 = vmatpush1.bf16.msra.mxu0 %v447
  %988 = vmatprep.subr.bf16.mxu0 0
  %989 = vmatpush1.bf16.msra.mxu0 %v448
  %990 = vmatprep.subr.bf16.mxu0 0
  %991 = vmatpush1.bf16.msra.mxu0 %v449
  %992 = vmatprep.subr.bf16.mxu0 0
  %993 = vmatpush1.bf16.msra.mxu0 %v450
  %994 = vmatprep.subr.bf16.mxu0 0
  %995 = vmatpush1.bf16.msra.mxu0 %v451
  %996 = vmatprep.subr.bf16.mxu0 0
  %997 = vmatpush1.bf16.msra.mxu0 %v452
  %998 = vmatprep.subr.bf16.mxu0 0
  %999 = vmatpush1.bf16.msra.mxu0 %v453
  %1000 = vmatprep.subr.bf16.mxu0 0
  %1001 = vmatpush1.bf16.msra.mxu0 %v454
  %1002 = vmatprep.subr.bf16.mxu0 0
  %1003 = vmatpush1.bf16.msra.mxu0 %v455
  %1004 = vmatprep.subr.bf16.mxu0 0
  %1005 = vmatpush1.bf16.msra.mxu0 %v456
  %1006 = vmatprep.subr.bf16.mxu0 0
  %1007 = vmatpush1.bf16.msra.mxu0 %v457
  %1008 = vmatprep.subr.bf16.mxu0 0
  %1009 = vmatpush1.bf16.msra.mxu0 %v458
  %1010 = vmatprep.subr.bf16.mxu0 0
  %1011 = vmatpush1.bf16.msra.mxu0 %v459
  %1012 = vmatprep.subr.bf16.mxu0 0
  %1013 = vmatpush1.bf16.msra.mxu0 %v460
  %1014 = vmatprep.subr.bf16.mxu0 0
  %1015 = vmatpush1.bf16.msra.mxu0 %v461
  %1016 = vmatprep.subr.bf16.mxu0 0
  %1017 = vmatpush1.bf16.msra.mxu0 %v462
  %1018 = vmatprep.mubr.bf16.mxu0 %v933
  %1019 = vmatmul.mubr.bf16.gmra.mrb[0].mxu0 %v932
  %v1020 = vpop.f32.mrb[0].mxu0
  %v1021 = vadd.f32 %v981, %v1020
  %v1022 = vpop.f32.mrb[0].mxu0
  %v1023 = vpop.f32.mrb[0].mxu0
  %v1024 = vpop.f32.mrb[0].mxu0
  %1025 = vdwg.mxu0
  %1026 = vmatprep.subr.bf16.mxu0 0
  %1027 = vmatpush1.bf16.msra.mxu0 %v463
  %1028 = vmatprep.subr.bf16.mxu0 0
  %1029 = vmatpush1.bf16.msra.mxu0 %v464
  %1030 = vmatprep.subr.bf16.mxu0 0
  %1031 = vmatpush1.bf16.msra.mxu0 %v465
  %1032 = vmatprep.subr.bf16.mxu0 0
  %1033 = vmatpush1.bf16.msra.mxu0 %v466
  %1034 = vmatprep.subr.bf16.mxu0 0
  %1035 = vmatpush1.bf16.msra.mxu0 %v467
  %1036 = vmatprep.subr.bf16.mxu0 0
  %1037 = vmatpush1.bf16.msra.mxu0 %v468
  %1038 = vmatprep.subr.bf16.mxu0 0
  %1039 = vmatpush1.bf16.msra.mxu0 %v469
  %1040 = vmatprep.subr.bf16.mxu0 0
  %1041 = vmatpush1.bf16.msra.mxu0 %v470
  %1042 = vmatprep.subr.bf16.mxu0 0
  %1043 = vmatpush1.bf16.msra.mxu0 %v471
  %1044 = vmatprep.subr.bf16.mxu0 0
  %1045 = vmatpush1.bf16.msra.mxu0 %v472
  %1046 = vmatprep.subr.bf16.mxu0 0
  %1047 = vmatpush1.bf16.msra.mxu0 %v473
  %1048 = vmatprep.subr.bf16.mxu0 0
  %1049 = vmatpush1.bf16.msra.mxu0 %v474
  %1050 = vmatprep.subr.bf16.mxu0 0
  %1051 = vmatpush1.bf16.msra.mxu0 %v475
  %1052 = vmatprep.subr.bf16.mxu0 0
  %1053 = vmatpush1.bf16.msra.mxu0 %v476
  %1054 = vmatprep.subr.bf16.mxu0 0
  %1055 = vmatpush1.bf16.msra.mxu0 %v477
  %1056 = vmatprep.subr.bf16.mxu0 0
  %1057 = vmatpush1.bf16.msra.mxu0 %v478
  %1058 = vmatprep.mubr.bf16.mxu0 %v935
  %1059 = vmatmul.mubr.bf16.gmra.mrb[0].mxu0 %v934
  %v1060 = vpop.f32.mrb[0].mxu0
  %v1061 = vadd.f32 %v1021, %v1060
  %v1062 = vpop.f32.mrb[0].mxu0
  %v1063 = vpop.f32.mrb[0].mxu0
  %v1064 = vpop.f32.mrb[0].mxu0
  %1065 = vdwg.mxu0
  %1066 = vmatprep.subr.bf16.mxu0 0
  %1067 = vmatpush1.bf16.msra.mxu0 %v479
  %1068 = vmatprep.subr.bf16.mxu0 0
  %1069 = vmatpush1.bf16.msra.mxu0 %v480
  %1070 = vmatprep.subr.bf16.mxu0 0
  %1071 = vmatpush1.bf16.msra.mxu0 %v481
  %1072 = vmatprep.subr.bf16.mxu0 0
  %1073 = vmatpush1.bf16.msra.mxu0 %v482
  %1074 = vmatprep.subr.bf16.mxu0 0
  %1075 = vmatpush1.bf16.msra.mxu0 %v483
  %1076 = vmatprep.subr.bf16.mxu0 0
  %1077 = vmatpush1.bf16.msra.mxu0 %v484
  %1078 = vmatprep.subr.bf16.mxu0 0
  %1079 = vmatpush1.bf16.msra.mxu0 %v485
  %1080 = vmatprep.subr.bf16.mxu0 0
  %1081 = vmatpush1.bf16.msra.mxu0 %v486
  %1082 = vmatprep.subr.bf16.mxu0 0
  %1083 = vmatpush1.bf16.msra.mxu0 %v487
  %1084 = vmatprep.subr.bf16.mxu0 0
  %1085 = vmatpush1.bf16.msra.mxu0 %v488
  %1086 = vmatprep.subr.bf16.mxu0 0
  %1087 = vmatpush1.bf16.msra.mxu0 %v489
  %1088 = vmatprep.subr.bf16.mxu0 0
  %1089 = vmatpush1.bf16.msra.mxu0 %v490
  %1090 = vmatprep.subr.bf16.mxu0 0
  %1091 = vmatpush1.bf16.msra.mxu0 %v491
  %1092 = vmatprep.subr.bf16.mxu0 0
  %1093 = vmatpush1.bf16.msra.mxu0 %v492
  %1094 = vmatprep.subr.bf16.mxu0 0
  %1095 = vmatpush1.bf16.msra.mxu0 %v493
  %1096 = vmatprep.subr.bf16.mxu0 0
  %1097 = vmatpush1.bf16.msra.mxu0 %v494
  %1098 = vmatprep.mubr.bf16.mxu0 %v937
  %1099 = vmatmul.mubr.bf16.gmra.mrb[0].mxu0 %v936
  %v1100 = vpop.f32.mrb[0].mxu0
  %v1101 = vadd.f32 %v1061, %v1100
  %v1102 = vpop.f32.mrb[0].mxu0
  %v1103 = vpop.f32.mrb[0].mxu0
  %v1104 = vpop.f32.mrb[0].mxu0
  %1105 = vdwg.mxu0
  %v1106 = vmax.f32 %v912, %v1101
  %s1107 = scalar_lea.vmem %s0, 96
  %v1108 = vld [vmem:[%s1107] sm:$0xff]
  %v1109 = vld [vmem:[%s1107 + $0x8] sm:$0xff]
  %v1110 = vld [vmem:[%s1107 + $0x10] sm:$0xff]
  %v1111 = vld [vmem:[%s1107 + $0x18] sm:$0xff]
  %v1116 = vunpack.c.l.b16 %v1108
  %v1117 = vunpack.c.h.b16 %v1108
  %v1118 = vunpack.c.l.b16 %v1109
  %v1119 = vunpack.c.h.b16 %v1109
  %v1120 = vunpack.c.l.b16 %v1110
  %v1121 = vunpack.c.h.b16 %v1110
  %v1122 = vunpack.c.l.b16 %v1111
  %v1123 = vunpack.c.h.b16 %v1111
  %v1124 = vpack.c.b16 %v1116, %v1116
  %v1125 = vpack.c.b16 %v1117, %v1117
  %v1126 = vpack.c.b16 %v1118, %v1118
  %v1127 = vpack.c.b16 %v1119, %v1119
  %v1128 = vpack.c.b16 %v1120, %v1120
  %v1129 = vpack.c.b16 %v1121, %v1121
  %v1130 = vpack.c.b16 %v1122, %v1122
  %v1131 = vpack.c.b16 %v1123, %v1123
  %1140 = vmatprep.subr.bf16.mxu0 0
  %1141 = vmatpush1.bf16.msra.mxu0 %v431
  %1142 = vmatprep.subr.bf16.mxu0 0
  %1143 = vmatpush1.bf16.msra.mxu0 %v432
  %1144 = vmatprep.subr.bf16.mxu0 0
  %1145 = vmatpush1.bf16.msra.mxu0 %v433
  %1146 = vmatprep.subr.bf16.mxu0 0
  %1147 = vmatpush1.bf16.msra.mxu0 %v434
  %1148 = vmatprep.subr.bf16.mxu0 0
  %1149 = vmatpush1.bf16.msra.mxu0 %v435
  %1150 = vmatprep.subr.bf16.mxu0 0
  %1151 = vmatpush1.bf16.msra.mxu0 %v436
  %1152 = vmatprep.subr.bf16.mxu0 0
  %1153 = vmatpush1.bf16.msra.mxu0 %v437
  %1154 = vmatprep.subr.bf16.mxu0 0
  %1155 = vmatpush1.bf16.msra.mxu0 %v438
  %1156 = vmatprep.subr.bf16.mxu0 0
  %1157 = vmatpush1.bf16.msra.mxu0 %v439
  %1158 = vmatprep.subr.bf16.mxu0 0
  %1159 = vmatpush1.bf16.msra.mxu0 %v440
  %1160 = vmatprep.subr.bf16.mxu0 0
  %1161 = vmatpush1.bf16.msra.mxu0 %v441
  %1162 = vmatprep.subr.bf16.mxu0 0
  %1163 = vmatpush1.bf16.msra.mxu0 %v442
  %1164 = vmatprep.subr.bf16.mxu0 0
  %1165 = vmatpush1.bf16.msra.mxu0 %v443
  %1166 = vmatprep.subr.bf16.mxu0 0
  %1167 = vmatpush1.bf16.msra.mxu0 %v444
  %1168 = vmatprep.subr.bf16.mxu0 0
  %1169 = vmatpush1.bf16.msra.mxu0 %v445
  %1170 = vmatprep.subr.bf16.mxu0 0
  %1171 = vmatpush1.bf16.msra.mxu0 %v446
  %1172 = vmatprep.mubr.bf16.mxu0 %v1125
  %1173 = vmatmul.mubr.bf16.gmra.mrb[0].mxu0 %v1124
  %v1174 = vpop.f32.mrb[0].mxu0
  %v1175 = vadd.f32 0.0, %v1174
  %v1176 = vpop.f32.mrb[0].mxu0
  %v1177 = vpop.f32.mrb[0].mxu0
  %v1178 = vpop.f32.mrb[0].mxu0
  %1179 = vdwg.mxu0
  %1180 = vmatprep.subr.bf16.mxu0 0
  %1181 = vmatpush1.bf16.msra.mxu0 %v447
  %1182 = vmatprep.subr.bf16.mxu0 0
  %1183 = vmatpush1.bf16.msra.mxu0 %v448
  %1184 = vmatprep.subr.bf16.mxu0 0
  %1185 = vmatpush1.bf16.msra.mxu0 %v449
  %1186 = vmatprep.subr.bf16.mxu0 0
  %1187 = vmatpush1.bf16.msra.mxu0 %v450
  %1188 = vmatprep.subr.bf16.mxu0 0
  %1189 = vmatpush1.bf16.msra.mxu0 %v451
  %1190 = vmatprep.subr.bf16.mxu0 0
  %1191 = vmatpush1.bf16.msra.mxu0 %v452
  %1192 = vmatprep.subr.bf16.mxu0 0
  %1193 = vmatpush1.bf16.msra.mxu0 %v453
  %1194 = vmatprep.subr.bf16.mxu0 0
  %1195 = vmatpush1.bf16.msra.mxu0 %v454
  %1196 = vmatprep.subr.bf16.mxu0 0
  %1197 = vmatpush1.bf16.msra.mxu0 %v455
  %1198 = vmatprep.subr.bf16.mxu0 0
  %1199 = vmatpush1.bf16.msra.mxu0 %v456
  %1200 = vmatprep.subr.bf16.mxu0 0
  %1201 = vmatpush1.bf16.msra.mxu0 %v457
  %1202 = vmatprep.subr.bf16.mxu0 0
  %1203 = vmatpush1.bf16.msra.mxu0 %v458
  %1204 = vmatprep.subr.bf16.mxu0 0
  %1205 = vmatpush1.bf16.msra.mxu0 %v459
  %1206 = vmatprep.subr.bf16.mxu0 0
  %1207 = vmatpush1.bf16.msra.mxu0 %v460
  %1208 = vmatprep.subr.bf16.mxu0 0
  %1209 = vmatpush1.bf16.msra.mxu0 %v461
  %1210 = vmatprep.subr.bf16.mxu0 0
  %1211 = vmatpush1.bf16.msra.mxu0 %v462
  %1212 = vmatprep.mubr.bf16.mxu0 %v1127
  %1213 = vmatmul.mubr.bf16.gmra.mrb[0].mxu0 %v1126
  %v1214 = vpop.f32.mrb[0].mxu0
  %v1215 = vadd.f32 %v1175, %v1214
  %v1216 = vpop.f32.mrb[0].mxu0
  %v1217 = vpop.f32.mrb[0].mxu0
  %v1218 = vpop.f32.mrb[0].mxu0
  %1219 = vdwg.mxu0
  %1220 = vmatprep.subr.bf16.mxu0 0
  %1221 = vmatpush1.bf16.msra.mxu0 %v463
  %1222 = vmatprep.subr.bf16.mxu0 0
  %1223 = vmatpush1.bf16.msra.mxu0 %v464
  %1224 = vmatprep.subr.bf16.mxu0 0
  %1225 = vmatpush1.bf16.msra.mxu0 %v465
  %1226 = vmatprep.subr.bf16.mxu0 0
  %1227 = vmatpush1.bf16.msra.mxu0 %v466
  %1228 = vmatprep.subr.bf16.mxu0 0
  %1229 = vmatpush1.bf16.msra.mxu0 %v467
  %1230 = vmatprep.subr.bf16.mxu0 0
  %1231 = vmatpush1.bf16.msra.mxu0 %v468
  %1232 = vmatprep.subr.bf16.mxu0 0
  %1233 = vmatpush1.bf16.msra.mxu0 %v469
  %1234 = vmatprep.subr.bf16.mxu0 0
  %1235 = vmatpush1.bf16.msra.mxu0 %v470
  %1236 = vmatprep.subr.bf16.mxu0 0
  %1237 = vmatpush1.bf16.msra.mxu0 %v471
  %1238 = vmatprep.subr.bf16.mxu0 0
  %1239 = vmatpush1.bf16.msra.mxu0 %v472
  %1240 = vmatprep.subr.bf16.mxu0 0
  %1241 = vmatpush1.bf16.msra.mxu0 %v473
  %1242 = vmatprep.subr.bf16.mxu0 0
  %1243 = vmatpush1.bf16.msra.mxu0 %v474
  %1244 = vmatprep.subr.bf16.mxu0 0
  %1245 = vmatpush1.bf16.msra.mxu0 %v475
  %1246 = vmatprep.subr.bf16.mxu0 0
  %1247 = vmatpush1.bf16.msra.mxu0 %v476
  %1248 = vmatprep.subr.bf16.mxu0 0
  %1249 = vmatpush1.bf16.msra.mxu0 %v477
  %1250 = vmatprep.subr.bf16.mxu0 0
  %1251 = vmatpush1.bf16.msra.mxu0 %v478
  %1252 = vmatprep.mubr.bf16.mxu0 %v1129
  %1253 = vmatmul.mubr.bf16.gmra.mrb[0].mxu0 %v1128
  %v1254 = vpop.f32.mrb[0].mxu0
  %v1255 = vadd.f32 %v1215, %v1254
  %v1256 = vpop.f32.mrb[0].mxu0
  %v1257 = vpop.f32.mrb[0].mxu0
  %v1258 = vpop.f32.mrb[0].mxu0
  %1259 = vdwg.mxu0
  %1260 = vmatprep.subr.bf16.mxu0 0
  %1261 = vmatpush1.bf16.msra.mxu0 %v479
  %1262 = vmatprep.subr.bf16.mxu0 0
  %1263 = vmatpush1.bf16.msra.mxu0 %v480
  %1264 = vmatprep.subr.bf16.mxu0 0
  %1265 = vmatpush1.bf16.msra.mxu0 %v481
  %1266 = vmatprep.subr.bf16.mxu0 0
  %1267 = vmatpush1.bf16.msra.mxu0 %v482
  %1268 = vmatprep.subr.bf16.mxu0 0
  %1269 = vmatpush1.bf16.msra.mxu0 %v483
  %1270 = vmatprep.subr.bf16.mxu0 0
  %1271 = vmatpush1.bf16.msra.mxu0 %v484
  %1272 = vmatprep.subr.bf16.mxu0 0
  %1273 = vmatpush1.bf16.msra.mxu0 %v485
  %1274 = vmatprep.subr.bf16.mxu0 0
  %1275 = vmatpush1.bf16.msra.mxu0 %v486
  %1276 = vmatprep.subr.bf16.mxu0 0
  %1277 = vmatpush1.bf16.msra.mxu0 %v487
  %1278 = vmatprep.subr.bf16.mxu0 0
  %1279 = vmatpush1.bf16.msra.mxu0 %v488
  %1280 = vmatprep.subr.bf16.mxu0 0
  %1281 = vmatpush1.bf16.msra.mxu0 %v489
  %1282 = vmatprep.subr.bf16.mxu0 0
  %1283 = vmatpush1.bf16.msra.mxu0 %v490
  %1284 = vmatprep.subr.bf16.mxu0 0
  %1285 = vmatpush1.bf16.msra.mxu0 %v491
  %1286 = vmatprep.subr.bf16.mxu0 0
  %1287 = vmatpush1.bf16.msra.mxu0 %v492
  %1288 = vmatprep.subr.bf16.mxu0 0
  %1289 = vmatpush1.bf16.msra.mxu0 %v493
  %1290 = vmatprep.subr.bf16.mxu0 0
  %1291 = vmatpush1.bf16.msra.mxu0 %v494
  %1292 = vmatprep.mubr.bf16.mxu0 %v1131
  %1293 = vmatmul.mubr.bf16.gmra.mrb[0].mxu0 %v1130
  %v1294 = vpop.f32.mrb[0].mxu0
  %v1295 = vadd.f32 %v1255, %v1294
  %v1296 = vpop.f32.mrb[0].mxu0
  %v1297 = vpop.f32.mrb[0].mxu0
  %v1298 = vpop.f32.mrb[0].mxu0
  %1299 = vdwg.mxu0
  %v1300 = vmax.f32 %v1106, %v1295
  %s1301 = scalar_lea.vmem %s0, 128
  %v1302 = vld [vmem:[%s1301] sm:$0xff]
  %v1303 = vld [vmem:[%s1301 + $0x8] sm:$0xff]
  %v1304 = vld [vmem:[%s1301 + $0x10] sm:$0xff]
  %v1305 = vld [vmem:[%s1301 + $0x18] sm:$0xff]
  %v1310 = vunpack.c.l.b16 %v1302
  %v1311 = vunpack.c.h.b16 %v1302
  %v1312 = vunpack.c.l.b16 %v1303
  %v1313 = vunpack.c.h.b16 %v1303
  %v1314 = vunpack.c.l.b16 %v1304
  %v1315 = vunpack.c.h.b16 %v1304
  %v1316 = vunpack.c.l.b16 %v1305
  %v1317 = vunpack.c.h.b16 %v1305
  %v1318 = vpack.c.b16 %v1310, %v1310
  %v1319 = vpack.c.b16 %v1311, %v1311
  %v1320 = vpack.c.b16 %v1312, %v1312
  %v1321 = vpack.c.b16 %v1313, %v1313
  %v1322 = vpack.c.b16 %v1314, %v1314
  %v1323 = vpack.c.b16 %v1315, %v1315
  %v1324 = vpack.c.b16 %v1316, %v1316
  %v1325 = vpack.c.b16 %v1317, %v1317
  %1334 = vmatprep.subr.bf16.mxu0 0
  %1335 = vmatpush1.bf16.msra.mxu0 %v431
  %1336 = vmatprep.subr.bf16.mxu0 0
  %1337 = vmatpush1.bf16.msra.mxu0 %v432
  %1338 = vmatprep.subr.bf16.mxu0 0
  %1339 = vmatpush1.bf16.msra.mxu0 %v433
  %1340 = vmatprep.subr.bf16.mxu0 0
  %1341 = vmatpush1.bf16.msra.mxu0 %v434
  %1342 = vmatprep.subr.bf16.mxu0 0
  %1343 = vmatpush1.bf16.msra.mxu0 %v435
  %1344 = vmatprep.subr.bf16.mxu0 0
  %1345 = vmatpush1.bf16.msra.mxu0 %v436
  %1346 = vmatprep.subr.bf16.mxu0 0
  %1347 = vmatpush1.bf16.msra.mxu0 %v437
  %1348 = vmatprep.subr.bf16.mxu0 0
  %1349 = vmatpush1.bf16.msra.mxu0 %v438
  %1350 = vmatprep.subr.bf16.mxu0 0
  %1351 = vmatpush1.bf16.msra.mxu0 %v439
  %1352 = vmatprep.subr.bf16.mxu0 0
  %1353 = vmatpush1.bf16.msra.mxu0 %v440
  %1354 = vmatprep.subr.bf16.mxu0 0
  %1355 = vmatpush1.bf16.msra.mxu0 %v441
  %1356 = vmatprep.subr.bf16.mxu0 0
  %1357 = vmatpush1.bf16.msra.mxu0 %v442
  %1358 = vmatprep.subr.bf16.mxu0 0
  %1359 = vmatpush1.bf16.msra.mxu0 %v443
  %1360 = vmatprep.subr.bf16.mxu0 0
  %1361 = vmatpush1.bf16.msra.mxu0 %v444
  %1362 = vmatprep.subr.bf16.mxu0 0
  %1363 = vmatpush1.bf16.msra.mxu0 %v445
  %1364 = vmatprep.subr.bf16.mxu0 0
  %1365 = vmatpush1.bf16.msra.mxu0 %v446
  %1366 = vmatprep.mubr.bf16.mxu0 %v1319
  %1367 = vmatmul.mubr.bf16.gmra.mrb[0].mxu0 %v1318
  %v1368 = vpop.f32.mrb[0].mxu0
  %v1369 = vadd.f32 0.0, %v1368
  %v1370 = vpop.f32.mrb[0].mxu0
  %v1371 = vpop.f32.mrb[0].mxu0
  %v1372 = vpop.f32.mrb[0].mxu0
  %1373 = vdwg.mxu0
  %1374 = vmatprep.subr.bf16.mxu0 0
  %1375 = vmatpush1.bf16.msra.mxu0 %v447
  %1376 = vmatprep.subr.bf16.mxu0 0
  %1377 = vmatpush1.bf16.msra.mxu0 %v448
  %1378 = vmatprep.subr.bf16.mxu0 0
  %1379 = vmatpush1.bf16.msra.mxu0 %v449
  %1380 = vmatprep.subr.bf16.mxu0 0
  %1381 = vmatpush1.bf16.msra.mxu0 %v450
  %1382 = vmatprep.subr.bf16.mxu0 0
  %1383 = vmatpush1.bf16.msra.mxu0 %v451
  %1384 = vmatprep.subr.bf16.mxu0 0
  %1385 = vmatpush1.bf16.msra.mxu0 %v452
  %1386 = vmatprep.subr.bf16.mxu0 0
  %1387 = vmatpush1.bf16.msra.mxu0 %v453
  %1388 = vmatprep.subr.bf16.mxu0 0
  %1389 = vmatpush1.bf16.msra.mxu0 %v454
  %1390 = vmatprep.subr.bf16.mxu0 0
  %1391 = vmatpush1.bf16.msra.mxu0 %v455
  %1392 = vmatprep.subr.bf16.mxu0 0
  %1393 = vmatpush1.bf16.msra.mxu0 %v456
  %1394 = vmatprep.subr.bf16.mxu0 0
  %1395 = vmatpush1.bf16.msra.mxu0 %v457
  %1396 = vmatprep.subr.bf16.mxu0 0
  %1397 = vmatpush1.bf16.msra.mxu0 %v458
  %1398 = vmatprep.subr.bf16.mxu0 0
  %1399 = vmatpush1.bf16.msra.mxu0 %v459
  %1400 = vmatprep.subr.bf16.mxu0 0
  %1401 = vmatpush1.bf16.msra.mxu0 %v460
  %1402 = vmatprep.subr.bf16.mxu0 0
  %1403 = vmatpush1.bf16.msra.mxu0 %v461
  %1404 = vmatprep.subr.bf16.mxu0 0
  %1405 = vmatpush1.bf16.msra.mxu0 %v462
  %1406 = vmatprep.mubr.bf16.mxu0 %v1321
  %1407 = vmatmul.mubr.bf16.gmra.mrb[0].mxu0 %v1320
  %v1408 = vpop.f32.mrb[0].mxu0
  %v1409 = vadd.f32 %v1369, %v1408
  %v1410 = vpop.f32.mrb[0].mxu0
  %v1411 = vpop.f32.mrb[0].mxu0
  %v1412 = vpop.f32.mrb[0].mxu0
  %1413 = vdwg.mxu0
  %1414 = vmatprep.subr.bf16.mxu0 0
  %1415 = vmatpush1.bf16.msra.mxu0 %v463
  %1416 = vmatprep.subr.bf16.mxu0 0
  %1417 = vmatpush1.bf16.msra.mxu0 %v464
  %1418 = vmatprep.subr.bf16.mxu0 0
  %1419 = vmatpush1.bf16.msra.mxu0 %v465
  %1420 = vmatprep.subr.bf16.mxu0 0
  %1421 = vmatpush1.bf16.msra.mxu0 %v466
  %1422 = vmatprep.subr.bf16.mxu0 0
  %1423 = vmatpush1.bf16.msra.mxu0 %v467
  %1424 = vmatprep.subr.bf16.mxu0 0
  %1425 = vmatpush1.bf16.msra.mxu0 %v468
  %1426 = vmatprep.subr.bf16.mxu0 0
  %1427 = vmatpush1.bf16.msra.mxu0 %v469
  %1428 = vmatprep.subr.bf16.mxu0 0
  %1429 = vmatpush1.bf16.msra.mxu0 %v470
  %1430 = vmatprep.subr.bf16.mxu0 0
  %1431 = vmatpush1.bf16.msra.mxu0 %v471
  %1432 = vmatprep.subr.bf16.mxu0 0
  %1433 = vmatpush1.bf16.msra.mxu0 %v472
  %1434 = vmatprep.subr.bf16.mxu0 0
  %1435 = vmatpush1.bf16.msra.mxu0 %v473
  %1436 = vmatprep.subr.bf16.mxu0 0
  %1437 = vmatpush1.bf16.msra.mxu0 %v474
  %1438 = vmatprep.subr.bf16.mxu0 0
  %1439 = vmatpush1.bf16.msra.mxu0 %v475
  %1440 = vmatprep.subr.bf16.mxu0 0
  %1441 = vmatpush1.bf16.msra.mxu0 %v476
  %1442 = vmatprep.subr.bf16.mxu0 0
  %1443 = vmatpush1.bf16.msra.mxu0 %v477
  %1444 = vmatprep.subr.bf16.mxu0 0
  %1445 = vmatpush1.bf16.msra.mxu0 %v478
  %1446 = vmatprep.mubr.bf16.mxu0 %v1323
  %1447 = vmatmul.mubr.bf16.gmra.mrb[0].mxu0 %v1322
  %v1448 = vpop.f32.mrb[0].mxu0
  %v1449 = vadd.f32 %v1409, %v1448
  %v1450 = vpop.f32.mrb[0].mxu0
  %v1451 = vpop.f32.mrb[0].mxu0
  %v1452 = vpop.f32.mrb[0].mxu0
  %1453 = vdwg.mxu0
  %1454 = vmatprep.subr.bf16.mxu0 0
  %1455 = vmatpush1.bf16.msra.mxu0 %v479
  %1456 = vmatprep.subr.bf16.mxu0 0
  %1457 = vmatpush1.bf16.msra.mxu0 %v480
  %1458 = vmatprep.subr.bf16.mxu0 0
  %1459 = vmatpush1.bf16.msra.mxu0 %v481
  %1460 = vmatprep.subr.bf16.mxu0 0
  %1461 = vmatpush1.bf16.msra.mxu0 %v482
  %1462 = vmatprep.subr.bf16.mxu0 0
  %1463 = vmatpush1.bf16.msra.mxu0 %v483
  %1464 = vmatprep.subr.bf16.mxu0 0
  %1465 = vmatpush1.bf16.msra.mxu0 %v484
  %1466 = vmatprep.subr.bf16.mxu0 0
  %1467 = vmatpush1.bf16.msra.mxu0 %v485
  %1468 = vmatprep.subr.bf16.mxu0 0
  %1469 = vmatpush1.bf16.msra.mxu0 %v486
  %1470 = vmatprep.subr.bf16.mxu0 0
  %1471 = vmatpush1.bf16.msra.mxu0 %v487
  %1472 = vmatprep.subr.bf16.mxu0 0
  %1473 = vmatpush1.bf16.msra.mxu0 %v488
  %1474 = vmatprep.subr.bf16.mxu0 0
  %1475 = vmatpush1.bf16.msra.mxu0 %v489
  %1476 = vmatprep.subr.bf16.mxu0 0
  %1477 = vmatpush1.bf16.msra.mxu0 %v490
  %1478 = vmatprep.subr.bf16.mxu0 0
  %1479 = vmatpush1.bf16.msra.mxu0 %v491
  %1480 = vmatprep.subr.bf16.mxu0 0
  %1481 = vmatpush1.bf16.msra.mxu0 %v492
  %1482 = vmatprep.subr.bf16.mxu0 0
  %1483 = vmatpush1.bf16.msra.mxu0 %v493
  %1484 = vmatprep.subr.bf16.mxu0 0
  %1485 = vmatpush1.bf16.msra.mxu0 %v494
  %1486 = vmatprep.mubr.bf16.mxu0 %v1325
  %1487 = vmatmul.mubr.bf16.gmra.mrb[0].mxu0 %v1324
  %v1488 = vpop.f32.mrb[0].mxu0
  %v1489 = vadd.f32 %v1449, %v1488
  %v1490 = vpop.f32.mrb[0].mxu0
  %v1491 = vpop.f32.mrb[0].mxu0
  %v1492 = vpop.f32.mrb[0].mxu0
  %1493 = vdwg.mxu0
  %v1494 = vmax.f32 %v1300, %v1489
  %s1495 = scalar_lea.vmem %s0, 160
  %v1496 = vld [vmem:[%s1495] sm:$0xff]
  %v1497 = vld [vmem:[%s1495 + $0x8] sm:$0xff]
  %v1498 = vld [vmem:[%s1495 + $0x10] sm:$0xff]
  %v1499 = vld [vmem:[%s1495 + $0x18] sm:$0xff]
  %v1504 = vunpack.c.l.b16 %v1496
  %v1505 = vunpack.c.h.b16 %v1496
  %v1506 = vunpack.c.l.b16 %v1497
  %v1507 = vunpack.c.h.b16 %v1497
  %v1508 = vunpack.c.l.b16 %v1498
  %v1509 = vunpack.c.h.b16 %v1498
  %v1510 = vunpack.c.l.b16 %v1499
  %v1511 = vunpack.c.h.b16 %v1499
  %v1512 = vpack.c.b16 %v1504, %v1504
  %v1513 = vpack.c.b16 %v1505, %v1505
  %v1514 = vpack.c.b16 %v1506, %v1506
  %v1515 = vpack.c.b16 %v1507, %v1507
  %v1516 = vpack.c.b16 %v1508, %v1508
  %v1517 = vpack.c.b16 %v1509, %v1509
  %v1518 = vpack.c.b16 %v1510, %v1510
  %v1519 = vpack.c.b16 %v1511, %v1511
  %1528 = vmatprep.subr.bf16.mxu0 0
  %1529 = vmatpush1.bf16.msra.mxu0 %v431
  %1530 = vmatprep.subr.bf16.mxu0 0
  %1531 = vmatpush1.bf16.msra.mxu0 %v432
  %1532 = vmatprep.subr.bf16.mxu0 0
  %1533 = vmatpush1.bf16.msra.mxu0 %v433
  %1534 = vmatprep.subr.bf16.mxu0 0
  %1535 = vmatpush1.bf16.msra.mxu0 %v434
  %1536 = vmatprep.subr.bf16.mxu0 0
  %1537 = vmatpush1.bf16.msra.mxu0 %v435
  %1538 = vmatprep.subr.bf16.mxu0 0
  %1539 = vmatpush1.bf16.msra.mxu0 %v436
  %1540 = vmatprep.subr.bf16.mxu0 0
  %1541 = vmatpush1.bf16.msra.mxu0 %v437
  %1542 = vmatprep.subr.bf16.mxu0 0
  %1543 = vmatpush1.bf16.msra.mxu0 %v438
  %1544 = vmatprep.subr.bf16.mxu0 0
  %1545 = vmatpush1.bf16.msra.mxu0 %v439
  %1546 = vmatprep.subr.bf16.mxu0 0
  %1547 = vmatpush1.bf16.msra.mxu0 %v440
  %1548 = vmatprep.subr.bf16.mxu0 0
  %1549 = vmatpush1.bf16.msra.mxu0 %v441
  %1550 = vmatprep.subr.bf16.mxu0 0
  %1551 = vmatpush1.bf16.msra.mxu0 %v442
  %1552 = vmatprep.subr.bf16.mxu0 0
  %1553 = vmatpush1.bf16.msra.mxu0 %v443
  %1554 = vmatprep.subr.bf16.mxu0 0
  %1555 = vmatpush1.bf16.msra.mxu0 %v444
  %1556 = vmatprep.subr.bf16.mxu0 0
  %1557 = vmatpush1.bf16.msra.mxu0 %v445
  %1558 = vmatprep.subr.bf16.mxu0 0
  %1559 = vmatpush1.bf16.msra.mxu0 %v446
  %1560 = vmatprep.mubr.bf16.mxu0 %v1513
  %1561 = vmatmul.mubr.bf16.gmra.mrb[0].mxu0 %v1512
  %v1562 = vpop.f32.mrb[0].mxu0
  %v1563 = vadd.f32 0.0, %v1562
  %v1564 = vpop.f32.mrb[0].mxu0
  %v1565 = vpop.f32.mrb[0].mxu0
  %v1566 = vpop.f32.mrb[0].mxu0
  %1567 = vdwg.mxu0
  %1568 = vmatprep.subr.bf16.mxu0 0
  %1569 = vmatpush1.bf16.msra.mxu0 %v447
  %1570 = vmatprep.subr.bf16.mxu0 0
  %1571 = vmatpush1.bf16.msra.mxu0 %v448
  %1572 = vmatprep.subr.bf16.mxu0 0
  %1573 = vmatpush1.bf16.msra.mxu0 %v449
  %1574 = vmatprep.subr.bf16.mxu0 0
  %1575 = vmatpush1.bf16.msra.mxu0 %v450
  %1576 = vmatprep.subr.bf16.mxu0 0
  %1577 = vmatpush1.bf16.msra.mxu0 %v451
  %1578 = vmatprep.subr.bf16.mxu0 0
  %1579 = vmatpush1.bf16.msra.mxu0 %v452
  %1580 = vmatprep.subr.bf16.mxu0 0
  %1581 = vmatpush1.bf16.msra.mxu0 %v453
  %1582 = vmatprep.subr.bf16.mxu0 0
  %1583 = vmatpush1.bf16.msra.mxu0 %v454
  %1584 = vmatprep.subr.bf16.mxu0 0
  %1585 = vmatpush1.bf16.msra.mxu0 %v455
  %1586 = vmatprep.subr.bf16.mxu0 0
  %1587 = vmatpush1.bf16.msra.mxu0 %v456
  %1588 = vmatprep.subr.bf16.mxu0 0
  %1589 = vmatpush1.bf16.msra.mxu0 %v457
  %1590 = vmatprep.subr.bf16.mxu0 0
  %1591 = vmatpush1.bf16.msra.mxu0 %v458
  %1592 = vmatprep.subr.bf16.mxu0 0
  %1593 = vmatpush1.bf16.msra.mxu0 %v459
  %1594 = vmatprep.subr.bf16.mxu0 0
  %1595 = vmatpush1.bf16.msra.mxu0 %v460
  %1596 = vmatprep.subr.bf16.mxu0 0
  %1597 = vmatpush1.bf16.msra.mxu0 %v461
  %1598 = vmatprep.subr.bf16.mxu0 0
  %1599 = vmatpush1.bf16.msra.mxu0 %v462
  %1600 = vmatprep.mubr.bf16.mxu0 %v1515
  %1601 = vmatmul.mubr.bf16.gmra.mrb[0].mxu0 %v1514
  %v1602 = vpop.f32.mrb[0].mxu0
  %v1603 = vadd.f32 %v1563, %v1602
  %v1604 = vpop.f32.mrb[0].mxu0
  %v1605 = vpop.f32.mrb[0].mxu0
  %v1606 = vpop.f32.mrb[0].mxu0
  %1607 = vdwg.mxu0
  %1608 = vmatprep.subr.bf16.mxu0 0
  %1609 = vmatpush1.bf16.msra.mxu0 %v463
  %1610 = vmatprep.subr.bf16.mxu0 0
  %1611 = vmatpush1.bf16.msra.mxu0 %v464
  %1612 = vmatprep.subr.bf16.mxu0 0
  %1613 = vmatpush1.bf16.msra.mxu0 %v465
  %1614 = vmatprep.subr.bf16.mxu0 0
  %1615 = vmatpush1.bf16.msra.mxu0 %v466
  %1616 = vmatprep.subr.bf16.mxu0 0
  %1617 = vmatpush1.bf16.msra.mxu0 %v467
  %1618 = vmatprep.subr.bf16.mxu0 0
  %1619 = vmatpush1.bf16.msra.mxu0 %v468
  %1620 = vmatprep.subr.bf16.mxu0 0
  %1621 = vmatpush1.bf16.msra.mxu0 %v469
  %1622 = vmatprep.subr.bf16.mxu0 0
  %1623 = vmatpush1.bf16.msra.mxu0 %v470
  %1624 = vmatprep.subr.bf16.mxu0 0
  %1625 = vmatpush1.bf16.msra.mxu0 %v471
  %1626 = vmatprep.subr.bf16.mxu0 0
  %1627 = vmatpush1.bf16.msra.mxu0 %v472
  %1628 = vmatprep.subr.bf16.mxu0 0
  %1629 = vmatpush1.bf16.msra.mxu0 %v473
  %1630 = vmatprep.subr.bf16.mxu0 0
  %1631 = vmatpush1.bf16.msra.mxu0 %v474
  %1632 = vmatprep.subr.bf16.mxu0 0
  %1633 = vmatpush1.bf16.msra.mxu0 %v475
  %1634 = vmatprep.subr.bf16.mxu0 0
  %1635 = vmatpush1.bf16.msra.mxu0 %v476
  %1636 = vmatprep.subr.bf16.mxu0 0
  %1637 = vmatpush1.bf16.msra.mxu0 %v477
  %1638 = vmatprep.subr.bf16.mxu0 0
  %1639 = vmatpush1.bf16.msra.mxu0 %v478
  %1640 = vmatprep.mubr.bf16.mxu0 %v1517
  %1641 = vmatmul.mubr.bf16.gmra.mrb[0].mxu0 %v1516
  %v1642 = vpop.f32.mrb[0].mxu0
  %v1643 = vadd.f32 %v1603, %v1642
  %v1644 = vpop.f32.mrb[0].mxu0
  %v1645 = vpop.f32.mrb[0].mxu0
  %v1646 = vpop.f32.mrb[0].mxu0
  %1647 = vdwg.mxu0
  %1648 = vmatprep.subr.bf16.mxu0 0
  %1649 = vmatpush1.bf16.msra.mxu0 %v479
  %1650 = vmatprep.subr.bf16.mxu0 0
  %1651 = vmatpush1.bf16.msra.mxu0 %v480
  %1652 = vmatprep.subr.bf16.mxu0 0
  %1653 = vmatpush1.bf16.msra.mxu0 %v481
  %1654 = vmatprep.subr.bf16.mxu0 0
  %1655 = vmatpush1.bf16.msra.mxu0 %v482
  %1656 = vmatprep.subr.bf16.mxu0 0
  %1657 = vmatpush1.bf16.msra.mxu0 %v483
  %1658 = vmatprep.subr.bf16.mxu0 0
  %1659 = vmatpush1.bf16.msra.mxu0 %v484
  %1660 = vmatprep.subr.bf16.mxu0 0
  %1661 = vmatpush1.bf16.msra.mxu0 %v485
  %1662 = vmatprep.subr.bf16.mxu0 0
  %1663 = vmatpush1.bf16.msra.mxu0 %v486
  %1664 = vmatprep.subr.bf16.mxu0 0
  %1665 = vmatpush1.bf16.msra.mxu0 %v487
  %1666 = vmatprep.subr.bf16.mxu0 0
  %1667 = vmatpush1.bf16.msra.mxu0 %v488
  %1668 = vmatprep.subr.bf16.mxu0 0
  %1669 = vmatpush1.bf16.msra.mxu0 %v489
  %1670 = vmatprep.subr.bf16.mxu0 0
  %1671 = vmatpush1.bf16.msra.mxu0 %v490
  %1672 = vmatprep.subr.bf16.mxu0 0
  %1673 = vmatpush1.bf16.msra.mxu0 %v491
  %1674 = vmatprep.subr.bf16.mxu0 0
  %1675 = vmatpush1.bf16.msra.mxu0 %v492
  %1676 = vmatprep.subr.bf16.mxu0 0
  %1677 = vmatpush1.bf16.msra.mxu0 %v493
  %1678 = vmatprep.subr.bf16.mxu0 0
  %1679 = vmatpush1.bf16.msra.mxu0 %v494
  %1680 = vmatprep.mubr.bf16.mxu0 %v1519
  %1681 = vmatmul.mubr.bf16.gmra.mrb[0].mxu0 %v1518
  %v1682 = vpop.f32.mrb[0].mxu0
  %v1683 = vadd.f32 %v1643, %v1682
  %v1684 = vpop.f32.mrb[0].mxu0
  %v1685 = vpop.f32.mrb[0].mxu0
  %v1686 = vpop.f32.mrb[0].mxu0
  %1687 = vdwg.mxu0
  %v1688 = vmax.f32 %v1494, %v1683
  %s1689 = scalar_lea.vmem %s0, 192
  %v1690 = vld [vmem:[%s1689] sm:$0xff]
  %v1691 = vld [vmem:[%s1689 + $0x8] sm:$0xff]
  %v1692 = vld [vmem:[%s1689 + $0x10] sm:$0xff]
  %v1693 = vld [vmem:[%s1689 + $0x18] sm:$0xff]
  %v1698 = vunpack.c.l.b16 %v1690
  %v1699 = vunpack.c.h.b16 %v1690
  %v1700 = vunpack.c.l.b16 %v1691
  %v1701 = vunpack.c.h.b16 %v1691
  %v1702 = vunpack.c.l.b16 %v1692
  %v1703 = vunpack.c.h.b16 %v1692
  %v1704 = vunpack.c.l.b16 %v1693
  %v1705 = vunpack.c.h.b16 %v1693
  %v1706 = vpack.c.b16 %v1698, %v1698
  %v1707 = vpack.c.b16 %v1699, %v1699
  %v1708 = vpack.c.b16 %v1700, %v1700
  %v1709 = vpack.c.b16 %v1701, %v1701
  %v1710 = vpack.c.b16 %v1702, %v1702
  %v1711 = vpack.c.b16 %v1703, %v1703
  %v1712 = vpack.c.b16 %v1704, %v1704
  %v1713 = vpack.c.b16 %v1705, %v1705
  %1722 = vmatprep.subr.bf16.mxu0 0
  %1723 = vmatpush1.bf16.msra.mxu0 %v431
  %1724 = vmatprep.subr.bf16.mxu0 0
  %1725 = vmatpush1.bf16.msra.mxu0 %v432
  %1726 = vmatprep.subr.bf16.mxu0 0
  %1727 = vmatpush1.bf16.msra.mxu0 %v433
  %1728 = vmatprep.subr.bf16.mxu0 0
  %1729 = vmatpush1.bf16.msra.mxu0 %v434
  %1730 = vmatprep.subr.bf16.mxu0 0
  %1731 = vmatpush1.bf16.msra.mxu0 %v435
  %1732 = vmatprep.subr.bf16.mxu0 0
  %1733 = vmatpush1.bf16.msra.mxu0 %v436
  %1734 = vmatprep.subr.bf16.mxu0 0
  %1735 = vmatpush1.bf16.msra.mxu0 %v437
  %1736 = vmatprep.subr.bf16.mxu0 0
  %1737 = vmatpush1.bf16.msra.mxu0 %v438
  %1738 = vmatprep.subr.bf16.mxu0 0
  %1739 = vmatpush1.bf16.msra.mxu0 %v439
  %1740 = vmatprep.subr.bf16.mxu0 0
  %1741 = vmatpush1.bf16.msra.mxu0 %v440
  %1742 = vmatprep.subr.bf16.mxu0 0
  %1743 = vmatpush1.bf16.msra.mxu0 %v441
  %1744 = vmatprep.subr.bf16.mxu0 0
  %1745 = vmatpush1.bf16.msra.mxu0 %v442
  %1746 = vmatprep.subr.bf16.mxu0 0
  %1747 = vmatpush1.bf16.msra.mxu0 %v443
  %1748 = vmatprep.subr.bf16.mxu0 0
  %1749 = vmatpush1.bf16.msra.mxu0 %v444
  %1750 = vmatprep.subr.bf16.mxu0 0
  %1751 = vmatpush1.bf16.msra.mxu0 %v445
  %1752 = vmatprep.subr.bf16.mxu0 0
  %1753 = vmatpush1.bf16.msra.mxu0 %v446
  %1754 = vmatprep.mubr.bf16.mxu0 %v1707
  %1755 = vmatmul.mubr.bf16.gmra.mrb[0].mxu0 %v1706
  %v1756 = vpop.f32.mrb[0].mxu0
  %v1757 = vadd.f32 0.0, %v1756
  %v1758 = vpop.f32.mrb[0].mxu0
  %v1759 = vpop.f32.mrb[0].mxu0
  %v1760 = vpop.f32.mrb[0].mxu0
  %1761 = vdwg.mxu0
  %1762 = vmatprep.subr.bf16.mxu0 0
  %1763 = vmatpush1.bf16.msra.mxu0 %v447
  %1764 = vmatprep.subr.bf16.mxu0 0
  %1765 = vmatpush1.bf16.msra.mxu0 %v448
  %1766 = vmatprep.subr.bf16.mxu0 0
  %1767 = vmatpush1.bf16.msra.mxu0 %v449
  %1768 = vmatprep.subr.bf16.mxu0 0
  %1769 = vmatpush1.bf16.msra.mxu0 %v450
  %1770 = vmatprep.subr.bf16.mxu0 0
  %1771 = vmatpush1.bf16.msra.mxu0 %v451
  %1772 = vmatprep.subr.bf16.mxu0 0
  %1773 = vmatpush1.bf16.msra.mxu0 %v452
  %1774 = vmatprep.subr.bf16.mxu0 0
  %1775 = vmatpush1.bf16.msra.mxu0 %v453
  %1776 = vmatprep.subr.bf16.mxu0 0
  %1777 = vmatpush1.bf16.msra.mxu0 %v454
  %1778 = vmatprep.subr.bf16.mxu0 0
  %1779 = vmatpush1.bf16.msra.mxu0 %v455
  %1780 = vmatprep.subr.bf16.mxu0 0
  %1781 = vmatpush1.bf16.msra.mxu0 %v456
  %1782 = vmatprep.subr.bf16.mxu0 0
  %1783 = vmatpush1.bf16.msra.mxu0 %v457
  %1784 = vmatprep.subr.bf16.mxu0 0
  %1785 = vmatpush1.bf16.msra.mxu0 %v458
  %1786 = vmatprep.subr.bf16.mxu0 0
  %1787 = vmatpush1.bf16.msra.mxu0 %v459
  %1788 = vmatprep.subr.bf16.mxu0 0
  %1789 = vmatpush1.bf16.msra.mxu0 %v460
  %1790 = vmatprep.subr.bf16.mxu0 0
  %1791 = vmatpush1.bf16.msra.mxu0 %v461
  %1792 = vmatprep.subr.bf16.mxu0 0
  %1793 = vmatpush1.bf16.msra.mxu0 %v462
  %1794 = vmatprep.mubr.bf16.mxu0 %v1709
  %1795 = vmatmul.mubr.bf16.gmra.mrb[0].mxu0 %v1708
  %v1796 = vpop.f32.mrb[0].mxu0
  %v1797 = vadd.f32 %v1757, %v1796
  %v1798 = vpop.f32.mrb[0].mxu0
  %v1799 = vpop.f32.mrb[0].mxu0
  %v1800 = vpop.f32.mrb[0].mxu0
  %1801 = vdwg.mxu0
  %1802 = vmatprep.subr.bf16.mxu0 0
  %1803 = vmatpush1.bf16.msra.mxu0 %v463
  %1804 = vmatprep.subr.bf16.mxu0 0
  %1805 = vmatpush1.bf16.msra.mxu0 %v464
  %1806 = vmatprep.subr.bf16.mxu0 0
  %1807 = vmatpush1.bf16.msra.mxu0 %v465
  %1808 = vmatprep.subr.bf16.mxu0 0
  %1809 = vmatpush1.bf16.msra.mxu0 %v466
  %1810 = vmatprep.subr.bf16.mxu0 0
  %1811 = vmatpush1.bf16.msra.mxu0 %v467
  %1812 = vmatprep.subr.bf16.mxu0 0
  %1813 = vmatpush1.bf16.msra.mxu0 %v468
  %1814 = vmatprep.subr.bf16.mxu0 0
  %1815 = vmatpush1.bf16.msra.mxu0 %v469
  %1816 = vmatprep.subr.bf16.mxu0 0
  %1817 = vmatpush1.bf16.msra.mxu0 %v470
  %1818 = vmatprep.subr.bf16.mxu0 0
  %1819 = vmatpush1.bf16.msra.mxu0 %v471
  %1820 = vmatprep.subr.bf16.mxu0 0
  %1821 = vmatpush1.bf16.msra.mxu0 %v472
  %1822 = vmatprep.subr.bf16.mxu0 0
  %1823 = vmatpush1.bf16.msra.mxu0 %v473
  %1824 = vmatprep.subr.bf16.mxu0 0
  %1825 = vmatpush1.bf16.msra.mxu0 %v474
  %1826 = vmatprep.subr.bf16.mxu0 0
  %1827 = vmatpush1.bf16.msra.mxu0 %v475
  %1828 = vmatprep.subr.bf16.mxu0 0
  %1829 = vmatpush1.bf16.msra.mxu0 %v476
  %1830 = vmatprep.subr.bf16.mxu0 0
  %1831 = vmatpush1.bf16.msra.mxu0 %v477
  %1832 = vmatprep.subr.bf16.mxu0 0
  %1833 = vmatpush1.bf16.msra.mxu0 %v478
  %1834 = vmatprep.mubr.bf16.mxu0 %v1711
  %1835 = vmatmul.mubr.bf16.gmra.mrb[0].mxu0 %v1710
  %v1836 = vpop.f32.mrb[0].mxu0
  %v1837 = vadd.f32 %v1797, %v1836
  %v1838 = vpop.f32.mrb[0].mxu0
  %v1839 = vpop.f32.mrb[0].mxu0
  %v1840 = vpop.f32.mrb[0].mxu0
  %1841 = vdwg.mxu0
  %1842 = vmatprep.subr.bf16.mxu0 0
  %1843 = vmatpush1.bf16.msra.mxu0 %v479
  %1844 = vmatprep.subr.bf16.mxu0 0
  %1845 = vmatpush1.bf16.msra.mxu0 %v480
  %1846 = vmatprep.subr.bf16.mxu0 0
  %1847 = vmatpush1.bf16.msra.mxu0 %v481
  %1848 = vmatprep.subr.bf16.mxu0 0
  %1849 = vmatpush1.bf16.msra.mxu0 %v482
  %1850 = vmatprep.subr.bf16.mxu0 0
  %1851 = vmatpush1.bf16.msra.mxu0 %v483
  %1852 = vmatprep.subr.bf16.mxu0 0
  %1853 = vmatpush1.bf16.msra.mxu0 %v484
  %1854 = vmatprep.subr.bf16.mxu0 0
  %1855 = vmatpush1.bf16.msra.mxu0 %v485
  %1856 = vmatprep.subr.bf16.mxu0 0
  %1857 = vmatpush1.bf16.msra.mxu0 %v486
  %1858 = vmatprep.subr.bf16.mxu0 0
  %1859 = vmatpush1.bf16.msra.mxu0 %v487
  %1860 = vmatprep.subr.bf16.mxu0 0
  %1861 = vmatpush1.bf16.msra.mxu0 %v488
  %1862 = vmatprep.subr.bf16.mxu0 0
  %1863 = vmatpush1.bf16.msra.mxu0 %v489
  %1864 = vmatprep.subr.bf16.mxu0 0
  %1865 = vmatpush1.bf16.msra.mxu0 %v490
  %1866 = vmatprep.subr.bf16.mxu0 0
  %1867 = vmatpush1.bf16.msra.mxu0 %v491
  %1868 = vmatprep.subr.bf16.mxu0 0
  %1869 = vmatpush1.bf16.msra.mxu0 %v492
  %1870 = vmatprep.subr.bf16.mxu0 0
  %1871 = vmatpush1.bf16.msra.mxu0 %v493
  %1872 = vmatprep.subr.bf16.mxu0 0
  %1873 = vmatpush1.bf16.msra.mxu0 %v494
  %1874 = vmatprep.mubr.bf16.mxu0 %v1713
  %1875 = vmatmul.mubr.bf16.gmra.mrb[0].mxu0 %v1712
  %v1876 = vpop.f32.mrb[0].mxu0
  %v1877 = vadd.f32 %v1837, %v1876
  %v1878 = vpop.f32.mrb[0].mxu0
  %v1879 = vpop.f32.mrb[0].mxu0
  %v1880 = vpop.f32.mrb[0].mxu0
  %1881 = vdwg.mxu0
  %v1882 = vmax.f32 %v1688, %v1877
  %s1883 = scalar_lea.vmem %s0, 224
  %v1884 = vld [vmem:[%s1883] sm:$0xff]
  %v1885 = vld [vmem:[%s1883 + $0x8] sm:$0xff]
  %v1886 = vld [vmem:[%s1883 + $0x10] sm:$0xff]
  %v1887 = vld [vmem:[%s1883 + $0x18] sm:$0xff]
  %v1892 = vunpack.c.l.b16 %v1884
  %v1893 = vunpack.c.h.b16 %v1884
  %v1894 = vunpack.c.l.b16 %v1885
  %v1895 = vunpack.c.h.b16 %v1885
  %v1896 = vunpack.c.l.b16 %v1886
  %v1897 = vunpack.c.h.b16 %v1886
  %v1898 = vunpack.c.l.b16 %v1887
  %v1899 = vunpack.c.h.b16 %v1887
  %v1900 = vpack.c.b16 %v1892, %v1892
  %v1901 = vpack.c.b16 %v1893, %v1893
  %v1902 = vpack.c.b16 %v1894, %v1894
  %v1903 = vpack.c.b16 %v1895, %v1895
  %v1904 = vpack.c.b16 %v1896, %v1896
  %v1905 = vpack.c.b16 %v1897, %v1897
  %v1906 = vpack.c.b16 %v1898, %v1898
  %v1907 = vpack.c.b16 %v1899, %v1899
  %1916 = vmatprep.subr.bf16.mxu0 0
  %1917 = vmatpush1.bf16.msra.mxu0 %v431
  %1918 = vmatprep.subr.bf16.mxu0 0
  %1919 = vmatpush1.bf16.msra.mxu0 %v432
  %1920 = vmatprep.subr.bf16.mxu0 0
  %1921 = vmatpush1.bf16.msra.mxu0 %v433
  %1922 = vmatprep.subr.bf16.mxu0 0
  %1923 = vmatpush1.bf16.msra.mxu0 %v434
  %1924 = vmatprep.subr.bf16.mxu0 0
  %1925 = vmatpush1.bf16.msra.mxu0 %v435
  %1926 = vmatprep.subr.bf16.mxu0 0
  %1927 = vmatpush1.bf16.msra.mxu0 %v436
  %1928 = vmatprep.subr.bf16.mxu0 0
  %1929 = vmatpush1.bf16.msra.mxu0 %v437
  %1930 = vmatprep.subr.bf16.mxu0 0
  %1931 = vmatpush1.bf16.msra.mxu0 %v438
  %1932 = vmatprep.subr.bf16.mxu0 0
  %1933 = vmatpush1.bf16.msra.mxu0 %v439
  %1934 = vmatprep.subr.bf16.mxu0 0
  %1935 = vmatpush1.bf16.msra.mxu0 %v440
  %1936 = vmatprep.subr.bf16.mxu0 0
  %1937 = vmatpush1.bf16.msra.mxu0 %v441
  %1938 = vmatprep.subr.bf16.mxu0 0
  %1939 = vmatpush1.bf16.msra.mxu0 %v442
  %1940 = vmatprep.subr.bf16.mxu0 0
  %1941 = vmatpush1.bf16.msra.mxu0 %v443
  %1942 = vmatprep.subr.bf16.mxu0 0
  %1943 = vmatpush1.bf16.msra.mxu0 %v444
  %1944 = vmatprep.subr.bf16.mxu0 0
  %1945 = vmatpush1.bf16.msra.mxu0 %v445
  %1946 = vmatprep.subr.bf16.mxu0 0
  %1947 = vmatpush1.bf16.msra.mxu0 %v446
  %1948 = vmatprep.mubr.bf16.mxu0 %v1901
  %1949 = vmatmul.mubr.bf16.gmra.mrb[0].mxu0 %v1900
  %v1950 = vpop.f32.mrb[0].mxu0
  %v1951 = vadd.f32 0.0, %v1950
  %v1952 = vpop.f32.mrb[0].mxu0
  %v1953 = vpop.f32.mrb[0].mxu0
  %v1954 = vpop.f32.mrb[0].mxu0
  %1955 = vdwg.mxu0
  %1956 = vmatprep.subr.bf16.mxu0 0
  %1957 = vmatpush1.bf16.msra.mxu0 %v447
  %1958 = vmatprep.subr.bf16.mxu0 0
  %1959 = vmatpush1.bf16.msra.mxu0 %v448
  %1960 = vmatprep.subr.bf16.mxu0 0
  %1961 = vmatpush1.bf16.msra.mxu0 %v449
  %1962 = vmatprep.subr.bf16.mxu0 0
  %1963 = vmatpush1.bf16.msra.mxu0 %v450
  %1964 = vmatprep.subr.bf16.mxu0 0
  %1965 = vmatpush1.bf16.msra.mxu0 %v451
  %1966 = vmatprep.subr.bf16.mxu0 0
  %1967 = vmatpush1.bf16.msra.mxu0 %v452
  %1968 = vmatprep.subr.bf16.mxu0 0
  %1969 = vmatpush1.bf16.msra.mxu0 %v453
  %1970 = vmatprep.subr.bf16.mxu0 0
  %1971 = vmatpush1.bf16.msra.mxu0 %v454
  %1972 = vmatprep.subr.bf16.mxu0 0
  %1973 = vmatpush1.bf16.msra.mxu0 %v455
  %1974 = vmatprep.subr.bf16.mxu0 0
  %1975 = vmatpush1.bf16.msra.mxu0 %v456
  %1976 = vmatprep.subr.bf16.mxu0 0
  %1977 = vmatpush1.bf16.msra.mxu0 %v457
  %1978 = vmatprep.subr.bf16.mxu0 0
  %1979 = vmatpush1.bf16.msra.mxu0 %v458
  %1980 = vmatprep.subr.bf16.mxu0 0
  %1981 = vmatpush1.bf16.msra.mxu0 %v459
  %1982 = vmatprep.subr.bf16.mxu0 0
  %1983 = vmatpush1.bf16.msra.mxu0 %v460
  %1984 = vmatprep.subr.bf16.mxu0 0
  %1985 = vmatpush1.bf16.msra.mxu0 %v461
  %1986 = vmatprep.subr.bf16.mxu0 0
  %1987 = vmatpush1.bf16.msra.mxu0 %v462
  %1988 = vmatprep.mubr.bf16.mxu0 %v1903
  %1989 = vmatmul.mubr.bf16.gmra.mrb[0].mxu0 %v1902
  %v1990 = vpop.f32.mrb[0].mxu0
  %v1991 = vadd.f32 %v1951, %v1990
  %v1992 = vpop.f32.mrb[0].mxu0
  %v1993 = vpop.f32.mrb[0].mxu0
  %v1994 = vpop.f32.mrb[0].mxu0
  %1995 = vdwg.mxu0
  %1996 = vmatprep.subr.bf16.mxu0 0
  %1997 = vmatpush1.bf16.msra.mxu0 %v463
  %1998 = vmatprep.subr.bf16.mxu0 0
  %1999 = vmatpush1.bf16.msra.mxu0 %v464
  %2000 = vmatprep.subr.bf16.mxu0 0
  %2001 = vmatpush1.bf16.msra.mxu0 %v465
  %2002 = vmatprep.subr.bf16.mxu0 0
  %2003 = vmatpush1.bf16.msra.mxu0 %v466
  %2004 = vmatprep.subr.bf16.mxu0 0
  %2005 = vmatpush1.bf16.msra.mxu0 %v467
  %2006 = vmatprep.subr.bf16.mxu0 0
  %2007 = vmatpush1.bf16.msra.mxu0 %v468
  %2008 = vmatprep.subr.bf16.mxu0 0
  %2009 = vmatpush1.bf16.msra.mxu0 %v469
  %2010 = vmatprep.subr.bf16.mxu0 0
  %2011 = vmatpush1.bf16.msra.mxu0 %v470
  %2012 = vmatprep.subr.bf16.mxu0 0
  %2013 = vmatpush1.bf16.msra.mxu0 %v471
  %2014 = vmatprep.subr.bf16.mxu0 0
  %2015 = vmatpush1.bf16.msra.mxu0 %v472
  %2016 = vmatprep.subr.bf16.mxu0 0
  %2017 = vmatpush1.bf16.msra.mxu0 %v473
  %2018 = vmatprep.subr.bf16.mxu0 0
  %2019 = vmatpush1.bf16.msra.mxu0 %v474
  %2020 = vmatprep.subr.bf16.mxu0 0
  %2021 = vmatpush1.bf16.msra.mxu0 %v475
  %2022 = vmatprep.subr.bf16.mxu0 0
  %2023 = vmatpush1.bf16.msra.mxu0 %v476
  %2024 = vmatprep.subr.bf16.mxu0 0
  %2025 = vmatpush1.bf16.msra.mxu0 %v477
  %2026 = vmatprep.subr.bf16.mxu0 0
  %2027 = vmatpush1.bf16.msra.mxu0 %v478
  %2028 = vmatprep.mubr.bf16.mxu0 %v1905
  %2029 = vmatmul.mubr.bf16.gmra.mrb[0].mxu0 %v1904
  %v2030 = vpop.f32.mrb[0].mxu0
  %v2031 = vadd.f32 %v1991, %v2030
  %v2032 = vpop.f32.mrb[0].mxu0
  %v2033 = vpop.f32.mrb[0].mxu0
  %v2034 = vpop.f32.mrb[0].mxu0
  %2035 = vdwg.mxu0
  %2036 = vmatprep.subr.bf16.mxu0 0
  %2037 = vmatpush1.bf16.msra.mxu0 %v479
  %2038 = vmatprep.subr.bf16.mxu0 0
  %2039 = vmatpush1.bf16.msra.mxu0 %v480
  %2040 = vmatprep.subr.bf16.mxu0 0
  %2041 = vmatpush1.bf16.msra.mxu0 %v481
  %2042 = vmatprep.subr.bf16.mxu0 0
  %2043 = vmatpush1.bf16.msra.mxu0 %v482
  %2044 = vmatprep.subr.bf16.mxu0 0
  %2045 = vmatpush1.bf16.msra.mxu0 %v483
  %2046 = vmatprep.subr.bf16.mxu0 0
  %2047 = vmatpush1.bf16.msra.mxu0 %v484
  %2048 = vmatprep.subr.bf16.mxu0 0
  %2049 = vmatpush1.bf16.msra.mxu0 %v485
  %2050 = vmatprep.subr.bf16.mxu0 0
  %2051 = vmatpush1.bf16.msra.mxu0 %v486
  %2052 = vmatprep.subr.bf16.mxu0 0
  %2053 = vmatpush1.bf16.msra.mxu0 %v487
  %2054 = vmatprep.subr.bf16.mxu0 0
  %2055 = vmatpush1.bf16.msra.mxu0 %v488
  %2056 = vmatprep.subr.bf16.mxu0 0
  %2057 = vmatpush1.bf16.msra.mxu0 %v489
  %2058 = vmatprep.subr.bf16.mxu0 0
  %2059 = vmatpush1.bf16.msra.mxu0 %v490
  %2060 = vmatprep.subr.bf16.mxu0 0
  %2061 = vmatpush1.bf16.msra.mxu0 %v491
  %2062 = vmatprep.subr.bf16.mxu0 0
  %2063 = vmatpush1.bf16.msra.mxu0 %v492
  %2064 = vmatprep.subr.bf16.mxu0 0
  %2065 = vmatpush1.bf16.msra.mxu0 %v493
  %2066 = vmatprep.subr.bf16.mxu0 0
  %2067 = vmatpush1.bf16.msra.mxu0 %v494
  %2068 = vmatprep.mubr.bf16.mxu0 %v1907
  %2069 = vmatmul.mubr.bf16.gmra.mrb[0].mxu0 %v1906
  %v2070 = vpop.f32.mrb[0].mxu0
  %v2071 = vadd.f32 %v2031, %v2070
  %v2072 = vpop.f32.mrb[0].mxu0
  %v2073 = vpop.f32.mrb[0].mxu0
  %v2074 = vpop.f32.mrb[0].mxu0
  %2075 = vdwg.mxu0
  %v2076 = vmax.f32 %v1882, %v2071
  %s2077 = scalar_lea.vmem %s0, 256
  %v2078 = vld [vmem:[%s2077] sm:$0xff]
  %v2079 = vld [vmem:[%s2077 + $0x8] sm:$0xff]
  %v2080 = vld [vmem:[%s2077 + $0x10] sm:$0xff]
  %v2081 = vld [vmem:[%s2077 + $0x18] sm:$0xff]
  %v2086 = vunpack.c.l.b16 %v2078
  %v2087 = vunpack.c.h.b16 %v2078
  %v2088 = vunpack.c.l.b16 %v2079
  %v2089 = vunpack.c.h.b16 %v2079
  %v2090 = vunpack.c.l.b16 %v2080
  %v2091 = vunpack.c.h.b16 %v2080
  %v2092 = vunpack.c.l.b16 %v2081
  %v2093 = vunpack.c.h.b16 %v2081
  %v2094 = vpack.c.b16 %v2086, %v2086
  %v2095 = vpack.c.b16 %v2087, %v2087
  %v2096 = vpack.c.b16 %v2088, %v2088
  %v2097 = vpack.c.b16 %v2089, %v2089
  %v2098 = vpack.c.b16 %v2090, %v2090
  %v2099 = vpack.c.b16 %v2091, %v2091
  %v2100 = vpack.c.b16 %v2092, %v2092
  %v2101 = vpack.c.b16 %v2093, %v2093
  %2110 = vmatprep.subr.bf16.mxu0 0
  %2111 = vmatpush1.bf16.msra.mxu0 %v431
  %2112 = vmatprep.subr.bf16.mxu0 0
  %2113 = vmatpush1.bf16.msra.mxu0 %v432
  %2114 = vmatprep.subr.bf16.mxu0 0
  %2115 = vmatpush1.bf16.msra.mxu0 %v433
  %2116 = vmatprep.subr.bf16.mxu0 0
  %2117 = vmatpush1.bf16.msra.mxu0 %v434
  %2118 = vmatprep.subr.bf16.mxu0 0
  %2119 = vmatpush1.bf16.msra.mxu0 %v435
  %2120 = vmatprep.subr.bf16.mxu0 0
  %2121 = vmatpush1.bf16.msra.mxu0 %v436
  %2122 = vmatprep.subr.bf16.mxu0 0
  %2123 = vmatpush1.bf16.msra.mxu0 %v437
  %2124 = vmatprep.subr.bf16.mxu0 0
  %2125 = vmatpush1.bf16.msra.mxu0 %v438
  %2126 = vmatprep.subr.bf16.mxu0 0
  %2127 = vmatpush1.bf16.msra.mxu0 %v439
  %2128 = vmatprep.subr.bf16.mxu0 0
  %2129 = vmatpush1.bf16.msra.mxu0 %v440
  %2130 = vmatprep.subr.bf16.mxu0 0
  %2131 = vmatpush1.bf16.msra.mxu0 %v441
  %2132 = vmatprep.subr.bf16.mxu0 0
  %2133 = vmatpush1.bf16.msra.mxu0 %v442
  %2134 = vmatprep.subr.bf16.mxu0 0
  %2135 = vmatpush1.bf16.msra.mxu0 %v443
  %2136 = vmatprep.subr.bf16.mxu0 0
  %2137 = vmatpush1.bf16.msra.mxu0 %v444
  %2138 = vmatprep.subr.bf16.mxu0 0
  %2139 = vmatpush1.bf16.msra.mxu0 %v445
  %2140 = vmatprep.subr.bf16.mxu0 0
  %2141 = vmatpush1.bf16.msra.mxu0 %v446
  %2142 = vmatprep.mubr.bf16.mxu0 %v2095
  %2143 = vmatmul.mubr.bf16.gmra.mrb[0].mxu0 %v2094
  %v2144 = vpop.f32.mrb[0].mxu0
  %v2145 = vadd.f32 0.0, %v2144
  %v2146 = vpop.f32.mrb[0].mxu0
  %v2147 = vpop.f32.mrb[0].mxu0
  %v2148 = vpop.f32.mrb[0].mxu0
  %2149 = vdwg.mxu0
  %2150 = vmatprep.subr.bf16.mxu0 0
  %2151 = vmatpush1.bf16.msra.mxu0 %v447
  %2152 = vmatprep.subr.bf16.mxu0 0
  %2153 = vmatpush1.bf16.msra.mxu0 %v448
  %2154 = vmatprep.subr.bf16.mxu0 0
  %2155 = vmatpush1.bf16.msra.mxu0 %v449
  %2156 = vmatprep.subr.bf16.mxu0 0
  %2157 = vmatpush1.bf16.msra.mxu0 %v450
  %2158 = vmatprep.subr.bf16.mxu0 0
  %2159 = vmatpush1.bf16.msra.mxu0 %v451
  %2160 = vmatprep.subr.bf16.mxu0 0
  %2161 = vmatpush1.bf16.msra.mxu0 %v452
  %2162 = vmatprep.subr.bf16.mxu0 0
  %2163 = vmatpush1.bf16.msra.mxu0 %v453
  %2164 = vmatprep.subr.bf16.mxu0 0
  %2165 = vmatpush1.bf16.msra.mxu0 %v454
  %2166 = vmatprep.subr.bf16.mxu0 0
  %2167 = vmatpush1.bf16.msra.mxu0 %v455
  %2168 = vmatprep.subr.bf16.mxu0 0
  %2169 = vmatpush1.bf16.msra.mxu0 %v456
  %2170 = vmatprep.subr.bf16.mxu0 0
  %2171 = vmatpush1.bf16.msra.mxu0 %v457
  %2172 = vmatprep.subr.bf16.mxu0 0
  %2173 = vmatpush1.bf16.msra.mxu0 %v458
  %2174 = vmatprep.subr.bf16.mxu0 0
  %2175 = vmatpush1.bf16.msra.mxu0 %v459
  %2176 = vmatprep.subr.bf16.mxu0 0
  %2177 = vmatpush1.bf16.msra.mxu0 %v460
  %2178 = vmatprep.subr.bf16.mxu0 0
  %2179 = vmatpush1.bf16.msra.mxu0 %v461
  %2180 = vmatprep.subr.bf16.mxu0 0
  %2181 = vmatpush1.bf16.msra.mxu0 %v462
  %2182 = vmatprep.mubr.bf16.mxu0 %v2097
  %2183 = vmatmul.mubr.bf16.gmra.mrb[0].mxu0 %v2096
  %v2184 = vpop.f32.mrb[0].mxu0
  %v2185 = vadd.f32 %v2145, %v2184
  %v2186 = vpop.f32.mrb[0].mxu0
  %v2187 = vpop.f32.mrb[0].mxu0
  %v2188 = vpop.f32.mrb[0].mxu0
  %2189 = vdwg.mxu0
  %2190 = vmatprep.subr.bf16.mxu0 0
  %2191 = vmatpush1.bf16.msra.mxu0 %v463
  %2192 = vmatprep.subr.bf16.mxu0 0
  %2193 = vmatpush1.bf16.msra.mxu0 %v464
  %2194 = vmatprep.subr.bf16.mxu0 0
  %2195 = vmatpush1.bf16.msra.mxu0 %v465
  %2196 = vmatprep.subr.bf16.mxu0 0
  %2197 = vmatpush1.bf16.msra.mxu0 %v466
  %2198 = vmatprep.subr.bf16.mxu0 0
  %2199 = vmatpush1.bf16.msra.mxu0 %v467
  %2200 = vmatprep.subr.bf16.mxu0 0
  %2201 = vmatpush1.bf16.msra.mxu0 %v468
  %2202 = vmatprep.subr.bf16.mxu0 0
  %2203 = vmatpush1.bf16.msra.mxu0 %v469
  %2204 = vmatprep.subr.bf16.mxu0 0
  %2205 = vmatpush1.bf16.msra.mxu0 %v470
  %2206 = vmatprep.subr.bf16.mxu0 0
  %2207 = vmatpush1.bf16.msra.mxu0 %v471
  %2208 = vmatprep.subr.bf16.mxu0 0
  %2209 = vmatpush1.bf16.msra.mxu0 %v472
  %2210 = vmatprep.subr.bf16.mxu0 0
  %2211 = vmatpush1.bf16.msra.mxu0 %v473
  %2212 = vmatprep.subr.bf16.mxu0 0
  %2213 = vmatpush1.bf16.msra.mxu0 %v474
  %2214 = vmatprep.subr.bf16.mxu0 0
  %2215 = vmatpush1.bf16.msra.mxu0 %v475
  %2216 = vmatprep.subr.bf16.mxu0 0
  %2217 = vmatpush1.bf16.msra.mxu0 %v476
  %2218 = vmatprep.subr.bf16.mxu0 0
  %2219 = vmatpush1.bf16.msra.mxu0 %v477
  %2220 = vmatprep.subr.bf16.mxu0 0
  %2221 = vmatpush1.bf16.msra.mxu0 %v478
  %2222 = vmatprep.mubr.bf16.mxu0 %v2099
  %2223 = vmatmul.mubr.bf16.gmra.mrb[0].mxu0 %v2098
  %v2224 = vpop.f32.mrb[0].mxu0
  %v2225 = vadd.f32 %v2185, %v2224
  %v2226 = vpop.f32.mrb[0].mxu0
  %v2227 = vpop.f32.mrb[0].mxu0
  %v2228 = vpop.f32.mrb[0].mxu0
  %2229 = vdwg.mxu0
  %2230 = vmatprep.subr.bf16.mxu0 0
  %2231 = vmatpush1.bf16.msra.mxu0 %v479
  %2232 = vmatprep.subr.bf16.mxu0 0
  %2233 = vmatpush1.bf16.msra.mxu0 %v480
  %2234 = vmatprep.subr.bf16.mxu0 0
  %2235 = vmatpush1.bf16.msra.mxu0 %v481
  %2236 = vmatprep.subr.bf16.mxu0 0
  %2237 = vmatpush1.bf16.msra.mxu0 %v482
  %2238 = vmatprep.subr.bf16.mxu0 0
  %2239 = vmatpush1.bf16.msra.mxu0 %v483
  %2240 = vmatprep.subr.bf16.mxu0 0
  %2241 = vmatpush1.bf16.msra.mxu0 %v484
  %2242 = vmatprep.subr.bf16.mxu0 0
  %2243 = vmatpush1.bf16.msra.mxu0 %v485
  %2244 = vmatprep.subr.bf16.mxu0 0
  %2245 = vmatpush1.bf16.msra.mxu0 %v486
  %2246 = vmatprep.subr.bf16.mxu0 0
  %2247 = vmatpush1.bf16.msra.mxu0 %v487
  %2248 = vmatprep.subr.bf16.mxu0 0
  %2249 = vmatpush1.bf16.msra.mxu0 %v488
  %2250 = vmatprep.subr.bf16.mxu0 0
  %2251 = vmatpush1.bf16.msra.mxu0 %v489
  %2252 = vmatprep.subr.bf16.mxu0 0
  %2253 = vmatpush1.bf16.msra.mxu0 %v490
  %2254 = vmatprep.subr.bf16.mxu0 0
  %2255 = vmatpush1.bf16.msra.mxu0 %v491
  %2256 = vmatprep.subr.bf16.mxu0 0
  %2257 = vmatpush1.bf16.msra.mxu0 %v492
  %2258 = vmatprep.subr.bf16.mxu0 0
  %2259 = vmatpush1.bf16.msra.mxu0 %v493
  %2260 = vmatprep.subr.bf16.mxu0 0
  %2261 = vmatpush1.bf16.msra.mxu0 %v494
  %2262 = vmatprep.mubr.bf16.mxu0 %v2101
  %2263 = vmatmul.mubr.bf16.gmra.mrb[0].mxu0 %v2100
  %v2264 = vpop.f32.mrb[0].mxu0
  %v2265 = vadd.f32 %v2225, %v2264
  %v2266 = vpop.f32.mrb[0].mxu0
  %v2267 = vpop.f32.mrb[0].mxu0
  %v2268 = vpop.f32.mrb[0].mxu0
  %2269 = vdwg.mxu0
  %v2270 = vmax.f32 %v2076, %v2265
  %s2271 = scalar_lea.vmem %s0, 288
  %v2272 = vld [vmem:[%s2271] sm:$0xff]
  %v2273 = vld [vmem:[%s2271 + $0x8] sm:$0xff]
  %v2274 = vld [vmem:[%s2271 + $0x10] sm:$0xff]
  %v2275 = vld [vmem:[%s2271 + $0x18] sm:$0xff]
  %v2280 = vunpack.c.l.b16 %v2272
  %v2281 = vunpack.c.h.b16 %v2272
  %v2282 = vunpack.c.l.b16 %v2273
  %v2283 = vunpack.c.h.b16 %v2273
  %v2284 = vunpack.c.l.b16 %v2274
  %v2285 = vunpack.c.h.b16 %v2274
  %v2286 = vunpack.c.l.b16 %v2275
  %v2287 = vunpack.c.h.b16 %v2275
  %v2288 = vpack.c.b16 %v2280, %v2280
  %v2289 = vpack.c.b16 %v2281, %v2281
  %v2290 = vpack.c.b16 %v2282, %v2282
  %v2291 = vpack.c.b16 %v2283, %v2283
  %v2292 = vpack.c.b16 %v2284, %v2284
  %v2293 = vpack.c.b16 %v2285, %v2285
  %v2294 = vpack.c.b16 %v2286, %v2286
  %v2295 = vpack.c.b16 %v2287, %v2287
  %2304 = vmatprep.subr.bf16.mxu0 0
  %2305 = vmatpush1.bf16.msra.mxu0 %v431
  %2306 = vmatprep.subr.bf16.mxu0 0
  %2307 = vmatpush1.bf16.msra.mxu0 %v432
  %2308 = vmatprep.subr.bf16.mxu0 0
  %2309 = vmatpush1.bf16.msra.mxu0 %v433
  %2310 = vmatprep.subr.bf16.mxu0 0
  %2311 = vmatpush1.bf16.msra.mxu0 %v434
  %2312 = vmatprep.subr.bf16.mxu0 0
  %2313 = vmatpush1.bf16.msra.mxu0 %v435
  %2314 = vmatprep.subr.bf16.mxu0 0
  %2315 = vmatpush1.bf16.msra.mxu0 %v436
  %2316 = vmatprep.subr.bf16.mxu0 0
  %2317 = vmatpush1.bf16.msra.mxu0 %v437
  %2318 = vmatprep.subr.bf16.mxu0 0
  %2319 = vmatpush1.bf16.msra.mxu0 %v438
  %2320 = vmatprep.subr.bf16.mxu0 0
  %2321 = vmatpush1.bf16.msra.mxu0 %v439
  %2322 = vmatprep.subr.bf16.mxu0 0
  %2323 = vmatpush1.bf16.msra.mxu0 %v440
  %2324 = vmatprep.subr.bf16.mxu0 0
  %2325 = vmatpush1.bf16.msra.mxu0 %v441
  %2326 = vmatprep.subr.bf16.mxu0 0
  %2327 = vmatpush1.bf16.msra.mxu0 %v442
  %2328 = vmatprep.subr.bf16.mxu0 0
  %2329 = vmatpush1.bf16.msra.mxu0 %v443
  %2330 = vmatprep.subr.bf16.mxu0 0
  %2331 = vmatpush1.bf16.msra.mxu0 %v444
  %2332 = vmatprep.subr.bf16.mxu0 0
  %2333 = vmatpush1.bf16.msra.mxu0 %v445
  %2334 = vmatprep.subr.bf16.mxu0 0
  %2335 = vmatpush1.bf16.msra.mxu0 %v446
  %2336 = vmatprep.mubr.bf16.mxu0 %v2289
  %2337 = vmatmul.mubr.bf16.gmra.mrb[0].mxu0 %v2288
  %v2338 = vpop.f32.mrb[0].mxu0
  %v2339 = vadd.f32 0.0, %v2338
  %v2340 = vpop.f32.mrb[0].mxu0
  %v2341 = vpop.f32.mrb[0].mxu0
  %v2342 = vpop.f32.mrb[0].mxu0
  %2343 = vdwg.mxu0
  %2344 = vmatprep.subr.bf16.mxu0 0
  %2345 = vmatpush1.bf16.msra.mxu0 %v447
  %2346 = vmatprep.subr.bf16.mxu0 0
  %2347 = vmatpush1.bf16.msra.mxu0 %v448
  %2348 = vmatprep.subr.bf16.mxu0 0
  %2349 = vmatpush1.bf16.msra.mxu0 %v449
  %2350 = vmatprep.subr.bf16.mxu0 0
  %2351 = vmatpush1.bf16.msra.mxu0 %v450
  %2352 = vmatprep.subr.bf16.mxu0 0
  %2353 = vmatpush1.bf16.msra.mxu0 %v451
  %2354 = vmatprep.subr.bf16.mxu0 0
  %2355 = vmatpush1.bf16.msra.mxu0 %v452
  %2356 = vmatprep.subr.bf16.mxu0 0
  %2357 = vmatpush1.bf16.msra.mxu0 %v453
  %2358 = vmatprep.subr.bf16.mxu0 0
  %2359 = vmatpush1.bf16.msra.mxu0 %v454
  %2360 = vmatprep.subr.bf16.mxu0 0
  %2361 = vmatpush1.bf16.msra.mxu0 %v455
  %2362 = vmatprep.subr.bf16.mxu0 0
  %2363 = vmatpush1.bf16.msra.mxu0 %v456
  %2364 = vmatprep.subr.bf16.mxu0 0
  %2365 = vmatpush1.bf16.msra.mxu0 %v457
  %2366 = vmatprep.subr.bf16.mxu0 0
  %2367 = vmatpush1.bf16.msra.mxu0 %v458
  %2368 = vmatprep.subr.bf16.mxu0 0
  %2369 = vmatpush1.bf16.msra.mxu0 %v459
  %2370 = vmatprep.subr.bf16.mxu0 0
  %2371 = vmatpush1.bf16.msra.mxu0 %v460
  %2372 = vmatprep.subr.bf16.mxu0 0
  %2373 = vmatpush1.bf16.msra.mxu0 %v461
  %2374 = vmatprep.subr.bf16.mxu0 0
  %2375 = vmatpush1.bf16.msra.mxu0 %v462
  %2376 = vmatprep.mubr.bf16.mxu0 %v2291
  %2377 = vmatmul.mubr.bf16.gmra.mrb[0].mxu0 %v2290
  %v2378 = vpop.f32.mrb[0].mxu0
  %v2379 = vadd.f32 %v2339, %v2378
  %v2380 = vpop.f32.mrb[0].mxu0
  %v2381 = vpop.f32.mrb[0].mxu0
  %v2382 = vpop.f32.mrb[0].mxu0
  %2383 = vdwg.mxu0
  %2384 = vmatprep.subr.bf16.mxu0 0
  %2385 = vmatpush1.bf16.msra.mxu0 %v463
  %2386 = vmatprep.subr.bf16.mxu0 0
  %2387 = vmatpush1.bf16.msra.mxu0 %v464
  %2388 = vmatprep.subr.bf16.mxu0 0
  %2389 = vmatpush1.bf16.msra.mxu0 %v465
  %2390 = vmatprep.subr.bf16.mxu0 0
  %2391 = vmatpush1.bf16.msra.mxu0 %v466
  %2392 = vmatprep.subr.bf16.mxu0 0
  %2393 = vmatpush1.bf16.msra.mxu0 %v467
  %2394 = vmatprep.subr.bf16.mxu0 0
  %2395 = vmatpush1.bf16.msra.mxu0 %v468
  %2396 = vmatprep.subr.bf16.mxu0 0
  %2397 = vmatpush1.bf16.msra.mxu0 %v469
  %2398 = vmatprep.subr.bf16.mxu0 0
  %2399 = vmatpush1.bf16.msra.mxu0 %v470
  %2400 = vmatprep.subr.bf16.mxu0 0
  %2401 = vmatpush1.bf16.msra.mxu0 %v471
  %2402 = vmatprep.subr.bf16.mxu0 0
  %2403 = vmatpush1.bf16.msra.mxu0 %v472
  %2404 = vmatprep.subr.bf16.mxu0 0
  %2405 = vmatpush1.bf16.msra.mxu0 %v473
  %2406 = vmatprep.subr.bf16.mxu0 0
  %2407 = vmatpush1.bf16.msra.mxu0 %v474
  %2408 = vmatprep.subr.bf16.mxu0 0
  %2409 = vmatpush1.bf16.msra.mxu0 %v475
  %2410 = vmatprep.subr.bf16.mxu0 0
  %2411 = vmatpush1.bf16.msra.mxu0 %v476
  %2412 = vmatprep.subr.bf16.mxu0 0
  %2413 = vmatpush1.bf16.msra.mxu0 %v477
  %2414 = vmatprep.subr.bf16.mxu0 0
  %2415 = vmatpush1.bf16.msra.mxu0 %v478
  %2416 = vmatprep.mubr.bf16.mxu0 %v2293
  %2417 = vmatmul.mubr.bf16.gmra.mrb[0].mxu0 %v2292
  %v2418 = vpop.f32.mrb[0].mxu0
  %v2419 = vadd.f32 %v2379, %v2418
  %v2420 = vpop.f32.mrb[0].mxu0
  %v2421 = vpop.f32.mrb[0].mxu0
  %v2422 = vpop.f32.mrb[0].mxu0
  %2423 = vdwg.mxu0
  %2424 = vmatprep.subr.bf16.mxu0 0
  %2425 = vmatpush1.bf16.msra.mxu0 %v479
  %2426 = vmatprep.subr.bf16.mxu0 0
  %2427 = vmatpush1.bf16.msra.mxu0 %v480
  %2428 = vmatprep.subr.bf16.mxu0 0
  %2429 = vmatpush1.bf16.msra.mxu0 %v481
  %2430 = vmatprep.subr.bf16.mxu0 0
  %2431 = vmatpush1.bf16.msra.mxu0 %v482
  %2432 = vmatprep.subr.bf16.mxu0 0
  %2433 = vmatpush1.bf16.msra.mxu0 %v483
  %2434 = vmatprep.subr.bf16.mxu0 0
  %2435 = vmatpush1.bf16.msra.mxu0 %v484
  %2436 = vmatprep.subr.bf16.mxu0 0
  %2437 = vmatpush1.bf16.msra.mxu0 %v485
  %2438 = vmatprep.subr.bf16.mxu0 0
  %2439 = vmatpush1.bf16.msra.mxu0 %v486
  %2440 = vmatprep.subr.bf16.mxu0 0
  %2441 = vmatpush1.bf16.msra.mxu0 %v487
  %2442 = vmatprep.subr.bf16.mxu0 0
  %2443 = vmatpush1.bf16.msra.mxu0 %v488
  %2444 = vmatprep.subr.bf16.mxu0 0
  %2445 = vmatpush1.bf16.msra.mxu0 %v489
  %2446 = vmatprep.subr.bf16.mxu0 0
  %2447 = vmatpush1.bf16.msra.mxu0 %v490
  %2448 = vmatprep.subr.bf16.mxu0 0
  %2449 = vmatpush1.bf16.msra.mxu0 %v491
  %2450 = vmatprep.subr.bf16.mxu0 0
  %2451 = vmatpush1.bf16.msra.mxu0 %v492
  %2452 = vmatprep.subr.bf16.mxu0 0
  %2453 = vmatpush1.bf16.msra.mxu0 %v493
  %2454 = vmatprep.subr.bf16.mxu0 0
  %2455 = vmatpush1.bf16.msra.mxu0 %v494
  %2456 = vmatprep.mubr.bf16.mxu0 %v2295
  %2457 = vmatmul.mubr.bf16.gmra.mrb[0].mxu0 %v2294
  %v2458 = vpop.f32.mrb[0].mxu0
  %v2459 = vadd.f32 %v2419, %v2458
  %v2460 = vpop.f32.mrb[0].mxu0
  %v2461 = vpop.f32.mrb[0].mxu0
  %v2462 = vpop.f32.mrb[0].mxu0
  %2463 = vdwg.mxu0
  %v2464 = vmax.f32 %v2270, %v2459
  %s2465 = scalar_lea.vmem %s0, 320
  %v2466 = vld [vmem:[%s2465] sm:$0xff]
  %v2467 = vld [vmem:[%s2465 + $0x8] sm:$0xff]
  %v2468 = vld [vmem:[%s2465 + $0x10] sm:$0xff]
  %v2469 = vld [vmem:[%s2465 + $0x18] sm:$0xff]
  %v2474 = vunpack.c.l.b16 %v2466
  %v2475 = vunpack.c.h.b16 %v2466
  %v2476 = vunpack.c.l.b16 %v2467
  %v2477 = vunpack.c.h.b16 %v2467
  %v2478 = vunpack.c.l.b16 %v2468
  %v2479 = vunpack.c.h.b16 %v2468
  %v2480 = vunpack.c.l.b16 %v2469
  %v2481 = vunpack.c.h.b16 %v2469
  %v2482 = vpack.c.b16 %v2474, %v2474
  %v2483 = vpack.c.b16 %v2475, %v2475
  %v2484 = vpack.c.b16 %v2476, %v2476
  %v2485 = vpack.c.b16 %v2477, %v2477
  %v2486 = vpack.c.b16 %v2478, %v2478
  %v2487 = vpack.c.b16 %v2479, %v2479
  %v2488 = vpack.c.b16 %v2480, %v2480
  %v2489 = vpack.c.b16 %v2481, %v2481
  %2498 = vmatprep.subr.bf16.mxu0 0
  %2499 = vmatpush1.bf16.msra.mxu0 %v431
  %2500 = vmatprep.subr.bf16.mxu0 0
  %2501 = vmatpush1.bf16.msra.mxu0 %v432
  %2502 = vmatprep.subr.bf16.mxu0 0
  %2503 = vmatpush1.bf16.msra.mxu0 %v433
  %2504 = vmatprep.subr.bf16.mxu0 0
  %2505 = vmatpush1.bf16.msra.mxu0 %v434
  %2506 = vmatprep.subr.bf16.mxu0 0
  %2507 = vmatpush1.bf16.msra.mxu0 %v435
  %2508 = vmatprep.subr.bf16.mxu0 0
  %2509 = vmatpush1.bf16.msra.mxu0 %v436
  %2510 = vmatprep.subr.bf16.mxu0 0
  %2511 = vmatpush1.bf16.msra.mxu0 %v437
  %2512 = vmatprep.subr.bf16.mxu0 0
  %2513 = vmatpush1.bf16.msra.mxu0 %v438
  %2514 = vmatprep.subr.bf16.mxu0 0
  %2515 = vmatpush1.bf16.msra.mxu0 %v439
  %2516 = vmatprep.subr.bf16.mxu0 0
  %2517 = vmatpush1.bf16.msra.mxu0 %v440
  %2518 = vmatprep.subr.bf16.mxu0 0
  %2519 = vmatpush1.bf16.msra.mxu0 %v441
  %2520 = vmatprep.subr.bf16.mxu0 0
  %2521 = vmatpush1.bf16.msra.mxu0 %v442
  %2522 = vmatprep.subr.bf16.mxu0 0
  %2523 = vmatpush1.bf16.msra.mxu0 %v443
  %2524 = vmatprep.subr.bf16.mxu0 0
  %2525 = vmatpush1.bf16.msra.mxu0 %v444
  %2526 = vmatprep.subr.bf16.mxu0 0
  %2527 = vmatpush1.bf16.msra.mxu0 %v445
  %2528 = vmatprep.subr.bf16.mxu0 0
  %2529 = vmatpush1.bf16.msra.mxu0 %v446
  %2530 = vmatprep.mubr.bf16.mxu0 %v2483
  %2531 = vmatmul.mubr.bf16.gmra.mrb[0].mxu0 %v2482
  %v2532 = vpop.f32.mrb[0].mxu0
  %v2533 = vadd.f32 0.0, %v2532
  %v2534 = vpop.f32.mrb[0].mxu0
  %v2535 = vpop.f32.mrb[0].mxu0
  %v2536 = vpop.f32.mrb[0].mxu0
  %2537 = vdwg.mxu0
  %2538 = vmatprep.subr.bf16.mxu0 0
  %2539 = vmatpush1.bf16.msra.mxu0 %v447
  %2540 = vmatprep.subr.bf16.mxu0 0
  %2541 = vmatpush1.bf16.msra.mxu0 %v448
  %2542 = vmatprep.subr.bf16.mxu0 0
  %2543 = vmatpush1.bf16.msra.mxu0 %v449
  %2544 = vmatprep.subr.bf16.mxu0 0
  %2545 = vmatpush1.bf16.msra.mxu0 %v450
  %2546 = vmatprep.subr.bf16.mxu0 0
  %2547 = vmatpush1.bf16.msra.mxu0 %v451
  %2548 = vmatprep.subr.bf16.mxu0 0
  %2549 = vmatpush1.bf16.msra.mxu0 %v452
  %2550 = vmatprep.subr.bf16.mxu0 0
  %2551 = vmatpush1.bf16.msra.mxu0 %v453
  %2552 = vmatprep.subr.bf16.mxu0 0
  %2553 = vmatpush1.bf16.msra.mxu0 %v454
  %2554 = vmatprep.subr.bf16.mxu0 0
  %2555 = vmatpush1.bf16.msra.mxu0 %v455
  %2556 = vmatprep.subr.bf16.mxu0 0
  %2557 = vmatpush1.bf16.msra.mxu0 %v456
  %2558 = vmatprep.subr.bf16.mxu0 0
  %2559 = vmatpush1.bf16.msra.mxu0 %v457
  %2560 = vmatprep.subr.bf16.mxu0 0
  %2561 = vmatpush1.bf16.msra.mxu0 %v458
  %2562 = vmatprep.subr.bf16.mxu0 0
  %2563 = vmatpush1.bf16.msra.mxu0 %v459
  %2564 = vmatprep.subr.bf16.mxu0 0
  %2565 = vmatpush1.bf16.msra.mxu0 %v460
  %2566 = vmatprep.subr.bf16.mxu0 0
  %2567 = vmatpush1.bf16.msra.mxu0 %v461
  %2568 = vmatprep.subr.bf16.mxu0 0
  %2569 = vmatpush1.bf16.msra.mxu0 %v462
  %2570 = vmatprep.mubr.bf16.mxu0 %v2485
  %2571 = vmatmul.mubr.bf16.gmra.mrb[0].mxu0 %v2484
  %v2572 = vpop.f32.mrb[0].mxu0
  %v2573 = vadd.f32 %v2533, %v2572
  %v2574 = vpop.f32.mrb[0].mxu0
  %v2575 = vpop.f32.mrb[0].mxu0
  %v2576 = vpop.f32.mrb[0].mxu0
  %2577 = vdwg.mxu0
  %2578 = vmatprep.subr.bf16.mxu0 0
  %2579 = vmatpush1.bf16.msra.mxu0 %v463
  %2580 = vmatprep.subr.bf16.mxu0 0
  %2581 = vmatpush1.bf16.msra.mxu0 %v464
  %2582 = vmatprep.subr.bf16.mxu0 0
  %2583 = vmatpush1.bf16.msra.mxu0 %v465
  %2584 = vmatprep.subr.bf16.mxu0 0
  %2585 = vmatpush1.bf16.msra.mxu0 %v466
  %2586 = vmatprep.subr.bf16.mxu0 0
  %2587 = vmatpush1.bf16.msra.mxu0 %v467
  %2588 = vmatprep.subr.bf16.mxu0 0
  %2589 = vmatpush1.bf16.msra.mxu0 %v468
  %2590 = vmatprep.subr.bf16.mxu0 0
  %2591 = vmatpush1.bf16.msra.mxu0 %v469
  %2592 = vmatprep.subr.bf16.mxu0 0
  %2593 = vmatpush1.bf16.msra.mxu0 %v470
  %2594 = vmatprep.subr.bf16.mxu0 0
  %2595 = vmatpush1.bf16.msra.mxu0 %v471
  %2596 = vmatprep.subr.bf16.mxu0 0
  %2597 = vmatpush1.bf16.msra.mxu0 %v472
  %2598 = vmatprep.subr.bf16.mxu0 0
  %2599 = vmatpush1.bf16.msra.mxu0 %v473
  %2600 = vmatprep.subr.bf16.mxu0 0
  %2601 = vmatpush1.bf16.msra.mxu0 %v474
  %2602 = vmatprep.subr.bf16.mxu0 0
  %2603 = vmatpush1.bf16.msra.mxu0 %v475
  %2604 = vmatprep.subr.bf16.mxu0 0
  %2605 = vmatpush1.bf16.msra.mxu0 %v476
  %2606 = vmatprep.subr.bf16.mxu0 0
  %2607 = vmatpush1.bf16.msra.mxu0 %v477
  %2608 = vmatprep.subr.bf16.mxu0 0
  %2609 = vmatpush1.bf16.msra.mxu0 %v478
  %2610 = vmatprep.mubr.bf16.mxu0 %v2487
  %2611 = vmatmul.mubr.bf16.gmra.mrb[0].mxu0 %v2486
  %v2612 = vpop.f32.mrb[0].mxu0
  %v2613 = vadd.f32 %v2573, %v2612
  %v2614 = vpop.f32.mrb[0].mxu0
  %v2615 = vpop.f32.mrb[0].mxu0
  %v2616 = vpop.f32.mrb[0].mxu0
  %2617 = vdwg.mxu0
  %2618 = vmatprep.subr.bf16.mxu0 0
  %2619 = vmatpush1.bf16.msra.mxu0 %v479
  %2620 = vmatprep.subr.bf16.mxu0 0
  %2621 = vmatpush1.bf16.msra.mxu0 %v480
  %2622 = vmatprep.subr.bf16.mxu0 0
  %2623 = vmatpush1.bf16.msra.mxu0 %v481
  %2624 = vmatprep.subr.bf16.mxu0 0
  %2625 = vmatpush1.bf16.msra.mxu0 %v482
  %2626 = vmatprep.subr.bf16.mxu0 0
  %2627 = vmatpush1.bf16.msra.mxu0 %v483
  %2628 = vmatprep.subr.bf16.mxu0 0
  %2629 = vmatpush1.bf16.msra.mxu0 %v484
  %2630 = vmatprep.subr.bf16.mxu0 0
  %2631 = vmatpush1.bf16.msra.mxu0 %v485
  %2632 = vmatprep.subr.bf16.mxu0 0
  %2633 = vmatpush1.bf16.msra.mxu0 %v486
  %2634 = vmatprep.subr.bf16.mxu0 0
  %2635 = vmatpush1.bf16.msra.mxu0 %v487
  %2636 = vmatprep.subr.bf16.mxu0 0
  %2637 = vmatpush1.bf16.msra.mxu0 %v488
  %2638 = vmatprep.subr.bf16.mxu0 0
  %2639 = vmatpush1.bf16.msra.mxu0 %v489
  %2640 = vmatprep.subr.bf16.mxu0 0
  %2641 = vmatpush1.bf16.msra.mxu0 %v490
  %2642 = vmatprep.subr.bf16.mxu0 0
  %2643 = vmatpush1.bf16.msra.mxu0 %v491
  %2644 = vmatprep.subr.bf16.mxu0 0
  %2645 = vmatpush1.bf16.msra.mxu0 %v492
  %2646 = vmatprep.subr.bf16.mxu0 0
  %2647 = vmatpush1.bf16.msra.mxu0 %v493
  %2648 = vmatprep.subr.bf16.mxu0 0
  %2649 = vmatpush1.bf16.msra.mxu0 %v494
  %2650 = vmatprep.mubr.bf16.mxu0 %v2489
  %2651 = vmatmul.mubr.bf16.gmra.mrb[0].mxu0 %v2488
  %v2652 = vpop.f32.mrb[0].mxu0
  %v2653 = vadd.f32 %v2613, %v2652
  %v2654 = vpop.f32.mrb[0].mxu0
  %v2655 = vpop.f32.mrb[0].mxu0
  %v2656 = vpop.f32.mrb[0].mxu0
  %2657 = vdwg.mxu0
  %v2658 = vmax.f32 %v2464, %v2653
  %s2659 = scalar_lea.vmem %s0, 352
  %v2660 = vld [vmem:[%s2659] sm:$0xff]
  %v2661 = vld [vmem:[%s2659 + $0x8] sm:$0xff]
  %v2662 = vld [vmem:[%s2659 + $0x10] sm:$0xff]
  %v2663 = vld [vmem:[%s2659 + $0x18] sm:$0xff]
  %v2668 = vunpack.c.l.b16 %v2660
  %v2669 = vunpack.c.h.b16 %v2660
  %v2670 = vunpack.c.l.b16 %v2661
  %v2671 = vunpack.c.h.b16 %v2661
  %v2672 = vunpack.c.l.b16 %v2662
  %v2673 = vunpack.c.h.b16 %v2662
  %v2674 = vunpack.c.l.b16 %v2663
  %v2675 = vunpack.c.h.b16 %v2663
  %v2676 = vpack.c.b16 %v2668, %v2668
  %v2677 = vpack.c.b16 %v2669, %v2669
  %v2678 = vpack.c.b16 %v2670, %v2670
  %v2679 = vpack.c.b16 %v2671, %v2671
  %v2680 = vpack.c.b16 %v2672, %v2672
  %v2681 = vpack.c.b16 %v2673, %v2673
  %v2682 = vpack.c.b16 %v2674, %v2674
  %v2683 = vpack.c.b16 %v2675, %v2675
  %2692 = vmatprep.subr.bf16.mxu0 0
  %2693 = vmatpush1.bf16.msra.mxu0 %v431
  %2694 = vmatprep.subr.bf16.mxu0 0
  %2695 = vmatpush1.bf16.msra.mxu0 %v432
  %2696 = vmatprep.subr.bf16.mxu0 0
  %2697 = vmatpush1.bf16.msra.mxu0 %v433
  %2698 = vmatprep.subr.bf16.mxu0 0
  %2699 = vmatpush1.bf16.msra.mxu0 %v434
  %2700 = vmatprep.subr.bf16.mxu0 0
  %2701 = vmatpush1.bf16.msra.mxu0 %v435
  %2702 = vmatprep.subr.bf16.mxu0 0
  %2703 = vmatpush1.bf16.msra.mxu0 %v436
  %2704 = vmatprep.subr.bf16.mxu0 0
  %2705 = vmatpush1.bf16.msra.mxu0 %v437
  %2706 = vmatprep.subr.bf16.mxu0 0
  %2707 = vmatpush1.bf16.msra.mxu0 %v438
  %2708 = vmatprep.subr.bf16.mxu0 0
  %2709 = vmatpush1.bf16.msra.mxu0 %v439
  %2710 = vmatprep.subr.bf16.mxu0 0
  %2711 = vmatpush1.bf16.msra.mxu0 %v440
  %2712 = vmatprep.subr.bf16.mxu0 0
  %2713 = vmatpush1.bf16.msra.mxu0 %v441
  %2714 = vmatprep.subr.bf16.mxu0 0
  %2715 = vmatpush1.bf16.msra.mxu0 %v442
  %2716 = vmatprep.subr.bf16.mxu0 0
  %2717 = vmatpush1.bf16.msra.mxu0 %v443
  %2718 = vmatprep.subr.bf16.mxu0 0
  %2719 = vmatpush1.bf16.msra.mxu0 %v444
  %2720 = vmatprep.subr.bf16.mxu0 0
  %2721 = vmatpush1.bf16.msra.mxu0 %v445
  %2722 = vmatprep.subr.bf16.mxu0 0
  %2723 = vmatpush1.bf16.msra.mxu0 %v446
  %2724 = vmatprep.mubr.bf16.mxu0 %v2677
  %2725 = vmatmul.mubr.bf16.gmra.mrb[0].mxu0 %v2676
  %v2726 = vpop.f32.mrb[0].mxu0
  %v2727 = vadd.f32 0.0, %v2726
  %v2728 = vpop.f32.mrb[0].mxu0
  %v2729 = vpop.f32.mrb[0].mxu0
  %v2730 = vpop.f32.mrb[0].mxu0
  %2731 = vdwg.mxu0
  %2732 = vmatprep.subr.bf16.mxu0 0
  %2733 = vmatpush1.bf16.msra.mxu0 %v447
  %2734 = vmatprep.subr.bf16.mxu0 0
  %2735 = vmatpush1.bf16.msra.mxu0 %v448
  %2736 = vmatprep.subr.bf16.mxu0 0
  %2737 = vmatpush1.bf16.msra.mxu0 %v449
  %2738 = vmatprep.subr.bf16.mxu0 0
  %2739 = vmatpush1.bf16.msra.mxu0 %v450
  %2740 = vmatprep.subr.bf16.mxu0 0
  %2741 = vmatpush1.bf16.msra.mxu0 %v451
  %2742 = vmatprep.subr.bf16.mxu0 0
  %2743 = vmatpush1.bf16.msra.mxu0 %v452
  %2744 = vmatprep.subr.bf16.mxu0 0
  %2745 = vmatpush1.bf16.msra.mxu0 %v453
  %2746 = vmatprep.subr.bf16.mxu0 0
  %2747 = vmatpush1.bf16.msra.mxu0 %v454
  %2748 = vmatprep.subr.bf16.mxu0 0
  %2749 = vmatpush1.bf16.msra.mxu0 %v455
  %2750 = vmatprep.subr.bf16.mxu0 0
  %2751 = vmatpush1.bf16.msra.mxu0 %v456
  %2752 = vmatprep.subr.bf16.mxu0 0
  %2753 = vmatpush1.bf16.msra.mxu0 %v457
  %2754 = vmatprep.subr.bf16.mxu0 0
  %2755 = vmatpush1.bf16.msra.mxu0 %v458
  %2756 = vmatprep.subr.bf16.mxu0 0
  %2757 = vmatpush1.bf16.msra.mxu0 %v459
  %2758 = vmatprep.subr.bf16.mxu0 0
  %2759 = vmatpush1.bf16.msra.mxu0 %v460
  %2760 = vmatprep.subr.bf16.mxu0 0
  %2761 = vmatpush1.bf16.msra.mxu0 %v461
  %2762 = vmatprep.subr.bf16.mxu0 0
  %2763 = vmatpush1.bf16.msra.mxu0 %v462
  %2764 = vmatprep.mubr.bf16.mxu0 %v2679
  %2765 = vmatmul.mubr.bf16.gmra.mrb[0].mxu0 %v2678
  %v2766 = vpop.f32.mrb[0].mxu0
  %v2767 = vadd.f32 %v2727, %v2766
  %v2768 = vpop.f32.mrb[0].mxu0
  %v2769 = vpop.f32.mrb[0].mxu0
  %v2770 = vpop.f32.mrb[0].mxu0
  %2771 = vdwg.mxu0
  %2772 = vmatprep.subr.bf16.mxu0 0
  %2773 = vmatpush1.bf16.msra.mxu0 %v463
  %2774 = vmatprep.subr.bf16.mxu0 0
  %2775 = vmatpush1.bf16.msra.mxu0 %v464
  %2776 = vmatprep.subr.bf16.mxu0 0
  %2777 = vmatpush1.bf16.msra.mxu0 %v465
  %2778 = vmatprep.subr.bf16.mxu0 0
  %2779 = vmatpush1.bf16.msra.mxu0 %v466
  %2780 = vmatprep.subr.bf16.mxu0 0
  %2781 = vmatpush1.bf16.msra.mxu0 %v467
  %2782 = vmatprep.subr.bf16.mxu0 0
  %2783 = vmatpush1.bf16.msra.mxu0 %v468
  %2784 = vmatprep.subr.bf16.mxu0 0
  %2785 = vmatpush1.bf16.msra.mxu0 %v469
  %2786 = vmatprep.subr.bf16.mxu0 0
  %2787 = vmatpush1.bf16.msra.mxu0 %v470
  %2788 = vmatprep.subr.bf16.mxu0 0
  %2789 = vmatpush1.bf16.msra.mxu0 %v471
  %2790 = vmatprep.subr.bf16.mxu0 0
  %2791 = vmatpush1.bf16.msra.mxu0 %v472
  %2792 = vmatprep.subr.bf16.mxu0 0
  %2793 = vmatpush1.bf16.msra.mxu0 %v473
  %2794 = vmatprep.subr.bf16.mxu0 0
  %2795 = vmatpush1.bf16.msra.mxu0 %v474
  %2796 = vmatprep.subr.bf16.mxu0 0
  %2797 = vmatpush1.bf16.msra.mxu0 %v475
  %2798 = vmatprep.subr.bf16.mxu0 0
  %2799 = vmatpush1.bf16.msra.mxu0 %v476
  %2800 = vmatprep.subr.bf16.mxu0 0
  %2801 = vmatpush1.bf16.msra.mxu0 %v477
  %2802 = vmatprep.subr.bf16.mxu0 0
  %2803 = vmatpush1.bf16.msra.mxu0 %v478
  %2804 = vmatprep.mubr.bf16.mxu0 %v2681
  %2805 = vmatmul.mubr.bf16.gmra.mrb[0].mxu0 %v2680
  %v2806 = vpop.f32.mrb[0].mxu0
  %v2807 = vadd.f32 %v2767, %v2806
  %v2808 = vpop.f32.mrb[0].mxu0
  %v2809 = vpop.f32.mrb[0].mxu0
  %v2810 = vpop.f32.mrb[0].mxu0
  %2811 = vdwg.mxu0
  %2812 = vmatprep.subr.bf16.mxu0 0
  %2813 = vmatpush1.bf16.msra.mxu0 %v479
  %2814 = vmatprep.subr.bf16.mxu0 0
  %2815 = vmatpush1.bf16.msra.mxu0 %v480
  %2816 = vmatprep.subr.bf16.mxu0 0
  %2817 = vmatpush1.bf16.msra.mxu0 %v481
  %2818 = vmatprep.subr.bf16.mxu0 0
  %2819 = vmatpush1.bf16.msra.mxu0 %v482
  %2820 = vmatprep.subr.bf16.mxu0 0
  %2821 = vmatpush1.bf16.msra.mxu0 %v483
  %2822 = vmatprep.subr.bf16.mxu0 0
  %2823 = vmatpush1.bf16.msra.mxu0 %v484
  %2824 = vmatprep.subr.bf16.mxu0 0
  %2825 = vmatpush1.bf16.msra.mxu0 %v485
  %2826 = vmatprep.subr.bf16.mxu0 0
  %2827 = vmatpush1.bf16.msra.mxu0 %v486
  %2828 = vmatprep.subr.bf16.mxu0 0
  %2829 = vmatpush1.bf16.msra.mxu0 %v487
  %2830 = vmatprep.subr.bf16.mxu0 0
  %2831 = vmatpush1.bf16.msra.mxu0 %v488
  %2832 = vmatprep.subr.bf16.mxu0 0
  %2833 = vmatpush1.bf16.msra.mxu0 %v489
  %2834 = vmatprep.subr.bf16.mxu0 0
  %2835 = vmatpush1.bf16.msra.mxu0 %v490
  %2836 = vmatprep.subr.bf16.mxu0 0
  %2837 = vmatpush1.bf16.msra.mxu0 %v491
  %2838 = vmatprep.subr.bf16.mxu0 0
  %2839 = vmatpush1.bf16.msra.mxu0 %v492
  %2840 = vmatprep.subr.bf16.mxu0 0
  %2841 = vmatpush1.bf16.msra.mxu0 %v493
  %2842 = vmatprep.subr.bf16.mxu0 0
  %2843 = vmatpush1.bf16.msra.mxu0 %v494
  %2844 = vmatprep.mubr.bf16.mxu0 %v2683
  %2845 = vmatmul.mubr.bf16.gmra.mrb[0].mxu0 %v2682
  %v2846 = vpop.f32.mrb[0].mxu0
  %v2847 = vadd.f32 %v2807, %v2846
  %v2848 = vpop.f32.mrb[0].mxu0
  %v2849 = vpop.f32.mrb[0].mxu0
  %v2850 = vpop.f32.mrb[0].mxu0
  %2851 = vdwg.mxu0
  %v2852 = vmax.f32 %v2658, %v2847
  %s2853 = scalar_lea.vmem %s0, 384
  %v2854 = vld [vmem:[%s2853] sm:$0xff]
  %v2855 = vld [vmem:[%s2853 + $0x8] sm:$0xff]
  %v2856 = vld [vmem:[%s2853 + $0x10] sm:$0xff]
  %v2857 = vld [vmem:[%s2853 + $0x18] sm:$0xff]
  %v2862 = vunpack.c.l.b16 %v2854
  %v2863 = vunpack.c.h.b16 %v2854
  %v2864 = vunpack.c.l.b16 %v2855
  %v2865 = vunpack.c.h.b16 %v2855
  %v2866 = vunpack.c.l.b16 %v2856
  %v2867 = vunpack.c.h.b16 %v2856
  %v2868 = vunpack.c.l.b16 %v2857
  %v2869 = vunpack.c.h.b16 %v2857
  %v2870 = vpack.c.b16 %v2862, %v2862
  %v2871 = vpack.c.b16 %v2863, %v2863
  %v2872 = vpack.c.b16 %v2864, %v2864
  %v2873 = vpack.c.b16 %v2865, %v2865
  %v2874 = vpack.c.b16 %v2866, %v2866
  %v2875 = vpack.c.b16 %v2867, %v2867
  %v2876 = vpack.c.b16 %v2868, %v2868
  %v2877 = vpack.c.b16 %v2869, %v2869
  %2886 = vmatprep.subr.bf16.mxu0 0
  %2887 = vmatpush1.bf16.msra.mxu0 %v431
  %2888 = vmatprep.subr.bf16.mxu0 0
  %2889 = vmatpush1.bf16.msra.mxu0 %v432
  %2890 = vmatprep.subr.bf16.mxu0 0
  %2891 = vmatpush1.bf16.msra.mxu0 %v433
  %2892 = vmatprep.subr.bf16.mxu0 0
  %2893 = vmatpush1.bf16.msra.mxu0 %v434
  %2894 = vmatprep.subr.bf16.mxu0 0
  %2895 = vmatpush1.bf16.msra.mxu0 %v435
  %2896 = vmatprep.subr.bf16.mxu0 0
  %2897 = vmatpush1.bf16.msra.mxu0 %v436
  %2898 = vmatprep.subr.bf16.mxu0 0
  %2899 = vmatpush1.bf16.msra.mxu0 %v437
  %2900 = vmatprep.subr.bf16.mxu0 0
  %2901 = vmatpush1.bf16.msra.mxu0 %v438
  %2902 = vmatprep.subr.bf16.mxu0 0
  %2903 = vmatpush1.bf16.msra.mxu0 %v439
  %2904 = vmatprep.subr.bf16.mxu0 0
  %2905 = vmatpush1.bf16.msra.mxu0 %v440
  %2906 = vmatprep.subr.bf16.mxu0 0
  %2907 = vmatpush1.bf16.msra.mxu0 %v441
  %2908 = vmatprep.subr.bf16.mxu0 0
  %2909 = vmatpush1.bf16.msra.mxu0 %v442
  %2910 = vmatprep.subr.bf16.mxu0 0
  %2911 = vmatpush1.bf16.msra.mxu0 %v443
  %2912 = vmatprep.subr.bf16.mxu0 0
  %2913 = vmatpush1.bf16.msra.mxu0 %v444
  %2914 = vmatprep.subr.bf16.mxu0 0
  %2915 = vmatpush1.bf16.msra.mxu0 %v445
  %2916 = vmatprep.subr.bf16.mxu0 0
  %2917 = vmatpush1.bf16.msra.mxu0 %v446
  %2918 = vmatprep.mubr.bf16.mxu0 %v2871
  %2919 = vmatmul.mubr.bf16.gmra.mrb[0].mxu0 %v2870
  %v2920 = vpop.f32.mrb[0].mxu0
  %v2921 = vadd.f32 0.0, %v2920
  %v2922 = vpop.f32.mrb[0].mxu0
  %v2923 = vpop.f32.mrb[0].mxu0
  %v2924 = vpop.f32.mrb[0].mxu0
  %2925 = vdwg.mxu0
  %2926 = vmatprep.subr.bf16.mxu0 0
  %2927 = vmatpush1.bf16.msra.mxu0 %v447
  %2928 = vmatprep.subr.bf16.mxu0 0
  %2929 = vmatpush1.bf16.msra.mxu0 %v448
  %2930 = vmatprep.subr.bf16.mxu0 0
  %2931 = vmatpush1.bf16.msra.mxu0 %v449
  %2932 = vmatprep.subr.bf16.mxu0 0
  %2933 = vmatpush1.bf16.msra.mxu0 %v450
  %2934 = vmatprep.subr.bf16.mxu0 0
  %2935 = vmatpush1.bf16.msra.mxu0 %v451
  %2936 = vmatprep.subr.bf16.mxu0 0
  %2937 = vmatpush1.bf16.msra.mxu0 %v452
  %2938 = vmatprep.subr.bf16.mxu0 0
  %2939 = vmatpush1.bf16.msra.mxu0 %v453
  %2940 = vmatprep.subr.bf16.mxu0 0
  %2941 = vmatpush1.bf16.msra.mxu0 %v454
  %2942 = vmatprep.subr.bf16.mxu0 0
  %2943 = vmatpush1.bf16.msra.mxu0 %v455
  %2944 = vmatprep.subr.bf16.mxu0 0
  %2945 = vmatpush1.bf16.msra.mxu0 %v456
  %2946 = vmatprep.subr.bf16.mxu0 0
  %2947 = vmatpush1.bf16.msra.mxu0 %v457
  %2948 = vmatprep.subr.bf16.mxu0 0
  %2949 = vmatpush1.bf16.msra.mxu0 %v458
  %2950 = vmatprep.subr.bf16.mxu0 0
  %2951 = vmatpush1.bf16.msra.mxu0 %v459
  %2952 = vmatprep.subr.bf16.mxu0 0
  %2953 = vmatpush1.bf16.msra.mxu0 %v460
  %2954 = vmatprep.subr.bf16.mxu0 0
  %2955 = vmatpush1.bf16.msra.mxu0 %v461
  %2956 = vmatprep.subr.bf16.mxu0 0
  %2957 = vmatpush1.bf16.msra.mxu0 %v462
  %2958 = vmatprep.mubr.bf16.mxu0 %v2873
  %2959 = vmatmul.mubr.bf16.gmra.mrb[0].mxu0 %v2872
  %v2960 = vpop.f32.mrb[0].mxu0
  %v2961 = vadd.f32 %v2921, %v2960
  %v2962 = vpop.f32.mrb[0].mxu0
  %v2963 = vpop.f32.mrb[0].mxu0
  %v2964 = vpop.f32.mrb[0].mxu0
  %2965 = vdwg.mxu0
  %2966 = vmatprep.subr.bf16.mxu0 0
  %2967 = vmatpush1.bf16.msra.mxu0 %v463
  %2968 = vmatprep.subr.bf16.mxu0 0
  %2969 = vmatpush1.bf16.msra.mxu0 %v464
  %2970 = vmatprep.subr.bf16.mxu0 0
  %2971 = vmatpush1.bf16.msra.mxu0 %v465
  %2972 = vmatprep.subr.bf16.mxu0 0
  %2973 = vmatpush1.bf16.msra.mxu0 %v466
  %2974 = vmatprep.subr.bf16.mxu0 0
  %2975 = vmatpush1.bf16.msra.mxu0 %v467
  %2976 = vmatprep.subr.bf16.mxu0 0
  %2977 = vmatpush1.bf16.msra.mxu0 %v468
  %2978 = vmatprep.subr.bf16.mxu0 0
  %2979 = vmatpush1.bf16.msra.mxu0 %v469
  %2980 = vmatprep.subr.bf16.mxu0 0
  %2981 = vmatpush1.bf16.msra.mxu0 %v470
  %2982 = vmatprep.subr.bf16.mxu0 0
  %2983 = vmatpush1.bf16.msra.mxu0 %v471
  %2984 = vmatprep.subr.bf16.mxu0 0
  %2985 = vmatpush1.bf16.msra.mxu0 %v472
  %2986 = vmatprep.subr.bf16.mxu0 0
  %2987 = vmatpush1.bf16.msra.mxu0 %v473
  %2988 = vmatprep.subr.bf16.mxu0 0
  %2989 = vmatpush1.bf16.msra.mxu0 %v474
  %2990 = vmatprep.subr.bf16.mxu0 0
  %2991 = vmatpush1.bf16.msra.mxu0 %v475
  %2992 = vmatprep.subr.bf16.mxu0 0
  %2993 = vmatpush1.bf16.msra.mxu0 %v476
  %2994 = vmatprep.subr.bf16.mxu0 0
  %2995 = vmatpush1.bf16.msra.mxu0 %v477
  %2996 = vmatprep.subr.bf16.mxu0 0
  %2997 = vmatpush1.bf16.msra.mxu0 %v478
  %2998 = vmatprep.mubr.bf16.mxu0 %v2875
  %2999 = vmatmul.mubr.bf16.gmra.mrb[0].mxu0 %v2874
  %v3000 = vpop.f32.mrb[0].mxu0
  %v3001 = vadd.f32 %v2961, %v3000
  %v3002 = vpop.f32.mrb[0].mxu0
  %v3003 = vpop.f32.mrb[0].mxu0
  %v3004 = vpop.f32.mrb[0].mxu0
  %3005 = vdwg.mxu0
  %3006 = vmatprep.subr.bf16.mxu0 0
  %3007 = vmatpush1.bf16.msra.mxu0 %v479
  %3008 = vmatprep.subr.bf16.mxu0 0
  %3009 = vmatpush1.bf16.msra.mxu0 %v480
  %3010 = vmatprep.subr.bf16.mxu0 0
  %3011 = vmatpush1.bf16.msra.mxu0 %v481
  %3012 = vmatprep.subr.bf16.mxu0 0
  %3013 = vmatpush1.bf16.msra.mxu0 %v482
  %3014 = vmatprep.subr.bf16.mxu0 0
  %3015 = vmatpush1.bf16.msra.mxu0 %v483
  %3016 = vmatprep.subr.bf16.mxu0 0
  %3017 = vmatpush1.bf16.msra.mxu0 %v484
  %3018 = vmatprep.subr.bf16.mxu0 0
  %3019 = vmatpush1.bf16.msra.mxu0 %v485
  %3020 = vmatprep.subr.bf16.mxu0 0
  %3021 = vmatpush1.bf16.msra.mxu0 %v486
  %3022 = vmatprep.subr.bf16.mxu0 0
  %3023 = vmatpush1.bf16.msra.mxu0 %v487
  %3024 = vmatprep.subr.bf16.mxu0 0
  %3025 = vmatpush1.bf16.msra.mxu0 %v488
  %3026 = vmatprep.subr.bf16.mxu0 0
  %3027 = vmatpush1.bf16.msra.mxu0 %v489
  %3028 = vmatprep.subr.bf16.mxu0 0
  %3029 = vmatpush1.bf16.msra.mxu0 %v490
  %3030 = vmatprep.subr.bf16.mxu0 0
  %3031 = vmatpush1.bf16.msra.mxu0 %v491
  %3032 = vmatprep.subr.bf16.mxu0 0
  %3033 = vmatpush1.bf16.msra.mxu0 %v492
  %3034 = vmatprep.subr.bf16.mxu0 0
  %3035 = vmatpush1.bf16.msra.mxu0 %v493
  %3036 = vmatprep.subr.bf16.mxu0 0
  %3037 = vmatpush1.bf16.msra.mxu0 %v494
  %3038 = vmatprep.mubr.bf16.mxu0 %v2877
  %3039 = vmatmul.mubr.bf16.gmra.mrb[0].mxu0 %v2876
  %v3040 = vpop.f32.mrb[0].mxu0
  %v3041 = vadd.f32 %v3001, %v3040
  %v3042 = vpop.f32.mrb[0].mxu0
  %v3043 = vpop.f32.mrb[0].mxu0
  %v3044 = vpop.f32.mrb[0].mxu0
  %3045 = vdwg.mxu0
  %v3046 = vmax.f32 %v2852, %v3041
  %s3047 = scalar_lea.vmem %s0, 416
  %v3048 = vld [vmem:[%s3047] sm:$0xff]
  %v3049 = vld [vmem:[%s3047 + $0x8] sm:$0xff]
  %v3050 = vld [vmem:[%s3047 + $0x10] sm:$0xff]
  %v3051 = vld [vmem:[%s3047 + $0x18] sm:$0xff]
  %v3056 = vunpack.c.l.b16 %v3048
  %v3057 = vunpack.c.h.b16 %v3048
  %v3058 = vunpack.c.l.b16 %v3049
  %v3059 = vunpack.c.h.b16 %v3049
  %v3060 = vunpack.c.l.b16 %v3050
  %v3061 = vunpack.c.h.b16 %v3050
  %v3062 = vunpack.c.l.b16 %v3051
  %v3063 = vunpack.c.h.b16 %v3051
  %v3064 = vpack.c.b16 %v3056, %v3056
  %v3065 = vpack.c.b16 %v3057, %v3057
  %v3066 = vpack.c.b16 %v3058, %v3058
  %v3067 = vpack.c.b16 %v3059, %v3059
  %v3068 = vpack.c.b16 %v3060, %v3060
  %v3069 = vpack.c.b16 %v3061, %v3061
  %v3070 = vpack.c.b16 %v3062, %v3062
  %v3071 = vpack.c.b16 %v3063, %v3063
  %3080 = vmatprep.subr.bf16.mxu0 0
  %3081 = vmatpush1.bf16.msra.mxu0 %v431
  %3082 = vmatprep.subr.bf16.mxu0 0
  %3083 = vmatpush1.bf16.msra.mxu0 %v432
  %3084 = vmatprep.subr.bf16.mxu0 0
  %3085 = vmatpush1.bf16.msra.mxu0 %v433
  %3086 = vmatprep.subr.bf16.mxu0 0
  %3087 = vmatpush1.bf16.msra.mxu0 %v434
  %3088 = vmatprep.subr.bf16.mxu0 0
  %3089 = vmatpush1.bf16.msra.mxu0 %v435
  %3090 = vmatprep.subr.bf16.mxu0 0
  %3091 = vmatpush1.bf16.msra.mxu0 %v436
  %3092 = vmatprep.subr.bf16.mxu0 0
  %3093 = vmatpush1.bf16.msra.mxu0 %v437
  %3094 = vmatprep.subr.bf16.mxu0 0
  %3095 = vmatpush1.bf16.msra.mxu0 %v438
  %3096 = vmatprep.subr.bf16.mxu0 0
  %3097 = vmatpush1.bf16.msra.mxu0 %v439
  %3098 = vmatprep.subr.bf16.mxu0 0
  %3099 = vmatpush1.bf16.msra.mxu0 %v440
  %3100 = vmatprep.subr.bf16.mxu0 0
  %3101 = vmatpush1.bf16.msra.mxu0 %v441
  %3102 = vmatprep.subr.bf16.mxu0 0
  %3103 = vmatpush1.bf16.msra.mxu0 %v442
  %3104 = vmatprep.subr.bf16.mxu0 0
  %3105 = vmatpush1.bf16.msra.mxu0 %v443
  %3106 = vmatprep.subr.bf16.mxu0 0
  %3107 = vmatpush1.bf16.msra.mxu0 %v444
  %3108 = vmatprep.subr.bf16.mxu0 0
  %3109 = vmatpush1.bf16.msra.mxu0 %v445
  %3110 = vmatprep.subr.bf16.mxu0 0
  %3111 = vmatpush1.bf16.msra.mxu0 %v446
  %3112 = vmatprep.mubr.bf16.mxu0 %v3065
  %3113 = vmatmul.mubr.bf16.gmra.mrb[0].mxu0 %v3064
  %v3114 = vpop.f32.mrb[0].mxu0
  %v3115 = vadd.f32 0.0, %v3114
  %v3116 = vpop.f32.mrb[0].mxu0
  %v3117 = vpop.f32.mrb[0].mxu0
  %v3118 = vpop.f32.mrb[0].mxu0
  %3119 = vdwg.mxu0
  %3120 = vmatprep.subr.bf16.mxu0 0
  %3121 = vmatpush1.bf16.msra.mxu0 %v447
  %3122 = vmatprep.subr.bf16.mxu0 0
  %3123 = vmatpush1.bf16.msra.mxu0 %v448
  %3124 = vmatprep.subr.bf16.mxu0 0
  %3125 = vmatpush1.bf16.msra.mxu0 %v449
  %3126 = vmatprep.subr.bf16.mxu0 0
  %3127 = vmatpush1.bf16.msra.mxu0 %v450
  %3128 = vmatprep.subr.bf16.mxu0 0
  %3129 = vmatpush1.bf16.msra.mxu0 %v451
  %3130 = vmatprep.subr.bf16.mxu0 0
  %3131 = vmatpush1.bf16.msra.mxu0 %v452
  %3132 = vmatprep.subr.bf16.mxu0 0
  %3133 = vmatpush1.bf16.msra.mxu0 %v453
  %3134 = vmatprep.subr.bf16.mxu0 0
  %3135 = vmatpush1.bf16.msra.mxu0 %v454
  %3136 = vmatprep.subr.bf16.mxu0 0
  %3137 = vmatpush1.bf16.msra.mxu0 %v455
  %3138 = vmatprep.subr.bf16.mxu0 0
  %3139 = vmatpush1.bf16.msra.mxu0 %v456
  %3140 = vmatprep.subr.bf16.mxu0 0
  %3141 = vmatpush1.bf16.msra.mxu0 %v457
  %3142 = vmatprep.subr.bf16.mxu0 0
  %3143 = vmatpush1.bf16.msra.mxu0 %v458
  %3144 = vmatprep.subr.bf16.mxu0 0
  %3145 = vmatpush1.bf16.msra.mxu0 %v459
  %3146 = vmatprep.subr.bf16.mxu0 0
  %3147 = vmatpush1.bf16.msra.mxu0 %v460
  %3148 = vmatprep.subr.bf16.mxu0 0
  %3149 = vmatpush1.bf16.msra.mxu0 %v461
  %3150 = vmatprep.subr.bf16.mxu0 0
  %3151 = vmatpush1.bf16.msra.mxu0 %v462
  %3152 = vmatprep.mubr.bf16.mxu0 %v3067
  %3153 = vmatmul.mubr.bf16.gmra.mrb[0].mxu0 %v3066
  %v3154 = vpop.f32.mrb[0].mxu0
  %v3155 = vadd.f32 %v3115, %v3154
  %v3156 = vpop.f32.mrb[0].mxu0
  %v3157 = vpop.f32.mrb[0].mxu0
  %v3158 = vpop.f32.mrb[0].mxu0
  %3159 = vdwg.mxu0
  %3160 = vmatprep.subr.bf16.mxu0 0
  %3161 = vmatpush1.bf16.msra.mxu0 %v463
  %3162 = vmatprep.subr.bf16.mxu0 0
  %3163 = vmatpush1.bf16.msra.mxu0 %v464
  %3164 = vmatprep.subr.bf16.mxu0 0
  %3165 = vmatpush1.bf16.msra.mxu0 %v465
  %3166 = vmatprep.subr.bf16.mxu0 0
  %3167 = vmatpush1.bf16.msra.mxu0 %v466
  %3168 = vmatprep.subr.bf16.mxu0 0
  %3169 = vmatpush1.bf16.msra.mxu0 %v467
  %3170 = vmatprep.subr.bf16.mxu0 0
  %3171 = vmatpush1.bf16.msra.mxu0 %v468
  %3172 = vmatprep.subr.bf16.mxu0 0
  %3173 = vmatpush1.bf16.msra.mxu0 %v469
  %3174 = vmatprep.subr.bf16.mxu0 0
  %3175 = vmatpush1.bf16.msra.mxu0 %v470
  %3176 = vmatprep.subr.bf16.mxu0 0
  %3177 = vmatpush1.bf16.msra.mxu0 %v471
  %3178 = vmatprep.subr.bf16.mxu0 0
  %3179 = vmatpush1.bf16.msra.mxu0 %v472
  %3180 = vmatprep.subr.bf16.mxu0 0
  %3181 = vmatpush1.bf16.msra.mxu0 %v473
  %3182 = vmatprep.subr.bf16.mxu0 0
  %3183 = vmatpush1.bf16.msra.mxu0 %v474
  %3184 = vmatprep.subr.bf16.mxu0 0
  %3185 = vmatpush1.bf16.msra.mxu0 %v475
  %3186 = vmatprep.subr.bf16.mxu0 0
  %3187 = vmatpush1.bf16.msra.mxu0 %v476
  %3188 = vmatprep.subr.bf16.mxu0 0
  %3189 = vmatpush1.bf16.msra.mxu0 %v477
  %3190 = vmatprep.subr.bf16.mxu0 0
  %3191 = vmatpush1.bf16.msra.mxu0 %v478
  %3192 = vmatprep.mubr.bf16.mxu0 %v3069
  %3193 = vmatmul.mubr.bf16.gmra.mrb[0].mxu0 %v3068
  %v3194 = vpop.f32.mrb[0].mxu0
  %v3195 = vadd.f32 %v3155, %v3194
  %v3196 = vpop.f32.mrb[0].mxu0
  %v3197 = vpop.f32.mrb[0].mxu0
  %v3198 = vpop.f32.mrb[0].mxu0
  %3199 = vdwg.mxu0
  %3200 = vmatprep.subr.bf16.mxu0 0
  %3201 = vmatpush1.bf16.msra.mxu0 %v479
  %3202 = vmatprep.subr.bf16.mxu0 0
  %3203 = vmatpush1.bf16.msra.mxu0 %v480
  %3204 = vmatprep.subr.bf16.mxu0 0
  %3205 = vmatpush1.bf16.msra.mxu0 %v481
  %3206 = vmatprep.subr.bf16.mxu0 0
  %3207 = vmatpush1.bf16.msra.mxu0 %v482
  %3208 = vmatprep.subr.bf16.mxu0 0
  %3209 = vmatpush1.bf16.msra.mxu0 %v483
  %3210 = vmatprep.subr.bf16.mxu0 0
  %3211 = vmatpush1.bf16.msra.mxu0 %v484
  %3212 = vmatprep.subr.bf16.mxu0 0
  %3213 = vmatpush1.bf16.msra.mxu0 %v485
  %3214 = vmatprep.subr.bf16.mxu0 0
  %3215 = vmatpush1.bf16.msra.mxu0 %v486
  %3216 = vmatprep.subr.bf16.mxu0 0
  %3217 = vmatpush1.bf16.msra.mxu0 %v487
  %3218 = vmatprep.subr.bf16.mxu0 0
  %3219 = vmatpush1.bf16.msra.mxu0 %v488
  %3220 = vmatprep.subr.bf16.mxu0 0
  %3221 = vmatpush1.bf16.msra.mxu0 %v489
  %3222 = vmatprep.subr.bf16.mxu0 0
  %3223 = vmatpush1.bf16.msra.mxu0 %v490
  %3224 = vmatprep.subr.bf16.mxu0 0
  %3225 = vmatpush1.bf16.msra.mxu0 %v491
  %3226 = vmatprep.subr.bf16.mxu0 0
  %3227 = vmatpush1.bf16.msra.mxu0 %v492
  %3228 = vmatprep.subr.bf16.mxu0 0
  %3229 = vmatpush1.bf16.msra.mxu0 %v493
  %3230 = vmatprep.subr.bf16.mxu0 0
  %3231 = vmatpush1.bf16.msra.mxu0 %v494
  %3232 = vmatprep.mubr.bf16.mxu0 %v3071
  %3233 = vmatmul.mubr.bf16.gmra.mrb[0].mxu0 %v3070
  %v3234 = vpop.f32.mrb[0].mxu0
  %v3235 = vadd.f32 %v3195, %v3234
  %v3236 = vpop.f32.mrb[0].mxu0
  %v3237 = vpop.f32.mrb[0].mxu0
  %v3238 = vpop.f32.mrb[0].mxu0
  %3239 = vdwg.mxu0
  %v3240 = vmax.f32 %v3046, %v3235
  %s3241 = scalar_lea.vmem %s0, 448
  %v3242 = vld [vmem:[%s3241] sm:$0xff]
  %v3243 = vld [vmem:[%s3241 + $0x8] sm:$0xff]
  %v3244 = vld [vmem:[%s3241 + $0x10] sm:$0xff]
  %v3245 = vld [vmem:[%s3241 + $0x18] sm:$0xff]
  %v3250 = vunpack.c.l.b16 %v3242
  %v3251 = vunpack.c.h.b16 %v3242
  %v3252 = vunpack.c.l.b16 %v3243
  %v3253 = vunpack.c.h.b16 %v3243
  %v3254 = vunpack.c.l.b16 %v3244
  %v3255 = vunpack.c.h.b16 %v3244
  %v3256 = vunpack.c.l.b16 %v3245
  %v3257 = vunpack.c.h.b16 %v3245
  %v3258 = vpack.c.b16 %v3250, %v3250
  %v3259 = vpack.c.b16 %v3251, %v3251
  %v3260 = vpack.c.b16 %v3252, %v3252
  %v3261 = vpack.c.b16 %v3253, %v3253
  %v3262 = vpack.c.b16 %v3254, %v3254
  %v3263 = vpack.c.b16 %v3255, %v3255
  %v3264 = vpack.c.b16 %v3256, %v3256
  %v3265 = vpack.c.b16 %v3257, %v3257
  %3274 = vmatprep.subr.bf16.mxu0 0
  %3275 = vmatpush1.bf16.msra.mxu0 %v431
  %3276 = vmatprep.subr.bf16.mxu0 0
  %3277 = vmatpush1.bf16.msra.mxu0 %v432
  %3278 = vmatprep.subr.bf16.mxu0 0
  %3279 = vmatpush1.bf16.msra.mxu0 %v433
  %3280 = vmatprep.subr.bf16.mxu0 0
  %3281 = vmatpush1.bf16.msra.mxu0 %v434
  %3282 = vmatprep.subr.bf16.mxu0 0
  %3283 = vmatpush1.bf16.msra.mxu0 %v435
  %3284 = vmatprep.subr.bf16.mxu0 0
  %3285 = vmatpush1.bf16.msra.mxu0 %v436
  %3286 = vmatprep.subr.bf16.mxu0 0
  %3287 = vmatpush1.bf16.msra.mxu0 %v437
  %3288 = vmatprep.subr.bf16.mxu0 0
  %3289 = vmatpush1.bf16.msra.mxu0 %v438
  %3290 = vmatprep.subr.bf16.mxu0 0
  %3291 = vmatpush1.bf16.msra.mxu0 %v439
  %3292 = vmatprep.subr.bf16.mxu0 0
  %3293 = vmatpush1.bf16.msra.mxu0 %v440
  %3294 = vmatprep.subr.bf16.mxu0 0
  %3295 = vmatpush1.bf16.msra.mxu0 %v441
  %3296 = vmatprep.subr.bf16.mxu0 0
  %3297 = vmatpush1.bf16.msra.mxu0 %v442
  %3298 = vmatprep.subr.bf16.mxu0 0
  %3299 = vmatpush1.bf16.msra.mxu0 %v443
  %3300 = vmatprep.subr.bf16.mxu0 0
  %3301 = vmatpush1.bf16.msra.mxu0 %v444
  %3302 = vmatprep.subr.bf16.mxu0 0
  %3303 = vmatpush1.bf16.msra.mxu0 %v445
  %3304 = vmatprep.subr.bf16.mxu0 0
  %3305 = vmatpush1.bf16.msra.mxu0 %v446
  %3306 = vmatprep.mubr.bf16.mxu0 %v3259
  %3307 = vmatmul.mubr.bf16.gmra.mrb[0].mxu0 %v3258
  %v3308 = vpop.f32.mrb[0].mxu0
  %v3309 = vadd.f32 0.0, %v3308
  %v3310 = vpop.f32.mrb[0].mxu0
  %v3311 = vpop.f32.mrb[0].mxu0
  %v3312 = vpop.f32.mrb[0].mxu0
  %3313 = vdwg.mxu0
  %3314 = vmatprep.subr.bf16.mxu0 0
  %3315 = vmatpush1.bf16.msra.mxu0 %v447
  %3316 = vmatprep.subr.bf16.mxu0 0
  %3317 = vmatpush1.bf16.msra.mxu0 %v448
  %3318 = vmatprep.subr.bf16.mxu0 0
  %3319 = vmatpush1.bf16.msra.mxu0 %v449
  %3320 = vmatprep.subr.bf16.mxu0 0
  %3321 = vmatpush1.bf16.msra.mxu0 %v450
  %3322 = vmatprep.subr.bf16.mxu0 0
  %3323 = vmatpush1.bf16.msra.mxu0 %v451
  %3324 = vmatprep.subr.bf16.mxu0 0
  %3325 = vmatpush1.bf16.msra.mxu0 %v452
  %3326 = vmatprep.subr.bf16.mxu0 0
  %3327 = vmatpush1.bf16.msra.mxu0 %v453
  %3328 = vmatprep.subr.bf16.mxu0 0
  %3329 = vmatpush1.bf16.msra.mxu0 %v454
  %3330 = vmatprep.subr.bf16.mxu0 0
  %3331 = vmatpush1.bf16.msra.mxu0 %v455
  %3332 = vmatprep.subr.bf16.mxu0 0
  %3333 = vmatpush1.bf16.msra.mxu0 %v456
  %3334 = vmatprep.subr.bf16.mxu0 0
  %3335 = vmatpush1.bf16.msra.mxu0 %v457
  %3336 = vmatprep.subr.bf16.mxu0 0
  %3337 = vmatpush1.bf16.msra.mxu0 %v458
  %3338 = vmatprep.subr.bf16.mxu0 0
  %3339 = vmatpush1.bf16.msra.mxu0 %v459
  %3340 = vmatprep.subr.bf16.mxu0 0
  %3341 = vmatpush1.bf16.msra.mxu0 %v460
  %3342 = vmatprep.subr.bf16.mxu0 0
  %3343 = vmatpush1.bf16.msra.mxu0 %v461
  %3344 = vmatprep.subr.bf16.mxu0 0
  %3345 = vmatpush1.bf16.msra.mxu0 %v462
  %3346 = vmatprep.mubr.bf16.mxu0 %v3261
  %3347 = vmatmul.mubr.bf16.gmra.mrb[0].mxu0 %v3260
  %v3348 = vpop.f32.mrb[0].mxu0
  %v3349 = vadd.f32 %v3309, %v3348
  %v3350 = vpop.f32.mrb[0].mxu0
  %v3351 = vpop.f32.mrb[0].mxu0
  %v3352 = vpop.f32.mrb[0].mxu0
  %3353 = vdwg.mxu0
  %3354 = vmatprep.subr.bf16.mxu0 0
  %3355 = vmatpush1.bf16.msra.mxu0 %v463
  %3356 = vmatprep.subr.bf16.mxu0 0
  %3357 = vmatpush1.bf16.msra.mxu0 %v464
  %3358 = vmatprep.subr.bf16.mxu0 0
  %3359 = vmatpush1.bf16.msra.mxu0 %v465
  %3360 = vmatprep.subr.bf16.mxu0 0
  %3361 = vmatpush1.bf16.msra.mxu0 %v466
  %3362 = vmatprep.subr.bf16.mxu0 0
  %3363 = vmatpush1.bf16.msra.mxu0 %v467
  %3364 = vmatprep.subr.bf16.mxu0 0
  %3365 = vmatpush1.bf16.msra.mxu0 %v468
  %3366 = vmatprep.subr.bf16.mxu0 0
  %3367 = vmatpush1.bf16.msra.mxu0 %v469
  %3368 = vmatprep.subr.bf16.mxu0 0
  %3369 = vmatpush1.bf16.msra.mxu0 %v470
  %3370 = vmatprep.subr.bf16.mxu0 0
  %3371 = vmatpush1.bf16.msra.mxu0 %v471
  %3372 = vmatprep.subr.bf16.mxu0 0
  %3373 = vmatpush1.bf16.msra.mxu0 %v472
  %3374 = vmatprep.subr.bf16.mxu0 0
  %3375 = vmatpush1.bf16.msra.mxu0 %v473
  %3376 = vmatprep.subr.bf16.mxu0 0
  %3377 = vmatpush1.bf16.msra.mxu0 %v474
  %3378 = vmatprep.subr.bf16.mxu0 0
  %3379 = vmatpush1.bf16.msra.mxu0 %v475
  %3380 = vmatprep.subr.bf16.mxu0 0
  %3381 = vmatpush1.bf16.msra.mxu0 %v476
  %3382 = vmatprep.subr.bf16.mxu0 0
  %3383 = vmatpush1.bf16.msra.mxu0 %v477
  %3384 = vmatprep.subr.bf16.mxu0 0
  %3385 = vmatpush1.bf16.msra.mxu0 %v478
  %3386 = vmatprep.mubr.bf16.mxu0 %v3263
  %3387 = vmatmul.mubr.bf16.gmra.mrb[0].mxu0 %v3262
  %v3388 = vpop.f32.mrb[0].mxu0
  %v3389 = vadd.f32 %v3349, %v3388
  %v3390 = vpop.f32.mrb[0].mxu0
  %v3391 = vpop.f32.mrb[0].mxu0
  %v3392 = vpop.f32.mrb[0].mxu0
  %3393 = vdwg.mxu0
  %3394 = vmatprep.subr.bf16.mxu0 0
  %3395 = vmatpush1.bf16.msra.mxu0 %v479
  %3396 = vmatprep.subr.bf16.mxu0 0
  %3397 = vmatpush1.bf16.msra.mxu0 %v480
  %3398 = vmatprep.subr.bf16.mxu0 0
  %3399 = vmatpush1.bf16.msra.mxu0 %v481
  %3400 = vmatprep.subr.bf16.mxu0 0
  %3401 = vmatpush1.bf16.msra.mxu0 %v482
  %3402 = vmatprep.subr.bf16.mxu0 0
  %3403 = vmatpush1.bf16.msra.mxu0 %v483
  %3404 = vmatprep.subr.bf16.mxu0 0
  %3405 = vmatpush1.bf16.msra.mxu0 %v484
  %3406 = vmatprep.subr.bf16.mxu0 0
  %3407 = vmatpush1.bf16.msra.mxu0 %v485
  %3408 = vmatprep.subr.bf16.mxu0 0
  %3409 = vmatpush1.bf16.msra.mxu0 %v486
  %3410 = vmatprep.subr.bf16.mxu0 0
  %3411 = vmatpush1.bf16.msra.mxu0 %v487
  %3412 = vmatprep.subr.bf16.mxu0 0
  %3413 = vmatpush1.bf16.msra.mxu0 %v488
  %3414 = vmatprep.subr.bf16.mxu0 0
  %3415 = vmatpush1.bf16.msra.mxu0 %v489
  %3416 = vmatprep.subr.bf16.mxu0 0
  %3417 = vmatpush1.bf16.msra.mxu0 %v490
  %3418 = vmatprep.subr.bf16.mxu0 0
  %3419 = vmatpush1.bf16.msra.mxu0 %v491
  %3420 = vmatprep.subr.bf16.mxu0 0
  %3421 = vmatpush1.bf16.msra.mxu0 %v492
  %3422 = vmatprep.subr.bf16.mxu0 0
  %3423 = vmatpush1.bf16.msra.mxu0 %v493
  %3424 = vmatprep.subr.bf16.mxu0 0
  %3425 = vmatpush1.bf16.msra.mxu0 %v494
  %3426 = vmatprep.mubr.bf16.mxu0 %v3265
  %3427 = vmatmul.mubr.bf16.gmra.mrb[0].mxu0 %v3264
  %v3428 = vpop.f32.mrb[0].mxu0
  %v3429 = vadd.f32 %v3389, %v3428
  %v3430 = vpop.f32.mrb[0].mxu0
  %v3431 = vpop.f32.mrb[0].mxu0
  %v3432 = vpop.f32.mrb[0].mxu0
  %3433 = vdwg.mxu0
  %v3434 = vmax.f32 %v3240, %v3429
  %s3435 = scalar_lea.vmem %s0, 480
  %v3436 = vld [vmem:[%s3435] sm:$0xff]
  %v3437 = vld [vmem:[%s3435 + $0x8] sm:$0xff]
  %v3438 = vld [vmem:[%s3435 + $0x10] sm:$0xff]
  %v3439 = vld [vmem:[%s3435 + $0x18] sm:$0xff]
  %v3444 = vunpack.c.l.b16 %v3436
  %v3445 = vunpack.c.h.b16 %v3436
  %v3446 = vunpack.c.l.b16 %v3437
  %v3447 = vunpack.c.h.b16 %v3437
  %v3448 = vunpack.c.l.b16 %v3438
  %v3449 = vunpack.c.h.b16 %v3438
  %v3450 = vunpack.c.l.b16 %v3439
  %v3451 = vunpack.c.h.b16 %v3439
  %v3452 = vpack.c.b16 %v3444, %v3444
  %v3453 = vpack.c.b16 %v3445, %v3445
  %v3454 = vpack.c.b16 %v3446, %v3446
  %v3455 = vpack.c.b16 %v3447, %v3447
  %v3456 = vpack.c.b16 %v3448, %v3448
  %v3457 = vpack.c.b16 %v3449, %v3449
  %v3458 = vpack.c.b16 %v3450, %v3450
  %v3459 = vpack.c.b16 %v3451, %v3451
  %3468 = vmatprep.subr.bf16.mxu0 0
  %3469 = vmatpush1.bf16.msra.mxu0 %v431
  %3470 = vmatprep.subr.bf16.mxu0 0
  %3471 = vmatpush1.bf16.msra.mxu0 %v432
  %3472 = vmatprep.subr.bf16.mxu0 0
  %3473 = vmatpush1.bf16.msra.mxu0 %v433
  %3474 = vmatprep.subr.bf16.mxu0 0
  %3475 = vmatpush1.bf16.msra.mxu0 %v434
  %3476 = vmatprep.subr.bf16.mxu0 0
  %3477 = vmatpush1.bf16.msra.mxu0 %v435
  %3478 = vmatprep.subr.bf16.mxu0 0
  %3479 = vmatpush1.bf16.msra.mxu0 %v436
  %3480 = vmatprep.subr.bf16.mxu0 0
  %3481 = vmatpush1.bf16.msra.mxu0 %v437
  %3482 = vmatprep.subr.bf16.mxu0 0
  %3483 = vmatpush1.bf16.msra.mxu0 %v438
  %3484 = vmatprep.subr.bf16.mxu0 0
  %3485 = vmatpush1.bf16.msra.mxu0 %v439
  %3486 = vmatprep.subr.bf16.mxu0 0
  %3487 = vmatpush1.bf16.msra.mxu0 %v440
  %3488 = vmatprep.subr.bf16.mxu0 0
  %3489 = vmatpush1.bf16.msra.mxu0 %v441
  %3490 = vmatprep.subr.bf16.mxu0 0
  %3491 = vmatpush1.bf16.msra.mxu0 %v442
  %3492 = vmatprep.subr.bf16.mxu0 0
  %3493 = vmatpush1.bf16.msra.mxu0 %v443
  %3494 = vmatprep.subr.bf16.mxu0 0
  %3495 = vmatpush1.bf16.msra.mxu0 %v444
  %3496 = vmatprep.subr.bf16.mxu0 0
  %3497 = vmatpush1.bf16.msra.mxu0 %v445
  %3498 = vmatprep.subr.bf16.mxu0 0
  %3499 = vmatpush1.bf16.msra.mxu0 %v446
  %3500 = vmatprep.mubr.bf16.mxu0 %v3453
  %3501 = vmatmul.mubr.bf16.gmra.mrb[0].mxu0 %v3452
  %v3502 = vpop.f32.mrb[0].mxu0
  %v3503 = vadd.f32 0.0, %v3502
  %v3504 = vpop.f32.mrb[0].mxu0
  %v3505 = vpop.f32.mrb[0].mxu0
  %v3506 = vpop.f32.mrb[0].mxu0
  %3507 = vdwg.mxu0
  %3508 = vmatprep.subr.bf16.mxu0 0
  %3509 = vmatpush1.bf16.msra.mxu0 %v447
  %3510 = vmatprep.subr.bf16.mxu0 0
  %3511 = vmatpush1.bf16.msra.mxu0 %v448
  %3512 = vmatprep.subr.bf16.mxu0 0
  %3513 = vmatpush1.bf16.msra.mxu0 %v449
  %3514 = vmatprep.subr.bf16.mxu0 0
  %3515 = vmatpush1.bf16.msra.mxu0 %v450
  %3516 = vmatprep.subr.bf16.mxu0 0
  %3517 = vmatpush1.bf16.msra.mxu0 %v451
  %3518 = vmatprep.subr.bf16.mxu0 0
  %3519 = vmatpush1.bf16.msra.mxu0 %v452
  %3520 = vmatprep.subr.bf16.mxu0 0
  %3521 = vmatpush1.bf16.msra.mxu0 %v453
  %3522 = vmatprep.subr.bf16.mxu0 0
  %3523 = vmatpush1.bf16.msra.mxu0 %v454
  %3524 = vmatprep.subr.bf16.mxu0 0
  %3525 = vmatpush1.bf16.msra.mxu0 %v455
  %3526 = vmatprep.subr.bf16.mxu0 0
  %3527 = vmatpush1.bf16.msra.mxu0 %v456
  %3528 = vmatprep.subr.bf16.mxu0 0
  %3529 = vmatpush1.bf16.msra.mxu0 %v457
  %3530 = vmatprep.subr.bf16.mxu0 0
  %3531 = vmatpush1.bf16.msra.mxu0 %v458
  %3532 = vmatprep.subr.bf16.mxu0 0
  %3533 = vmatpush1.bf16.msra.mxu0 %v459
  %3534 = vmatprep.subr.bf16.mxu0 0
  %3535 = vmatpush1.bf16.msra.mxu0 %v460
  %3536 = vmatprep.subr.bf16.mxu0 0
  %3537 = vmatpush1.bf16.msra.mxu0 %v461
  %3538 = vmatprep.subr.bf16.mxu0 0
  %3539 = vmatpush1.bf16.msra.mxu0 %v462
  %3540 = vmatprep.mubr.bf16.mxu0 %v3455
  %3541 = vmatmul.mubr.bf16.gmra.mrb[0].mxu0 %v3454
  %v3542 = vpop.f32.mrb[0].mxu0
  %v3543 = vadd.f32 %v3503, %v3542
  %v3544 = vpop.f32.mrb[0].mxu0
  %v3545 = vpop.f32.mrb[0].mxu0
  %v3546 = vpop.f32.mrb[0].mxu0
  %3547 = vdwg.mxu0
  %3548 = vmatprep.subr.bf16.mxu0 0
  %3549 = vmatpush1.bf16.msra.mxu0 %v463
  %3550 = vmatprep.subr.bf16.mxu0 0
  %3551 = vmatpush1.bf16.msra.mxu0 %v464
  %3552 = vmatprep.subr.bf16.mxu0 0
  %3553 = vmatpush1.bf16.msra.mxu0 %v465
  %3554 = vmatprep.subr.bf16.mxu0 0
  %3555 = vmatpush1.bf16.msra.mxu0 %v466
  %3556 = vmatprep.subr.bf16.mxu0 0
  %3557 = vmatpush1.bf16.msra.mxu0 %v467
  %3558 = vmatprep.subr.bf16.mxu0 0
  %3559 = vmatpush1.bf16.msra.mxu0 %v468
  %3560 = vmatprep.subr.bf16.mxu0 0
  %3561 = vmatpush1.bf16.msra.mxu0 %v469
  %3562 = vmatprep.subr.bf16.mxu0 0
  %3563 = vmatpush1.bf16.msra.mxu0 %v470
  %3564 = vmatprep.subr.bf16.mxu0 0
  %3565 = vmatpush1.bf16.msra.mxu0 %v471
  %3566 = vmatprep.subr.bf16.mxu0 0
  %3567 = vmatpush1.bf16.msra.mxu0 %v472
  %3568 = vmatprep.subr.bf16.mxu0 0
  %3569 = vmatpush1.bf16.msra.mxu0 %v473
  %3570 = vmatprep.subr.bf16.mxu0 0
  %3571 = vmatpush1.bf16.msra.mxu0 %v474
  %3572 = vmatprep.subr.bf16.mxu0 0
  %3573 = vmatpush1.bf16.msra.mxu0 %v475
  %3574 = vmatprep.subr.bf16.mxu0 0
  %3575 = vmatpush1.bf16.msra.mxu0 %v476
  %3576 = vmatprep.subr.bf16.mxu0 0
  %3577 = vmatpush1.bf16.msra.mxu0 %v477
  %3578 = vmatprep.subr.bf16.mxu0 0
  %3579 = vmatpush1.bf16.msra.mxu0 %v478
  %3580 = vmatprep.mubr.bf16.mxu0 %v3457
  %3581 = vmatmul.mubr.bf16.gmra.mrb[0].mxu0 %v3456
  %v3582 = vpop.f32.mrb[0].mxu0
  %v3583 = vadd.f32 %v3543, %v3582
  %v3584 = vpop.f32.mrb[0].mxu0
  %v3585 = vpop.f32.mrb[0].mxu0
  %v3586 = vpop.f32.mrb[0].mxu0
  %3587 = vdwg.mxu0
  %3588 = vmatprep.subr.bf16.mxu0 0
  %3589 = vmatpush1.bf16.msra.mxu0 %v479
  %3590 = vmatprep.subr.bf16.mxu0 0
  %3591 = vmatpush1.bf16.msra.mxu0 %v480
  %3592 = vmatprep.subr.bf16.mxu0 0
  %3593 = vmatpush1.bf16.msra.mxu0 %v481
  %3594 = vmatprep.subr.bf16.mxu0 0
  %3595 = vmatpush1.bf16.msra.mxu0 %v482
  %3596 = vmatprep.subr.bf16.mxu0 0
  %3597 = vmatpush1.bf16.msra.mxu0 %v483
  %3598 = vmatprep.subr.bf16.mxu0 0
  %3599 = vmatpush1.bf16.msra.mxu0 %v484
  %3600 = vmatprep.subr.bf16.mxu0 0
  %3601 = vmatpush1.bf16.msra.mxu0 %v485
  %3602 = vmatprep.subr.bf16.mxu0 0
  %3603 = vmatpush1.bf16.msra.mxu0 %v486
  %3604 = vmatprep.subr.bf16.mxu0 0
  %3605 = vmatpush1.bf16.msra.mxu0 %v487
  %3606 = vmatprep.subr.bf16.mxu0 0
  %3607 = vmatpush1.bf16.msra.mxu0 %v488
  %3608 = vmatprep.subr.bf16.mxu0 0
  %3609 = vmatpush1.bf16.msra.mxu0 %v489
  %3610 = vmatprep.subr.bf16.mxu0 0
  %3611 = vmatpush1.bf16.msra.mxu0 %v490
  %3612 = vmatprep.subr.bf16.mxu0 0
  %3613 = vmatpush1.bf16.msra.mxu0 %v491
  %3614 = vmatprep.subr.bf16.mxu0 0
  %3615 = vmatpush1.bf16.msra.mxu0 %v492
  %3616 = vmatprep.subr.bf16.mxu0 0
  %3617 = vmatpush1.bf16.msra.mxu0 %v493
  %3618 = vmatprep.subr.bf16.mxu0 0
  %3619 = vmatpush1.bf16.msra.mxu0 %v494
  %3620 = vmatprep.mubr.bf16.mxu0 %v3459
  %3621 = vmatmul.mubr.bf16.gmra.mrb[0].mxu0 %v3458
  %v3622 = vpop.f32.mrb[0].mxu0
  %v3623 = vadd.f32 %v3583, %v3622
  %v3624 = vpop.f32.mrb[0].mxu0
  %v3625 = vpop.f32.mrb[0].mxu0
  %v3626 = vpop.f32.mrb[0].mxu0
  %3627 = vdwg.mxu0
  %v3628 = vmax.f32 %v3434, %v3623
  %v3629 = vld [vmem:[%s2] sm:$0x1]
  %v3631 = vlaneseq
  %v3632 = vshrl.u32 %v3631, 7
  %v3633 = vsub.s32 0, %v3632
  %v3634 = vrot.slane %v3629, %v3633
  %v3636 = vadd.f32 %v3628, %v3634
  %v3637 = vmax.f32 %v3636, 0.0
  %vm3638 = vcmask 523264
  %3639 = vst.msk [vmem:[%s3] sm:$0xff] %vm3638, %v3637
  // Predicated region
  $region14: #{conv_forward.4} parent=0 // pred_check
    _
  $region15: #{conv_forward.4} parent=0 // pred_check_branch
    %3641 = sbr.rel (0) target = $region17
  $region16: #{conv_forward.4} parent=0 // pred_region
    _
  $region17: #{conv_forward.4} parent=0 // pred_fallthru
    _
  // Predicated region
  $region18: #{conv_forward.4} parent=0 // pred_check
    _
  $region19: #{conv_forward.4} parent=0 // pred_check_branch
    %3643 = sbr.rel (0) target = $region21
  $region20: #{conv_forward.4} parent=0 // pred_region
    _
  $region21: #{conv_forward.4} parent=0 // pred_fallthru
    _

// kernel: conv_forward.5
$region0: #{conv_forward.5}
  #allocation0 [shape = 'u32[]', space=smem, size = 0x4, offset = 0x4, fixed_abs, tag = 'smem constant byte address 0x4 - core index']
  #allocation1 [shape = 'u32[144,128]{1,0:T(1,128)}', space=vmem, size = 0x12000, scoped, tag = 'internal scratch']
  %s0 = inlined_call_operand.vmem [shape: bf16[2,256], index: 0, kind: input, shape index: {}]
  %s1 = inlined_call_operand.vmem [shape: bf16[256,256], index: 1, kind: input, shape index: {}]
  %s2 = inlined_call_operand.vmem [shape: f32[1,256], index: 2, kind: input, shape index: {}]
  %s3 = inlined_call_operand.vmem [shape: bf16[256,64], index: 3, kind: input, shape index: {}]
  %s4 = inlined_call_operand.vmem [shape: f32[1,64], index: 4, kind: input, shape index: {}]
  %s5 = inlined_call_operand.vmem [shape: bf16[64,10], index: 5, kind: input, shape index: {}]
  %s6 = inlined_call_operand.vmem [shape: f32[1,10], index: 6, kind: input, shape index: {}]
  %s7 = inlined_call_operand.hbm [shape: f32[2,10], index: 7, kind: output, shape index: {}]
  %s8 = sld [smem:[#allocation0]]
  $region38: #{conv_forward.5} parent=0
    _
  %s10 = ssub.s32 1, %s8
  %s11 = scalar_select 0, %s10, %s8
  $region1: #{conv_forward.5} parent=0
    #allocation2 [shape = 'u8[1024]{0}', space=vmem, size = 0x400, scoped, tag = 'output window, operand 0, single buffered']
    #allocation3 [shape = 's32[1]{0}', space=sflag, size = 0x4, scoped, tag = 'scoped memory for conv_forward.5']
    %12 = vsyncpa [#allocation3], 0
    // Predicated region
    $region2: #{conv_forward.5} parent=1 // pred_check
      _
    $region3: #{conv_forward.5} parent=1 // pred_check_branch
      %14 = sbr.rel (0) target = $region5
    $region4: #{conv_forward.5} parent=1 // pred_region
      _
    $region5: #{conv_forward.5} parent=1 // pred_fallthru
      _
    // Predicated region
    $region6: #{conv_forward.5} parent=1 // pred_check
      _
    $region7: #{conv_forward.5} parent=1 // pred_check_branch
      %16 = sbr.rel (0) target = $region9
    $region8: #{conv_forward.5} parent=1 // pred_region
      _
    $region9: #{conv_forward.5} parent=1 // pred_fallthru
      _
    // Predicated region
    $region10: #{conv_forward.5} parent=1 // pred_check
      _
    $region11: #{conv_forward.5} parent=1 // pred_check_branch
      %18 = sbr.rel (0) target = $region13
    $region12: #{conv_forward.5} parent=1 // pred_region
      _
    $region13: #{conv_forward.5} parent=1 // pred_fallthru
      _
    // Predicated region
    $region14: #{conv_forward.5} parent=1 // pred_check
      _
    $region15: #{conv_forward.5} parent=1 // pred_check_branch
      %20 = sbr.rel (0) target = $region17
    $region16: #{conv_forward.5} parent=1 // pred_region
      _
    $region17: #{conv_forward.5} parent=1 // pred_fallthru
      _
    // Predicated region
    $region18: #{conv_forward.5} parent=1 // pred_check
      _
    $region19: #{conv_forward.5} parent=1 // pred_check_branch
      %22 = sbr.rel (0) target = $region21
    $region20: #{conv_forward.5} parent=1 // pred_region
      _
    $region21: #{conv_forward.5} parent=1 // pred_fallthru
      _
    // Predicated region
    $region22: #{conv_forward.5} parent=1 // pred_check
      _
    $region23: #{conv_forward.5} parent=1 // pred_check_branch
      %24 = sbr.rel (0) target = $region25
    $region24: #{conv_forward.5} parent=1 // pred_region
      _
    $region25: #{conv_forward.5} parent=1 // pred_fallthru
      _
    // Predicated region
    $region26: #{conv_forward.5} parent=1 // pred_check
      _
    $region27: #{conv_forward.5} parent=1 // pred_check_branch
      %26 = sbr.rel (0) target = $region29
    $region28: #{conv_forward.5} parent=1 // pred_region
      _
    $region29: #{conv_forward.5} parent=1 // pred_fallthru
      _
    %v28 = vld [vmem:[%s0] sm:$0x3]
    %v29 = vld [vmem:[%s1] sm:$0xff]
    %v30 = vld [vmem:[%s1 + $0x8] sm:$0xff]
    %v31 = vld [vmem:[%s1 + $0x10] sm:$0xff]
    %v32 = vld [vmem:[%s1 + $0x18] sm:$0xff]
    %v33 = vld [vmem:[%s1 + $0x20] sm:$0xff]
    %v34 = vld [vmem:[%s1 + $0x28] sm:$0xff]
    %v35 = vld [vmem:[%s1 + $0x30] sm:$0xff]
    %v36 = vld [vmem:[%s1 + $0x38] sm:$0xff]
    %v37 = vld [vmem:[%s1 + $0x40] sm:$0xff]
    %v38 = vld [vmem:[%s1 + $0x48] sm:$0xff]
    %v39 = vld [vmem:[%s1 + $0x50] sm:$0xff]
    %v40 = vld [vmem:[%s1 + $0x58] sm:$0xff]
    %v41 = vld [vmem:[%s1 + $0x60] sm:$0xff]
    %v42 = vld [vmem:[%s1 + $0x68] sm:$0xff]
    %v43 = vld [vmem:[%s1 + $0x70] sm:$0xff]
    %v44 = vld [vmem:[%s1 + $0x78] sm:$0xff]
    %v45 = vld [vmem:[%s1 + $0x80] sm:$0xff]
    %v46 = vld [vmem:[%s1 + $0x88] sm:$0xff]
    %v47 = vld [vmem:[%s1 + $0x90] sm:$0xff]
    %v48 = vld [vmem:[%s1 + $0x98] sm:$0xff]
    %v49 = vld [vmem:[%s1 + $0xa0] sm:$0xff]
    %v50 = vld [vmem:[%s1 + $0xa8] sm:$0xff]
    %v51 = vld [vmem:[%s1 + $0xb0] sm:$0xff]
    %v52 = vld [vmem:[%s1 + $0xb8] sm:$0xff]
    %v53 = vld [vmem:[%s1 + $0xc0] sm:$0xff]
    %v54 = vld [vmem:[%s1 + $0xc8] sm:$0xff]
    %v55 = vld [vmem:[%s1 + $0xd0] sm:$0xff]
    %v56 = vld [vmem:[%s1 + $0xd8] sm:$0xff]
    %v57 = vld [vmem:[%s1 + $0xe0] sm:$0xff]
    %v58 = vld [vmem:[%s1 + $0xe8] sm:$0xff]
    %v59 = vld [vmem:[%s1 + $0xf0] sm:$0xff]
    %v60 = vld [vmem:[%s1 + $0xf8] sm:$0xff]
    %v61 = vld [vmem:[%s2] sm:$0x3]
    %v63 = vlaneseq
    %v64 = vshrl.u32 %v63, 7
    %v65 = vsub.s32 0, %v64
    %v66 = vrot.slane %v61, %v65
    %v67 = vlaneseq
    %v68 = vshrl.u32 %v67, 7
    %v69 = vsub.s32 1, %v68
    %v70 = vrot.slane %v61, %v69
    %v75 = vunpack.c.l.s4 1966171168
    %v76 = vunpack.c.0.s8 %v75
    %v77 = vlaneseq
    %v78 = vshrl.u32 %v77, 7
    %v79 = vsub.s32 %v76, %v78
    %v80 = vrot.slane %v28, %v79
    %v81 = vcombine.high %v80, %v80
    %v83 = vunpack.c.l.s4 1966171168
    %v84 = vunpack.c.0.s8 %v83
    %v85 = vlaneseq
    %v86 = vshrl.u32 %v85, 7
    %v87 = vsub.s32 %v84, %v86
    %v88 = vrot.slane %v80, %v87
    %v90 = vunpack.c.l.s4 1966171168
    %v91 = vunpack.c.0.s8 %v90
    %v92 = vlaneseq
    %v93 = vshrl.u32 %v92, 7
    %v94 = vsub.s32 %v91, %v93
    %v95 = vrot.slane %v81, %v94
    %v130 = vunpack.c.l.b16 %v29
    %v131 = vunpack.c.h.b16 %v29
    %v132 = vunpack.c.l.b16 %v30
    %v133 = vunpack.c.h.b16 %v30
    %v134 = vunpack.c.l.b16 %v31
    %v135 = vunpack.c.h.b16 %v31
    %v136 = vunpack.c.l.b16 %v32
    %v137 = vunpack.c.h.b16 %v32
    %v138 = vunpack.c.l.b16 %v33
    %v139 = vunpack.c.h.b16 %v33
    %v140 = vunpack.c.l.b16 %v34
    %v141 = vunpack.c.h.b16 %v34
    %v142 = vunpack.c.l.b16 %v35
    %v143 = vunpack.c.h.b16 %v35
    %v144 = vunpack.c.l.b16 %v36
    %v145 = vunpack.c.h.b16 %v36
    %v146 = vunpack.c.l.b16 %v37
    %v147 = vunpack.c.h.b16 %v37
    %v148 = vunpack.c.l.b16 %v38
    %v149 = vunpack.c.h.b16 %v38
    %v150 = vunpack.c.l.b16 %v39
    %v151 = vunpack.c.h.b16 %v39
    %v152 = vunpack.c.l.b16 %v40
    %v153 = vunpack.c.h.b16 %v40
    %v154 = vunpack.c.l.b16 %v41
    %v155 = vunpack.c.h.b16 %v41
    %v156 = vunpack.c.l.b16 %v42
    %v157 = vunpack.c.h.b16 %v42
    %v158 = vunpack.c.l.b16 %v43
    %v159 = vunpack.c.h.b16 %v43
    %v160 = vunpack.c.l.b16 %v44
    %v161 = vunpack.c.h.b16 %v44
    %v162 = vunpack.c.l.b16 %v45
    %v163 = vunpack.c.h.b16 %v45
    %v164 = vunpack.c.l.b16 %v46
    %v165 = vunpack.c.h.b16 %v46
    %v166 = vunpack.c.l.b16 %v47
    %v167 = vunpack.c.h.b16 %v47
    %v168 = vunpack.c.l.b16 %v48
    %v169 = vunpack.c.h.b16 %v48
    %v170 = vunpack.c.l.b16 %v49
    %v171 = vunpack.c.h.b16 %v49
    %v172 = vunpack.c.l.b16 %v50
    %v173 = vunpack.c.h.b16 %v50
    %v174 = vunpack.c.l.b16 %v51
    %v175 = vunpack.c.h.b16 %v51
    %v176 = vunpack.c.l.b16 %v52
    %v177 = vunpack.c.h.b16 %v52
    %v178 = vunpack.c.l.b16 %v53
    %v179 = vunpack.c.h.b16 %v53
    %v180 = vunpack.c.l.b16 %v54
    %v181 = vunpack.c.h.b16 %v54
    %v182 = vunpack.c.l.b16 %v55
    %v183 = vunpack.c.h.b16 %v55
    %v184 = vunpack.c.l.b16 %v56
    %v185 = vunpack.c.h.b16 %v56
    %v186 = vunpack.c.l.b16 %v57
    %v187 = vunpack.c.h.b16 %v57
    %v188 = vunpack.c.l.b16 %v58
    %v189 = vunpack.c.h.b16 %v58
    %v190 = vunpack.c.l.b16 %v59
    %v191 = vunpack.c.h.b16 %v59
    %v192 = vunpack.c.l.b16 %v60
    %v193 = vunpack.c.h.b16 %v60
    %v194 = vpack.c.b16 %v132, %v130
    %v195 = vpack.c.b16 %v133, %v131
    %v196 = vpack.c.b16 %v136, %v134
    %v197 = vpack.c.b16 %v137, %v135
    %v198 = vpack.c.b16 %v140, %v138
    %v199 = vpack.c.b16 %v141, %v139
    %v200 = vpack.c.b16 %v144, %v142
    %v201 = vpack.c.b16 %v145, %v143
    %v202 = vpack.c.b16 %v148, %v146
    %v203 = vpack.c.b16 %v149, %v147
    %v204 = vpack.c.b16 %v152, %v150
    %v205 = vpack.c.b16 %v153, %v151
    %v206 = vpack.c.b16 %v156, %v154
    %v207 = vpack.c.b16 %v157, %v155
    %v208 = vpack.c.b16 %v160, %v158
    %v209 = vpack.c.b16 %v161, %v159
    %v210 = vpack.c.b16 %v164, %v162
    %v211 = vpack.c.b16 %v165, %v163
    %v212 = vpack.c.b16 %v168, %v166
    %v213 = vpack.c.b16 %v169, %v167
    %v214 = vpack.c.b16 %v172, %v170
    %v215 = vpack.c.b16 %v173, %v171
    %v216 = vpack.c.b16 %v176, %v174
    %v217 = vpack.c.b16 %v177, %v175
    %v218 = vpack.c.b16 %v180, %v178
    %v219 = vpack.c.b16 %v181, %v179
    %v220 = vpack.c.b16 %v184, %v182
    %v221 = vpack.c.b16 %v185, %v183
    %v222 = vpack.c.b16 %v188, %v186
    %v223 = vpack.c.b16 %v189, %v187
    %v224 = vpack.c.b16 %v192, %v190
    %v225 = vpack.c.b16 %v193, %v191
    %258 = vmatprep.subr.bf16.mxu0 %v195
    %259 = vmatpush1.bf16.msra.mxu0 %v194
    %260 = vmatprep.subr.bf16.mxu0 %v197
    %261 = vmatpush1.bf16.msra.mxu0 %v196
    %262 = vmatprep.subr.bf16.mxu0 %v199
    %263 = vmatpush1.bf16.msra.mxu0 %v198
    %264 = vmatprep.subr.bf16.mxu0 %v201
    %265 = vmatpush1.bf16.msra.mxu0 %v200
    %266 = vmatprep.subr.bf16.mxu0 %v203
    %267 = vmatpush1.bf16.msra.mxu0 %v202
    %268 = vmatprep.subr.bf16.mxu0 %v205
    %269 = vmatpush1.bf16.msra.mxu0 %v204
    %270 = vmatprep.subr.bf16.mxu0 %v207
    %271 = vmatpush1.bf16.msra.mxu0 %v206
    %272 = vmatprep.subr.bf16.mxu0 %v209
    %273 = vmatpush1.bf16.msra.mxu0 %v208
    %274 = vmatprep.subr.bf16.mxu0 %v211
    %275 = vmatpush1.bf16.msra.mxu0 %v210
    %276 = vmatprep.subr.bf16.mxu0 %v213
    %277 = vmatpush1.bf16.msra.mxu0 %v212
    %278 = vmatprep.subr.bf16.mxu0 %v215
    %279 = vmatpush1.bf16.msra.mxu0 %v214
    %280 = vmatprep.subr.bf16.mxu0 %v217
    %281 = vmatpush1.bf16.msra.mxu0 %v216
    %282 = vmatprep.subr.bf16.mxu0 %v219
    %283 = vmatpush1.bf16.msra.mxu0 %v218
    %284 = vmatprep.subr.bf16.mxu0 %v221
    %285 = vmatpush1.bf16.msra.mxu0 %v220
    %286 = vmatprep.subr.bf16.mxu0 %v223
    %287 = vmatpush1.bf16.msra.mxu0 %v222
    %288 = vmatprep.subr.bf16.mxu0 %v225
    %289 = vmatpush1.bf16.msra.mxu0 %v224
    %290 = vmatprep.mubr.bf16.mxu0 %v95
    %291 = vmatmul.mubr.bf16.gmra.mrb[0].mxu0 %v88
    %v292 = vpop.f32.mrb[0].mxu0
    %v293 = vadd.f32 %v66, %v292
    %v294 = vpop.f32.mrb[0].mxu0
    %v295 = vadd.f32 %v70, %v294
    %v296 = vpop.f32.mrb[0].mxu0
    %v297 = vpop.f32.mrb[0].mxu0
    %298 = vdwg.mxu0
    %v299 = vmax.f32 %v293, 0.0
    %v300 = vmax.f32 %v295, 0.0
    %v301 = vpack.c.bf16 %v299, %v299
    %v302 = vpack.c.bf16 %v300, %v300
    %v303 = vld [vmem:[%s3] sm:$0xf]
    %v304 = vld [vmem:[%s3 + $0x4] sm:$0xf]
    %v305 = vld [vmem:[%s3 + $0x8] sm:$0xf]
    %v306 = vld [vmem:[%s3 + $0xc] sm:$0xf]
    %v307 = vld [vmem:[%s3 + $0x10] sm:$0xf]
    %v308 = vld [vmem:[%s3 + $0x14] sm:$0xf]
    %v309 = vld [vmem:[%s3 + $0x18] sm:$0xf]
    %v310 = vld [vmem:[%s3 + $0x1c] sm:$0xf]
    %v311 = vld [vmem:[%s3 + $0x20] sm:$0xf]
    %v312 = vld [vmem:[%s3 + $0x24] sm:$0xf]
    %v313 = vld [vmem:[%s3 + $0x28] sm:$0xf]
    %v314 = vld [vmem:[%s3 + $0x2c] sm:$0xf]
    %v315 = vld [vmem:[%s3 + $0x30] sm:$0xf]
    %v316 = vld [vmem:[%s3 + $0x34] sm:$0xf]
    %v317 = vld [vmem:[%s3 + $0x38] sm:$0xf]
    %v318 = vld [vmem:[%s3 + $0x3c] sm:$0xf]
    %v319 = vld [vmem:[%s3 + $0x40] sm:$0xf]
    %v320 = vld [vmem:[%s3 + $0x44] sm:$0xf]
    %v321 = vld [vmem:[%s3 + $0x48] sm:$0xf]
    %v322 = vld [vmem:[%s3 + $0x4c] sm:$0xf]
    %v323 = vld [vmem:[%s3 + $0x50] sm:$0xf]
    %v324 = vld [vmem:[%s3 + $0x54] sm:$0xf]
    %v325 = vld [vmem:[%s3 + $0x58] sm:$0xf]
    %v326 = vld [vmem:[%s3 + $0x5c] sm:$0xf]
    %v327 = vld [vmem:[%s3 + $0x60] sm:$0xf]
    %v328 = vld [vmem:[%s3 + $0x64] sm:$0xf]
    %v329 = vld [vmem:[%s3 + $0x68] sm:$0xf]
    %v330 = vld [vmem:[%s3 + $0x6c] sm:$0xf]
    %v331 = vld [vmem:[%s3 + $0x70] sm:$0xf]
    %v332 = vld [vmem:[%s3 + $0x74] sm:$0xf]
    %v333 = vld [vmem:[%s3 + $0x78] sm:$0xf]
    %v334 = vld [vmem:[%s3 + $0x7c] sm:$0xf]
    %v335 = vld [vmem:[%s4] sm:$0x1]
    %v337 = vlaneseq
    %v338 = vshrl.u32 %v337, 7
    %v339 = vsub.s32 0, %v338
    %v340 = vrot.slane %v335, %v339
    %v374 = vunpack.c.l.b16 %v303
    %v375 = vunpack.c.l.b16 %v304
    %v376 = vunpack.c.l.b16 %v305
    %v377 = vunpack.c.l.b16 %v306
    %v378 = vunpack.c.l.b16 %v307
    %v379 = vunpack.c.l.b16 %v308
    %v380 = vunpack.c.l.b16 %v309
    %v381 = vunpack.c.l.b16 %v310
    %v382 = vunpack.c.l.b16 %v311
    %v383 = vunpack.c.l.b16 %v312
    %v384 = vunpack.c.l.b16 %v313
    %v385 = vunpack.c.l.b16 %v314
    %v386 = vunpack.c.l.b16 %v315
    %v387 = vunpack.c.l.b16 %v316
    %v388 = vunpack.c.l.b16 %v317
    %v389 = vunpack.c.l.b16 %v318
    %v390 = vunpack.c.l.b16 %v319
    %v391 = vunpack.c.l.b16 %v320
    %v392 = vunpack.c.l.b16 %v321
    %v393 = vunpack.c.l.b16 %v322
    %v394 = vunpack.c.l.b16 %v323
    %v395 = vunpack.c.l.b16 %v324
    %v396 = vunpack.c.l.b16 %v325
    %v397 = vunpack.c.l.b16 %v326
    %v398 = vunpack.c.l.b16 %v327
    %v399 = vunpack.c.l.b16 %v328
    %v400 = vunpack.c.l.b16 %v329
    %v401 = vunpack.c.l.b16 %v330
    %v402 = vunpack.c.l.b16 %v331
    %v403 = vunpack.c.l.b16 %v332
    %v404 = vunpack.c.l.b16 %v333
    %v405 = vunpack.c.l.b16 %v334
    %v406 = vpack.c.b16 %v375, %v374
    %v407 = vpack.c.b16 %v377, %v376
    %v408 = vpack.c.b16 %v379, %v378
    %v409 = vpack.c.b16 %v381, %v380
    %v410 = vpack.c.b16 %v383, %v382
    %v411 = vpack.c.b16 %v385, %v384
    %v412 = vpack.c.b16 %v387, %v386
    %v413 = vpack.c.b16 %v389, %v388
    %v414 = vpack.c.b16 %v391, %v390
    %v415 = vpack.c.b16 %v393, %v392
    %v416 = vpack.c.b16 %v395, %v394
    %v417 = vpack.c.b16 %v397, %v396
    %v418 = vpack.c.b16 %v399, %v398
    %v419 = vpack.c.b16 %v401, %v400
    %v420 = vpack.c.b16 %v403, %v402
    %v421 = vpack.c.b16 %v405, %v404
    %438 = vmatprep.subr.bf16.mxu0 0
    %439 = vmatpush1.bf16.msra.mxu0 %v406
    %440 = vmatprep.subr.bf16.mxu0 0
    %441 = vmatpush1.bf16.msra.mxu0 %v407
    %442 = vmatprep.subr.bf16.mxu0 0
    %443 = vmatpush1.bf16.msra.mxu0 %v408
    %444 = vmatprep.subr.bf16.mxu0 0
    %445 = vmatpush1.bf16.msra.mxu0 %v409
    %446 = vmatprep.subr.bf16.mxu0 0
    %447 = vmatpush1.bf16.msra.mxu0 %v410
    %448 = vmatprep.subr.bf16.mxu0 0
    %449 = vmatpush1.bf16.msra.mxu0 %v411
    %450 = vmatprep.subr.bf16.mxu0 0
    %451 = vmatpush1.bf16.msra.mxu0 %v412
    %452 = vmatprep.subr.bf16.mxu0 0
    %453 = vmatpush1.bf16.msra.mxu0 %v413
    %454 = vmatprep.subr.bf16.mxu0 0
    %455 = vmatpush1.bf16.msra.mxu0 %v414
    %456 = vmatprep.subr.bf16.mxu0 0
    %457 = vmatpush1.bf16.msra.mxu0 %v415
    %458 = vmatprep.subr.bf16.mxu0 0
    %459 = vmatpush1.bf16.msra.mxu0 %v416
    %460 = vmatprep.subr.bf16.mxu0 0
    %461 = vmatpush1.bf16.msra.mxu0 %v417
    %462 = vmatprep.subr.bf16.mxu0 0
    %463 = vmatpush1.bf16.msra.mxu0 %v418
    %464 = vmatprep.subr.bf16.mxu0 0
    %465 = vmatpush1.bf16.msra.mxu0 %v419
    %466 = vmatprep.subr.bf16.mxu0 0
    %467 = vmatpush1.bf16.msra.mxu0 %v420
    %468 = vmatprep.subr.bf16.mxu0 0
    %469 = vmatpush1.bf16.msra.mxu0 %v421
    %470 = vmatprep.mubr.bf16.mxu0 %v302
    %471 = vmatmul.mubr.bf16.gmra.mrb[0].mxu0 %v301
    %v472 = vpop.f32.mrb[0].mxu0
    %v473 = vadd.f32 %v340, %v472
    %v474 = vpop.f32.mrb[0].mxu0
    %v475 = vpop.f32.mrb[0].mxu0
    %v476 = vpop.f32.mrb[0].mxu0
    %477 = vdwg.mxu0
    %v478 = vmax.f32 %v473, 0.0
    %v479 = vpack.c.bf16 %v478, %v478
    %v480 = vld [vmem:[%s5] sm:$0xf]
    %v481 = vld [vmem:[%s5 + $0x4] sm:$0xf]
    %v482 = vld [vmem:[%s5 + $0x8] sm:$0xf]
    %v483 = vld [vmem:[%s5 + $0xc] sm:$0xf]
    %v484 = vld [vmem:[%s5 + $0x10] sm:$0xf]
    %v485 = vld [vmem:[%s5 + $0x14] sm:$0xf]
    %v486 = vld [vmem:[%s5 + $0x18] sm:$0xf]
    %v487 = vld [vmem:[%s5 + $0x1c] sm:$0xf]
    %v488 = vld [vmem:[%s6] sm:$0x1]
    %v490 = vlaneseq
    %v491 = vshrl.u32 %v490, 7
    %v492 = vsub.s32 0, %v491
    %v493 = vrot.slane %v488, %v492
    %v503 = vunpack.c.l.b16 %v480
    %v504 = vunpack.c.l.b16 %v481
    %v505 = vunpack.c.l.b16 %v482
    %v506 = vunpack.c.l.b16 %v483
    %v507 = vunpack.c.l.b16 %v484
    %v508 = vunpack.c.l.b16 %v485
    %v509 = vunpack.c.l.b16 %v486
    %v510 = vunpack.c.l.b16 %v487
    %v511 = vpack.c.b16 %v504, %v503
    %v512 = vpack.c.b16 %v506, %v505
    %v513 = vpack.c.b16 %v508, %v507
    %v514 = vpack.c.b16 %v510, %v509
    %vm519 = vcmask 523264
    %v521 = vsel %vm519, %v479, 0
    %523 = vmatprep.subr.bf16.mxu0 0
    %524 = vmatpush1.bf16.msra.mxu0 %v511
    %525 = vmatprep.subr.bf16.mxu0 0
    %526 = vmatpush1.bf16.msra.mxu0 %v512
    %527 = vmatprep.subr.bf16.mxu0 0
    %528 = vmatpush1.bf16.msra.mxu0 %v513
    %529 = vmatprep.subr.bf16.mxu0 0
    %530 = vmatpush1.bf16.msra.mxu0 %v514
    %531 = vmatprep.subr.bf16.mxu0 0
    %532 = vmatpush1.bf16.msra.mxu0 0
    %533 = vmatprep.subr.bf16.mxu0 0
    %534 = vmatpush1.bf16.msra.mxu0 0
    %535 = vmatprep.subr.bf16.mxu0 0
    %536 = vmatpush1.bf16.msra.mxu0 0
    %537 = vmatprep.subr.bf16.mxu0 0
    %538 = vmatpush1.bf16.msra.mxu0 0
    %539 = vmatprep.subr.bf16.mxu0 0
    %540 = vmatpush1.bf16.msra.mxu0 0
    %541 = vmatprep.subr.bf16.mxu0 0
    %542 = vmatpush1.bf16.msra.mxu0 0
    %543 = vmatprep.subr.bf16.mxu0 0
    %544 = vmatpush1.bf16.msra.mxu0 0
    %545 = vmatprep.subr.bf16.mxu0 0
    %546 = vmatpush1.bf16.msra.mxu0 0
    %547 = vmatprep.subr.bf16.mxu0 0
    %548 = vmatpush1.bf16.msra.mxu0 0
    %549 = vmatprep.subr.bf16.mxu0 0
    %550 = vmatpush1.bf16.msra.mxu0 0
    %551 = vmatprep.subr.bf16.mxu0 0
    %552 = vmatpush1.bf16.msra.mxu0 0
    %553 = vmatprep.subr.bf16.mxu0 0
    %554 = vmatpush1.bf16.msra.mxu0 0
    %555 = vmatprep.mubr.bf16.mxu0 0
    %556 = vmatmul.mubr.bf16.gmra.mrb[0].mxu0 %v521
    %v557 = vpop.f32.mrb[0].mxu0
    %v558 = vadd.f32 %v493, %v557
    %v559 = vpop.f32.mrb[0].mxu0
    %v560 = vpop.f32.mrb[0].mxu0
    %v561 = vpop.f32.mrb[0].mxu0
    %562 = vdwg.mxu0
    %v563 = vmax.f32 %v558, 0.0
    %vm564 = vcmask 74752
    %v565 = vsel %vm564, %v563, -inf
    %566 = vmax.xlane.f32.xlu0 %v565
    %v567 = vpop.xlane.xlu0 %566
    %v568 = vsub.f32 %v563, %v567
    %v569 = vmul.f32 %v568, 1.442695
    %v570 = vpow.pop %v569
    %v571 = vsel %vm564, %v570, 0.0
    %572 = vadd.xlane.f32.xlu0 %v571
    %v573 = vpop.xlane.xlu0 %572
    %v574 = vrcp.pop %v573
    %v575 = vmul.f32 %v570, %v574
    %576 = vst.msk [vmem:[#allocation2] sm:$0x3] %vm564, %v575
    // Predicated region
    $region30: #{conv_forward.5} parent=1 // pred_check
      _
    $region31: #{conv_forward.5} parent=1 // pred_check_branch
      %578 = sbr.rel (0) target = $region33
    $region32: #{conv_forward.5} parent=1 // pred_region
      %s580 = ssub.s32 32, 32
      %581 = vsyncadd [#allocation3], %s580
      %s583 = sshll.u32 [#allocation2], 4
      %s584 = int_to_ptr.vmem [resolvable:$true] %s583
      %586 = dma.vmem_to_hbm [thread:$0]  %s584, 32, %s7, [#allocation3]
    $region33: #{conv_forward.5} parent=1 // pred_fallthru
      _
    // Predicated region
    $region34: #{conv_forward.5} parent=1 // pred_check
      _
    $region35: #{conv_forward.5} parent=1 // pred_check_branch
      %588 = sbr.rel (0) target = $region37
    $region36: #{conv_forward.5} parent=1 // pred_region
      %589 = dma.done [#allocation3], 32
    $region37: #{conv_forward.5} parent=1 // pred_fallthru
      _
    %590 = vsyncpa [#allocation3], 1

</llo_original>
